<compile_context>
chip_gen: v6e
topology: v6e:2x2x1
jax: 0.10.0
libtpu: 0.0.40
codegen_flags: <defaults>
</compile_context>

<pallas_src>
import numpy as np
import jax
import jax.numpy as jnp
from jax.experimental import pallas as pl
from jax.experimental.pallas import tpu as pltpu

# ------------------------- tiny T5 config (synthetic) -------------------------
VOCAB = 64
VPAD = 128           # vocab padded to 128 lanes for a dense logits store
D_MODEL = 32
D_KV = 8
N_HEADS = 4
INNER = N_HEADS * D_KV          # 32
D_FF = 64
N_LAYERS = 2
REL_BUCKETS = 32
REL_MAX_DIST = 128
LN_EPS = 1e-6
DEC_START_ID = 0     # T5 decoder_start_token_id
PAD_ID = 0           # T5 pad_token_id
IGNORE_INDEX = -100
NEG_INF = -1e9


# --------------------------- in-kernel building blocks ---------------------------
def _rms(x, w):
    """T5 RMSNorm in f32. x (S, D), w (1, D)."""
    var = jnp.mean(x * x, axis=-1, keepdims=True)
    return x * jax.lax.rsqrt(var + LN_EPS) * w


def _attn_core(q, k, v, wo, bias_list):
    """Multi-head attention + O-projection, fully in-register.

    q (Sq, H*dk), k/v (Sk, H*dk), wo (H*dk, D), bias_list: list of H (Sq, Sk) or None.
    Heads are static lane slices; per-head context is accumulated directly into the
    O-projection (concat_h ctx_h @ Wo == sum_h ctx_h @ Wo[h*dk:(h+1)*dk]).
    T5 attention has NO 1/sqrt(d) scaling; bias carries rel-pos (+ causal) terms.
    """
    out = None
    for h in range(N_HEADS):
        sl = slice(h * D_KV, (h + 1) * D_KV)
        qh, kh, vh = q[:, sl], k[:, sl], v[:, sl]
        s = jnp.dot(qh, kh.T, preferred_element_type=jnp.float32)
        if bias_list is not None:
            s = s + bias_list[h]
        s = s - jnp.max(s, axis=-1, keepdims=True)
        p = jnp.exp(s)
        p = p * pl.reciprocal(jnp.sum(p, axis=-1, keepdims=True), approx=True)
        ctx = jnp.dot(p, vh, preferred_element_type=jnp.float32)
        contrib = jnp.dot(ctx, wo[sl, :], preferred_element_type=jnp.float32)
        out = contrib if out is None else out + contrib
    return out  # (Sq, D)


# ------------------------------ fused encoder kernel ------------------------------
def _encoder_kernel(x_ref, bias_ref, ln1_ref, wqkv_ref, wo_ref, ln2_ref,
                    wi_ref, wo_ff_ref, fln_ref, out_ref):
    h = x_ref[0].astype(jnp.float32)                        # (Se, D)
    bias = [bias_ref[hh] for hh in range(N_HEADS)]          # H x (Se, Se)
    for l in range(N_LAYERS):
        # self-attention block
        xn = _rms(h, ln1_ref[l])
        qkv = jnp.dot(xn, wqkv_ref[l], preferred_element_type=jnp.float32)   # (Se, 3*INNER)
        h = h + _attn_core(qkv[:, :INNER], qkv[:, INNER:2 * INNER],
                           qkv[:, 2 * INNER:], wo_ref[l], bias)
        # FFN block (ReLU DenseActDense)
        xn = _rms(h, ln2_ref[l])
        ff = jnp.maximum(jnp.dot(xn, wi_ref[l], preferred_element_type=jnp.float32), 0.0)
        h = h + jnp.dot(ff, wo_ff_ref[l], preferred_element_type=jnp.float32)
    out_ref[0] = _rms(h, fln_ref[...])


# ------------------- fused decoder + LM head + cross-entropy kernel -------------------
def _decoder_kernel(x_ref, enc_ref, bias_ref, labels_ref,
                    ln1_ref, wqkv_ref, wo_self_ref,
                    ln2_ref, wq_ref, wkv_ref, wo_cross_ref,
                    ln3_ref, wi_ref, wo_ff_ref,
                    fln_ref, embt_ref,
                    logits_ref, nll_ref):
    h = x_ref[0].astype(jnp.float32)                        # (Sd, D)
    enc = enc_ref[0].astype(jnp.float32)                    # (Se, D)
    bias = [bias_ref[hh] for hh in range(N_HEADS)]          # H x (Sd, Sd): rel-pos + causal
    for l in range(N_LAYERS):
        # causal self-attention
        xn = _rms(h, ln1_ref[l])
        qkv = jnp.dot(xn, wqkv_ref[l], preferred_element_type=jnp.float32)
        h = h + _attn_core(qkv[:, :INNER], qkv[:, INNER:2 * INNER],
                           qkv[:, 2 * INNER:], wo_self_ref[l], bias)
        # cross-attention (K/V from encoder output; no rel-pos bias, no padding mask)
        xn = _rms(h, ln2_ref[l])
        q = jnp.dot(xn, wq_ref[l], preferred_element_type=jnp.float32)
        kv = jnp.dot(enc, wkv_ref[l], preferred_element_type=jnp.float32)
        h = h + _attn_core(q, kv[:, :INNER], kv[:, INNER:], wo_cross_ref[l], None)
        # FFN block
        xn = _rms(h, ln3_ref[l])
        ff = jnp.maximum(jnp.dot(xn, wi_ref[l], preferred_element_type=jnp.float32), 0.0)
        h = h + jnp.dot(ff, wo_ff_ref[l], preferred_element_type=jnp.float32)

    # LM head: final RMSNorm; d_model**-0.5 rescale is folded into embt_ref (tied weights).
    hn = _rms(h, fln_ref[...])                              # (Sd, D)
    logits = jnp.dot(hn, embt_ref[...], preferred_element_type=jnp.float32)  # (Sd, VPAD)
    logits_ref[0] = logits                                  # lane-dense (128) store

    # per-token cross-entropy with ignore_index (pad columns masked out)
    labels = labels_ref[0]                                  # (Sd, 1) int32
    col = jax.lax.broadcasted_iota(jnp.int32, logits.shape, 1)
    masked = jnp.where(col < VOCAB, logits, NEG_INF)
    m = jnp.max(masked, axis=-1, keepdims=True)
    lse = jnp.log(jnp.sum(jnp.exp(masked - m), axis=-1, keepdims=True)) + m
    tgt = jnp.sum(jnp.where(col == labels, logits, 0.0), axis=-1, keepdims=True)
    valid = (labels != IGNORE_INDEX).astype(jnp.float32)
    nll_ref[0] = (lse - tgt) * valid


# ------------------------------ BlockSpec helpers ------------------------------
def _full_spec(shape):
    """Whole array as one block, resident across the batch grid."""
    return pl.BlockSpec(tuple(shape), lambda b: (0,) * len(shape))


def _batch_spec(shape):
    """Per-batch block (1, ...) indexed by the grid position."""
    return pl.BlockSpec((1,) + tuple(shape[1:]),
                        lambda b: (b,) + (0,) * (len(shape) - 1))


# ------------------------------ pallas_call wrappers ------------------------------
def run_encoder(params, inputs_embeds, enc_bias):
    B, Se, _ = inputs_embeds.shape
    return pl.pallas_call(
        _encoder_kernel,
        out_shape=jax.ShapeDtypeStruct((B, Se, D_MODEL), jnp.float32),
        grid=(B,),
        in_specs=[
            _batch_spec((B, Se, D_MODEL)),
            _full_spec((N_HEADS, Se, Se)),
            _full_spec((N_LAYERS, 1, D_MODEL)),
            _full_spec((N_LAYERS, D_MODEL, 3 * INNER)),
            _full_spec((N_LAYERS, INNER, D_MODEL)),
            _full_spec((N_LAYERS, 1, D_MODEL)),
            _full_spec((N_LAYERS, D_MODEL, D_FF)),
            _full_spec((N_LAYERS, D_FF, D_MODEL)),
            _full_spec((1, D_MODEL)),
        ],
        out_specs=_batch_spec((B, Se, D_MODEL)),
        compiler_params=pltpu.CompilerParams(dimension_semantics=("parallel",)),
    )(inputs_embeds.astype(jnp.float32), enc_bias,
      params['enc_ln1'], params['enc_wqkv'], params['enc_wo'],
      params['enc_ln2'], params['enc_wi'], params['enc_wo_ff'],
      params['enc_final_ln'])


def run_decoder(params, dec_emb, enc_out, dec_bias, labels_col, embt_pad):
    B, Sd, _ = dec_emb.shape
    Se = enc_out.shape[1]
    return pl.pallas_call(
        _decoder_kernel,
        out_shape=(jax.ShapeDtypeStruct((B, Sd, VPAD), jnp.float32),
                   jax.ShapeDtypeStruct((B, Sd, 1), jnp.float32)),
        grid=(B,),
        in_specs=[
            _batch_spec((B, Sd, D_MODEL)),
            _batch_spec((B, Se, D_MODEL)),
            _full_spec((N_HEADS, Sd, Sd)),
            _batch_spec((B, Sd, 1)),
            _full_spec((N_LAYERS, 1, D_MODEL)),
            _full_spec((N_LAYERS, D_MODEL, 3 * INNER)),
            _full_spec((N_LAYERS, INNER, D_MODEL)),
            _full_spec((N_LAYERS, 1, D_MODEL)),
            _full_spec((N_LAYERS, D_MODEL, INNER)),
            _full_spec((N_LAYERS, D_MODEL, 2 * INNER)),
            _full_spec((N_LAYERS, INNER, D_MODEL)),
            _full_spec((N_LAYERS, 1, D_MODEL)),
            _full_spec((N_LAYERS, D_MODEL, D_FF)),
            _full_spec((N_LAYERS, D_FF, D_MODEL)),
            _full_spec((1, D_MODEL)),
            _full_spec((D_MODEL, VPAD)),
        ],
        out_specs=(_batch_spec((B, Sd, VPAD)), _batch_spec((B, Sd, 1))),
        compiler_params=pltpu.CompilerParams(dimension_semantics=("parallel",)),
    )(dec_emb, enc_out, dec_bias, labels_col,
      params['dec_ln1'], params['dec_wqkv_self'], params['dec_wo_self'],
      params['dec_ln2'], params['dec_wq_cross'], params['dec_wkv_cross'],
      params['dec_wo_cross'], params['dec_ln3'], params['dec_wi'],
      params['dec_wo_ff'], params['dec_final_ln'], embt_pad)


# ------------------------------ plain-JAX glue ------------------------------
def _relative_position_bucket(rel_pos, bidirectional, num_buckets, max_distance):
    ret = jnp.zeros_like(rel_pos)
    if bidirectional:
        num_buckets //= 2
        ret = ret + (rel_pos > 0).astype(jnp.int32) * num_buckets
        rel_pos = jnp.abs(rel_pos)
    else:
        rel_pos = -jnp.minimum(rel_pos, 0)
    max_exact = num_buckets // 2
    is_small = rel_pos < max_exact
    rel_if_large = max_exact + (
        jnp.log(jnp.maximum(rel_pos, 1).astype(jnp.float32) / max_exact)
        / np.log(max_distance / max_exact)
        * (num_buckets - max_exact)
    ).astype(jnp.int32)
    rel_if_large = jnp.minimum(rel_if_large, num_buckets - 1)
    return ret + jnp.where(is_small, rel_pos, rel_if_large)


def compute_bias(rel_emb, q_len, k_len, bidirectional):
    ctx = jnp.arange(q_len, dtype=jnp.int32)[:, None]
    mem = jnp.arange(k_len, dtype=jnp.int32)[None, :]
    buckets = _relative_position_bucket(mem - ctx, bidirectional, REL_BUCKETS, REL_MAX_DIST)
    values = rel_emb[buckets]                               # (q, k, H)
    return jnp.transpose(values, (2, 0, 1))                 # (H, q, k)


def clip_dsi_decoder_forward(params, inputs_embeds, labels):
    B, Se, _ = inputs_embeds.shape
    Sd = labels.shape[1]

    # relative-position / causal biases, kept as small (H, S, S) tables (no B-broadcast)
    enc_bias = compute_bias(params['enc_rel_bias'], Se, Se, bidirectional=True)
    causal = jnp.where(jnp.arange(Sd)[None, :] <= jnp.arange(Sd)[:, None], 0.0, NEG_INF)
    dec_bias = compute_bias(params['dec_rel_bias'], Sd, Sd, bidirectional=False) + causal[None]

    # ------------------------- fused encoder (one pallas_call) -------------------------
    enc_out = run_encoder(params, inputs_embeds, enc_bias)            # (B, Se, D)

    # ------------------ decoder inputs: T5 _shift_right + embedding gather ------------------
    dec_ids = jnp.concatenate(
        [jnp.full((B, 1), DEC_START_ID, labels.dtype), labels[:, :-1]], axis=1)
    dec_ids = jnp.where(dec_ids == IGNORE_INDEX, PAD_ID, dec_ids)
    dec_emb = params['embed'][dec_ids].astype(jnp.float32)            # (B, Sd, D)

    # tied-embedding LM head weight: fold d_model**-0.5 rescale into it, pad vocab to 128 lanes
    embt_pad = jnp.zeros((D_MODEL, VPAD), jnp.float32).at[:, :VOCAB].set(
        params['embed'].T * (D_MODEL ** -0.5))

    labels_col = labels.reshape(B, Sd, 1).astype(jnp.int32)

    # -------------- fused decoder + LM head + cross-entropy (one pallas_call) --------------
    logits_pad, nll = run_decoder(params, dec_emb, enc_out, dec_bias, labels_col, embt_pad)

    valid = (labels != IGNORE_INDEX).astype(jnp.float32)
    loss = jnp.sum(nll) / jnp.maximum(jnp.sum(valid), 1.0)            # mean over valid tokens
    return loss, logits_pad[..., :VOCAB]


# --------------------------- deterministic params ---------------------------
def init_params(key):
    keys = iter(jax.random.split(key, 64))

    def nrm(shape, scale=0.02):
        return jax.random.normal(next(keys), shape, jnp.float32) * scale

    return {
        'embed': nrm((VOCAB, D_MODEL)),
        'enc_rel_bias': nrm((REL_BUCKETS, N_HEADS)),
        'dec_rel_bias': nrm((REL_BUCKETS, N_HEADS)),
        # encoder layer stacks (leading dim = layer)
        'enc_ln1': jnp.ones((N_LAYERS, 1, D_MODEL), jnp.float32),
        'enc_wqkv': nrm((N_LAYERS, D_MODEL, 3 * INNER)),     # fused [Wq|Wk|Wv]
        'enc_wo': nrm((N_LAYERS, INNER, D_MODEL)),
        'enc_ln2': jnp.ones((N_LAYERS, 1, D_MODEL), jnp.float32),
        'enc_wi': nrm((N_LAYERS, D_MODEL, D_FF)),
        'enc_wo_ff': nrm((N_LAYERS, D_FF, D_MODEL)),
        'enc_final_ln': jnp.ones((1, D_MODEL), jnp.float32),
        # decoder layer stacks
        'dec_ln1': jnp.ones((N_LAYERS, 1, D_MODEL), jnp.float32),
        'dec_wqkv_self': nrm((N_LAYERS, D_MODEL, 3 * INNER)),
        'dec_wo_self': nrm((N_LAYERS, INNER, D_MODEL)),
        'dec_ln2': jnp.ones((N_LAYERS, 1, D_MODEL), jnp.float32),
        'dec_wq_cross': nrm((N_LAYERS, D_MODEL, INNER)),
        'dec_wkv_cross': nrm((N_LAYERS, D_MODEL, 2 * INNER)),  # fused [Wk|Wv]
        'dec_wo_cross': nrm((N_LAYERS, INNER, D_MODEL)),
        'dec_ln3': jnp.ones((N_LAYERS, 1, D_MODEL), jnp.float32),
        'dec_wi': nrm((N_LAYERS, D_MODEL, D_FF)),
        'dec_wo_ff': nrm((N_LAYERS, D_FF, D_MODEL)),
        'dec_final_ln': jnp.ones((1, D_MODEL), jnp.float32),
    }


if __name__ == "__main__":
    key = jax.random.PRNGKey(0)
    pkey, ekey, lkey = jax.random.split(key, 3)
    params = init_params(pkey)

    B, S_ENC, S_DEC = 2, 8, 8
    inputs_embeds = jax.random.normal(ekey, (B, S_ENC, D_MODEL), jnp.float32)
    labels = jax.random.randint(lkey, (B, S_DEC), 0, VOCAB, dtype=jnp.int32)
    labels = labels.at[0, -1].set(IGNORE_INDEX)   # exercise ignore_index=-100

    loss, logits = jax.jit(clip_dsi_decoder_forward)(params, inputs_embeds, labels)
    jax.block_until_ready((loss, logits))

    assert logits.shape == (B, S_DEC, VOCAB)
    assert bool(jnp.isfinite(loss))
    print("KERNEL_OK")
</pallas_src>

<mosaic_0001>
module attributes {stable_mosaic.version = 11 : i64} {
  func.func @_encoder_kernel(%arg0: i32, %arg1: memref<1x8x32xf32, #tpu.memory_space<vmem>>, %arg2: memref<4x8x8xf32, #tpu.memory_space<vmem>>, %arg3: memref<2x1x32xf32, #tpu.memory_space<vmem>>, %arg4: memref<2x32x96xf32, #tpu.memory_space<vmem>>, %arg5: memref<2x32x32xf32, #tpu.memory_space<vmem>>, %arg6: memref<2x1x32xf32, #tpu.memory_space<vmem>>, %arg7: memref<2x32x64xf32, #tpu.memory_space<vmem>>, %arg8: memref<2x64x32xf32, #tpu.memory_space<vmem>>, %arg9: memref<1x32xf32, #tpu.memory_space<vmem>>, %arg10: memref<1x8x32xf32, #tpu.memory_space<vmem>>) attributes {dimension_semantics = [#tpu.dimension_semantics<parallel>], iteration_bounds = array<i64: 2>, scalar_prefetch = 0 : i64, scratch_operands = 0 : i64, tpu.core_type = #tpu.core_type<tc>, window_params = [{transform_indices = @transform_0, window_bounds = array<i64: 1, 8, 32>}, {pipeline_mode = #tpu.pipeline_mode<synchronous>, transform_indices = @transform_1, window_bounds = array<i64: 4, 8, 8>}, {pipeline_mode = #tpu.pipeline_mode<synchronous>, transform_indices = @transform_2, window_bounds = array<i64: 2, 1, 32>}, {pipeline_mode = #tpu.pipeline_mode<synchronous>, transform_indices = @transform_3, window_bounds = array<i64: 2, 32, 96>}, {pipeline_mode = #tpu.pipeline_mode<synchronous>, transform_indices = @transform_4, window_bounds = array<i64: 2, 32, 32>}, {pipeline_mode = #tpu.pipeline_mode<synchronous>, transform_indices = @transform_5, window_bounds = array<i64: 2, 1, 32>}, {pipeline_mode = #tpu.pipeline_mode<synchronous>, transform_indices = @transform_6, window_bounds = array<i64: 2, 32, 64>}, {pipeline_mode = #tpu.pipeline_mode<synchronous>, transform_indices = @transform_7, window_bounds = array<i64: 2, 64, 32>}, {pipeline_mode = #tpu.pipeline_mode<synchronous>, transform_indices = @transform_8, window_bounds = array<i64: 1, 32>}, {transform_indices = @transform_9, window_bounds = array<i64: 1, 8, 32>}]} {
    %c0 = arith.constant 0 : index
    %c0_0 = arith.constant 0 : index
    %c0_1 = arith.constant 0 : index
    %0 = vector.load %arg1[%c0, %c0_0, %c0_1] : memref<1x8x32xf32, #tpu.memory_space<vmem>>, vector<1x8x32xf32>
    %1 = vector.shape_cast %0 : vector<1x8x32xf32> to vector<8x32xf32>
    %c0_2 = arith.constant 0 : index
    %c0_3 = arith.constant 0 : index
    %c0_4 = arith.constant 0 : index
    %2 = vector.load %arg2[%c0_2, %c0_3, %c0_4] : memref<4x8x8xf32, #tpu.memory_space<vmem>>, vector<1x8x8xf32>
    %3 = vector.shape_cast %2 : vector<1x8x8xf32> to vector<8x8xf32>
    %c1 = arith.constant 1 : index
    %c0_5 = arith.constant 0 : index
    %c0_6 = arith.constant 0 : index
    %4 = vector.load %arg2[%c1, %c0_5, %c0_6] : memref<4x8x8xf32, #tpu.memory_space<vmem>>, vector<1x8x8xf32>
    %5 = vector.shape_cast %4 : vector<1x8x8xf32> to vector<8x8xf32>
    %c2 = arith.constant 2 : index
    %c0_7 = arith.constant 0 : index
    %c0_8 = arith.constant 0 : index
    %6 = vector.load %arg2[%c2, %c0_7, %c0_8] : memref<4x8x8xf32, #tpu.memory_space<vmem>>, vector<1x8x8xf32>
    %7 = vector.shape_cast %6 : vector<1x8x8xf32> to vector<8x8xf32>
    %c3 = arith.constant 3 : index
    %c0_9 = arith.constant 0 : index
    %c0_10 = arith.constant 0 : index
    %8 = vector.load %arg2[%c3, %c0_9, %c0_10] : memref<4x8x8xf32, #tpu.memory_space<vmem>>, vector<1x8x8xf32>
    %9 = vector.shape_cast %8 : vector<1x8x8xf32> to vector<8x8xf32>
    %c0_11 = arith.constant 0 : index
    %c0_12 = arith.constant 0 : index
    %c0_13 = arith.constant 0 : index
    %10 = vector.load %arg3[%c0_11, %c0_12, %c0_13] : memref<2x1x32xf32, #tpu.memory_space<vmem>>, vector<1x1x32xf32>
    %11 = vector.shape_cast %10 : vector<1x1x32xf32> to vector<1x32xf32>
    %12 = arith.mulf %1, %1 : vector<8x32xf32>
    %cst = arith.constant dense<0.000000e+00> : vector<8xf32>
    %13 = vector.multi_reduction <add>, %12, %cst [1] : vector<8x32xf32> to vector<8xf32>
    %14 = vector.shape_cast %13 : vector<8xf32> to vector<8x1xf32>
    %cst_14 = arith.constant 3.200000e+01 : f32
    %15 = vector.broadcast %cst_14 : f32 to vector<8x1xf32>
    %16 = arith.divf %14, %15 : vector<8x1xf32>
    %cst_15 = arith.constant 9.99999997E-7 : f32
    %17 = vector.broadcast %cst_15 : f32 to vector<8x1xf32>
    %18 = arith.addf %16, %17 : vector<8x1xf32>
    %19 = math.rsqrt %18 : vector<8x1xf32>
    %20 = vector.broadcast %19 : vector<8x1xf32> to vector<8x32xf32>
    %21 = arith.mulf %1, %20 : vector<8x32xf32>
    %22 = vector.broadcast %11 : vector<1x32xf32> to vector<8x32xf32>
    %23 = arith.mulf %21, %22 : vector<8x32xf32>
    %c0_16 = arith.constant 0 : index
    %c0_17 = arith.constant 0 : index
    %c0_18 = arith.constant 0 : index
    %24 = vector.load %arg4[%c0_16, %c0_17, %c0_18] : memref<2x32x96xf32, #tpu.memory_space<vmem>>, vector<1x32x96xf32>
    %25 = vector.shape_cast %24 : vector<1x32x96xf32> to vector<32x96xf32>
    %cst_19 = arith.constant dense<0.000000e+00> : vector<8x96xf32>
    %26 = tpu.matmul %23, %25, %cst_19 {dimension_numbers = #tpu.dot_dimension_numbers<[1], [0], [0], [1], [0, 0, 1, 1], [], []>} : vector<8x32xf32>, vector<32x96xf32>, vector<8x96xf32> -> vector<8x96xf32>
    %27 = vector.extract_strided_slice %26 {offsets = [0, 0], sizes = [8, 32], strides = [1, 1]} : vector<8x96xf32> to vector<8x32xf32>
    %28 = vector.extract_strided_slice %26 {offsets = [0, 32], sizes = [8, 32], strides = [1, 1]} : vector<8x96xf32> to vector<8x32xf32>
    %29 = vector.extract_strided_slice %26 {offsets = [0, 64], sizes = [8, 32], strides = [1, 1]} : vector<8x96xf32> to vector<8x32xf32>
    %c0_20 = arith.constant 0 : index
    %c0_21 = arith.constant 0 : index
    %c0_22 = arith.constant 0 : index
    %30 = vector.load %arg5[%c0_20, %c0_21, %c0_22] : memref<2x32x32xf32, #tpu.memory_space<vmem>>, vector<1x32x32xf32>
    %31 = vector.shape_cast %30 : vector<1x32x32xf32> to vector<32x32xf32>
    %32 = vector.extract_strided_slice %27 {offsets = [0, 0], sizes = [8, 8], strides = [1, 1]} : vector<8x32xf32> to vector<8x8xf32>
    %33 = vector.extract_strided_slice %28 {offsets = [0, 0], sizes = [8, 8], strides = [1, 1]} : vector<8x32xf32> to vector<8x8xf32>
    %34 = vector.extract_strided_slice %29 {offsets = [0, 0], sizes = [8, 8], strides = [1, 1]} : vector<8x32xf32> to vector<8x8xf32>
    %35 = tpu.transpose %33, [1, 0] : vector<8x8xf32> -> vector<8x8xf32>
    %cst_23 = arith.constant dense<0.000000e+00> : vector<8x8xf32>
    %36 = tpu.matmul %32, %35, %cst_23 {dimension_numbers = #tpu.dot_dimension_numbers<[1], [0], [0], [1], [0, 0, 1, 1], [], []>} : vector<8x8xf32>, vector<8x8xf32>, vector<8x8xf32> -> vector<8x8xf32>
    %37 = arith.addf %36, %3 : vector<8x8xf32>
    %cst_24 = arith.constant dense<0xFF800000> : vector<8xf32>
    %38 = vector.multi_reduction <maximumf>, %37, %cst_24 [1] : vector<8x8xf32> to vector<8xf32>
    %39 = vector.shape_cast %38 : vector<8xf32> to vector<8x1xf32>
    %40 = vector.broadcast %39 : vector<8x1xf32> to vector<8x8xf32>
    %41 = arith.subf %37, %40 : vector<8x8xf32>
    %42 = math.exp %41 : vector<8x8xf32>
    %cst_25 = arith.constant dense<0.000000e+00> : vector<8xf32>
    %43 = vector.multi_reduction <add>, %42, %cst_25 [1] : vector<8x8xf32> to vector<8xf32>
    %44 = vector.shape_cast %43 : vector<8xf32> to vector<8x1xf32>
    %45 = tpu.reciprocal %44 {approx = true} : vector<8x1xf32> -> vector<8x1xf32>
    %46 = vector.broadcast %45 : vector<8x1xf32> to vector<8x8xf32>
    %47 = arith.mulf %42, %46 : vector<8x8xf32>
    %cst_26 = arith.constant dense<0.000000e+00> : vector<8x8xf32>
    %48 = tpu.matmul %47, %34, %cst_26 {dimension_numbers = #tpu.dot_dimension_numbers<[1], [0], [0], [1], [0, 0, 1, 1], [], []>} : vector<8x8xf32>, vector<8x8xf32>, vector<8x8xf32> -> vector<8x8xf32>
    %49 = vector.extract_strided_slice %31 {offsets = [0, 0], sizes = [8, 32], strides = [1, 1]} : vector<32x32xf32> to vector<8x32xf32>
    %cst_27 = arith.constant dense<0.000000e+00> : vector<8x32xf32>
    %50 = tpu.matmul %48, %49, %cst_27 {dimension_numbers = #tpu.dot_dimension_numbers<[1], [0], [0], [1], [0, 0, 1, 1], [], []>} : vector<8x8xf32>, vector<8x32xf32>, vector<8x32xf32> -> vector<8x32xf32>
    %51 = vector.extract_strided_slice %27 {offsets = [0, 8], sizes = [8, 8], strides = [1, 1]} : vector<8x32xf32> to vector<8x8xf32>
    %52 = vector.extract_strided_slice %28 {offsets = [0, 8], sizes = [8, 8], strides = [1, 1]} : vector<8x32xf32> to vector<8x8xf32>
    %53 = vector.extract_strided_slice %29 {offsets = [0, 8], sizes = [8, 8], strides = [1, 1]} : vector<8x32xf32> to vector<8x8xf32>
    %54 = tpu.transpose %52, [1, 0] : vector<8x8xf32> -> vector<8x8xf32>
    %cst_28 = arith.constant dense<0.000000e+00> : vector<8x8xf32>
    %55 = tpu.matmul %51, %54, %cst_28 {dimension_numbers = #tpu.dot_dimension_numbers<[1], [0], [0], [1], [0, 0, 1, 1], [], []>} : vector<8x8xf32>, vector<8x8xf32>, vector<8x8xf32> -> vector<8x8xf32>
    %56 = arith.addf %55, %5 : vector<8x8xf32>
    %cst_29 = arith.constant dense<0xFF800000> : vector<8xf32>
    %57 = vector.multi_reduction <maximumf>, %56, %cst_29 [1] : vector<8x8xf32> to vector<8xf32>
    %58 = vector.shape_cast %57 : vector<8xf32> to vector<8x1xf32>
    %59 = vector.broadcast %58 : vector<8x1xf32> to vector<8x8xf32>
    %60 = arith.subf %56, %59 : vector<8x8xf32>
    %61 = math.exp %60 : vector<8x8xf32>
    %cst_30 = arith.constant dense<0.000000e+00> : vector<8xf32>
    %62 = vector.multi_reduction <add>, %61, %cst_30 [1] : vector<8x8xf32> to vector<8xf32>
    %63 = vector.shape_cast %62 : vector<8xf32> to vector<8x1xf32>
    %64 = tpu.reciprocal %63 {approx = true} : vector<8x1xf32> -> vector<8x1xf32>
    %65 = vector.broadcast %64 : vector<8x1xf32> to vector<8x8xf32>
    %66 = arith.mulf %61, %65 : vector<8x8xf32>
    %cst_31 = arith.constant dense<0.000000e+00> : vector<8x8xf32>
    %67 = tpu.matmul %66, %53, %cst_31 {dimension_numbers = #tpu.dot_dimension_numbers<[1], [0], [0], [1], [0, 0, 1, 1], [], []>} : vector<8x8xf32>, vector<8x8xf32>, vector<8x8xf32> -> vector<8x8xf32>
    %68 = vector.extract_strided_slice %31 {offsets = [8, 0], sizes = [8, 32], strides = [1, 1]} : vector<32x32xf32> to vector<8x32xf32>
    %cst_32 = arith.constant dense<0.000000e+00> : vector<8x32xf32>
    %69 = tpu.matmul %67, %68, %cst_32 {dimension_numbers = #tpu.dot_dimension_numbers<[1], [0], [0], [1], [0, 0, 1, 1], [], []>} : vector<8x8xf32>, vector<8x32xf32>, vector<8x32xf32> -> vector<8x32xf32>
    %70 = arith.addf %50, %69 : vector<8x32xf32>
    %71 = vector.extract_strided_slice %27 {offsets = [0, 16], sizes = [8, 8], strides = [1, 1]} : vector<8x32xf32> to vector<8x8xf32>
    %72 = vector.extract_strided_slice %28 {offsets = [0, 16], sizes = [8, 8], strides = [1, 1]} : vector<8x32xf32> to vector<8x8xf32>
    %73 = vector.extract_strided_slice %29 {offsets = [0, 16], sizes = [8, 8], strides = [1, 1]} : vector<8x32xf32> to vector<8x8xf32>
    %74 = tpu.transpose %72, [1, 0] : vector<8x8xf32> -> vector<8x8xf32>
    %cst_33 = arith.constant dense<0.000000e+00> : vector<8x8xf32>
    %75 = tpu.matmul %71, %74, %cst_33 {dimension_numbers = #tpu.dot_dimension_numbers<[1], [0], [0], [1], [0, 0, 1, 1], [], []>} : vector<8x8xf32>, vector<8x8xf32>, vector<8x8xf32> -> vector<8x8xf32>
    %76 = arith.addf %75, %7 : vector<8x8xf32>
    %cst_34 = arith.constant dense<0xFF800000> : vector<8xf32>
    %77 = vector.multi_reduction <maximumf>, %76, %cst_34 [1] : vector<8x8xf32> to vector<8xf32>
    %78 = vector.shape_cast %77 : vector<8xf32> to vector<8x1xf32>
    %79 = vector.broadcast %78 : vector<8x1xf32> to vector<8x8xf32>
    %80 = arith.subf %76, %79 : vector<8x8xf32>
    %81 = math.exp %80 : vector<8x8xf32>
    %cst_35 = arith.constant dense<0.000000e+00> : vector<8xf32>
    %82 = vector.multi_reduction <add>, %81, %cst_35 [1] : vector<8x8xf32> to vector<8xf32>
    %83 = vector.shape_cast %82 : vector<8xf32> to vector<8x1xf32>
    %84 = tpu.reciprocal %83 {approx = true} : vector<8x1xf32> -> vector<8x1xf32>
    %85 = vector.broadcast %84 : vector<8x1xf32> to vector<8x8xf32>
    %86 = arith.mulf %81, %85 : vector<8x8xf32>
    %cst_36 = arith.constant dense<0.000000e+00> : vector<8x8xf32>
    %87 = tpu.matmul %86, %73, %cst_36 {dimension_numbers = #tpu.dot_dimension_numbers<[1], [0], [0], [1], [0, 0, 1, 1], [], []>} : vector<8x8xf32>, vector<8x8xf32>, vector<8x8xf32> -> vector<8x8xf32>
    %88 = vector.extract_strided_slice %31 {offsets = [16, 0], sizes = [8, 32], strides = [1, 1]} : vector<32x32xf32> to vector<8x32xf32>
    %cst_37 = arith.constant dense<0.000000e+00> : vector<8x32xf32>
    %89 = tpu.matmul %87, %88, %cst_37 {dimension_numbers = #tpu.dot_dimension_numbers<[1], [0], [0], [1], [0, 0, 1, 1], [], []>} : vector<8x8xf32>, vector<8x32xf32>, vector<8x32xf32> -> vector<8x32xf32>
    %90 = arith.addf %70, %89 : vector<8x32xf32>
    %91 = vector.extract_strided_slice %27 {offsets = [0, 24], sizes = [8, 8], strides = [1, 1]} : vector<8x32xf32> to vector<8x8xf32>
    %92 = vector.extract_strided_slice %28 {offsets = [0, 24], sizes = [8, 8], strides = [1, 1]} : vector<8x32xf32> to vector<8x8xf32>
    %93 = vector.extract_strided_slice %29 {offsets = [0, 24], sizes = [8, 8], strides = [1, 1]} : vector<8x32xf32> to vector<8x8xf32>
    %94 = tpu.transpose %92, [1, 0] : vector<8x8xf32> -> vector<8x8xf32>
    %cst_38 = arith.constant dense<0.000000e+00> : vector<8x8xf32>
    %95 = tpu.matmul %91, %94, %cst_38 {dimension_numbers = #tpu.dot_dimension_numbers<[1], [0], [0], [1], [0, 0, 1, 1], [], []>} : vector<8x8xf32>, vector<8x8xf32>, vector<8x8xf32> -> vector<8x8xf32>
    %96 = arith.addf %95, %9 : vector<8x8xf32>
    %cst_39 = arith.constant dense<0xFF800000> : vector<8xf32>
    %97 = vector.multi_reduction <maximumf>, %96, %cst_39 [1] : vector<8x8xf32> to vector<8xf32>
    %98 = vector.shape_cast %97 : vector<8xf32> to vector<8x1xf32>
    %99 = vector.broadcast %98 : vector<8x1xf32> to vector<8x8xf32>
    %100 = arith.subf %96, %99 : vector<8x8xf32>
    %101 = math.exp %100 : vector<8x8xf32>
    %cst_40 = arith.constant dense<0.000000e+00> : vector<8xf32>
    %102 = vector.multi_reduction <add>, %101, %cst_40 [1] : vector<8x8xf32> to vector<8xf32>
    %103 = vector.shape_cast %102 : vector<8xf32> to vector<8x1xf32>
    %104 = tpu.reciprocal %103 {approx = true} : vector<8x1xf32> -> vector<8x1xf32>
    %105 = vector.broadcast %104 : vector<8x1xf32> to vector<8x8xf32>
    %106 = arith.mulf %101, %105 : vector<8x8xf32>
    %cst_41 = arith.constant dense<0.000000e+00> : vector<8x8xf32>
    %107 = tpu.matmul %106, %93, %cst_41 {dimension_numbers = #tpu.dot_dimension_numbers<[1], [0], [0], [1], [0, 0, 1, 1], [], []>} : vector<8x8xf32>, vector<8x8xf32>, vector<8x8xf32> -> vector<8x8xf32>
    %108 = vector.extract_strided_slice %31 {offsets = [24, 0], sizes = [8, 32], strides = [1, 1]} : vector<32x32xf32> to vector<8x32xf32>
    %cst_42 = arith.constant dense<0.000000e+00> : vector<8x32xf32>
    %109 = tpu.matmul %107, %108, %cst_42 {dimension_numbers = #tpu.dot_dimension_numbers<[1], [0], [0], [1], [0, 0, 1, 1], [], []>} : vector<8x8xf32>, vector<8x32xf32>, vector<8x32xf32> -> vector<8x32xf32>
    %110 = arith.addf %90, %109 : vector<8x32xf32>
    %111 = arith.addf %1, %110 : vector<8x32xf32>
    %c0_43 = arith.constant 0 : index
    %c0_44 = arith.constant 0 : index
    %c0_45 = arith.constant 0 : index
    %112 = vector.load %arg6[%c0_43, %c0_44, %c0_45] : memref<2x1x32xf32, #tpu.memory_space<vmem>>, vector<1x1x32xf32>
    %113 = vector.shape_cast %112 : vector<1x1x32xf32> to vector<1x32xf32>
    %114 = arith.mulf %111, %111 : vector<8x32xf32>
    %cst_46 = arith.constant dense<0.000000e+00> : vector<8xf32>
    %115 = vector.multi_reduction <add>, %114, %cst_46 [1] : vector<8x32xf32> to vector<8xf32>
    %116 = vector.shape_cast %115 : vector<8xf32> to vector<8x1xf32>
    %cst_47 = arith.constant 3.200000e+01 : f32
    %117 = vector.broadcast %cst_47 : f32 to vector<8x1xf32>
    %118 = arith.divf %116, %117 : vector<8x1xf32>
    %cst_48 = arith.constant 9.99999997E-7 : f32
    %119 = vector.broadcast %cst_48 : f32 to vector<8x1xf32>
    %120 = arith.addf %118, %119 : vector<8x1xf32>
    %121 = math.rsqrt %120 : vector<8x1xf32>
    %122 = vector.broadcast %121 : vector<8x1xf32> to vector<8x32xf32>
    %123 = arith.mulf %111, %122 : vector<8x32xf32>
    %124 = vector.broadcast %113 : vector<1x32xf32> to vector<8x32xf32>
    %125 = arith.mulf %123, %124 : vector<8x32xf32>
    %c0_49 = arith.constant 0 : index
    %c0_50 = arith.constant 0 : index
    %c0_51 = arith.constant 0 : index
    %126 = vector.load %arg7[%c0_49, %c0_50, %c0_51] : memref<2x32x64xf32, #tpu.memory_space<vmem>>, vector<1x32x64xf32>
    %127 = vector.shape_cast %126 : vector<1x32x64xf32> to vector<32x64xf32>
    %cst_52 = arith.constant dense<0.000000e+00> : vector<8x64xf32>
    %128 = tpu.matmul %125, %127, %cst_52 {dimension_numbers = #tpu.dot_dimension_numbers<[1], [0], [0], [1], [0, 0, 1, 1], [], []>} : vector<8x32xf32>, vector<32x64xf32>, vector<8x64xf32> -> vector<8x64xf32>
    %cst_53 = arith.constant 0.000000e+00 : f32
    %129 = vector.broadcast %cst_53 : f32 to vector<8x64xf32>
    %130 = arith.maximumf %128, %129 : vector<8x64xf32>
    %c0_54 = arith.constant 0 : index
    %c0_55 = arith.constant 0 : index
    %c0_56 = arith.constant 0 : index
    %131 = vector.load %arg8[%c0_54, %c0_55, %c0_56] : memref<2x64x32xf32, #tpu.memory_space<vmem>>, vector<1x64x32xf32>
    %132 = vector.shape_cast %131 : vector<1x64x32xf32> to vector<64x32xf32>
    %cst_57 = arith.constant dense<0.000000e+00> : vector<8x32xf32>
    %133 = tpu.matmul %130, %132, %cst_57 {dimension_numbers = #tpu.dot_dimension_numbers<[1], [0], [0], [1], [0, 0, 1, 1], [], []>} : vector<8x64xf32>, vector<64x32xf32>, vector<8x32xf32> -> vector<8x32xf32>
    %134 = arith.addf %111, %133 : vector<8x32xf32>
    %c1_58 = arith.constant 1 : index
    %c0_59 = arith.constant 0 : index
    %c0_60 = arith.constant 0 : index
    %135 = vector.load %arg3[%c1_58, %c0_59, %c0_60] : memref<2x1x32xf32, #tpu.memory_space<vmem>>, vector<1x1x32xf32>
    %136 = vector.shape_cast %135 : vector<1x1x32xf32> to vector<1x32xf32>
    %137 = arith.mulf %134, %134 : vector<8x32xf32>
    %cst_61 = arith.constant dense<0.000000e+00> : vector<8xf32>
    %138 = vector.multi_reduction <add>, %137, %cst_61 [1] : vector<8x32xf32> to vector<8xf32>
    %139 = vector.shape_cast %138 : vector<8xf32> to vector<8x1xf32>
    %cst_62 = arith.constant 3.200000e+01 : f32
    %140 = vector.broadcast %cst_62 : f32 to vector<8x1xf32>
    %141 = arith.divf %139, %140 : vector<8x1xf32>
    %cst_63 = arith.constant 9.99999997E-7 : f32
    %142 = vector.broadcast %cst_63 : f32 to vector<8x1xf32>
    %143 = arith.addf %141, %142 : vector<8x1xf32>
    %144 = math.rsqrt %143 : vector<8x1xf32>
    %145 = vector.broadcast %144 : vector<8x1xf32> to vector<8x32xf32>
    %146 = arith.mulf %134, %145 : vector<8x32xf32>
    %147 = vector.broadcast %136 : vector<1x32xf32> to vector<8x32xf32>
    %148 = arith.mulf %146, %147 : vector<8x32xf32>
    %c1_64 = arith.constant 1 : index
    %c0_65 = arith.constant 0 : index
    %c0_66 = arith.constant 0 : index
    %149 = vector.load %arg4[%c1_64, %c0_65, %c0_66] : memref<2x32x96xf32, #tpu.memory_space<vmem>>, vector<1x32x96xf32>
    %150 = vector.shape_cast %149 : vector<1x32x96xf32> to vector<32x96xf32>
    %cst_67 = arith.constant dense<0.000000e+00> : vector<8x96xf32>
    %151 = tpu.matmul %148, %150, %cst_67 {dimension_numbers = #tpu.dot_dimension_numbers<[1], [0], [0], [1], [0, 0, 1, 1], [], []>} : vector<8x32xf32>, vector<32x96xf32>, vector<8x96xf32> -> vector<8x96xf32>
    %152 = vector.extract_strided_slice %151 {offsets = [0, 0], sizes = [8, 32], strides = [1, 1]} : vector<8x96xf32> to vector<8x32xf32>
    %153 = vector.extract_strided_slice %151 {offsets = [0, 32], sizes = [8, 32], strides = [1, 1]} : vector<8x96xf32> to vector<8x32xf32>
    %154 = vector.extract_strided_slice %151 {offsets = [0, 64], sizes = [8, 32], strides = [1, 1]} : vector<8x96xf32> to vector<8x32xf32>
    %c1_68 = arith.constant 1 : index
    %c0_69 = arith.constant 0 : index
    %c0_70 = arith.constant 0 : index
    %155 = vector.load %arg5[%c1_68, %c0_69, %c0_70] : memref<2x32x32xf32, #tpu.memory_space<vmem>>, vector<1x32x32xf32>
    %156 = vector.shape_cast %155 : vector<1x32x32xf32> to vector<32x32xf32>
    %157 = vector.extract_strided_slice %152 {offsets = [0, 0], sizes = [8, 8], strides = [1, 1]} : vector<8x32xf32> to vector<8x8xf32>
    %158 = vector.extract_strided_slice %153 {offsets = [0, 0], sizes = [8, 8], strides = [1, 1]} : vector<8x32xf32> to vector<8x8xf32>
    %159 = vector.extract_strided_slice %154 {offsets = [0, 0], sizes = [8, 8], strides = [1, 1]} : vector<8x32xf32> to vector<8x8xf32>
    %160 = tpu.transpose %158, [1, 0] : vector<8x8xf32> -> vector<8x8xf32>
    %cst_71 = arith.constant dense<0.000000e+00> : vector<8x8xf32>
    %161 = tpu.matmul %157, %160, %cst_71 {dimension_numbers = #tpu.dot_dimension_numbers<[1], [0], [0], [1], [0, 0, 1, 1], [], []>} : vector<8x8xf32>, vector<8x8xf32>, vector<8x8xf32> -> vector<8x8xf32>
    %162 = arith.addf %161, %3 : vector<8x8xf32>
    %cst_72 = arith.constant dense<0xFF800000> : vector<8xf32>
    %163 = vector.multi_reduction <maximumf>, %162, %cst_72 [1] : vector<8x8xf32> to vector<8xf32>
    %164 = vector.shape_cast %163 : vector<8xf32> to vector<8x1xf32>
    %165 = vector.broadcast %164 : vector<8x1xf32> to vector<8x8xf32>
    %166 = arith.subf %162, %165 : vector<8x8xf32>
    %167 = math.exp %166 : vector<8x8xf32>
    %cst_73 = arith.constant dense<0.000000e+00> : vector<8xf32>
    %168 = vector.multi_reduction <add>, %167, %cst_73 [1] : vector<8x8xf32> to vector<8xf32>
    %169 = vector.shape_cast %168 : vector<8xf32> to vector<8x1xf32>
    %170 = tpu.reciprocal %169 {approx = true} : vector<8x1xf32> -> vector<8x1xf32>
    %171 = vector.broadcast %170 : vector<8x1xf32> to vector<8x8xf32>
    %172 = arith.mulf %167, %171 : vector<8x8xf32>
    %cst_74 = arith.constant dense<0.000000e+00> : vector<8x8xf32>
    %173 = tpu.matmul %172, %159, %cst_74 {dimension_numbers = #tpu.dot_dimension_numbers<[1], [0], [0], [1], [0, 0, 1, 1], [], []>} : vector<8x8xf32>, vector<8x8xf32>, vector<8x8xf32> -> vector<8x8xf32>
    %174 = vector.extract_strided_slice %156 {offsets = [0, 0], sizes = [8, 32], strides = [1, 1]} : vector<32x32xf32> to vector<8x32xf32>
    %cst_75 = arith.constant dense<0.000000e+00> : vector<8x32xf32>
    %175 = tpu.matmul %173, %174, %cst_75 {dimension_numbers = #tpu.dot_dimension_numbers<[1], [0], [0], [1], [0, 0, 1, 1], [], []>} : vector<8x8xf32>, vector<8x32xf32>, vector<8x32xf32> -> vector<8x32xf32>
    %176 = vector.extract_strided_slice %152 {offsets = [0, 8], sizes = [8, 8], strides = [1, 1]} : vector<8x32xf32> to vector<8x8xf32>
    %177 = vector.extract_strided_slice %153 {offsets = [0, 8], sizes = [8, 8], strides = [1, 1]} : vector<8x32xf32> to vector<8x8xf32>
    %178 = vector.extract_strided_slice %154 {offsets = [0, 8], sizes = [8, 8], strides = [1, 1]} : vector<8x32xf32> to vector<8x8xf32>
    %179 = tpu.transpose %177, [1, 0] : vector<8x8xf32> -> vector<8x8xf32>
    %cst_76 = arith.constant dense<0.000000e+00> : vector<8x8xf32>
    %180 = tpu.matmul %176, %179, %cst_76 {dimension_numbers = #tpu.dot_dimension_numbers<[1], [0], [0], [1], [0, 0, 1, 1], [], []>} : vector<8x8xf32>, vector<8x8xf32>, vector<8x8xf32> -> vector<8x8xf32>
    %181 = arith.addf %180, %5 : vector<8x8xf32>
    %cst_77 = arith.constant dense<0xFF800000> : vector<8xf32>
    %182 = vector.multi_reduction <maximumf>, %181, %cst_77 [1] : vector<8x8xf32> to vector<8xf32>
    %183 = vector.shape_cast %182 : vector<8xf32> to vector<8x1xf32>
    %184 = vector.broadcast %183 : vector<8x1xf32> to vector<8x8xf32>
    %185 = arith.subf %181, %184 : vector<8x8xf32>
    %186 = math.exp %185 : vector<8x8xf32>
    %cst_78 = arith.constant dense<0.000000e+00> : vector<8xf32>
    %187 = vector.multi_reduction <add>, %186, %cst_78 [1] : vector<8x8xf32> to vector<8xf32>
    %188 = vector.shape_cast %187 : vector<8xf32> to vector<8x1xf32>
    %189 = tpu.reciprocal %188 {approx = true} : vector<8x1xf32> -> vector<8x1xf32>
    %190 = vector.broadcast %189 : vector<8x1xf32> to vector<8x8xf32>
    %191 = arith.mulf %186, %190 : vector<8x8xf32>
    %cst_79 = arith.constant dense<0.000000e+00> : vector<8x8xf32>
    %192 = tpu.matmul %191, %178, %cst_79 {dimension_numbers = #tpu.dot_dimension_numbers<[1], [0], [0], [1], [0, 0, 1, 1], [], []>} : vector<8x8xf32>, vector<8x8xf32>, vector<8x8xf32> -> vector<8x8xf32>
    %193 = vector.extract_strided_slice %156 {offsets = [8, 0], sizes = [8, 32], strides = [1, 1]} : vector<32x32xf32> to vector<8x32xf32>
    %cst_80 = arith.constant dense<0.000000e+00> : vector<8x32xf32>
    %194 = tpu.matmul %192, %193, %cst_80 {dimension_numbers = #tpu.dot_dimension_numbers<[1], [0], [0], [1], [0, 0, 1, 1], [], []>} : vector<8x8xf32>, vector<8x32xf32>, vector<8x32xf32> -> vector<8x32xf32>
    %195 = arith.addf %175, %194 : vector<8x32xf32>
    %196 = vector.extract_strided_slice %152 {offsets = [0, 16], sizes = [8, 8], strides = [1, 1]} : vector<8x32xf32> to vector<8x8xf32>
    %197 = vector.extract_strided_slice %153 {offsets = [0, 16], sizes = [8, 8], strides = [1, 1]} : vector<8x32xf32> to vector<8x8xf32>
    %198 = vector.extract_strided_slice %154 {offsets = [0, 16], sizes = [8, 8], strides = [1, 1]} : vector<8x32xf32> to vector<8x8xf32>
    %199 = tpu.transpose %197, [1, 0] : vector<8x8xf32> -> vector<8x8xf32>
    %cst_81 = arith.constant dense<0.000000e+00> : vector<8x8xf32>
    %200 = tpu.matmul %196, %199, %cst_81 {dimension_numbers = #tpu.dot_dimension_numbers<[1], [0], [0], [1], [0, 0, 1, 1], [], []>} : vector<8x8xf32>, vector<8x8xf32>, vector<8x8xf32> -> vector<8x8xf32>
    %201 = arith.addf %200, %7 : vector<8x8xf32>
    %cst_82 = arith.constant dense<0xFF800000> : vector<8xf32>
    %202 = vector.multi_reduction <maximumf>, %201, %cst_82 [1] : vector<8x8xf32> to vector<8xf32>
    %203 = vector.shape_cast %202 : vector<8xf32> to vector<8x1xf32>
    %204 = vector.broadcast %203 : vector<8x1xf32> to vector<8x8xf32>
    %205 = arith.subf %201, %204 : vector<8x8xf32>
    %206 = math.exp %205 : vector<8x8xf32>
    %cst_83 = arith.constant dense<0.000000e+00> : vector<8xf32>
    %207 = vector.multi_reduction <add>, %206, %cst_83 [1] : vector<8x8xf32> to vector<8xf32>
    %208 = vector.shape_cast %207 : vector<8xf32> to vector<8x1xf32>
    %209 = tpu.reciprocal %208 {approx = true} : vector<8x1xf32> -> vector<8x1xf32>
    %210 = vector.broadcast %209 : vector<8x1xf32> to vector<8x8xf32>
    %211 = arith.mulf %206, %210 : vector<8x8xf32>
    %cst_84 = arith.constant dense<0.000000e+00> : vector<8x8xf32>
    %212 = tpu.matmul %211, %198, %cst_84 {dimension_numbers = #tpu.dot_dimension_numbers<[1], [0], [0], [1], [0, 0, 1, 1], [], []>} : vector<8x8xf32>, vector<8x8xf32>, vector<8x8xf32> -> vector<8x8xf32>
    %213 = vector.extract_strided_slice %156 {offsets = [16, 0], sizes = [8, 32], strides = [1, 1]} : vector<32x32xf32> to vector<8x32xf32>
    %cst_85 = arith.constant dense<0.000000e+00> : vector<8x32xf32>
    %214 = tpu.matmul %212, %213, %cst_85 {dimension_numbers = #tpu.dot_dimension_numbers<[1], [0], [0], [1], [0, 0, 1, 1], [], []>} : vector<8x8xf32>, vector<8x32xf32>, vector<8x32xf32> -> vector<8x32xf32>
    %215 = arith.addf %195, %214 : vector<8x32xf32>
    %216 = vector.extract_strided_slice %152 {offsets = [0, 24], sizes = [8, 8], strides = [1, 1]} : vector<8x32xf32> to vector<8x8xf32>
    %217 = vector.extract_strided_slice %153 {offsets = [0, 24], sizes = [8, 8], strides = [1, 1]} : vector<8x32xf32> to vector<8x8xf32>
    %218 = vector.extract_strided_slice %154 {offsets = [0, 24], sizes = [8, 8], strides = [1, 1]} : vector<8x32xf32> to vector<8x8xf32>
    %219 = tpu.transpose %217, [1, 0] : vector<8x8xf32> -> vector<8x8xf32>
    %cst_86 = arith.constant dense<0.000000e+00> : vector<8x8xf32>
    %220 = tpu.matmul %216, %219, %cst_86 {dimension_numbers = #tpu.dot_dimension_numbers<[1], [0], [0], [1], [0, 0, 1, 1], [], []>} : vector<8x8xf32>, vector<8x8xf32>, vector<8x8xf32> -> vector<8x8xf32>
    %221 = arith.addf %220, %9 : vector<8x8xf32>
    %cst_87 = arith.constant dense<0xFF800000> : vector<8xf32>
    %222 = vector.multi_reduction <maximumf>, %221, %cst_87 [1] : vector<8x8xf32> to vector<8xf32>
    %223 = vector.shape_cast %222 : vector<8xf32> to vector<8x1xf32>
    %224 = vector.broadcast %223 : vector<8x1xf32> to vector<8x8xf32>
    %225 = arith.subf %221, %224 : vector<8x8xf32>
    %226 = math.exp %225 : vector<8x8xf32>
    %cst_88 = arith.constant dense<0.000000e+00> : vector<8xf32>
    %227 = vector.multi_reduction <add>, %226, %cst_88 [1] : vector<8x8xf32> to vector<8xf32>
    %228 = vector.shape_cast %227 : vector<8xf32> to vector<8x1xf32>
    %229 = tpu.reciprocal %228 {approx = true} : vector<8x1xf32> -> vector<8x1xf32>
    %230 = vector.broadcast %229 : vector<8x1xf32> to vector<8x8xf32>
    %231 = arith.mulf %226, %230 : vector<8x8xf32>
    %cst_89 = arith.constant dense<0.000000e+00> : vector<8x8xf32>
    %232 = tpu.matmul %231, %218, %cst_89 {dimension_numbers = #tpu.dot_dimension_numbers<[1], [0], [0], [1], [0, 0, 1, 1], [], []>} : vector<8x8xf32>, vector<8x8xf32>, vector<8x8xf32> -> vector<8x8xf32>
    %233 = vector.extract_strided_slice %156 {offsets = [24, 0], sizes = [8, 32], strides = [1, 1]} : vector<32x32xf32> to vector<8x32xf32>
    %cst_90 = arith.constant dense<0.000000e+00> : vector<8x32xf32>
    %234 = tpu.matmul %232, %233, %cst_90 {dimension_numbers = #tpu.dot_dimension_numbers<[1], [0], [0], [1], [0, 0, 1, 1], [], []>} : vector<8x8xf32>, vector<8x32xf32>, vector<8x32xf32> -> vector<8x32xf32>
    %235 = arith.addf %215, %234 : vector<8x32xf32>
    %236 = arith.addf %134, %235 : vector<8x32xf32>
    %c1_91 = arith.constant 1 : index
    %c0_92 = arith.constant 0 : index
    %c0_93 = arith.constant 0 : index
    %237 = vector.load %arg6[%c1_91, %c0_92, %c0_93] : memref<2x1x32xf32, #tpu.memory_space<vmem>>, vector<1x1x32xf32>
    %238 = vector.shape_cast %237 : vector<1x1x32xf32> to vector<1x32xf32>
    %239 = arith.mulf %236, %236 : vector<8x32xf32>
    %cst_94 = arith.constant dense<0.000000e+00> : vector<8xf32>
    %240 = vector.multi_reduction <add>, %239, %cst_94 [1] : vector<8x32xf32> to vector<8xf32>
    %241 = vector.shape_cast %240 : vector<8xf32> to vector<8x1xf32>
    %cst_95 = arith.constant 3.200000e+01 : f32
    %242 = vector.broadcast %cst_95 : f32 to vector<8x1xf32>
    %243 = arith.divf %241, %242 : vector<8x1xf32>
    %cst_96 = arith.constant 9.99999997E-7 : f32
    %244 = vector.broadcast %cst_96 : f32 to vector<8x1xf32>
    %245 = arith.addf %243, %244 : vector<8x1xf32>
    %246 = math.rsqrt %245 : vector<8x1xf32>
    %247 = vector.broadcast %246 : vector<8x1xf32> to vector<8x32xf32>
    %248 = arith.mulf %236, %247 : vector<8x32xf32>
    %249 = vector.broadcast %238 : vector<1x32xf32> to vector<8x32xf32>
    %250 = arith.mulf %248, %249 : vector<8x32xf32>
    %c1_97 = arith.constant 1 : index
    %c0_98 = arith.constant 0 : index
    %c0_99 = arith.constant 0 : index
    %251 = vector.load %arg7[%c1_97, %c0_98, %c0_99] : memref<2x32x64xf32, #tpu.memory_space<vmem>>, vector<1x32x64xf32>
    %252 = vector.shape_cast %251 : vector<1x32x64xf32> to vector<32x64xf32>
    %cst_100 = arith.constant dense<0.000000e+00> : vector<8x64xf32>
    %253 = tpu.matmul %250, %252, %cst_100 {dimension_numbers = #tpu.dot_dimension_numbers<[1], [0], [0], [1], [0, 0, 1, 1], [], []>} : vector<8x32xf32>, vector<32x64xf32>, vector<8x64xf32> -> vector<8x64xf32>
    %cst_101 = arith.constant 0.000000e+00 : f32
    %254 = vector.broadcast %cst_101 : f32 to vector<8x64xf32>
    %255 = arith.maximumf %253, %254 : vector<8x64xf32>
    %c1_102 = arith.constant 1 : index
    %c0_103 = arith.constant 0 : index
    %c0_104 = arith.constant 0 : index
    %256 = vector.load %arg8[%c1_102, %c0_103, %c0_104] : memref<2x64x32xf32, #tpu.memory_space<vmem>>, vector<1x64x32xf32>
    %257 = vector.shape_cast %256 : vector<1x64x32xf32> to vector<64x32xf32>
    %cst_105 = arith.constant dense<0.000000e+00> : vector<8x32xf32>
    %258 = tpu.matmul %255, %257, %cst_105 {dimension_numbers = #tpu.dot_dimension_numbers<[1], [0], [0], [1], [0, 0, 1, 1], [], []>} : vector<8x64xf32>, vector<64x32xf32>, vector<8x32xf32> -> vector<8x32xf32>
    %259 = arith.addf %236, %258 : vector<8x32xf32>
    %c0_106 = arith.constant 0 : index
    %c0_107 = arith.constant 0 : index
    %260 = vector.load %arg9[%c0_106, %c0_107] : memref<1x32xf32, #tpu.memory_space<vmem>>, vector<1x32xf32>
    %261 = arith.mulf %259, %259 : vector<8x32xf32>
    %cst_108 = arith.constant dense<0.000000e+00> : vector<8xf32>
    %262 = vector.multi_reduction <add>, %261, %cst_108 [1] : vector<8x32xf32> to vector<8xf32>
    %263 = vector.shape_cast %262 : vector<8xf32> to vector<8x1xf32>
    %cst_109 = arith.constant 3.200000e+01 : f32
    %264 = vector.broadcast %cst_109 : f32 to vector<8x1xf32>
    %265 = arith.divf %263, %264 : vector<8x1xf32>
    %cst_110 = arith.constant 9.99999997E-7 : f32
    %266 = vector.broadcast %cst_110 : f32 to vector<8x1xf32>
    %267 = arith.addf %265, %266 : vector<8x1xf32>
    %268 = math.rsqrt %267 : vector<8x1xf32>
    %269 = vector.broadcast %268 : vector<8x1xf32> to vector<8x32xf32>
    %270 = arith.mulf %259, %269 : vector<8x32xf32>
    %271 = vector.broadcast %260 : vector<1x32xf32> to vector<8x32xf32>
    %272 = arith.mulf %270, %271 : vector<8x32xf32>
    %c0_111 = arith.constant 0 : index
    %c0_112 = arith.constant 0 : index
    %c0_113 = arith.constant 0 : index
    %273 = vector.load %arg10[%c0_111, %c0_112, %c0_113] : memref<1x8x32xf32, #tpu.memory_space<vmem>>, vector<1x8x32xf32>
    %274 = vector.shape_cast %273 : vector<1x8x32xf32> to vector<8x32xf32>
    %275 = vector.shape_cast %272 : vector<8x32xf32> to vector<1x8x32xf32>
    tpu.vector_store %arg10[%c0_111, %c0_112, %c0_113], %275 {strides = array<i32>} : memref<1x8x32xf32, #tpu.memory_space<vmem>>, vector<1x8x32xf32>,
    return
  }
  func.func @transform_0(%arg0: i32) -> (i32, i32, i32) {
    %c0_i32 = arith.constant 0 : i32
    %c0_i32_0 = arith.constant 0 : i32
    %c0_i32_1 = arith.constant 0 : i32
    return %arg0, %c0_i32, %c0_i32_0 : i32, i32, i32
  }
  func.func @transform_1(%arg0: i32) -> (i32, i32, i32) {
    %c0_i32 = arith.constant 0 : i32
    %c0_i32_0 = arith.constant 0 : i32
    %c0_i32_1 = arith.constant 0 : i32
    %c0_i32_2 = arith.constant 0 : i32
    return %c0_i32, %c0_i32_0, %c0_i32_1 : i32, i32, i32
  }
  func.func @transform_2(%arg0: i32) -> (i32, i32, i32) {
    %c0_i32 = arith.constant 0 : i32
    %c0_i32_0 = arith.constant 0 : i32
    %c0_i32_1 = arith.constant 0 : i32
    %c0_i32_2 = arith.constant 0 : i32
    return %c0_i32, %c0_i32_0, %c0_i32_1 : i32, i32, i32
  }
  func.func @transform_3(%arg0: i32) -> (i32, i32, i32) {
    %c0_i32 = arith.constant 0 : i32
    %c0_i32_0 = arith.constant 0 : i32
    %c0_i32_1 = arith.constant 0 : i32
    %c0_i32_2 = arith.constant 0 : i32
    return %c0_i32, %c0_i32_0, %c0_i32_1 : i32, i32, i32
  }
  func.func @transform_4(%arg0: i32) -> (i32, i32, i32) {
    %c0_i32 = arith.constant 0 : i32
    %c0_i32_0 = arith.constant 0 : i32
    %c0_i32_1 = arith.constant 0 : i32
    %c0_i32_2 = arith.constant 0 : i32
    return %c0_i32, %c0_i32_0, %c0_i32_1 : i32, i32, i32
  }
  func.func @transform_5(%arg0: i32) -> (i32, i32, i32) {
    %c0_i32 = arith.constant 0 : i32
    %c0_i32_0 = arith.constant 0 : i32
    %c0_i32_1 = arith.constant 0 : i32
    %c0_i32_2 = arith.constant 0 : i32
    return %c0_i32, %c0_i32_0, %c0_i32_1 : i32, i32, i32
  }
  func.func @transform_6(%arg0: i32) -> (i32, i32, i32) {
    %c0_i32 = arith.constant 0 : i32
    %c0_i32_0 = arith.constant 0 : i32
    %c0_i32_1 = arith.constant 0 : i32
    %c0_i32_2 = arith.constant 0 : i32
    return %c0_i32, %c0_i32_0, %c0_i32_1 : i32, i32, i32
  }
  func.func @transform_7(%arg0: i32) -> (i32, i32, i32) {
    %c0_i32 = arith.constant 0 : i32
    %c0_i32_0 = arith.constant 0 : i32
    %c0_i32_1 = arith.constant 0 : i32
    %c0_i32_2 = arith.constant 0 : i32
    return %c0_i32, %c0_i32_0, %c0_i32_1 : i32, i32, i32
  }
  func.func @transform_8(%arg0: i32) -> (i32, i32) {
    %c0_i32 = arith.constant 0 : i32
    %c0_i32_0 = arith.constant 0 : i32
    %c0_i32_1 = arith.constant 0 : i32
    return %c0_i32, %c0_i32_0 : i32, i32
  }
  func.func @transform_9(%arg0: i32) -> (i32, i32, i32) {
    %c0_i32 = arith.constant 0 : i32
    %c0_i32_0 = arith.constant 0 : i32
    %c0_i32_1 = arith.constant 0 : i32
    return %arg0, %c0_i32, %c0_i32_0 : i32, i32, i32
  }
}

module attributes {stable_mosaic.version = 11 : i64} {
  func.func @_decoder_kernel(%arg0: i32, %arg1: memref<1x8x32xf32, #tpu.memory_space<vmem>>, %arg2: memref<1x8x32xf32, #tpu.memory_space<vmem>>, %arg3: memref<4x8x8xf32, #tpu.memory_space<vmem>>, %arg4: memref<1x8x1xi32, #tpu.memory_space<vmem>>, %arg5: memref<2x1x32xf32, #tpu.memory_space<vmem>>, %arg6: memref<2x32x96xf32, #tpu.memory_space<vmem>>, %arg7: memref<2x32x32xf32, #tpu.memory_space<vmem>>, %arg8: memref<2x1x32xf32, #tpu.memory_space<vmem>>, %arg9: memref<2x32x32xf32, #tpu.memory_space<vmem>>, %arg10: memref<2x32x64xf32, #tpu.memory_space<vmem>>, %arg11: memref<2x32x32xf32, #tpu.memory_space<vmem>>, %arg12: memref<2x1x32xf32, #tpu.memory_space<vmem>>, %arg13: memref<2x32x64xf32, #tpu.memory_space<vmem>>, %arg14: memref<2x64x32xf32, #tpu.memory_space<vmem>>, %arg15: memref<1x32xf32, #tpu.memory_space<vmem>>, %arg16: memref<32x128xf32, #tpu.memory_space<vmem>>, %arg17: memref<1x8x128xf32, #tpu.memory_space<vmem>>, %arg18: memref<1x8x1xf32, #tpu.memory_space<vmem>>) attributes {dimension_semantics = [#tpu.dimension_semantics<parallel>], iteration_bounds = array<i64: 2>, scalar_prefetch = 0 : i64, scratch_operands = 0 : i64, tpu.core_type = #tpu.core_type<tc>, window_params = [{transform_indices = @transform_0, window_bounds = array<i64: 1, 8, 32>}, {transform_indices = @transform_1, window_bounds = array<i64: 1, 8, 32>}, {pipeline_mode = #tpu.pipeline_mode<synchronous>, transform_indices = @transform_2, window_bounds = array<i64: 4, 8, 8>}, {transform_indices = @transform_3, window_bounds = array<i64: 1, 8, 1>}, {pipeline_mode = #tpu.pipeline_mode<synchronous>, transform_indices = @transform_4, window_bounds = array<i64: 2, 1, 32>}, {pipeline_mode = #tpu.pipeline_mode<synchronous>, transform_indices = @transform_5, window_bounds = array<i64: 2, 32, 96>}, {pipeline_mode = #tpu.pipeline_mode<synchronous>, transform_indices = @transform_6, window_bounds = array<i64: 2, 32, 32>}, {pipeline_mode = #tpu.pipeline_mode<synchronous>, transform_indices = @transform_7, window_bounds = array<i64: 2, 1, 32>}, {pipeline_mode = #tpu.pipeline_mode<synchronous>, transform_indices = @transform_8, window_bounds = array<i64: 2, 32, 32>}, {pipeline_mode = #tpu.pipeline_mode<synchronous>, transform_indices = @transform_9, window_bounds = array<i64: 2, 32, 64>}, {pipeline_mode = #tpu.pipeline_mode<synchronous>, transform_indices = @transform_10, window_bounds = array<i64: 2, 32, 32>}, {pipeline_mode = #tpu.pipeline_mode<synchronous>, transform_indices = @transform_11, window_bounds = array<i64: 2, 1, 32>}, {pipeline_mode = #tpu.pipeline_mode<synchronous>, transform_indices = @transform_12, window_bounds = array<i64: 2, 32, 64>}, {pipeline_mode = #tpu.pipeline_mode<synchronous>, transform_indices = @transform_13, window_bounds = array<i64: 2, 64, 32>}, {pipeline_mode = #tpu.pipeline_mode<synchronous>, transform_indices = @transform_14, window_bounds = array<i64: 1, 32>}, {pipeline_mode = #tpu.pipeline_mode<synchronous>, transform_indices = @transform_15, window_bounds = array<i64: 32, 128>}, {transform_indices = @transform_16, window_bounds = array<i64: 1, 8, 128>}, {transform_indices = @transform_17, window_bounds = array<i64: 1, 8, 1>}]} {
    %c0 = arith.constant 0 : index
    %c0_0 = arith.constant 0 : index
    %c0_1 = arith.constant 0 : index
    %0 = vector.load %arg1[%c0, %c0_0, %c0_1] : memref<1x8x32xf32, #tpu.memory_space<vmem>>, vector<1x8x32xf32>
    %1 = vector.shape_cast %0 : vector<1x8x32xf32> to vector<8x32xf32>
    %c0_2 = arith.constant 0 : index
    %c0_3 = arith.constant 0 : index
    %c0_4 = arith.constant 0 : index
    %2 = vector.load %arg2[%c0_2, %c0_3, %c0_4] : memref<1x8x32xf32, #tpu.memory_space<vmem>>, vector<1x8x32xf32>
    %3 = vector.shape_cast %2 : vector<1x8x32xf32> to vector<8x32xf32>
    %c0_5 = arith.constant 0 : index
    %c0_6 = arith.constant 0 : index
    %c0_7 = arith.constant 0 : index
    %4 = vector.load %arg3[%c0_5, %c0_6, %c0_7] : memref<4x8x8xf32, #tpu.memory_space<vmem>>, vector<1x8x8xf32>
    %5 = vector.shape_cast %4 : vector<1x8x8xf32> to vector<8x8xf32>
    %c1 = arith.constant 1 : index
    %c0_8 = arith.constant 0 : index
    %c0_9 = arith.constant 0 : index
    %6 = vector.load %arg3[%c1, %c0_8, %c0_9] : memref<4x8x8xf32, #tpu.memory_space<vmem>>, vector<1x8x8xf32>
    %7 = vector.shape_cast %6 : vector<1x8x8xf32> to vector<8x8xf32>
    %c2 = arith.constant 2 : index
    %c0_10 = arith.constant 0 : index
    %c0_11 = arith.constant 0 : index
    %8 = vector.load %arg3[%c2, %c0_10, %c0_11] : memref<4x8x8xf32, #tpu.memory_space<vmem>>, vector<1x8x8xf32>
    %9 = vector.shape_cast %8 : vector<1x8x8xf32> to vector<8x8xf32>
    %c3 = arith.constant 3 : index
    %c0_12 = arith.constant 0 : index
    %c0_13 = arith.constant 0 : index
    %10 = vector.load %arg3[%c3, %c0_12, %c0_13] : memref<4x8x8xf32, #tpu.memory_space<vmem>>, vector<1x8x8xf32>
    %11 = vector.shape_cast %10 : vector<1x8x8xf32> to vector<8x8xf32>
    %c0_14 = arith.constant 0 : index
    %c0_15 = arith.constant 0 : index
    %c0_16 = arith.constant 0 : index
    %12 = vector.load %arg5[%c0_14, %c0_15, %c0_16] : memref<2x1x32xf32, #tpu.memory_space<vmem>>, vector<1x1x32xf32>
    %13 = vector.shape_cast %12 : vector<1x1x32xf32> to vector<1x32xf32>
    %14 = arith.mulf %1, %1 : vector<8x32xf32>
    %cst = arith.constant dense<0.000000e+00> : vector<8xf32>
    %15 = vector.multi_reduction <add>, %14, %cst [1] : vector<8x32xf32> to vector<8xf32>
    %16 = vector.shape_cast %15 : vector<8xf32> to vector<8x1xf32>
    %cst_17 = arith.constant 3.200000e+01 : f32
    %17 = vector.broadcast %cst_17 : f32 to vector<8x1xf32>
    %18 = arith.divf %16, %17 : vector<8x1xf32>
    %cst_18 = arith.constant 9.99999997E-7 : f32
    %19 = vector.broadcast %cst_18 : f32 to vector<8x1xf32>
    %20 = arith.addf %18, %19 : vector<8x1xf32>
    %21 = math.rsqrt %20 : vector<8x1xf32>
    %22 = vector.broadcast %21 : vector<8x1xf32> to vector<8x32xf32>
    %23 = arith.mulf %1, %22 : vector<8x32xf32>
    %24 = vector.broadcast %13 : vector<1x32xf32> to vector<8x32xf32>
    %25 = arith.mulf %23, %24 : vector<8x32xf32>
    %c0_19 = arith.constant 0 : index
    %c0_20 = arith.constant 0 : index
    %c0_21 = arith.constant 0 : index
    %26 = vector.load %arg6[%c0_19, %c0_20, %c0_21] : memref<2x32x96xf32, #tpu.memory_space<vmem>>, vector<1x32x96xf32>
    %27 = vector.shape_cast %26 : vector<1x32x96xf32> to vector<32x96xf32>
    %cst_22 = arith.constant dense<0.000000e+00> : vector<8x96xf32>
    %28 = tpu.matmul %25, %27, %cst_22 {dimension_numbers = #tpu.dot_dimension_numbers<[1], [0], [0], [1], [0, 0, 1, 1], [], []>} : vector<8x32xf32>, vector<32x96xf32>, vector<8x96xf32> -> vector<8x96xf32>
    %29 = vector.extract_strided_slice %28 {offsets = [0, 0], sizes = [8, 32], strides = [1, 1]} : vector<8x96xf32> to vector<8x32xf32>
    %30 = vector.extract_strided_slice %28 {offsets = [0, 32], sizes = [8, 32], strides = [1, 1]} : vector<8x96xf32> to vector<8x32xf32>
    %31 = vector.extract_strided_slice %28 {offsets = [0, 64], sizes = [8, 32], strides = [1, 1]} : vector<8x96xf32> to vector<8x32xf32>
    %c0_23 = arith.constant 0 : index
    %c0_24 = arith.constant 0 : index
    %c0_25 = arith.constant 0 : index
    %32 = vector.load %arg7[%c0_23, %c0_24, %c0_25] : memref<2x32x32xf32, #tpu.memory_space<vmem>>, vector<1x32x32xf32>
    %33 = vector.shape_cast %32 : vector<1x32x32xf32> to vector<32x32xf32>
    %34 = vector.extract_strided_slice %29 {offsets = [0, 0], sizes = [8, 8], strides = [1, 1]} : vector<8x32xf32> to vector<8x8xf32>
    %35 = vector.extract_strided_slice %30 {offsets = [0, 0], sizes = [8, 8], strides = [1, 1]} : vector<8x32xf32> to vector<8x8xf32>
    %36 = vector.extract_strided_slice %31 {offsets = [0, 0], sizes = [8, 8], strides = [1, 1]} : vector<8x32xf32> to vector<8x8xf32>
    %37 = tpu.transpose %35, [1, 0] : vector<8x8xf32> -> vector<8x8xf32>
    %cst_26 = arith.constant dense<0.000000e+00> : vector<8x8xf32>
    %38 = tpu.matmul %34, %37, %cst_26 {dimension_numbers = #tpu.dot_dimension_numbers<[1], [0], [0], [1], [0, 0, 1, 1], [], []>} : vector<8x8xf32>, vector<8x8xf32>, vector<8x8xf32> -> vector<8x8xf32>
    %39 = arith.addf %38, %5 : vector<8x8xf32>
    %cst_27 = arith.constant dense<0xFF800000> : vector<8xf32>
    %40 = vector.multi_reduction <maximumf>, %39, %cst_27 [1] : vector<8x8xf32> to vector<8xf32>
    %41 = vector.shape_cast %40 : vector<8xf32> to vector<8x1xf32>
    %42 = vector.broadcast %41 : vector<8x1xf32> to vector<8x8xf32>
    %43 = arith.subf %39, %42 : vector<8x8xf32>
    %44 = math.exp %43 : vector<8x8xf32>
    %cst_28 = arith.constant dense<0.000000e+00> : vector<8xf32>
    %45 = vector.multi_reduction <add>, %44, %cst_28 [1] : vector<8x8xf32> to vector<8xf32>
    %46 = vector.shape_cast %45 : vector<8xf32> to vector<8x1xf32>
    %47 = tpu.reciprocal %46 {approx = true} : vector<8x1xf32> -> vector<8x1xf32>
    %48 = vector.broadcast %47 : vector<8x1xf32> to vector<8x8xf32>
    %49 = arith.mulf %44, %48 : vector<8x8xf32>
    %cst_29 = arith.constant dense<0.000000e+00> : vector<8x8xf32>
    %50 = tpu.matmul %49, %36, %cst_29 {dimension_numbers = #tpu.dot_dimension_numbers<[1], [0], [0], [1], [0, 0, 1, 1], [], []>} : vector<8x8xf32>, vector<8x8xf32>, vector<8x8xf32> -> vector<8x8xf32>
    %51 = vector.extract_strided_slice %33 {offsets = [0, 0], sizes = [8, 32], strides = [1, 1]} : vector<32x32xf32> to vector<8x32xf32>
    %cst_30 = arith.constant dense<0.000000e+00> : vector<8x32xf32>
    %52 = tpu.matmul %50, %51, %cst_30 {dimension_numbers = #tpu.dot_dimension_numbers<[1], [0], [0], [1], [0, 0, 1, 1], [], []>} : vector<8x8xf32>, vector<8x32xf32>, vector<8x32xf32> -> vector<8x32xf32>
    %53 = vector.extract_strided_slice %29 {offsets = [0, 8], sizes = [8, 8], strides = [1, 1]} : vector<8x32xf32> to vector<8x8xf32>
    %54 = vector.extract_strided_slice %30 {offsets = [0, 8], sizes = [8, 8], strides = [1, 1]} : vector<8x32xf32> to vector<8x8xf32>
    %55 = vector.extract_strided_slice %31 {offsets = [0, 8], sizes = [8, 8], strides = [1, 1]} : vector<8x32xf32> to vector<8x8xf32>
    %56 = tpu.transpose %54, [1, 0] : vector<8x8xf32> -> vector<8x8xf32>
    %cst_31 = arith.constant dense<0.000000e+00> : vector<8x8xf32>
    %57 = tpu.matmul %53, %56, %cst_31 {dimension_numbers = #tpu.dot_dimension_numbers<[1], [0], [0], [1], [0, 0, 1, 1], [], []>} : vector<8x8xf32>, vector<8x8xf32>, vector<8x8xf32> -> vector<8x8xf32>
    %58 = arith.addf %57, %7 : vector<8x8xf32>
    %cst_32 = arith.constant dense<0xFF800000> : vector<8xf32>
    %59 = vector.multi_reduction <maximumf>, %58, %cst_32 [1] : vector<8x8xf32> to vector<8xf32>
    %60 = vector.shape_cast %59 : vector<8xf32> to vector<8x1xf32>
    %61 = vector.broadcast %60 : vector<8x1xf32> to vector<8x8xf32>
    %62 = arith.subf %58, %61 : vector<8x8xf32>
    %63 = math.exp %62 : vector<8x8xf32>
    %cst_33 = arith.constant dense<0.000000e+00> : vector<8xf32>
    %64 = vector.multi_reduction <add>, %63, %cst_33 [1] : vector<8x8xf32> to vector<8xf32>
    %65 = vector.shape_cast %64 : vector<8xf32> to vector<8x1xf32>
    %66 = tpu.reciprocal %65 {approx = true} : vector<8x1xf32> -> vector<8x1xf32>
    %67 = vector.broadcast %66 : vector<8x1xf32> to vector<8x8xf32>
    %68 = arith.mulf %63, %67 : vector<8x8xf32>
    %cst_34 = arith.constant dense<0.000000e+00> : vector<8x8xf32>
    %69 = tpu.matmul %68, %55, %cst_34 {dimension_numbers = #tpu.dot_dimension_numbers<[1], [0], [0], [1], [0, 0, 1, 1], [], []>} : vector<8x8xf32>, vector<8x8xf32>, vector<8x8xf32> -> vector<8x8xf32>
    %70 = vector.extract_strided_slice %33 {offsets = [8, 0], sizes = [8, 32], strides = [1, 1]} : vector<32x32xf32> to vector<8x32xf32>
    %cst_35 = arith.constant dense<0.000000e+00> : vector<8x32xf32>
    %71 = tpu.matmul %69, %70, %cst_35 {dimension_numbers = #tpu.dot_dimension_numbers<[1], [0], [0], [1], [0, 0, 1, 1], [], []>} : vector<8x8xf32>, vector<8x32xf32>, vector<8x32xf32> -> vector<8x32xf32>
    %72 = arith.addf %52, %71 : vector<8x32xf32>
    %73 = vector.extract_strided_slice %29 {offsets = [0, 16], sizes = [8, 8], strides = [1, 1]} : vector<8x32xf32> to vector<8x8xf32>
    %74 = vector.extract_strided_slice %30 {offsets = [0, 16], sizes = [8, 8], strides = [1, 1]} : vector<8x32xf32> to vector<8x8xf32>
    %75 = vector.extract_strided_slice %31 {offsets = [0, 16], sizes = [8, 8], strides = [1, 1]} : vector<8x32xf32> to vector<8x8xf32>
    %76 = tpu.transpose %74, [1, 0] : vector<8x8xf32> -> vector<8x8xf32>
    %cst_36 = arith.constant dense<0.000000e+00> : vector<8x8xf32>
    %77 = tpu.matmul %73, %76, %cst_36 {dimension_numbers = #tpu.dot_dimension_numbers<[1], [0], [0], [1], [0, 0, 1, 1], [], []>} : vector<8x8xf32>, vector<8x8xf32>, vector<8x8xf32> -> vector<8x8xf32>
    %78 = arith.addf %77, %9 : vector<8x8xf32>
    %cst_37 = arith.constant dense<0xFF800000> : vector<8xf32>
    %79 = vector.multi_reduction <maximumf>, %78, %cst_37 [1] : vector<8x8xf32> to vector<8xf32>
    %80 = vector.shape_cast %79 : vector<8xf32> to vector<8x1xf32>
    %81 = vector.broadcast %80 : vector<8x1xf32> to vector<8x8xf32>
    %82 = arith.subf %78, %81 : vector<8x8xf32>
    %83 = math.exp %82 : vector<8x8xf32>
    %cst_38 = arith.constant dense<0.000000e+00> : vector<8xf32>
    %84 = vector.multi_reduction <add>, %83, %cst_38 [1] : vector<8x8xf32> to vector<8xf32>
    %85 = vector.shape_cast %84 : vector<8xf32> to vector<8x1xf32>
    %86 = tpu.reciprocal %85 {approx = true} : vector<8x1xf32> -> vector<8x1xf32>
    %87 = vector.broadcast %86 : vector<8x1xf32> to vector<8x8xf32>
    %88 = arith.mulf %83, %87 : vector<8x8xf32>
    %cst_39 = arith.constant dense<0.000000e+00> : vector<8x8xf32>
    %89 = tpu.matmul %88, %75, %cst_39 {dimension_numbers = #tpu.dot_dimension_numbers<[1], [0], [0], [1], [0, 0, 1, 1], [], []>} : vector<8x8xf32>, vector<8x8xf32>, vector<8x8xf32> -> vector<8x8xf32>
    %90 = vector.extract_strided_slice %33 {offsets = [16, 0], sizes = [8, 32], strides = [1, 1]} : vector<32x32xf32> to vector<8x32xf32>
    %cst_40 = arith.constant dense<0.000000e+00> : vector<8x32xf32>
    %91 = tpu.matmul %89, %90, %cst_40 {dimension_numbers = #tpu.dot_dimension_numbers<[1], [0], [0], [1], [0, 0, 1, 1], [], []>} : vector<8x8xf32>, vector<8x32xf32>, vector<8x32xf32> -> vector<8x32xf32>
    %92 = arith.addf %72, %91 : vector<8x32xf32>
    %93 = vector.extract_strided_slice %29 {offsets = [0, 24], sizes = [8, 8], strides = [1, 1]} : vector<8x32xf32> to vector<8x8xf32>
    %94 = vector.extract_strided_slice %30 {offsets = [0, 24], sizes = [8, 8], strides = [1, 1]} : vector<8x32xf32> to vector<8x8xf32>
    %95 = vector.extract_strided_slice %31 {offsets = [0, 24], sizes = [8, 8], strides = [1, 1]} : vector<8x32xf32> to vector<8x8xf32>
    %96 = tpu.transpose %94, [1, 0] : vector<8x8xf32> -> vector<8x8xf32>
    %cst_41 = arith.constant dense<0.000000e+00> : vector<8x8xf32>
    %97 = tpu.matmul %93, %96, %cst_41 {dimension_numbers = #tpu.dot_dimension_numbers<[1], [0], [0], [1], [0, 0, 1, 1], [], []>} : vector<8x8xf32>, vector<8x8xf32>, vector<8x8xf32> -> vector<8x8xf32>
    %98 = arith.addf %97, %11 : vector<8x8xf32>
    %cst_42 = arith.constant dense<0xFF800000> : vector<8xf32>
    %99 = vector.multi_reduction <maximumf>, %98, %cst_42 [1] : vector<8x8xf32> to vector<8xf32>
    %100 = vector.shape_cast %99 : vector<8xf32> to vector<8x1xf32>
    %101 = vector.broadcast %100 : vector<8x1xf32> to vector<8x8xf32>
    %102 = arith.subf %98, %101 : vector<8x8xf32>
    %103 = math.exp %102 : vector<8x8xf32>
    %cst_43 = arith.constant dense<0.000000e+00> : vector<8xf32>
    %104 = vector.multi_reduction <add>, %103, %cst_43 [1] : vector<8x8xf32> to vector<8xf32>
    %105 = vector.shape_cast %104 : vector<8xf32> to vector<8x1xf32>
    %106 = tpu.reciprocal %105 {approx = true} : vector<8x1xf32> -> vector<8x1xf32>
    %107 = vector.broadcast %106 : vector<8x1xf32> to vector<8x8xf32>
    %108 = arith.mulf %103, %107 : vector<8x8xf32>
    %cst_44 = arith.constant dense<0.000000e+00> : vector<8x8xf32>
    %109 = tpu.matmul %108, %95, %cst_44 {dimension_numbers = #tpu.dot_dimension_numbers<[1], [0], [0], [1], [0, 0, 1, 1], [], []>} : vector<8x8xf32>, vector<8x8xf32>, vector<8x8xf32> -> vector<8x8xf32>
    %110 = vector.extract_strided_slice %33 {offsets = [24, 0], sizes = [8, 32], strides = [1, 1]} : vector<32x32xf32> to vector<8x32xf32>
    %cst_45 = arith.constant dense<0.000000e+00> : vector<8x32xf32>
    %111 = tpu.matmul %109, %110, %cst_45 {dimension_numbers = #tpu.dot_dimension_numbers<[1], [0], [0], [1], [0, 0, 1, 1], [], []>} : vector<8x8xf32>, vector<8x32xf32>, vector<8x32xf32> -> vector<8x32xf32>
    %112 = arith.addf %92, %111 : vector<8x32xf32>
    %113 = arith.addf %1, %112 : vector<8x32xf32>
    %c0_46 = arith.constant 0 : index
    %c0_47 = arith.constant 0 : index
    %c0_48 = arith.constant 0 : index
    %114 = vector.load %arg8[%c0_46, %c0_47, %c0_48] : memref<2x1x32xf32, #tpu.memory_space<vmem>>, vector<1x1x32xf32>
    %115 = vector.shape_cast %114 : vector<1x1x32xf32> to vector<1x32xf32>
    %116 = arith.mulf %113, %113 : vector<8x32xf32>
    %cst_49 = arith.constant dense<0.000000e+00> : vector<8xf32>
    %117 = vector.multi_reduction <add>, %116, %cst_49 [1] : vector<8x32xf32> to vector<8xf32>
    %118 = vector.shape_cast %117 : vector<8xf32> to vector<8x1xf32>
    %cst_50 = arith.constant 3.200000e+01 : f32
    %119 = vector.broadcast %cst_50 : f32 to vector<8x1xf32>
    %120 = arith.divf %118, %119 : vector<8x1xf32>
    %cst_51 = arith.constant 9.99999997E-7 : f32
    %121 = vector.broadcast %cst_51 : f32 to vector<8x1xf32>
    %122 = arith.addf %120, %121 : vector<8x1xf32>
    %123 = math.rsqrt %122 : vector<8x1xf32>
    %124 = vector.broadcast %123 : vector<8x1xf32> to vector<8x32xf32>
    %125 = arith.mulf %113, %124 : vector<8x32xf32>
    %126 = vector.broadcast %115 : vector<1x32xf32> to vector<8x32xf32>
    %127 = arith.mulf %125, %126 : vector<8x32xf32>
    %c0_52 = arith.constant 0 : index
    %c0_53 = arith.constant 0 : index
    %c0_54 = arith.constant 0 : index
    %128 = vector.load %arg9[%c0_52, %c0_53, %c0_54] : memref<2x32x32xf32, #tpu.memory_space<vmem>>, vector<1x32x32xf32>
    %129 = vector.shape_cast %128 : vector<1x32x32xf32> to vector<32x32xf32>
    %cst_55 = arith.constant dense<0.000000e+00> : vector<8x32xf32>
    %130 = tpu.matmul %127, %129, %cst_55 {dimension_numbers = #tpu.dot_dimension_numbers<[1], [0], [0], [1], [0, 0, 1, 1], [], []>} : vector<8x32xf32>, vector<32x32xf32>, vector<8x32xf32> -> vector<8x32xf32>
    %c0_56 = arith.constant 0 : index
    %c0_57 = arith.constant 0 : index
    %c0_58 = arith.constant 0 : index
    %131 = vector.load %arg10[%c0_56, %c0_57, %c0_58] : memref<2x32x64xf32, #tpu.memory_space<vmem>>, vector<1x32x64xf32>
    %132 = vector.shape_cast %131 : vector<1x32x64xf32> to vector<32x64xf32>
    %cst_59 = arith.constant dense<0.000000e+00> : vector<8x64xf32>
    %133 = tpu.matmul %3, %132, %cst_59 {dimension_numbers = #tpu.dot_dimension_numbers<[1], [0], [0], [1], [0, 0, 1, 1], [], []>} : vector<8x32xf32>, vector<32x64xf32>, vector<8x64xf32> -> vector<8x64xf32>
    %134 = vector.extract_strided_slice %133 {offsets = [0, 0], sizes = [8, 32], strides = [1, 1]} : vector<8x64xf32> to vector<8x32xf32>
    %135 = vector.extract_strided_slice %133 {offsets = [0, 32], sizes = [8, 32], strides = [1, 1]} : vector<8x64xf32> to vector<8x32xf32>
    %c0_60 = arith.constant 0 : index
    %c0_61 = arith.constant 0 : index
    %c0_62 = arith.constant 0 : index
    %136 = vector.load %arg11[%c0_60, %c0_61, %c0_62] : memref<2x32x32xf32, #tpu.memory_space<vmem>>, vector<1x32x32xf32>
    %137 = vector.shape_cast %136 : vector<1x32x32xf32> to vector<32x32xf32>
    %138 = vector.extract_strided_slice %130 {offsets = [0, 0], sizes = [8, 8], strides = [1, 1]} : vector<8x32xf32> to vector<8x8xf32>
    %139 = vector.extract_strided_slice %134 {offsets = [0, 0], sizes = [8, 8], strides = [1, 1]} : vector<8x32xf32> to vector<8x8xf32>
    %140 = vector.extract_strided_slice %135 {offsets = [0, 0], sizes = [8, 8], strides = [1, 1]} : vector<8x32xf32> to vector<8x8xf32>
    %141 = tpu.transpose %139, [1, 0] : vector<8x8xf32> -> vector<8x8xf32>
    %cst_63 = arith.constant dense<0.000000e+00> : vector<8x8xf32>
    %142 = tpu.matmul %138, %141, %cst_63 {dimension_numbers = #tpu.dot_dimension_numbers<[1], [0], [0], [1], [0, 0, 1, 1], [], []>} : vector<8x8xf32>, vector<8x8xf32>, vector<8x8xf32> -> vector<8x8xf32>
    %cst_64 = arith.constant dense<0xFF800000> : vector<8xf32>
    %143 = vector.multi_reduction <maximumf>, %142, %cst_64 [1] : vector<8x8xf32> to vector<8xf32>
    %144 = vector.shape_cast %143 : vector<8xf32> to vector<8x1xf32>
    %145 = vector.broadcast %144 : vector<8x1xf32> to vector<8x8xf32>
    %146 = arith.subf %142, %145 : vector<8x8xf32>
    %147 = math.exp %146 : vector<8x8xf32>
    %cst_65 = arith.constant dense<0.000000e+00> : vector<8xf32>
    %148 = vector.multi_reduction <add>, %147, %cst_65 [1] : vector<8x8xf32> to vector<8xf32>
    %149 = vector.shape_cast %148 : vector<8xf32> to vector<8x1xf32>
    %150 = tpu.reciprocal %149 {approx = true} : vector<8x1xf32> -> vector<8x1xf32>
    %151 = vector.broadcast %150 : vector<8x1xf32> to vector<8x8xf32>
    %152 = arith.mulf %147, %151 : vector<8x8xf32>
    %cst_66 = arith.constant dense<0.000000e+00> : vector<8x8xf32>
    %153 = tpu.matmul %152, %140, %cst_66 {dimension_numbers = #tpu.dot_dimension_numbers<[1], [0], [0], [1], [0, 0, 1, 1], [], []>} : vector<8x8xf32>, vector<8x8xf32>, vector<8x8xf32> -> vector<8x8xf32>
    %154 = vector.extract_strided_slice %137 {offsets = [0, 0], sizes = [8, 32], strides = [1, 1]} : vector<32x32xf32> to vector<8x32xf32>
    %cst_67 = arith.constant dense<0.000000e+00> : vector<8x32xf32>
    %155 = tpu.matmul %153, %154, %cst_67 {dimension_numbers = #tpu.dot_dimension_numbers<[1], [0], [0], [1], [0, 0, 1, 1], [], []>} : vector<8x8xf32>, vector<8x32xf32>, vector<8x32xf32> -> vector<8x32xf32>
    %156 = vector.extract_strided_slice %130 {offsets = [0, 8], sizes = [8, 8], strides = [1, 1]} : vector<8x32xf32> to vector<8x8xf32>
    %157 = vector.extract_strided_slice %134 {offsets = [0, 8], sizes = [8, 8], strides = [1, 1]} : vector<8x32xf32> to vector<8x8xf32>
    %158 = vector.extract_strided_slice %135 {offsets = [0, 8], sizes = [8, 8], strides = [1, 1]} : vector<8x32xf32> to vector<8x8xf32>
    %159 = tpu.transpose %157, [1, 0] : vector<8x8xf32> -> vector<8x8xf32>
    %cst_68 = arith.constant dense<0.000000e+00> : vector<8x8xf32>
    %160 = tpu.matmul %156, %159, %cst_68 {dimension_numbers = #tpu.dot_dimension_numbers<[1], [0], [0], [1], [0, 0, 1, 1], [], []>} : vector<8x8xf32>, vector<8x8xf32>, vector<8x8xf32> -> vector<8x8xf32>
    %cst_69 = arith.constant dense<0xFF800000> : vector<8xf32>
    %161 = vector.multi_reduction <maximumf>, %160, %cst_69 [1] : vector<8x8xf32> to vector<8xf32>
    %162 = vector.shape_cast %161 : vector<8xf32> to vector<8x1xf32>
    %163 = vector.broadcast %162 : vector<8x1xf32> to vector<8x8xf32>
    %164 = arith.subf %160, %163 : vector<8x8xf32>
    %165 = math.exp %164 : vector<8x8xf32>
    %cst_70 = arith.constant dense<0.000000e+00> : vector<8xf32>
    %166 = vector.multi_reduction <add>, %165, %cst_70 [1] : vector<8x8xf32> to vector<8xf32>
    %167 = vector.shape_cast %166 : vector<8xf32> to vector<8x1xf32>
    %168 = tpu.reciprocal %167 {approx = true} : vector<8x1xf32> -> vector<8x1xf32>
    %169 = vector.broadcast %168 : vector<8x1xf32> to vector<8x8xf32>
    %170 = arith.mulf %165, %169 : vector<8x8xf32>
    %cst_71 = arith.constant dense<0.000000e+00> : vector<8x8xf32>
    %171 = tpu.matmul %170, %158, %cst_71 {dimension_numbers = #tpu.dot_dimension_numbers<[1], [0], [0], [1], [0, 0, 1, 1], [], []>} : vector<8x8xf32>, vector<8x8xf32>, vector<8x8xf32> -> vector<8x8xf32>
    %172 = vector.extract_strided_slice %137 {offsets = [8, 0], sizes = [8, 32], strides = [1, 1]} : vector<32x32xf32> to vector<8x32xf32>
    %cst_72 = arith.constant dense<0.000000e+00> : vector<8x32xf32>
    %173 = tpu.matmul %171, %172, %cst_72 {dimension_numbers = #tpu.dot_dimension_numbers<[1], [0], [0], [1], [0, 0, 1, 1], [], []>} : vector<8x8xf32>, vector<8x32xf32>, vector<8x32xf32> -> vector<8x32xf32>
    %174 = arith.addf %155, %173 : vector<8x32xf32>
    %175 = vector.extract_strided_slice %130 {offsets = [0, 16], sizes = [8, 8], strides = [1, 1]} : vector<8x32xf32> to vector<8x8xf32>
    %176 = vector.extract_strided_slice %134 {offsets = [0, 16], sizes = [8, 8], strides = [1, 1]} : vector<8x32xf32> to vector<8x8xf32>
    %177 = vector.extract_strided_slice %135 {offsets = [0, 16], sizes = [8, 8], strides = [1, 1]} : vector<8x32xf32> to vector<8x8xf32>
    %178 = tpu.transpose %176, [1, 0] : vector<8x8xf32> -> vector<8x8xf32>
    %cst_73 = arith.constant dense<0.000000e+00> : vector<8x8xf32>
    %179 = tpu.matmul %175, %178, %cst_73 {dimension_numbers = #tpu.dot_dimension_numbers<[1], [0], [0], [1], [0, 0, 1, 1], [], []>} : vector<8x8xf32>, vector<8x8xf32>, vector<8x8xf32> -> vector<8x8xf32>
    %cst_74 = arith.constant dense<0xFF800000> : vector<8xf32>
    %180 = vector.multi_reduction <maximumf>, %179, %cst_74 [1] : vector<8x8xf32> to vector<8xf32>
    %181 = vector.shape_cast %180 : vector<8xf32> to vector<8x1xf32>
    %182 = vector.broadcast %181 : vector<8x1xf32> to vector<8x8xf32>
    %183 = arith.subf %179, %182 : vector<8x8xf32>
    %184 = math.exp %183 : vector<8x8xf32>
    %cst_75 = arith.constant dense<0.000000e+00> : vector<8xf32>
    %185 = vector.multi_reduction <add>, %184, %cst_75 [1] : vector<8x8xf32> to vector<8xf32>
    %186 = vector.shape_cast %185 : vector<8xf32> to vector<8x1xf32>
    %187 = tpu.reciprocal %186 {approx = true} : vector<8x1xf32> -> vector<8x1xf32>
    %188 = vector.broadcast %187 : vector<8x1xf32> to vector<8x8xf32>
    %189 = arith.mulf %184, %188 : vector<8x8xf32>
    %cst_76 = arith.constant dense<0.000000e+00> : vector<8x8xf32>
    %190 = tpu.matmul %189, %177, %cst_76 {dimension_numbers = #tpu.dot_dimension_numbers<[1], [0], [0], [1], [0, 0, 1, 1], [], []>} : vector<8x8xf32>, vector<8x8xf32>, vector<8x8xf32> -> vector<8x8xf32>
    %191 = vector.extract_strided_slice %137 {offsets = [16, 0], sizes = [8, 32], strides = [1, 1]} : vector<32x32xf32> to vector<8x32xf32>
    %cst_77 = arith.constant dense<0.000000e+00> : vector<8x32xf32>
    %192 = tpu.matmul %190, %191, %cst_77 {dimension_numbers = #tpu.dot_dimension_numbers<[1], [0], [0], [1], [0, 0, 1, 1], [], []>} : vector<8x8xf32>, vector<8x32xf32>, vector<8x32xf32> -> vector<8x32xf32>
    %193 = arith.addf %174, %192 : vector<8x32xf32>
    %194 = vector.extract_strided_slice %130 {offsets = [0, 24], sizes = [8, 8], strides = [1, 1]} : vector<8x32xf32> to vector<8x8xf32>
    %195 = vector.extract_strided_slice %134 {offsets = [0, 24], sizes = [8, 8], strides = [1, 1]} : vector<8x32xf32> to vector<8x8xf32>
    %196 = vector.extract_strided_slice %135 {offsets = [0, 24], sizes = [8, 8], strides = [1, 1]} : vector<8x32xf32> to vector<8x8xf32>
    %197 = tpu.transpose %195, [1, 0] : vector<8x8xf32> -> vector<8x8xf32>
    %cst_78 = arith.constant dense<0.000000e+00> : vector<8x8xf32>
    %198 = tpu.matmul %194, %197, %cst_78 {dimension_numbers = #tpu.dot_dimension_numbers<[1], [0], [0], [1], [0, 0, 1, 1], [], []>} : vector<8x8xf32>, vector<8x8xf32>, vector<8x8xf32> -> vector<8x8xf32>
    %cst_79 = arith.constant dense<0xFF800000> : vector<8xf32>
    %199 = vector.multi_reduction <maximumf>, %198, %cst_79 [1] : vector<8x8xf32> to vector<8xf32>
    %200 = vector.shape_cast %199 : vector<8xf32> to vector<8x1xf32>
    %201 = vector.broadcast %200 : vector<8x1xf32> to vector<8x8xf32>
    %202 = arith.subf %198, %201 : vector<8x8xf32>
    %203 = math.exp %202 : vector<8x8xf32>
    %cst_80 = arith.constant dense<0.000000e+00> : vector<8xf32>
    %204 = vector.multi_reduction <add>, %203, %cst_80 [1] : vector<8x8xf32> to vector<8xf32>
    %205 = vector.shape_cast %204 : vector<8xf32> to vector<8x1xf32>
    %206 = tpu.reciprocal %205 {approx = true} : vector<8x1xf32> -> vector<8x1xf32>
    %207 = vector.broadcast %206 : vector<8x1xf32> to vector<8x8xf32>
    %208 = arith.mulf %203, %207 : vector<8x8xf32>
    %cst_81 = arith.constant dense<0.000000e+00> : vector<8x8xf32>
    %209 = tpu.matmul %208, %196, %cst_81 {dimension_numbers = #tpu.dot_dimension_numbers<[1], [0], [0], [1], [0, 0, 1, 1], [], []>} : vector<8x8xf32>, vector<8x8xf32>, vector<8x8xf32> -> vector<8x8xf32>
    %210 = vector.extract_strided_slice %137 {offsets = [24, 0], sizes = [8, 32], strides = [1, 1]} : vector<32x32xf32> to vector<8x32xf32>
    %cst_82 = arith.constant dense<0.000000e+00> : vector<8x32xf32>
    %211 = tpu.matmul %209, %210, %cst_82 {dimension_numbers = #tpu.dot_dimension_numbers<[1], [0], [0], [1], [0, 0, 1, 1], [], []>} : vector<8x8xf32>, vector<8x32xf32>, vector<8x32xf32> -> vector<8x32xf32>
    %212 = arith.addf %193, %211 : vector<8x32xf32>
    %213 = arith.addf %113, %212 : vector<8x32xf32>
    %c0_83 = arith.constant 0 : index
    %c0_84 = arith.constant 0 : index
    %c0_85 = arith.constant 0 : index
    %214 = vector.load %arg12[%c0_83, %c0_84, %c0_85] : memref<2x1x32xf32, #tpu.memory_space<vmem>>, vector<1x1x32xf32>
    %215 = vector.shape_cast %214 : vector<1x1x32xf32> to vector<1x32xf32>
    %216 = arith.mulf %213, %213 : vector<8x32xf32>
    %cst_86 = arith.constant dense<0.000000e+00> : vector<8xf32>
    %217 = vector.multi_reduction <add>, %216, %cst_86 [1] : vector<8x32xf32> to vector<8xf32>
    %218 = vector.shape_cast %217 : vector<8xf32> to vector<8x1xf32>
    %cst_87 = arith.constant 3.200000e+01 : f32
    %219 = vector.broadcast %cst_87 : f32 to vector<8x1xf32>
    %220 = arith.divf %218, %219 : vector<8x1xf32>
    %cst_88 = arith.constant 9.99999997E-7 : f32
    %221 = vector.broadcast %cst_88 : f32 to vector<8x1xf32>
    %222 = arith.addf %220, %221 : vector<8x1xf32>
    %223 = math.rsqrt %222 : vector<8x1xf32>
    %224 = vector.broadcast %223 : vector<8x1xf32> to vector<8x32xf32>
    %225 = arith.mulf %213, %224 : vector<8x32xf32>
    %226 = vector.broadcast %215 : vector<1x32xf32> to vector<8x32xf32>
    %227 = arith.mulf %225, %226 : vector<8x32xf32>
    %c0_89 = arith.constant 0 : index
    %c0_90 = arith.constant 0 : index
    %c0_91 = arith.constant 0 : index
    %228 = vector.load %arg13[%c0_89, %c0_90, %c0_91] : memref<2x32x64xf32, #tpu.memory_space<vmem>>, vector<1x32x64xf32>
    %229 = vector.shape_cast %228 : vector<1x32x64xf32> to vector<32x64xf32>
    %cst_92 = arith.constant dense<0.000000e+00> : vector<8x64xf32>
    %230 = tpu.matmul %227, %229, %cst_92 {dimension_numbers = #tpu.dot_dimension_numbers<[1], [0], [0], [1], [0, 0, 1, 1], [], []>} : vector<8x32xf32>, vector<32x64xf32>, vector<8x64xf32> -> vector<8x64xf32>
    %cst_93 = arith.constant 0.000000e+00 : f32
    %231 = vector.broadcast %cst_93 : f32 to vector<8x64xf32>
    %232 = arith.maximumf %230, %231 : vector<8x64xf32>
    %c0_94 = arith.constant 0 : index
    %c0_95 = arith.constant 0 : index
    %c0_96 = arith.constant 0 : index
    %233 = vector.load %arg14[%c0_94, %c0_95, %c0_96] : memref<2x64x32xf32, #tpu.memory_space<vmem>>, vector<1x64x32xf32>
    %234 = vector.shape_cast %233 : vector<1x64x32xf32> to vector<64x32xf32>
    %cst_97 = arith.constant dense<0.000000e+00> : vector<8x32xf32>
    %235 = tpu.matmul %232, %234, %cst_97 {dimension_numbers = #tpu.dot_dimension_numbers<[1], [0], [0], [1], [0, 0, 1, 1], [], []>} : vector<8x64xf32>, vector<64x32xf32>, vector<8x32xf32> -> vector<8x32xf32>
    %236 = arith.addf %213, %235 : vector<8x32xf32>
    %c1_98 = arith.constant 1 : index
    %c0_99 = arith.constant 0 : index
    %c0_100 = arith.constant 0 : index
    %237 = vector.load %arg5[%c1_98, %c0_99, %c0_100] : memref<2x1x32xf32, #tpu.memory_space<vmem>>, vector<1x1x32xf32>
    %238 = vector.shape_cast %237 : vector<1x1x32xf32> to vector<1x32xf32>
    %239 = arith.mulf %236, %236 : vector<8x32xf32>
    %cst_101 = arith.constant dense<0.000000e+00> : vector<8xf32>
    %240 = vector.multi_reduction <add>, %239, %cst_101 [1] : vector<8x32xf32> to vector<8xf32>
    %241 = vector.shape_cast %240 : vector<8xf32> to vector<8x1xf32>
    %cst_102 = arith.constant 3.200000e+01 : f32
    %242 = vector.broadcast %cst_102 : f32 to vector<8x1xf32>
    %243 = arith.divf %241, %242 : vector<8x1xf32>
    %cst_103 = arith.constant 9.99999997E-7 : f32
    %244 = vector.broadcast %cst_103 : f32 to vector<8x1xf32>
    %245 = arith.addf %243, %244 : vector<8x1xf32>
    %246 = math.rsqrt %245 : vector<8x1xf32>
    %247 = vector.broadcast %246 : vector<8x1xf32> to vector<8x32xf32>
    %248 = arith.mulf %236, %247 : vector<8x32xf32>
    %249 = vector.broadcast %238 : vector<1x32xf32> to vector<8x32xf32>
    %250 = arith.mulf %248, %249 : vector<8x32xf32>
    %c1_104 = arith.constant 1 : index
    %c0_105 = arith.constant 0 : index
    %c0_106 = arith.constant 0 : index
    %251 = vector.load %arg6[%c1_104, %c0_105, %c0_106] : memref<2x32x96xf32, #tpu.memory_space<vmem>>, vector<1x32x96xf32>
    %252 = vector.shape_cast %251 : vector<1x32x96xf32> to vector<32x96xf32>
    %cst_107 = arith.constant dense<0.000000e+00> : vector<8x96xf32>
    %253 = tpu.matmul %250, %252, %cst_107 {dimension_numbers = #tpu.dot_dimension_numbers<[1], [0], [0], [1], [0, 0, 1, 1], [], []>} : vector<8x32xf32>, vector<32x96xf32>, vector<8x96xf32> -> vector<8x96xf32>
    %254 = vector.extract_strided_slice %253 {offsets = [0, 0], sizes = [8, 32], strides = [1, 1]} : vector<8x96xf32> to vector<8x32xf32>
    %255 = vector.extract_strided_slice %253 {offsets = [0, 32], sizes = [8, 32], strides = [1, 1]} : vector<8x96xf32> to vector<8x32xf32>
    %256 = vector.extract_strided_slice %253 {offsets = [0, 64], sizes = [8, 32], strides = [1, 1]} : vector<8x96xf32> to vector<8x32xf32>
    %c1_108 = arith.constant 1 : index
    %c0_109 = arith.constant 0 : index
    %c0_110 = arith.constant 0 : index
    %257 = vector.load %arg7[%c1_108, %c0_109, %c0_110] : memref<2x32x32xf32, #tpu.memory_space<vmem>>, vector<1x32x32xf32>
    %258 = vector.shape_cast %257 : vector<1x32x32xf32> to vector<32x32xf32>
    %259 = vector.extract_strided_slice %254 {offsets = [0, 0], sizes = [8, 8], strides = [1, 1]} : vector<8x32xf32> to vector<8x8xf32>
    %260 = vector.extract_strided_slice %255 {offsets = [0, 0], sizes = [8, 8], strides = [1, 1]} : vector<8x32xf32> to vector<8x8xf32>
    %261 = vector.extract_strided_slice %256 {offsets = [0, 0], sizes = [8, 8], strides = [1, 1]} : vector<8x32xf32> to vector<8x8xf32>
    %262 = tpu.transpose %260, [1, 0] : vector<8x8xf32> -> vector<8x8xf32>
    %cst_111 = arith.constant dense<0.000000e+00> : vector<8x8xf32>
    %263 = tpu.matmul %259, %262, %cst_111 {dimension_numbers = #tpu.dot_dimension_numbers<[1], [0], [0], [1], [0, 0, 1, 1], [], []>} : vector<8x8xf32>, vector<8x8xf32>, vector<8x8xf32> -> vector<8x8xf32>
    %264 = arith.addf %263, %5 : vector<8x8xf32>
    %cst_112 = arith.constant dense<0xFF800000> : vector<8xf32>
    %265 = vector.multi_reduction <maximumf>, %264, %cst_112 [1] : vector<8x8xf32> to vector<8xf32>
    %266 = vector.shape_cast %265 : vector<8xf32> to vector<8x1xf32>
    %267 = vector.broadcast %266 : vector<8x1xf32> to vector<8x8xf32>
    %268 = arith.subf %264, %267 : vector<8x8xf32>
    %269 = math.exp %268 : vector<8x8xf32>
    %cst_113 = arith.constant dense<0.000000e+00> : vector<8xf32>
    %270 = vector.multi_reduction <add>, %269, %cst_113 [1] : vector<8x8xf32> to vector<8xf32>
    %271 = vector.shape_cast %270 : vector<8xf32> to vector<8x1xf32>
    %272 = tpu.reciprocal %271 {approx = true} : vector<8x1xf32> -> vector<8x1xf32>
    %273 = vector.broadcast %272 : vector<8x1xf32> to vector<8x8xf32>
    %274 = arith.mulf %269, %273 : vector<8x8xf32>
    %cst_114 = arith.constant dense<0.000000e+00> : vector<8x8xf32>
    %275 = tpu.matmul %274, %261, %cst_114 {dimension_numbers = #tpu.dot_dimension_numbers<[1], [0], [0], [1], [0, 0, 1, 1], [], []>} : vector<8x8xf32>, vector<8x8xf32>, vector<8x8xf32> -> vector<8x8xf32>
    %276 = vector.extract_strided_slice %258 {offsets = [0, 0], sizes = [8, 32], strides = [1, 1]} : vector<32x32xf32> to vector<8x32xf32>
    %cst_115 = arith.constant dense<0.000000e+00> : vector<8x32xf32>
    %277 = tpu.matmul %275, %276, %cst_115 {dimension_numbers = #tpu.dot_dimension_numbers<[1], [0], [0], [1], [0, 0, 1, 1], [], []>} : vector<8x8xf32>, vector<8x32xf32>, vector<8x32xf32> -> vector<8x32xf32>
    %278 = vector.extract_strided_slice %254 {offsets = [0, 8], sizes = [8, 8], strides = [1, 1]} : vector<8x32xf32> to vector<8x8xf32>
    %279 = vector.extract_strided_slice %255 {offsets = [0, 8], sizes = [8, 8], strides = [1, 1]} : vector<8x32xf32> to vector<8x8xf32>
    %280 = vector.extract_strided_slice %256 {offsets = [0, 8], sizes = [8, 8], strides = [1, 1]} : vector<8x32xf32> to vector<8x8xf32>
    %281 = tpu.transpose %279, [1, 0] : vector<8x8xf32> -> vector<8x8xf32>
    %cst_116 = arith.constant dense<0.000000e+00> : vector<8x8xf32>
    %282 = tpu.matmul %278, %281, %cst_116 {dimension_numbers = #tpu.dot_dimension_numbers<[1], [0], [0], [1], [0, 0, 1, 1], [], []>} : vector<8x8xf32>, vector<8x8xf32>, vector<8x8xf32> -> vector<8x8xf32>
    %283 = arith.addf %282, %7 : vector<8x8xf32>
    %cst_117 = arith.constant dense<0xFF800000> : vector<8xf32>
    %284 = vector.multi_reduction <maximumf>, %283, %cst_117 [1] : vector<8x8xf32> to vector<8xf32>
    %285 = vector.shape_cast %284 : vector<8xf32> to vector<8x1xf32>
    %286 = vector.broadcast %285 : vector<8x1xf32> to vector<8x8xf32>
    %287 = arith.subf %283, %286 : vector<8x8xf32>
    %288 = math.exp %287 : vector<8x8xf32>
    %cst_118 = arith.constant dense<0.000000e+00> : vector<8xf32>
    %289 = vector.multi_reduction <add>, %288, %cst_118 [1] : vector<8x8xf32> to vector<8xf32>
    %290 = vector.shape_cast %289 : vector<8xf32> to vector<8x1xf32>
    %291 = tpu.reciprocal %290 {approx = true} : vector<8x1xf32> -> vector<8x1xf32>
    %292 = vector.broadcast %291 : vector<8x1xf32> to vector<8x8xf32>
    %293 = arith.mulf %288, %292 : vector<8x8xf32>
    %cst_119 = arith.constant dense<0.000000e+00> : vector<8x8xf32>
    %294 = tpu.matmul %293, %280, %cst_119 {dimension_numbers = #tpu.dot_dimension_numbers<[1], [0], [0], [1], [0, 0, 1, 1], [], []>} : vector<8x8xf32>, vector<8x8xf32>, vector<8x8xf32> -> vector<8x8xf32>
    %295 = vector.extract_strided_slice %258 {offsets = [8, 0], sizes = [8, 32], strides = [1, 1]} : vector<32x32xf32> to vector<8x32xf32>
    %cst_120 = arith.constant dense<0.000000e+00> : vector<8x32xf32>
    %296 = tpu.matmul %294, %295, %cst_120 {dimension_numbers = #tpu.dot_dimension_numbers<[1], [0], [0], [1], [0, 0, 1, 1], [], []>} : vector<8x8xf32>, vector<8x32xf32>, vector<8x32xf32> -> vector<8x32xf32>
    %297 = arith.addf %277, %296 : vector<8x32xf32>
    %298 = vector.extract_strided_slice %254 {offsets = [0, 16], sizes = [8, 8], strides = [1, 1]} : vector<8x32xf32> to vector<8x8xf32>
    %299 = vector.extract_strided_slice %255 {offsets = [0, 16], sizes = [8, 8], strides = [1, 1]} : vector<8x32xf32> to vector<8x8xf32>
    %300 = vector.extract_strided_slice %256 {offsets = [0, 16], sizes = [8, 8], strides = [1, 1]} : vector<8x32xf32> to vector<8x8xf32>
    %301 = tpu.transpose %299, [1, 0] : vector<8x8xf32> -> vector<8x8xf32>
    %cst_121 = arith.constant dense<0.000000e+00> : vector<8x8xf32>
    %302 = tpu.matmul %298, %301, %cst_121 {dimension_numbers = #tpu.dot_dimension_numbers<[1], [0], [0], [1], [0, 0, 1, 1], [], []>} : vector<8x8xf32>, vector<8x8xf32>, vector<8x8xf32> -> vector<8x8xf32>
    %303 = arith.addf %302, %9 : vector<8x8xf32>
    %cst_122 = arith.constant dense<0xFF800000> : vector<8xf32>
    %304 = vector.multi_reduction <maximumf>, %303, %cst_122 [1] : vector<8x8xf32> to vector<8xf32>
    %305 = vector.shape_cast %304 : vector<8xf32> to vector<8x1xf32>
    %306 = vector.broadcast %305 : vector<8x1xf32> to vector<8x8xf32>
    %307 = arith.subf %303, %306 : vector<8x8xf32>
    %308 = math.exp %307 : vector<8x8xf32>
    %cst_123 = arith.constant dense<0.000000e+00> : vector<8xf32>
    %309 = vector.multi_reduction <add>, %308, %cst_123 [1] : vector<8x8xf32> to vector<8xf32>
    %310 = vector.shape_cast %309 : vector<8xf32> to vector<8x1xf32>
    %311 = tpu.reciprocal %310 {approx = true} : vector<8x1xf32> -> vector<8x1xf32>
    %312 = vector.broadcast %311 : vector<8x1xf32> to vector<8x8xf32>
    %313 = arith.mulf %308, %312 : vector<8x8xf32>
    %cst_124 = arith.constant dense<0.000000e+00> : vector<8x8xf32>
    %314 = tpu.matmul %313, %300, %cst_124 {dimension_numbers = #tpu.dot_dimension_numbers<[1], [0], [0], [1], [0, 0, 1, 1], [], []>} : vector<8x8xf32>, vector<8x8xf32>, vector<8x8xf32> -> vector<8x8xf32>
    %315 = vector.extract_strided_slice %258 {offsets = [16, 0], sizes = [8, 32], strides = [1, 1]} : vector<32x32xf32> to vector<8x32xf32>
    %cst_125 = arith.constant dense<0.000000e+00> : vector<8x32xf32>
    %316 = tpu.matmul %314, %315, %cst_125 {dimension_numbers = #tpu.dot_dimension_numbers<[1], [0], [0], [1], [0, 0, 1, 1], [], []>} : vector<8x8xf32>, vector<8x32xf32>, vector<8x32xf32> -> vector<8x32xf32>
    %317 = arith.addf %297, %316 : vector<8x32xf32>
    %318 = vector.extract_strided_slice %254 {offsets = [0, 24], sizes = [8, 8], strides = [1, 1]} : vector<8x32xf32> to vector<8x8xf32>
    %319 = vector.extract_strided_slice %255 {offsets = [0, 24], sizes = [8, 8], strides = [1, 1]} : vector<8x32xf32> to vector<8x8xf32>
    %320 = vector.extract_strided_slice %256 {offsets = [0, 24], sizes = [8, 8], strides = [1, 1]} : vector<8x32xf32> to vector<8x8xf32>
    %321 = tpu.transpose %319, [1, 0] : vector<8x8xf32> -> vector<8x8xf32>
    %cst_126 = arith.constant dense<0.000000e+00> : vector<8x8xf32>
    %322 = tpu.matmul %318, %321, %cst_126 {dimension_numbers = #tpu.dot_dimension_numbers<[1], [0], [0], [1], [0, 0, 1, 1], [], []>} : vector<8x8xf32>, vector<8x8xf32>, vector<8x8xf32> -> vector<8x8xf32>
    %323 = arith.addf %322, %11 : vector<8x8xf32>
    %cst_127 = arith.constant dense<0xFF800000> : vector<8xf32>
    %324 = vector.multi_reduction <maximumf>, %323, %cst_127 [1] : vector<8x8xf32> to vector<8xf32>
    %325 = vector.shape_cast %324 : vector<8xf32> to vector<8x1xf32>
    %326 = vector.broadcast %325 : vector<8x1xf32> to vector<8x8xf32>
    %327 = arith.subf %323, %326 : vector<8x8xf32>
    %328 = math.exp %327 : vector<8x8xf32>
    %cst_128 = arith.constant dense<0.000000e+00> : vector<8xf32>
    %329 = vector.multi_reduction <add>, %328, %cst_128 [1] : vector<8x8xf32> to vector<8xf32>
    %330 = vector.shape_cast %329 : vector<8xf32> to vector<8x1xf32>
    %331 = tpu.reciprocal %330 {approx = true} : vector<8x1xf32> -> vector<8x1xf32>
    %332 = vector.broadcast %331 : vector<8x1xf32> to vector<8x8xf32>
    %333 = arith.mulf %328, %332 : vector<8x8xf32>
    %cst_129 = arith.constant dense<0.000000e+00> : vector<8x8xf32>
    %334 = tpu.matmul %333, %320, %cst_129 {dimension_numbers = #tpu.dot_dimension_numbers<[1], [0], [0], [1], [0, 0, 1, 1], [], []>} : vector<8x8xf32>, vector<8x8xf32>, vector<8x8xf32> -> vector<8x8xf32>
    %335 = vector.extract_strided_slice %258 {offsets = [24, 0], sizes = [8, 32], strides = [1, 1]} : vector<32x32xf32> to vector<8x32xf32>
    %cst_130 = arith.constant dense<0.000000e+00> : vector<8x32xf32>
    %336 = tpu.matmul %334, %335, %cst_130 {dimension_numbers = #tpu.dot_dimension_numbers<[1], [0], [0], [1], [0, 0, 1, 1], [], []>} : vector<8x8xf32>, vector<8x32xf32>, vector<8x32xf32> -> vector<8x32xf32>
    %337 = arith.addf %317, %336 : vector<8x32xf32>
    %338 = arith.addf %236, %337 : vector<8x32xf32>
    %c1_131 = arith.constant 1 : index
    %c0_132 = arith.constant 0 : index
    %c0_133 = arith.constant 0 : index
    %339 = vector.load %arg8[%c1_131, %c0_132, %c0_133] : memref<2x1x32xf32, #tpu.memory_space<vmem>>, vector<1x1x32xf32>
    %340 = vector.shape_cast %339 : vector<1x1x32xf32> to vector<1x32xf32>
    %341 = arith.mulf %338, %338 : vector<8x32xf32>
    %cst_134 = arith.constant dense<0.000000e+00> : vector<8xf32>
    %342 = vector.multi_reduction <add>, %341, %cst_134 [1] : vector<8x32xf32> to vector<8xf32>
    %343 = vector.shape_cast %342 : vector<8xf32> to vector<8x1xf32>
    %cst_135 = arith.constant 3.200000e+01 : f32
    %344 = vector.broadcast %cst_135 : f32 to vector<8x1xf32>
    %345 = arith.divf %343, %344 : vector<8x1xf32>
    %cst_136 = arith.constant 9.99999997E-7 : f32
    %346 = vector.broadcast %cst_136 : f32 to vector<8x1xf32>
    %347 = arith.addf %345, %346 : vector<8x1xf32>
    %348 = math.rsqrt %347 : vector<8x1xf32>
    %349 = vector.broadcast %348 : vector<8x1xf32> to vector<8x32xf32>
    %350 = arith.mulf %338, %349 : vector<8x32xf32>
    %351 = vector.broadcast %340 : vector<1x32xf32> to vector<8x32xf32>
    %352 = arith.mulf %350, %351 : vector<8x32xf32>
    %c1_137 = arith.constant 1 : index
    %c0_138 = arith.constant 0 : index
    %c0_139 = arith.constant 0 : index
    %353 = vector.load %arg9[%c1_137, %c0_138, %c0_139] : memref<2x32x32xf32, #tpu.memory_space<vmem>>, vector<1x32x32xf32>
    %354 = vector.shape_cast %353 : vector<1x32x32xf32> to vector<32x32xf32>
    %cst_140 = arith.constant dense<0.000000e+00> : vector<8x32xf32>
    %355 = tpu.matmul %352, %354, %cst_140 {dimension_numbers = #tpu.dot_dimension_numbers<[1], [0], [0], [1], [0, 0, 1, 1], [], []>} : vector<8x32xf32>, vector<32x32xf32>, vector<8x32xf32> -> vector<8x32xf32>
    %c1_141 = arith.constant 1 : index
    %c0_142 = arith.constant 0 : index
    %c0_143 = arith.constant 0 : index
    %356 = vector.load %arg10[%c1_141, %c0_142, %c0_143] : memref<2x32x64xf32, #tpu.memory_space<vmem>>, vector<1x32x64xf32>
    %357 = vector.shape_cast %356 : vector<1x32x64xf32> to vector<32x64xf32>
    %cst_144 = arith.constant dense<0.000000e+00> : vector<8x64xf32>
    %358 = tpu.matmul %3, %357, %cst_144 {dimension_numbers = #tpu.dot_dimension_numbers<[1], [0], [0], [1], [0, 0, 1, 1], [], []>} : vector<8x32xf32>, vector<32x64xf32>, vector<8x64xf32> -> vector<8x64xf32>
    %359 = vector.extract_strided_slice %358 {offsets = [0, 0], sizes = [8, 32], strides = [1, 1]} : vector<8x64xf32> to vector<8x32xf32>
    %360 = vector.extract_strided_slice %358 {offsets = [0, 32], sizes = [8, 32], strides = [1, 1]} : vector<8x64xf32> to vector<8x32xf32>
    %c1_145 = arith.constant 1 : index
    %c0_146 = arith.constant 0 : index
    %c0_147 = arith.constant 0 : index
    %361 = vector.load %arg11[%c1_145, %c0_146, %c0_147] : memref<2x32x32xf32, #tpu.memory_space<vmem>>, vector<1x32x32xf32>
    %362 = vector.shape_cast %361 : vector<1x32x32xf32> to vector<32x32xf32>
    %363 = vector.extract_strided_slice %355 {offsets = [0, 0], sizes = [8, 8], strides = [1, 1]} : vector<8x32xf32> to vector<8x8xf32>
    %364 = vector.extract_strided_slice %359 {offsets = [0, 0], sizes = [8, 8], strides = [1, 1]} : vector<8x32xf32> to vector<8x8xf32>
    %365 = vector.extract_strided_slice %360 {offsets = [0, 0], sizes = [8, 8], strides = [1, 1]} : vector<8x32xf32> to vector<8x8xf32>
    %366 = tpu.transpose %364, [1, 0] : vector<8x8xf32> -> vector<8x8xf32>
    %cst_148 = arith.constant dense<0.000000e+00> : vector<8x8xf32>
    %367 = tpu.matmul %363, %366, %cst_148 {dimension_numbers = #tpu.dot_dimension_numbers<[1], [0], [0], [1], [0, 0, 1, 1], [], []>} : vector<8x8xf32>, vector<8x8xf32>, vector<8x8xf32> -> vector<8x8xf32>
    %cst_149 = arith.constant dense<0xFF800000> : vector<8xf32>
    %368 = vector.multi_reduction <maximumf>, %367, %cst_149 [1] : vector<8x8xf32> to vector<8xf32>
    %369 = vector.shape_cast %368 : vector<8xf32> to vector<8x1xf32>
    %370 = vector.broadcast %369 : vector<8x1xf32> to vector<8x8xf32>
    %371 = arith.subf %367, %370 : vector<8x8xf32>
    %372 = math.exp %371 : vector<8x8xf32>
    %cst_150 = arith.constant dense<0.000000e+00> : vector<8xf32>
    %373 = vector.multi_reduction <add>, %372, %cst_150 [1] : vector<8x8xf32> to vector<8xf32>
    %374 = vector.shape_cast %373 : vector<8xf32> to vector<8x1xf32>
    %375 = tpu.reciprocal %374 {approx = true} : vector<8x1xf32> -> vector<8x1xf32>
    %376 = vector.broadcast %375 : vector<8x1xf32> to vector<8x8xf32>
    %377 = arith.mulf %372, %376 : vector<8x8xf32>
    %cst_151 = arith.constant dense<0.000000e+00> : vector<8x8xf32>
    %378 = tpu.matmul %377, %365, %cst_151 {dimension_numbers = #tpu.dot_dimension_numbers<[1], [0], [0], [1], [0, 0, 1, 1], [], []>} : vector<8x8xf32>, vector<8x8xf32>, vector<8x8xf32> -> vector<8x8xf32>
    %379 = vector.extract_strided_slice %362 {offsets = [0, 0], sizes = [8, 32], strides = [1, 1]} : vector<32x32xf32> to vector<8x32xf32>
    %cst_152 = arith.constant dense<0.000000e+00> : vector<8x32xf32>
    %380 = tpu.matmul %378, %379, %cst_152 {dimension_numbers = #tpu.dot_dimension_numbers<[1], [0], [0], [1], [0, 0, 1, 1], [], []>} : vector<8x8xf32>, vector<8x32xf32>, vector<8x32xf32> -> vector<8x32xf32>
    %381 = vector.extract_strided_slice %355 {offsets = [0, 8], sizes = [8, 8], strides = [1, 1]} : vector<8x32xf32> to vector<8x8xf32>
    %382 = vector.extract_strided_slice %359 {offsets = [0, 8], sizes = [8, 8], strides = [1, 1]} : vector<8x32xf32> to vector<8x8xf32>
    %383 = vector.extract_strided_slice %360 {offsets = [0, 8], sizes = [8, 8], strides = [1, 1]} : vector<8x32xf32> to vector<8x8xf32>
    %384 = tpu.transpose %382, [1, 0] : vector<8x8xf32> -> vector<8x8xf32>
    %cst_153 = arith.constant dense<0.000000e+00> : vector<8x8xf32>
    %385 = tpu.matmul %381, %384, %cst_153 {dimension_numbers = #tpu.dot_dimension_numbers<[1], [0], [0], [1], [0, 0, 1, 1], [], []>} : vector<8x8xf32>, vector<8x8xf32>, vector<8x8xf32> -> vector<8x8xf32>
    %cst_154 = arith.constant dense<0xFF800000> : vector<8xf32>
    %386 = vector.multi_reduction <maximumf>, %385, %cst_154 [1] : vector<8x8xf32> to vector<8xf32>
    %387 = vector.shape_cast %386 : vector<8xf32> to vector<8x1xf32>
    %388 = vector.broadcast %387 : vector<8x1xf32> to vector<8x8xf32>
    %389 = arith.subf %385, %388 : vector<8x8xf32>
    %390 = math.exp %389 : vector<8x8xf32>
    %cst_155 = arith.constant dense<0.000000e+00> : vector<8xf32>
    %391 = vector.multi_reduction <add>, %390, %cst_155 [1] : vector<8x8xf32> to vector<8xf32>
    %392 = vector.shape_cast %391 : vector<8xf32> to vector<8x1xf32>
    %393 = tpu.reciprocal %392 {approx = true} : vector<8x1xf32> -> vector<8x1xf32>
    %394 = vector.broadcast %393 : vector<8x1xf32> to vector<8x8xf32>
    %395 = arith.mulf %390, %394 : vector<8x8xf32>
    %cst_156 = arith.constant dense<0.000000e+00> : vector<8x8xf32>
    %396 = tpu.matmul %395, %383, %cst_156 {dimension_numbers = #tpu.dot_dimension_numbers<[1], [0], [0], [1], [0, 0, 1, 1], [], []>} : vector<8x8xf32>, vector<8x8xf32>, vector<8x8xf32> -> vector<8x8xf32>
    %397 = vector.extract_strided_slice %362 {offsets = [8, 0], sizes = [8, 32], strides = [1, 1]} : vector<32x32xf32> to vector<8x32xf32>
    %cst_157 = arith.constant dense<0.000000e+00> : vector<8x32xf32>
    %398 = tpu.matmul %396, %397, %cst_157 {dimension_numbers = #tpu.dot_dimension_numbers<[1], [0], [0], [1], [0, 0, 1, 1], [], []>} : vector<8x8xf32>, vector<8x32xf32>, vector<8x32xf32> -> vector<8x32xf32>
    %399 = arith.addf %380, %398 : vector<8x32xf32>
    %400 = vector.extract_strided_slice %355 {offsets = [0, 16], sizes = [8, 8], strides = [1, 1]} : vector<8x32xf32> to vector<8x8xf32>
    %401 = vector.extract_strided_slice %359 {offsets = [0, 16], sizes = [8, 8], strides = [1, 1]} : vector<8x32xf32> to vector<8x8xf32>
    %402 = vector.extract_strided_slice %360 {offsets = [0, 16], sizes = [8, 8], strides = [1, 1]} : vector<8x32xf32> to vector<8x8xf32>
    %403 = tpu.transpose %401, [1, 0] : vector<8x8xf32> -> vector<8x8xf32>
    %cst_158 = arith.constant dense<0.000000e+00> : vector<8x8xf32>
    %404 = tpu.matmul %400, %403, %cst_158 {dimension_numbers = #tpu.dot_dimension_numbers<[1], [0], [0], [1], [0, 0, 1, 1], [], []>} : vector<8x8xf32>, vector<8x8xf32>, vector<8x8xf32> -> vector<8x8xf32>
    %cst_159 = arith.constant dense<0xFF800000> : vector<8xf32>
    %405 = vector.multi_reduction <maximumf>, %404, %cst_159 [1] : vector<8x8xf32> to vector<8xf32>
    %406 = vector.shape_cast %405 : vector<8xf32> to vector<8x1xf32>
    %407 = vector.broadcast %406 : vector<8x1xf32> to vector<8x8xf32>
    %408 = arith.subf %404, %407 : vector<8x8xf32>
    %409 = math.exp %408 : vector<8x8xf32>
    %cst_160 = arith.constant dense<0.000000e+00> : vector<8xf32>
    %410 = vector.multi_reduction <add>, %409, %cst_160 [1] : vector<8x8xf32> to vector<8xf32>
    %411 = vector.shape_cast %410 : vector<8xf32> to vector<8x1xf32>
    %412 = tpu.reciprocal %411 {approx = true} : vector<8x1xf32> -> vector<8x1xf32>
    %413 = vector.broadcast %412 : vector<8x1xf32> to vector<8x8xf32>
    %414 = arith.mulf %409, %413 : vector<8x8xf32>
    %cst_161 = arith.constant dense<0.000000e+00> : vector<8x8xf32>
    %415 = tpu.matmul %414, %402, %cst_161 {dimension_numbers = #tpu.dot_dimension_numbers<[1], [0], [0], [1], [0, 0, 1, 1], [], []>} : vector<8x8xf32>, vector<8x8xf32>, vector<8x8xf32> -> vector<8x8xf32>
    %416 = vector.extract_strided_slice %362 {offsets = [16, 0], sizes = [8, 32], strides = [1, 1]} : vector<32x32xf32> to vector<8x32xf32>
    %cst_162 = arith.constant dense<0.000000e+00> : vector<8x32xf32>
    %417 = tpu.matmul %415, %416, %cst_162 {dimension_numbers = #tpu.dot_dimension_numbers<[1], [0], [0], [1], [0, 0, 1, 1], [], []>} : vector<8x8xf32>, vector<8x32xf32>, vector<8x32xf32> -> vector<8x32xf32>
    %418 = arith.addf %399, %417 : vector<8x32xf32>
    %419 = vector.extract_strided_slice %355 {offsets = [0, 24], sizes = [8, 8], strides = [1, 1]} : vector<8x32xf32> to vector<8x8xf32>
    %420 = vector.extract_strided_slice %359 {offsets = [0, 24], sizes = [8, 8], strides = [1, 1]} : vector<8x32xf32> to vector<8x8xf32>
    %421 = vector.extract_strided_slice %360 {offsets = [0, 24], sizes = [8, 8], strides = [1, 1]} : vector<8x32xf32> to vector<8x8xf32>
    %422 = tpu.transpose %420, [1, 0] : vector<8x8xf32> -> vector<8x8xf32>
    %cst_163 = arith.constant dense<0.000000e+00> : vector<8x8xf32>
    %423 = tpu.matmul %419, %422, %cst_163 {dimension_numbers = #tpu.dot_dimension_numbers<[1], [0], [0], [1], [0, 0, 1, 1], [], []>} : vector<8x8xf32>, vector<8x8xf32>, vector<8x8xf32> -> vector<8x8xf32>
    %cst_164 = arith.constant dense<0xFF800000> : vector<8xf32>
    %424 = vector.multi_reduction <maximumf>, %423, %cst_164 [1] : vector<8x8xf32> to vector<8xf32>
    %425 = vector.shape_cast %424 : vector<8xf32> to vector<8x1xf32>
    %426 = vector.broadcast %425 : vector<8x1xf32> to vector<8x8xf32>
    %427 = arith.subf %423, %426 : vector<8x8xf32>
    %428 = math.exp %427 : vector<8x8xf32>
    %cst_165 = arith.constant dense<0.000000e+00> : vector<8xf32>
    %429 = vector.multi_reduction <add>, %428, %cst_165 [1] : vector<8x8xf32> to vector<8xf32>
    %430 = vector.shape_cast %429 : vector<8xf32> to vector<8x1xf32>
    %431 = tpu.reciprocal %430 {approx = true} : vector<8x1xf32> -> vector<8x1xf32>
    %432 = vector.broadcast %431 : vector<8x1xf32> to vector<8x8xf32>
    %433 = arith.mulf %428, %432 : vector<8x8xf32>
    %cst_166 = arith.constant dense<0.000000e+00> : vector<8x8xf32>
    %434 = tpu.matmul %433, %421, %cst_166 {dimension_numbers = #tpu.dot_dimension_numbers<[1], [0], [0], [1], [0, 0, 1, 1], [], []>} : vector<8x8xf32>, vector<8x8xf32>, vector<8x8xf32> -> vector<8x8xf32>
    %435 = vector.extract_strided_slice %362 {offsets = [24, 0], sizes = [8, 32], strides = [1, 1]} : vector<32x32xf32> to vector<8x32xf32>
    %cst_167 = arith.constant dense<0.000000e+00> : vector<8x32xf32>
    %436 = tpu.matmul %434, %435, %cst_167 {dimension_numbers = #tpu.dot_dimension_numbers<[1], [0], [0], [1], [0, 0, 1, 1], [], []>} : vector<8x8xf32>, vector<8x32xf32>, vector<8x32xf32> -> vector<8x32xf32>
    %437 = arith.addf %418, %436 : vector<8x32xf32>
    %438 = arith.addf %338, %437 : vector<8x32xf32>
    %c1_168 = arith.constant 1 : index
    %c0_169 = arith.constant 0 : index
    %c0_170 = arith.constant 0 : index
    %439 = vector.load %arg12[%c1_168, %c0_169, %c0_170] : memref<2x1x32xf32, #tpu.memory_space<vmem>>, vector<1x1x32xf32>
    %440 = vector.shape_cast %439 : vector<1x1x32xf32> to vector<1x32xf32>
    %441 = arith.mulf %438, %438 : vector<8x32xf32>
    %cst_171 = arith.constant dense<0.000000e+00> : vector<8xf32>
    %442 = vector.multi_reduction <add>, %441, %cst_171 [1] : vector<8x32xf32> to vector<8xf32>
    %443 = vector.shape_cast %442 : vector<8xf32> to vector<8x1xf32>
    %cst_172 = arith.constant 3.200000e+01 : f32
    %444 = vector.broadcast %cst_172 : f32 to vector<8x1xf32>
    %445 = arith.divf %443, %444 : vector<8x1xf32>
    %cst_173 = arith.constant 9.99999997E-7 : f32
    %446 = vector.broadcast %cst_173 : f32 to vector<8x1xf32>
    %447 = arith.addf %445, %446 : vector<8x1xf32>
    %448 = math.rsqrt %447 : vector<8x1xf32>
    %449 = vector.broadcast %448 : vector<8x1xf32> to vector<8x32xf32>
    %450 = arith.mulf %438, %449 : vector<8x32xf32>
    %451 = vector.broadcast %440 : vector<1x32xf32> to vector<8x32xf32>
    %452 = arith.mulf %450, %451 : vector<8x32xf32>
    %c1_174 = arith.constant 1 : index
    %c0_175 = arith.constant 0 : index
    %c0_176 = arith.constant 0 : index
    %453 = vector.load %arg13[%c1_174, %c0_175, %c0_176] : memref<2x32x64xf32, #tpu.memory_space<vmem>>, vector<1x32x64xf32>
    %454 = vector.shape_cast %453 : vector<1x32x64xf32> to vector<32x64xf32>
    %cst_177 = arith.constant dense<0.000000e+00> : vector<8x64xf32>
    %455 = tpu.matmul %452, %454, %cst_177 {dimension_numbers = #tpu.dot_dimension_numbers<[1], [0], [0], [1], [0, 0, 1, 1], [], []>} : vector<8x32xf32>, vector<32x64xf32>, vector<8x64xf32> -> vector<8x64xf32>
    %cst_178 = arith.constant 0.000000e+00 : f32
    %456 = vector.broadcast %cst_178 : f32 to vector<8x64xf32>
    %457 = arith.maximumf %455, %456 : vector<8x64xf32>
    %c1_179 = arith.constant 1 : index
    %c0_180 = arith.constant 0 : index
    %c0_181 = arith.constant 0 : index
    %458 = vector.load %arg14[%c1_179, %c0_180, %c0_181] : memref<2x64x32xf32, #tpu.memory_space<vmem>>, vector<1x64x32xf32>
    %459 = vector.shape_cast %458 : vector<1x64x32xf32> to vector<64x32xf32>
    %cst_182 = arith.constant dense<0.000000e+00> : vector<8x32xf32>
    %460 = tpu.matmul %457, %459, %cst_182 {dimension_numbers = #tpu.dot_dimension_numbers<[1], [0], [0], [1], [0, 0, 1, 1], [], []>} : vector<8x64xf32>, vector<64x32xf32>, vector<8x32xf32> -> vector<8x32xf32>
    %461 = arith.addf %438, %460 : vector<8x32xf32>
    %c0_183 = arith.constant 0 : index
    %c0_184 = arith.constant 0 : index
    %462 = vector.load %arg15[%c0_183, %c0_184] : memref<1x32xf32, #tpu.memory_space<vmem>>, vector<1x32xf32>
    %463 = arith.mulf %461, %461 : vector<8x32xf32>
    %cst_185 = arith.constant dense<0.000000e+00> : vector<8xf32>
    %464 = vector.multi_reduction <add>, %463, %cst_185 [1] : vector<8x32xf32> to vector<8xf32>
    %465 = vector.shape_cast %464 : vector<8xf32> to vector<8x1xf32>
    %cst_186 = arith.constant 3.200000e+01 : f32
    %466 = vector.broadcast %cst_186 : f32 to vector<8x1xf32>
    %467 = arith.divf %465, %466 : vector<8x1xf32>
    %cst_187 = arith.constant 9.99999997E-7 : f32
    %468 = vector.broadcast %cst_187 : f32 to vector<8x1xf32>
    %469 = arith.addf %467, %468 : vector<8x1xf32>
    %470 = math.rsqrt %469 : vector<8x1xf32>
    %471 = vector.broadcast %470 : vector<8x1xf32> to vector<8x32xf32>
    %472 = arith.mulf %461, %471 : vector<8x32xf32>
    %473 = vector.broadcast %462 : vector<1x32xf32> to vector<8x32xf32>
    %474 = arith.mulf %472, %473 : vector<8x32xf32>
    %c0_188 = arith.constant 0 : index
    %c0_189 = arith.constant 0 : index
    %475 = vector.load %arg16[%c0_188, %c0_189] : memref<32x128xf32, #tpu.memory_space<vmem>>, vector<32x128xf32>
    %cst_190 = arith.constant dense<0.000000e+00> : vector<8x128xf32>
    %476 = tpu.matmul %474, %475, %cst_190 {dimension_numbers = #tpu.dot_dimension_numbers<[1], [0], [0], [1], [0, 0, 1, 1], [], []>} : vector<8x32xf32>, vector<32x128xf32>, vector<8x128xf32> -> vector<8x128xf32>
    %c0_191 = arith.constant 0 : index
    %c0_192 = arith.constant 0 : index
    %c0_193 = arith.constant 0 : index
    %477 = vector.load %arg17[%c0_191, %c0_192, %c0_193] : memref<1x8x128xf32, #tpu.memory_space<vmem>>, vector<1x8x128xf32>
    %478 = vector.shape_cast %477 : vector<1x8x128xf32> to vector<8x128xf32>
    %479 = vector.shape_cast %476 : vector<8x128xf32> to vector<1x8x128xf32>
    tpu.vector_store %arg17[%c0_191, %c0_192, %c0_193], %479 {strides = array<i32>} : memref<1x8x128xf32, #tpu.memory_space<vmem>>, vector<1x8x128xf32>,
    %c0_194 = arith.constant 0 : index
    %c0_195 = arith.constant 0 : index
    %c0_196 = arith.constant 0 : index
    %480 = vector.load %arg4[%c0_194, %c0_195, %c0_196] : memref<1x8x1xi32, #tpu.memory_space<vmem>>, vector<1x8x1xi32>
    %481 = vector.shape_cast %480 : vector<1x8x1xi32> to vector<8x1xi32>
    %482 = tpu.iota {dimensions = array<i32: 1>} : vector<8x128xi32>
    %c64_i32 = arith.constant 64 : i32
    %483 = vector.broadcast %c64_i32 : i32 to vector<8x128xi32>
    %484 = arith.cmpi slt, %482, %483 : vector<8x128xi32>
    %cst_197 = arith.constant -1.000000e+09 : f32
    %485 = vector.broadcast %cst_197 : f32 to vector<8x128xf32>
    %486 = arith.select %484, %476, %485 : vector<8x128xi1>, vector<8x128xf32>
    %cst_198 = arith.constant dense<0xFF800000> : vector<8xf32>
    %487 = vector.multi_reduction <maximumf>, %486, %cst_198 [1] : vector<8x128xf32> to vector<8xf32>
    %488 = vector.shape_cast %487 : vector<8xf32> to vector<8x1xf32>
    %489 = vector.broadcast %488 : vector<8x1xf32> to vector<8x128xf32>
    %490 = arith.subf %486, %489 : vector<8x128xf32>
    %491 = math.exp %490 : vector<8x128xf32>
    %cst_199 = arith.constant dense<0.000000e+00> : vector<8xf32>
    %492 = vector.multi_reduction <add>, %491, %cst_199 [1] : vector<8x128xf32> to vector<8xf32>
    %493 = vector.shape_cast %492 : vector<8xf32> to vector<8x1xf32>
    %494 = math.log %493 : vector<8x1xf32>
    %495 = arith.addf %494, %488 : vector<8x1xf32>
    %496 = vector.broadcast %481 : vector<8x1xi32> to vector<8x128xi32>
    %497 = arith.cmpi eq, %482, %496 : vector<8x128xi32>
    %cst_200 = arith.constant 0.000000e+00 : f32
    %498 = vector.broadcast %cst_200 : f32 to vector<8x128xf32>
    %499 = arith.select %497, %476, %498 : vector<8x128xi1>, vector<8x128xf32>
    %cst_201 = arith.constant dense<0.000000e+00> : vector<8xf32>
    %500 = vector.multi_reduction <add>, %499, %cst_201 [1] : vector<8x128xf32> to vector<8xf32>
    %501 = vector.shape_cast %500 : vector<8xf32> to vector<8x1xf32>
    %c-100_i32 = arith.constant -100 : i32
    %502 = vector.broadcast %c-100_i32 : i32 to vector<8x1xi32>
    %503 = arith.cmpi ne, %481, %502 : vector<8x1xi32>
    %504 = arith.extui %503 : vector<8x1xi1> to vector<8x1xi32>
    %505 = arith.sitofp %504 : vector<8x1xi32> to vector<8x1xf32>
    %506 = arith.subf %495, %501 : vector<8x1xf32>
    %507 = arith.mulf %506, %505 : vector<8x1xf32>
    %c0_202 = arith.constant 0 : index
    %c0_203 = arith.constant 0 : index
    %c0_204 = arith.constant 0 : index
    %508 = vector.load %arg18[%c0_202, %c0_203, %c0_204] : memref<1x8x1xf32, #tpu.memory_space<vmem>>, vector<1x8x1xf32>
    %509 = vector.shape_cast %508 : vector<1x8x1xf32> to vector<8x1xf32>
    %510 = vector.shape_cast %507 : vector<8x1xf32> to vector<1x8x1xf32>
    tpu.vector_store %arg18[%c0_202, %c0_203, %c0_204], %510 {strides = array<i32>} : memref<1x8x1xf32, #tpu.memory_space<vmem>>, vector<1x8x1xf32>,
    return
  }
  func.func @transform_0(%arg0: i32) -> (i32, i32, i32) {
    %c0_i32 = arith.constant 0 : i32
    %c0_i32_0 = arith.constant 0 : i32
    %c0_i32_1 = arith.constant 0 : i32
    return %arg0, %c0_i32, %c0_i32_0 : i32, i32, i32
  }
  func.func @transform_1(%arg0: i32) -> (i32, i32, i32) {
    %c0_i32 = arith.constant 0 : i32
    %c0_i32_0 = arith.constant 0 : i32
    %c0_i32_1 = arith.constant 0 : i32
    return %arg0, %c0_i32, %c0_i32_0 : i32, i32, i32
  }
  func.func @transform_2(%arg0: i32) -> (i32, i32, i32) {
    %c0_i32 = arith.constant 0 : i32
    %c0_i32_0 = arith.constant 0 : i32
    %c0_i32_1 = arith.constant 0 : i32
    %c0_i32_2 = arith.constant 0 : i32
    return %c0_i32, %c0_i32_0, %c0_i32_1 : i32, i32, i32
  }
  func.func @transform_3(%arg0: i32) -> (i32, i32, i32) {
    %c0_i32 = arith.constant 0 : i32
    %c0_i32_0 = arith.constant 0 : i32
    %c0_i32_1 = arith.constant 0 : i32
    return %arg0, %c0_i32, %c0_i32_0 : i32, i32, i32
  }
  func.func @transform_4(%arg0: i32) -> (i32, i32, i32) {
    %c0_i32 = arith.constant 0 : i32
    %c0_i32_0 = arith.constant 0 : i32
    %c0_i32_1 = arith.constant 0 : i32
    %c0_i32_2 = arith.constant 0 : i32
    return %c0_i32, %c0_i32_0, %c0_i32_1 : i32, i32, i32
  }
  func.func @transform_5(%arg0: i32) -> (i32, i32, i32) {
    %c0_i32 = arith.constant 0 : i32
    %c0_i32_0 = arith.constant 0 : i32
    %c0_i32_1 = arith.constant 0 : i32
    %c0_i32_2 = arith.constant 0 : i32
    return %c0_i32, %c0_i32_0, %c0_i32_1 : i32, i32, i32
  }
  func.func @transform_6(%arg0: i32) -> (i32, i32, i32) {
    %c0_i32 = arith.constant 0 : i32
    %c0_i32_0 = arith.constant 0 : i32
    %c0_i32_1 = arith.constant 0 : i32
    %c0_i32_2 = arith.constant 0 : i32
    return %c0_i32, %c0_i32_0, %c0_i32_1 : i32, i32, i32
  }
  func.func @transform_7(%arg0: i32) -> (i32, i32, i32) {
    %c0_i32 = arith.constant 0 : i32
    %c0_i32_0 = arith.constant 0 : i32
    %c0_i32_1 = arith.constant 0 : i32
    %c0_i32_2 = arith.constant 0 : i32
    return %c0_i32, %c0_i32_0, %c0_i32_1 : i32, i32, i32
  }
  func.func @transform_8(%arg0: i32) -> (i32, i32, i32) {
    %c0_i32 = arith.constant 0 : i32
    %c0_i32_0 = arith.constant 0 : i32
    %c0_i32_1 = arith.constant 0 : i32
    %c0_i32_2 = arith.constant 0 : i32
    return %c0_i32, %c0_i32_0, %c0_i32_1 : i32, i32, i32
  }
  func.func @transform_9(%arg0: i32) -> (i32, i32, i32) {
    %c0_i32 = arith.constant 0 : i32
    %c0_i32_0 = arith.constant 0 : i32
    %c0_i32_1 = arith.constant 0 : i32
    %c0_i32_2 = arith.constant 0 : i32
    return %c0_i32, %c0_i32_0, %c0_i32_1 : i32, i32, i32
  }
  func.func @transform_10(%arg0: i32) -> (i32, i32, i32) {
    %c0_i32 = arith.constant 0 : i32
    %c0_i32_0 = arith.constant 0 : i32
    %c0_i32_1 = arith.constant 0 : i32
    %c0_i32_2 = arith.constant 0 : i32
    return %c0_i32, %c0_i32_0, %c0_i32_1 : i32, i32, i32
  }
  func.func @transform_11(%arg0: i32) -> (i32, i32, i32) {
    %c0_i32 = arith.constant 0 : i32
    %c0_i32_0 = arith.constant 0 : i32
    %c0_i32_1 = arith.constant 0 : i32
    %c0_i32_2 = arith.constant 0 : i32
    return %c0_i32, %c0_i32_0, %c0_i32_1 : i32, i32, i32
  }
  func.func @transform_12(%arg0: i32) -> (i32, i32, i32) {
    %c0_i32 = arith.constant 0 : i32
    %c0_i32_0 = arith.constant 0 : i32
    %c0_i32_1 = arith.constant 0 : i32
    %c0_i32_2 = arith.constant 0 : i32
    return %c0_i32, %c0_i32_0, %c0_i32_1 : i32, i32, i32
  }
  func.func @transform_13(%arg0: i32) -> (i32, i32, i32) {
    %c0_i32 = arith.constant 0 : i32
    %c0_i32_0 = arith.constant 0 : i32
    %c0_i32_1 = arith.constant 0 : i32
    %c0_i32_2 = arith.constant 0 : i32
    return %c0_i32, %c0_i32_0, %c0_i32_1 : i32, i32, i32
  }
  func.func @transform_14(%arg0: i32) -> (i32, i32) {
    %c0_i32 = arith.constant 0 : i32
    %c0_i32_0 = arith.constant 0 : i32
    %c0_i32_1 = arith.constant 0 : i32
    return %c0_i32, %c0_i32_0 : i32, i32
  }
  func.func @transform_15(%arg0: i32) -> (i32, i32) {
    %c0_i32 = arith.constant 0 : i32
    %c0_i32_0 = arith.constant 0 : i32
    %c0_i32_1 = arith.constant 0 : i32
    return %c0_i32, %c0_i32_0 : i32, i32
  }
  func.func @transform_16(%arg0: i32) -> (i32, i32, i32) {
    %c0_i32 = arith.constant 0 : i32
    %c0_i32_0 = arith.constant 0 : i32
    %c0_i32_1 = arith.constant 0 : i32
    return %arg0, %c0_i32, %c0_i32_0 : i32, i32, i32
  }
  func.func @transform_17(%arg0: i32) -> (i32, i32, i32) {
    %c0_i32 = arith.constant 0 : i32
    %c0_i32_0 = arith.constant 0 : i32
    %c0_i32_1 = arith.constant 0 : i32
    return %arg0, %c0_i32, %c0_i32_0 : i32, i32, i32
  }
}

</mosaic_0001>

<llo_original>
// kernel: clip_dsi_decoder_forward.2
$region0: #{clip_dsi_decoder_forward.2}
  #allocation0 [shape = 'u32[]', space=smem, size = 0x4, offset = 0x4, fixed_abs, tag = 'smem constant byte address 0x4 - core index']
  #allocation1 [shape = 'u32[144,128]{1,0:T(1,128)}', space=vmem, size = 0x12000, scoped, tag = 'internal scratch']
  %s0 = inlined_call_operand.vmem [shape: f32[2,8,32], index: 0, kind: input, shape index: {}]
  %s1 = inlined_call_operand.vmem [shape: f32[4,8,8], index: 1, kind: input, shape index: {}]
  %s2 = inlined_call_operand.vmem [shape: f32[2,1,32], index: 2, kind: input, shape index: {}]
  %s3 = inlined_call_operand.vmem [shape: f32[2,32,96], index: 3, kind: input, shape index: {}]
  %s4 = inlined_call_operand.vmem [shape: f32[2,32,32], index: 4, kind: input, shape index: {}]
  %s5 = inlined_call_operand.vmem [shape: f32[2,1,32], index: 5, kind: input, shape index: {}]
  %s6 = inlined_call_operand.vmem [shape: f32[2,32,64], index: 6, kind: input, shape index: {}]
  %s7 = inlined_call_operand.vmem [shape: f32[2,64,32], index: 7, kind: input, shape index: {}]
  %s8 = inlined_call_operand.vmem [shape: f32[1,32], index: 8, kind: input, shape index: {}]
  %s9 = inlined_call_operand.vmem [shape: f32[2,8,32], index: 9, kind: output, shape index: {}]
  %s10 = sld [smem:[#allocation0]]
  $region69: #{clip_dsi_decoder_forward.2} parent=0
    _
  %s12 = ssub.s32 1, %s10
  %s13 = scalar_select 0, %s12, %s10
  loop: start=0, step=1, limit=4
  $region2: #{clip_dsi_decoder_forward.2} parent=0 // loop_pre_header
    _
  $region3: #{clip_dsi_decoder_forward.2} parent=0 // loop_header
    %s15 = sphi 0, %s19
    %p16 = scmp.ge.s32.totalorder %s15, 4
    %s25 = sphi 0, %s27
    %s28 = sphi 0, %s25
    %s29 = sphi 0, %s28
    %s45 = sphi 0, %s29
    %s49 = sphi 0, %s49
    %s51 = sphi 0, %s49
    %s52 = sphi 0, %s51
    %s66 = sphi 0, %s52
    %s70 = sphi 0, %s70
    %s72 = sphi 0, %s70
    %s73 = sphi 0, %s72
    %s87 = sphi 0, %s73
    %s91 = sphi 0, %s91
    %s93 = sphi 0, %s91
    %s94 = sphi 0, %s93
    %s108 = sphi 0, %s94
    %s112 = sphi 0, %s112
    %s114 = sphi 0, %s112
    %s115 = sphi 0, %s114
    %s129 = sphi 0, %s115
    %s133 = sphi 0, %s133
    %s135 = sphi 0, %s133
    %s136 = sphi 0, %s135
    %s150 = sphi 0, %s136
    %s154 = sphi 0, %s154
    %s156 = sphi 0, %s154
    %s157 = sphi 0, %s156
    %s171 = sphi 0, %s157
    %s175 = sphi 0, %s175
    %s177 = sphi 0, %s175
    %s178 = sphi 0, %s177
    %s192 = sphi 0, %s178
    %s196 = sphi 0, %s196
    %s198 = sphi 0, %s196
    %s199 = sphi 0, %s198
    %s213 = sphi 0, %s199
    %s219 = sphi 0, %s221
    %s222 = sphi 0, %s219
    %s223 = sphi 0, %s222
    %s239 = sphi 0, %s223
  $region4: #{clip_dsi_decoder_forward.2} parent=0 // loop_header_branch
    %18 = sbr.rel (%p16) target = $region8
  $region5: #{clip_dsi_decoder_forward.2} parent=0 // loop_body
    %s20 = ssub.s32 %s15, 1
    %s21 = ssub.s32 %s15, 2
    %s22 = sadd.s32 %s15, 1
    %s23 = ssub.s32 %s15, %s22
    %p24 = scmp.eq.s32.totalorder %s23, 0
    %s26 = sadd.s32 %s25, 1
    %s27 = scalar_select %p24, %s25, %s26
    %p30 = pneg %p24
    %p31 = scmp.eq.s32.totalorder %s15, 1
    %p32 = por %p30, %p31
    %p33 = scmp.ne.s32.totalorder %s25, %s28
    %p34 = scmp.eq.s32.totalorder %s15, 0
    %p35 = por %p33, %p34
    %p36 = scmp.ne.s32.totalorder %s25, %s28
    %p37 = scmp.eq.s32.totalorder %s20, 1
    %p38 = por %p36, %p37
    %p39 = scmp.ne.s32.totalorder %s28, %s29
    %p40 = scmp.eq.s32.totalorder %s20, 0
    %p41 = por %p39, %p40
    %p42 = scmp.ne.s32.totalorder %s28, %s29
    %p43 = scmp.eq.s32.totalorder %s21, 1
    %p44 = por %p42, %p43
    %p46 = scmp.ne.s32.totalorder %s29, %s45
    %p47 = scmp.eq.s32.totalorder %s21, 0
    %p48 = por %p46, %p47
    %s50 = sadd.s32 %s49, 1
    %p53 = scmp.eq.s32.totalorder %s15, 1
    %p54 = scmp.ne.s32.totalorder %s49, %s51
    %p55 = scmp.eq.s32.totalorder %s15, 0
    %p56 = por %p54, %p55
    %p57 = scmp.ne.s32.totalorder %s49, %s51
    %p58 = scmp.eq.s32.totalorder %s20, 1
    %p59 = por %p57, %p58
    %p60 = scmp.ne.s32.totalorder %s51, %s52
    %p61 = scmp.eq.s32.totalorder %s20, 0
    %p62 = por %p60, %p61
    %p63 = scmp.ne.s32.totalorder %s51, %s52
    %p64 = scmp.eq.s32.totalorder %s21, 1
    %p65 = por %p63, %p64
    %p67 = scmp.ne.s32.totalorder %s52, %s66
    %p68 = scmp.eq.s32.totalorder %s21, 0
    %p69 = por %p67, %p68
    %s71 = sadd.s32 %s70, 1
    %p74 = scmp.eq.s32.totalorder %s15, 1
    %p75 = scmp.ne.s32.totalorder %s70, %s72
    %p76 = scmp.eq.s32.totalorder %s15, 0
    %p77 = por %p75, %p76
    %p78 = scmp.ne.s32.totalorder %s70, %s72
    %p79 = scmp.eq.s32.totalorder %s20, 1
    %p80 = por %p78, %p79
    %p81 = scmp.ne.s32.totalorder %s72, %s73
    %p82 = scmp.eq.s32.totalorder %s20, 0
    %p83 = por %p81, %p82
    %p84 = scmp.ne.s32.totalorder %s72, %s73
    %p85 = scmp.eq.s32.totalorder %s21, 1
    %p86 = por %p84, %p85
    %p88 = scmp.ne.s32.totalorder %s73, %s87
    %p89 = scmp.eq.s32.totalorder %s21, 0
    %p90 = por %p88, %p89
    %s92 = sadd.s32 %s91, 1
    %p95 = scmp.eq.s32.totalorder %s15, 1
    %p96 = scmp.ne.s32.totalorder %s91, %s93
    %p97 = scmp.eq.s32.totalorder %s15, 0
    %p98 = por %p96, %p97
    %p99 = scmp.ne.s32.totalorder %s91, %s93
    %p100 = scmp.eq.s32.totalorder %s20, 1
    %p101 = por %p99, %p100
    %p102 = scmp.ne.s32.totalorder %s93, %s94
    %p103 = scmp.eq.s32.totalorder %s20, 0
    %p104 = por %p102, %p103
    %p105 = scmp.ne.s32.totalorder %s93, %s94
    %p106 = scmp.eq.s32.totalorder %s21, 1
    %p107 = por %p105, %p106
    %p109 = scmp.ne.s32.totalorder %s94, %s108
    %p110 = scmp.eq.s32.totalorder %s21, 0
    %p111 = por %p109, %p110
    %s113 = sadd.s32 %s112, 1
    %p116 = scmp.eq.s32.totalorder %s15, 1
    %p117 = scmp.ne.s32.totalorder %s112, %s114
    %p118 = scmp.eq.s32.totalorder %s15, 0
    %p119 = por %p117, %p118
    %p120 = scmp.ne.s32.totalorder %s112, %s114
    %p121 = scmp.eq.s32.totalorder %s20, 1
    %p122 = por %p120, %p121
    %p123 = scmp.ne.s32.totalorder %s114, %s115
    %p124 = scmp.eq.s32.totalorder %s20, 0
    %p125 = por %p123, %p124
    %p126 = scmp.ne.s32.totalorder %s114, %s115
    %p127 = scmp.eq.s32.totalorder %s21, 1
    %p128 = por %p126, %p127
    %p130 = scmp.ne.s32.totalorder %s115, %s129
    %p131 = scmp.eq.s32.totalorder %s21, 0
    %p132 = por %p130, %p131
    %s134 = sadd.s32 %s133, 1
    %p137 = scmp.eq.s32.totalorder %s15, 1
    %p138 = scmp.ne.s32.totalorder %s133, %s135
    %p139 = scmp.eq.s32.totalorder %s15, 0
    %p140 = por %p138, %p139
    %p141 = scmp.ne.s32.totalorder %s133, %s135
    %p142 = scmp.eq.s32.totalorder %s20, 1
    %p143 = por %p141, %p142
    %p144 = scmp.ne.s32.totalorder %s135, %s136
    %p145 = scmp.eq.s32.totalorder %s20, 0
    %p146 = por %p144, %p145
    %p147 = scmp.ne.s32.totalorder %s135, %s136
    %p148 = scmp.eq.s32.totalorder %s21, 1
    %p149 = por %p147, %p148
    %p151 = scmp.ne.s32.totalorder %s136, %s150
    %p152 = scmp.eq.s32.totalorder %s21, 0
    %p153 = por %p151, %p152
    %s155 = sadd.s32 %s154, 1
    %p158 = scmp.eq.s32.totalorder %s15, 1
    %p159 = scmp.ne.s32.totalorder %s154, %s156
    %p160 = scmp.eq.s32.totalorder %s15, 0
    %p161 = por %p159, %p160
    %p162 = scmp.ne.s32.totalorder %s154, %s156
    %p163 = scmp.eq.s32.totalorder %s20, 1
    %p164 = por %p162, %p163
    %p165 = scmp.ne.s32.totalorder %s156, %s157
    %p166 = scmp.eq.s32.totalorder %s20, 0
    %p167 = por %p165, %p166
    %p168 = scmp.ne.s32.totalorder %s156, %s157
    %p169 = scmp.eq.s32.totalorder %s21, 1
    %p170 = por %p168, %p169
    %p172 = scmp.ne.s32.totalorder %s157, %s171
    %p173 = scmp.eq.s32.totalorder %s21, 0
    %p174 = por %p172, %p173
    %s176 = sadd.s32 %s175, 1
    %p179 = scmp.eq.s32.totalorder %s15, 1
    %p180 = scmp.ne.s32.totalorder %s175, %s177
    %p181 = scmp.eq.s32.totalorder %s15, 0
    %p182 = por %p180, %p181
    %p183 = scmp.ne.s32.totalorder %s175, %s177
    %p184 = scmp.eq.s32.totalorder %s20, 1
    %p185 = por %p183, %p184
    %p186 = scmp.ne.s32.totalorder %s177, %s178
    %p187 = scmp.eq.s32.totalorder %s20, 0
    %p188 = por %p186, %p187
    %p189 = scmp.ne.s32.totalorder %s177, %s178
    %p190 = scmp.eq.s32.totalorder %s21, 1
    %p191 = por %p189, %p190
    %p193 = scmp.ne.s32.totalorder %s178, %s192
    %p194 = scmp.eq.s32.totalorder %s21, 0
    %p195 = por %p193, %p194
    %s197 = sadd.s32 %s196, 1
    %p200 = scmp.eq.s32.totalorder %s15, 1
    %p201 = scmp.ne.s32.totalorder %s196, %s198
    %p202 = scmp.eq.s32.totalorder %s15, 0
    %p203 = por %p201, %p202
    %p204 = scmp.ne.s32.totalorder %s196, %s198
    %p205 = scmp.eq.s32.totalorder %s20, 1
    %p206 = por %p204, %p205
    %p207 = scmp.ne.s32.totalorder %s198, %s199
    %p208 = scmp.eq.s32.totalorder %s20, 0
    %p209 = por %p207, %p208
    %p210 = scmp.ne.s32.totalorder %s198, %s199
    %p211 = scmp.eq.s32.totalorder %s21, 1
    %p212 = por %p210, %p211
    %p214 = scmp.ne.s32.totalorder %s199, %s213
    %p215 = scmp.eq.s32.totalorder %s21, 0
    %p216 = por %p214, %p215
    %s217 = ssub.s32 %s15, %s22
    %p218 = scmp.eq.s32.totalorder %s217, 0
    %s220 = sadd.s32 %s219, 1
    %s221 = scalar_select %p218, %s219, %s220
    %p224 = pneg %p218
    %p225 = scmp.eq.s32.totalorder %s15, 1
    %p226 = por %p224, %p225
    %p227 = scmp.ne.s32.totalorder %s219, %s222
    %p228 = scmp.eq.s32.totalorder %s15, 0
    %p229 = por %p227, %p228
    %p230 = scmp.ne.s32.totalorder %s219, %s222
    %p231 = scmp.eq.s32.totalorder %s20, 1
    %p232 = por %p230, %p231
    %p233 = scmp.ne.s32.totalorder %s222, %s223
    %p234 = scmp.eq.s32.totalorder %s20, 0
    %p235 = por %p233, %p234
    %p236 = scmp.ne.s32.totalorder %s222, %s223
    %p237 = scmp.eq.s32.totalorder %s21, 1
    %p238 = por %p236, %p237
    %p240 = scmp.ne.s32.totalorder %s223, %s239
    %p241 = scmp.eq.s32.totalorder %s21, 0
    %p242 = por %p240, %p241
    %p243 = scmp.le.s32.totalorder 1, %s15
    %p244 = scmp.lt.s32.totalorder %s15, 3
    %p245 = pnand %p243, %p244
    %p246 = pneg %p245
    // Predicated region
    $region9: #{clip_dsi_decoder_forward.2} parent=5 // pred_check
      _
    $region10: #{clip_dsi_decoder_forward.2} parent=5 // pred_check_branch
      %248 = sbr.rel (%p245) target = $region12
    $region11: #{clip_dsi_decoder_forward.2} parent=5 // pred_region
      %s249 = ssub.s32 %s15, 1
      // Predicated region
      $region13: #{clip_dsi_decoder_forward.2} parent=11 // pred_check
        %p250 = pneg %p62
      $region14: #{clip_dsi_decoder_forward.2} parent=11 // pred_check_branch
        %252 = sbr.rel (%p250) target = $region16
      $region15: #{clip_dsi_decoder_forward.2} parent=11 // pred_region
        _
      $region16: #{clip_dsi_decoder_forward.2} parent=11 // pred_fallthru
        _
      // Predicated region
      $region17: #{clip_dsi_decoder_forward.2} parent=11 // pred_check
        %p253 = pneg %p83
      $region18: #{clip_dsi_decoder_forward.2} parent=11 // pred_check_branch
        %255 = sbr.rel (%p253) target = $region20
      $region19: #{clip_dsi_decoder_forward.2} parent=11 // pred_region
        _
      $region20: #{clip_dsi_decoder_forward.2} parent=11 // pred_fallthru
        _
      // Predicated region
      $region21: #{clip_dsi_decoder_forward.2} parent=11 // pred_check
        %p256 = pneg %p104
      $region22: #{clip_dsi_decoder_forward.2} parent=11 // pred_check_branch
        %258 = sbr.rel (%p256) target = $region24
      $region23: #{clip_dsi_decoder_forward.2} parent=11 // pred_region
        _
      $region24: #{clip_dsi_decoder_forward.2} parent=11 // pred_fallthru
        _
      // Predicated region
      $region25: #{clip_dsi_decoder_forward.2} parent=11 // pred_check
        %p259 = pneg %p125
      $region26: #{clip_dsi_decoder_forward.2} parent=11 // pred_check_branch
        %261 = sbr.rel (%p259) target = $region28
      $region27: #{clip_dsi_decoder_forward.2} parent=11 // pred_region
        _
      $region28: #{clip_dsi_decoder_forward.2} parent=11 // pred_fallthru
        _
      // Predicated region
      $region29: #{clip_dsi_decoder_forward.2} parent=11 // pred_check
        %p262 = pneg %p146
      $region30: #{clip_dsi_decoder_forward.2} parent=11 // pred_check_branch
        %264 = sbr.rel (%p262) target = $region32
      $region31: #{clip_dsi_decoder_forward.2} parent=11 // pred_region
        _
      $region32: #{clip_dsi_decoder_forward.2} parent=11 // pred_fallthru
        _
      // Predicated region
      $region33: #{clip_dsi_decoder_forward.2} parent=11 // pred_check
        %p265 = pneg %p167
      $region34: #{clip_dsi_decoder_forward.2} parent=11 // pred_check_branch
        %267 = sbr.rel (%p265) target = $region36
      $region35: #{clip_dsi_decoder_forward.2} parent=11 // pred_region
        _
      $region36: #{clip_dsi_decoder_forward.2} parent=11 // pred_fallthru
        _
      // Predicated region
      $region37: #{clip_dsi_decoder_forward.2} parent=11 // pred_check
        %p268 = pneg %p188
      $region38: #{clip_dsi_decoder_forward.2} parent=11 // pred_check_branch
        %270 = sbr.rel (%p268) target = $region40
      $region39: #{clip_dsi_decoder_forward.2} parent=11 // pred_region
        _
      $region40: #{clip_dsi_decoder_forward.2} parent=11 // pred_fallthru
        _
      // Predicated region
      $region41: #{clip_dsi_decoder_forward.2} parent=11 // pred_check
        %p271 = pneg %p209
      $region42: #{clip_dsi_decoder_forward.2} parent=11 // pred_check_branch
        %273 = sbr.rel (%p271) target = $region44
      $region43: #{clip_dsi_decoder_forward.2} parent=11 // pred_region
        _
      $region44: #{clip_dsi_decoder_forward.2} parent=11 // pred_fallthru
        _
    $region12: #{clip_dsi_decoder_forward.2} parent=5 // pred_fallthru
      _
    %p274 = scmp.lt.s32.totalorder %s15, 2
    // Predicated region
    $region45: #{clip_dsi_decoder_forward.2} parent=5 // pred_check
      %p275 = pneg %p274
    $region46: #{clip_dsi_decoder_forward.2} parent=5 // pred_check_branch
      %277 = sbr.rel (%p275) target = $region48
    $region47: #{clip_dsi_decoder_forward.2} parent=5 // pred_region
      // Predicated region
      $region49: #{clip_dsi_decoder_forward.2} parent=47 // pred_check
        %p278 = pneg %p35
      $region50: #{clip_dsi_decoder_forward.2} parent=47 // pred_check_branch
        %280 = sbr.rel (%p278) target = $region52
      $region51: #{clip_dsi_decoder_forward.2} parent=47 // pred_region
        %p281 = scmp.lt.s32.totalorder %s15, 1
        %s282 = scalar_select %p281, %s15, 1
        %s283 = smul.addr %s282, 8
        %s284 = scalar_lea.vmem %s0, %s283
      $region52: #{clip_dsi_decoder_forward.2} parent=47 // pred_fallthru
        _
    $region48: #{clip_dsi_decoder_forward.2} parent=5 // pred_fallthru
      _
    %p285 = scmp.le.s32.totalorder 1, %s15
    %p286 = scmp.lt.s32.totalorder %s15, 3
    %p287 = pnand %p285, %p286
    %p288 = pneg %p287
    // Predicated region
    $region53: #{clip_dsi_decoder_forward.2} parent=5 // pred_check
      _
    $region54: #{clip_dsi_decoder_forward.2} parent=5 // pred_check_branch
      %290 = sbr.rel (%p287) target = $region56
    $region55: #{clip_dsi_decoder_forward.2} parent=5 // pred_region
      %s291 = ssub.s32 %s15, 1
      %p292 = scmp.lt.s32.totalorder %s20, 1
      %s293 = scalar_select %p292, %s20, 1
      %s294 = smul.addr %s293, 8
      %s295 = scalar_lea.vmem %s0, %s294
      %p296 = pneg %p41
      %p297 = pneg %p38
      %p298 = pneg %p62
      %p299 = pneg %p59
      %p300 = pneg %p83
      %p301 = pneg %p80
      %p302 = pneg %p104
      %p303 = pneg %p101
      %p304 = pneg %p125
      %p305 = pneg %p122
      %p306 = pneg %p146
      %p307 = pneg %p143
      %p308 = pneg %p167
      %p309 = pneg %p164
      %p310 = pneg %p188
      %p311 = pneg %p185
      %p312 = pneg %p209
      %p313 = pneg %p206
      %p314 = pneg %p235
      %p315 = pneg %p232
      %p316 = scmp.lt.s32.totalorder %s20, 1
      %s317 = scalar_select %p316, %s20, 1
      %s318 = smul.addr %s317, 8
      %s319 = scalar_lea.vmem %s9, %s318
      %p320 = scmp.lt.s32.totalorder %s20, 1
      %s321 = scalar_select %p320, %s20, 1
      %s322 = smul.addr %s321, 8
      %s323 = scalar_lea.vmem %s0, %s322
      %p324 = scmp.lt.s32.totalorder %s20, 1
      %s325 = scalar_select %p324, %s20, 1
      %s326 = smul.addr %s325, 8
      %s327 = scalar_lea.vmem %s9, %s326
      %v328 = vld [vmem:[%s323] sm:$0xff]
      %v329 = vld [vmem:[%s1] sm:$0xff]
      %s330 = scalar_lea.vmem %s1, 8
      %v331 = vld [vmem:[%s330] sm:$0xff]
      %s332 = scalar_lea.vmem %s1, 16
      %v333 = vld [vmem:[%s332] sm:$0xff]
      %s334 = scalar_lea.vmem %s1, 24
      %v335 = vld [vmem:[%s334] sm:$0xff]
      %v336 = vld [vmem:[%s2] sm:$0x1]
      %v337 = vmul.f32 %v328, %v328
      %vm338 = vcmask 261120
      %v339 = vsel %vm338, %v337, 0.0
      %340 = vadd.xlane.f32.xlu0 %v339
      %v341 = vpop.xlane.xlu0 %340
      %v342 = vrcp.pop 32.0
      %v343 = vmul.f32 %v341, %v342
      %v344 = vadd.f32 %v343, 1e-06
      %v345 = vrsqrt.pop %v344
      %v346 = vmul.f32 %v328, %v345
      %v348 = vlaneseq
      %v349 = vshrl.u32 %v348, 7
      %v350 = vsub.s32 0, %v349
      %v351 = vrot.slane %v336, %v350
      %v353 = vmul.f32 %v346, %v351
      %v354 = vld [vmem:[%s3] sm:$0xff]
      %v355 = vld [vmem:[%s3 + $0x8] sm:$0xff]
      %v356 = vld [vmem:[%s3 + $0x10] sm:$0xff]
      %v357 = vld [vmem:[%s3 + $0x18] sm:$0xff]
      %v359 = vsel %vm338, %v353, 0
      %361 = vmatprep.subr.mxu0 0.0
      %362 = vmatpush1.msra.mxu0 0.0
      %363 = vmatprep.subr.mxu0 0.0
      %364 = vmatpush1.msra.mxu0 0.0
      %365 = vmatprep.subr.mxu0 0.0
      %366 = vmatpush1.msra.mxu0 0.0
      %367 = vmatprep.subr.mxu0 0.0
      %368 = vmatpush1.msra.mxu0 0.0
      %369 = vmatprep.subr.mxu0 0.0
      %370 = vmatpush1.msra.mxu0 0.0
      %371 = vmatprep.subr.mxu0 0.0
      %372 = vmatpush1.msra.mxu0 0.0
      %373 = vmatprep.subr.mxu0 0.0
      %374 = vmatpush1.msra.mxu0 0.0
      %375 = vmatprep.subr.mxu0 0.0
      %376 = vmatpush1.msra.mxu0 0.0
      %377 = vmatprep.subr.mxu0 0.0
      %378 = vmatpush1.msra.mxu0 0.0
      %379 = vmatprep.subr.mxu0 0.0
      %380 = vmatpush1.msra.mxu0 0.0
      %381 = vmatprep.subr.mxu0 0.0
      %382 = vmatpush1.msra.mxu0 0.0
      %383 = vmatprep.subr.mxu0 0.0
      %384 = vmatpush1.msra.mxu0 0.0
      %385 = vmatprep.subr.mxu0 0.0
      %386 = vmatpush1.msra.mxu0 %v357
      %387 = vmatprep.subr.mxu0 0.0
      %388 = vmatpush1.msra.mxu0 %v356
      %389 = vmatprep.subr.mxu0 0.0
      %390 = vmatpush1.msra.mxu0 %v355
      %391 = vmatprep.subr.mxu0 0.0
      %392 = vmatpush1.msra.mxu0 %v354
      %393 = vmatprep.subr.mxu0 0.0
      %394 = vmatpush2.msra.mxu0 0.0
      %395 = vmatprep.subr.mxu0 0.0
      %396 = vmatpush2.msra.mxu0 0.0
      %397 = vmatprep.subr.mxu0 0.0
      %398 = vmatpush2.msra.mxu0 0.0
      %399 = vmatprep.subr.mxu0 0.0
      %400 = vmatpush2.msra.mxu0 0.0
      %401 = vmatprep.subr.mxu0 0.0
      %402 = vmatpush2.msra.mxu0 0.0
      %403 = vmatprep.subr.mxu0 0.0
      %404 = vmatpush2.msra.mxu0 0.0
      %405 = vmatprep.subr.mxu0 0.0
      %406 = vmatpush2.msra.mxu0 0.0
      %407 = vmatprep.subr.mxu0 0.0
      %408 = vmatpush2.msra.mxu0 0.0
      %409 = vmatprep.subr.mxu0 0.0
      %410 = vmatpush2.msra.mxu0 0.0
      %411 = vmatprep.subr.mxu0 0.0
      %412 = vmatpush2.msra.mxu0 0.0
      %413 = vmatprep.subr.mxu0 0.0
      %414 = vmatpush2.msra.mxu0 0.0
      %415 = vmatprep.subr.mxu0 0.0
      %416 = vmatpush2.msra.mxu0 0.0
      %417 = vmatprep.subr.mxu0 0.0
      %418 = vmatpush2.msra.mxu0 0.0
      %419 = vmatprep.subr.mxu0 0.0
      %420 = vmatpush2.msra.mxu0 0.0
      %421 = vmatprep.subr.mxu0 0.0
      %422 = vmatpush2.msra.mxu0 0.0
      %423 = vmatprep.subr.mxu0 0.0
      %424 = vmatpush2.msra.mxu0 0.0
      %425 = vmatprep.mubr.f32.mxu0 0.0
      %426 = vmatmul.mubr.f32.gmra.mxu0 %v359
      %v427 = vpop.f32.mrf.mxu0
      %v428 = vadd.f32 0.0, %v427
      %v429 = vpop.f32.mrf.mxu0
      %430 = vdwg.mxu0
      %v431 = vld [vmem:[%s4] sm:$0xff]
      %v432 = vld [vmem:[%s4 + $0x8] sm:$0xff]
      %v433 = vld [vmem:[%s4 + $0x10] sm:$0xff]
      %v434 = vld [vmem:[%s4 + $0x18] sm:$0xff]
      %436 = vrot.lane.b32.xlu0 %v428, 96
      %v437 = vpop.permute.xlu0 %436
      %vm438 = vcmask 64512
      %v439 = vsel %vm438, %v428, 0
      %v441 = vsel %vm438, %v437, 0
      %443 = vmatprep.subr.mxu0 0.0
      %444 = vmatpush1.xpose.msra.mxu0 0.0
      %445 = vmatprep.subr.mxu0 0.0
      %446 = vmatpush1.xpose.msra.mxu0 0.0
      %447 = vmatprep.subr.mxu0 0.0
      %448 = vmatpush1.xpose.msra.mxu0 0.0
      %449 = vmatprep.subr.mxu0 0.0
      %450 = vmatpush1.xpose.msra.mxu0 0.0
      %451 = vmatprep.subr.mxu0 0.0
      %452 = vmatpush1.xpose.msra.mxu0 0.0
      %453 = vmatprep.subr.mxu0 0.0
      %454 = vmatpush1.xpose.msra.mxu0 0.0
      %455 = vmatprep.subr.mxu0 0.0
      %456 = vmatpush1.xpose.msra.mxu0 0.0
      %457 = vmatprep.subr.mxu0 0.0
      %458 = vmatpush1.xpose.msra.mxu0 0.0
      %459 = vmatprep.subr.mxu0 0.0
      %460 = vmatpush1.xpose.msra.mxu0 0.0
      %461 = vmatprep.subr.mxu0 0.0
      %462 = vmatpush1.xpose.msra.mxu0 0.0
      %463 = vmatprep.subr.mxu0 0.0
      %464 = vmatpush1.xpose.msra.mxu0 0.0
      %465 = vmatprep.subr.mxu0 0.0
      %466 = vmatpush1.xpose.msra.mxu0 0.0
      %467 = vmatprep.subr.mxu0 0.0
      %468 = vmatpush1.xpose.msra.mxu0 0.0
      %469 = vmatprep.subr.mxu0 0.0
      %470 = vmatpush1.xpose.msra.mxu0 0.0
      %471 = vmatprep.subr.mxu0 0.0
      %472 = vmatpush1.xpose.msra.mxu0 0.0
      %473 = vmatprep.subr.mxu0 0.0
      %474 = vmatpush1.xpose.msra.mxu0 %v441
      %475 = vmatprep.subr.mxu0 0.0
      %476 = vmatpush2.xpose.msra.mxu0 0.0
      %477 = vmatprep.subr.mxu0 0.0
      %478 = vmatpush2.xpose.msra.mxu0 0.0
      %479 = vmatprep.subr.mxu0 0.0
      %480 = vmatpush2.xpose.msra.mxu0 0.0
      %481 = vmatprep.subr.mxu0 0.0
      %482 = vmatpush2.xpose.msra.mxu0 0.0
      %483 = vmatprep.subr.mxu0 0.0
      %484 = vmatpush2.xpose.msra.mxu0 0.0
      %485 = vmatprep.subr.mxu0 0.0
      %486 = vmatpush2.xpose.msra.mxu0 0.0
      %487 = vmatprep.subr.mxu0 0.0
      %488 = vmatpush2.xpose.msra.mxu0 0.0
      %489 = vmatprep.subr.mxu0 0.0
      %490 = vmatpush2.xpose.msra.mxu0 0.0
      %491 = vmatprep.subr.mxu0 0.0
      %492 = vmatpush2.xpose.msra.mxu0 0.0
      %493 = vmatprep.subr.mxu0 0.0
      %494 = vmatpush2.xpose.msra.mxu0 0.0
      %495 = vmatprep.subr.mxu0 0.0
      %496 = vmatpush2.xpose.msra.mxu0 0.0
      %497 = vmatprep.subr.mxu0 0.0
      %498 = vmatpush2.xpose.msra.mxu0 0.0
      %499 = vmatprep.subr.mxu0 0.0
      %500 = vmatpush2.xpose.msra.mxu0 0.0
      %501 = vmatprep.subr.mxu0 0.0
      %502 = vmatpush2.xpose.msra.mxu0 0.0
      %503 = vmatprep.subr.mxu0 0.0
      %504 = vmatpush2.xpose.msra.mxu0 0.0
      %505 = vmatprep.subr.mxu0 0.0
      %506 = vmatpush2.xpose.msra.mxu0 0.0
      %507 = vmatprep.mubr.f32.mxu0 0.0
      %508 = vmatmul.mubr.f32.gmra.mxu0 %v439
      %v509 = vpop.f32.mrf.mxu0
      %v510 = vadd.f32 %v329, %v509
      %v511 = vpop.f32.mrf.mxu0
      %512 = vdwg.mxu0
      %v513 = vsel %vm438, %v510, -inf
      %514 = vmax.xlane.f32.xlu0 %v513
      %v515 = vpop.xlane.xlu0 %514
      %v516 = vsub.f32 %v510, %v515
      %v517 = vmul.f32 %v516, 1.442695
      %v518 = vpow.pop %v517
      %v519 = vsel %vm438, %v518, 0.0
      %520 = vadd.xlane.f32.xlu0 %v519
      %v521 = vpop.xlane.xlu0 %520
      %v522 = vrcp.pop %v521
      %v523 = vmul.f32 %v518, %v522
      %524 = vrot.lane.b32.xlu0 %v428, 64
      %v525 = vpop.permute.xlu0 %524
      %v528 = vsel %vm438, %v523, 0
      %530 = vmatprep.subr.mxu0 0.0
      %531 = vmatpush1.msra.mxu0 0.0
      %532 = vmatprep.subr.mxu0 0.0
      %533 = vmatpush1.msra.mxu0 0.0
      %534 = vmatprep.subr.mxu0 0.0
      %535 = vmatpush1.msra.mxu0 0.0
      %536 = vmatprep.subr.mxu0 0.0
      %537 = vmatpush1.msra.mxu0 0.0
      %538 = vmatprep.subr.mxu0 0.0
      %539 = vmatpush1.msra.mxu0 0.0
      %540 = vmatprep.subr.mxu0 0.0
      %541 = vmatpush1.msra.mxu0 0.0
      %542 = vmatprep.subr.mxu0 0.0
      %543 = vmatpush1.msra.mxu0 0.0
      %544 = vmatprep.subr.mxu0 0.0
      %545 = vmatpush1.msra.mxu0 0.0
      %546 = vmatprep.subr.mxu0 0.0
      %547 = vmatpush1.msra.mxu0 0.0
      %548 = vmatprep.subr.mxu0 0.0
      %549 = vmatpush1.msra.mxu0 0.0
      %550 = vmatprep.subr.mxu0 0.0
      %551 = vmatpush1.msra.mxu0 0.0
      %552 = vmatprep.subr.mxu0 0.0
      %553 = vmatpush1.msra.mxu0 0.0
      %554 = vmatprep.subr.mxu0 0.0
      %555 = vmatpush1.msra.mxu0 0.0
      %556 = vmatprep.subr.mxu0 0.0
      %557 = vmatpush1.msra.mxu0 0.0
      %558 = vmatprep.subr.mxu0 0.0
      %559 = vmatpush1.msra.mxu0 0.0
      %560 = vmatprep.subr.mxu0 0.0
      %561 = vmatpush1.msra.mxu0 %v525
      %562 = vmatprep.subr.mxu0 0.0
      %563 = vmatpush2.msra.mxu0 0.0
      %564 = vmatprep.subr.mxu0 0.0
      %565 = vmatpush2.msra.mxu0 0.0
      %566 = vmatprep.subr.mxu0 0.0
      %567 = vmatpush2.msra.mxu0 0.0
      %568 = vmatprep.subr.mxu0 0.0
      %569 = vmatpush2.msra.mxu0 0.0
      %570 = vmatprep.subr.mxu0 0.0
      %571 = vmatpush2.msra.mxu0 0.0
      %572 = vmatprep.subr.mxu0 0.0
      %573 = vmatpush2.msra.mxu0 0.0
      %574 = vmatprep.subr.mxu0 0.0
      %575 = vmatpush2.msra.mxu0 0.0
      %576 = vmatprep.subr.mxu0 0.0
      %577 = vmatpush2.msra.mxu0 0.0
      %578 = vmatprep.subr.mxu0 0.0
      %579 = vmatpush2.msra.mxu0 0.0
      %580 = vmatprep.subr.mxu0 0.0
      %581 = vmatpush2.msra.mxu0 0.0
      %582 = vmatprep.subr.mxu0 0.0
      %583 = vmatpush2.msra.mxu0 0.0
      %584 = vmatprep.subr.mxu0 0.0
      %585 = vmatpush2.msra.mxu0 0.0
      %586 = vmatprep.subr.mxu0 0.0
      %587 = vmatpush2.msra.mxu0 0.0
      %588 = vmatprep.subr.mxu0 0.0
      %589 = vmatpush2.msra.mxu0 0.0
      %590 = vmatprep.subr.mxu0 0.0
      %591 = vmatpush2.msra.mxu0 0.0
      %592 = vmatprep.subr.mxu0 0.0
      %593 = vmatpush2.msra.mxu0 0.0
      %594 = vmatprep.mubr.f32.mxu0 0.0
      %595 = vmatmul.mubr.f32.gmra.mxu0 %v528
      %v596 = vpop.f32.mrf.mxu0
      %v597 = vadd.f32 0.0, %v596
      %v598 = vpop.f32.mrf.mxu0
      %599 = vdwg.mxu0
      %600 = vrot.lane.b32.xlu0 %v428, 120
      %v601 = vpop.permute.xlu0 %600
      %602 = vrot.lane.b32.xlu0 %v428, 88
      %v603 = vpop.permute.xlu0 %602
      %v604 = vsel %vm438, %v601, 0
      %v606 = vsel %vm438, %v603, 0
      %608 = vmatprep.subr.mxu0 0.0
      %609 = vmatpush1.xpose.msra.mxu0 0.0
      %610 = vmatprep.subr.mxu0 0.0
      %611 = vmatpush1.xpose.msra.mxu0 0.0
      %612 = vmatprep.subr.mxu0 0.0
      %613 = vmatpush1.xpose.msra.mxu0 0.0
      %614 = vmatprep.subr.mxu0 0.0
      %615 = vmatpush1.xpose.msra.mxu0 0.0
      %616 = vmatprep.subr.mxu0 0.0
      %617 = vmatpush1.xpose.msra.mxu0 0.0
      %618 = vmatprep.subr.mxu0 0.0
      %619 = vmatpush1.xpose.msra.mxu0 0.0
      %620 = vmatprep.subr.mxu0 0.0
      %621 = vmatpush1.xpose.msra.mxu0 0.0
      %622 = vmatprep.subr.mxu0 0.0
      %623 = vmatpush1.xpose.msra.mxu0 0.0
      %624 = vmatprep.subr.mxu0 0.0
      %625 = vmatpush1.xpose.msra.mxu0 0.0
      %626 = vmatprep.subr.mxu0 0.0
      %627 = vmatpush1.xpose.msra.mxu0 0.0
      %628 = vmatprep.subr.mxu0 0.0
      %629 = vmatpush1.xpose.msra.mxu0 0.0
      %630 = vmatprep.subr.mxu0 0.0
      %631 = vmatpush1.xpose.msra.mxu0 0.0
      %632 = vmatprep.subr.mxu0 0.0
      %633 = vmatpush1.xpose.msra.mxu0 0.0
      %634 = vmatprep.subr.mxu0 0.0
      %635 = vmatpush1.xpose.msra.mxu0 0.0
      %636 = vmatprep.subr.mxu0 0.0
      %637 = vmatpush1.xpose.msra.mxu0 0.0
      %638 = vmatprep.subr.mxu0 0.0
      %639 = vmatpush1.xpose.msra.mxu0 %v606
      %640 = vmatprep.subr.mxu0 0.0
      %641 = vmatpush2.xpose.msra.mxu0 0.0
      %642 = vmatprep.subr.mxu0 0.0
      %643 = vmatpush2.xpose.msra.mxu0 0.0
      %644 = vmatprep.subr.mxu0 0.0
      %645 = vmatpush2.xpose.msra.mxu0 0.0
      %646 = vmatprep.subr.mxu0 0.0
      %647 = vmatpush2.xpose.msra.mxu0 0.0
      %648 = vmatprep.subr.mxu0 0.0
      %649 = vmatpush2.xpose.msra.mxu0 0.0
      %650 = vmatprep.subr.mxu0 0.0
      %651 = vmatpush2.xpose.msra.mxu0 0.0
      %652 = vmatprep.subr.mxu0 0.0
      %653 = vmatpush2.xpose.msra.mxu0 0.0
      %654 = vmatprep.subr.mxu0 0.0
      %655 = vmatpush2.xpose.msra.mxu0 0.0
      %656 = vmatprep.subr.mxu0 0.0
      %657 = vmatpush2.xpose.msra.mxu0 0.0
      %658 = vmatprep.subr.mxu0 0.0
      %659 = vmatpush2.xpose.msra.mxu0 0.0
      %660 = vmatprep.subr.mxu0 0.0
      %661 = vmatpush2.xpose.msra.mxu0 0.0
      %662 = vmatprep.subr.mxu0 0.0
      %663 = vmatpush2.xpose.msra.mxu0 0.0
      %664 = vmatprep.subr.mxu0 0.0
      %665 = vmatpush2.xpose.msra.mxu0 0.0
      %666 = vmatprep.subr.mxu0 0.0
      %667 = vmatpush2.xpose.msra.mxu0 0.0
      %668 = vmatprep.subr.mxu0 0.0
      %669 = vmatpush2.xpose.msra.mxu0 0.0
      %670 = vmatprep.subr.mxu0 0.0
      %671 = vmatpush2.xpose.msra.mxu0 0.0
      %672 = vmatprep.mubr.f32.mxu0 0.0
      %673 = vmatmul.mubr.f32.gmra.mxu0 %v604
      %v674 = vpop.f32.mrf.mxu0
      %v675 = vadd.f32 %v331, %v674
      %v676 = vpop.f32.mrf.mxu0
      %677 = vdwg.mxu0
      %v678 = vsel %vm438, %v675, -inf
      %679 = vmax.xlane.f32.xlu0 %v678
      %v680 = vpop.xlane.xlu0 %679
      %v681 = vsub.f32 %v675, %v680
      %v682 = vmul.f32 %v681, 1.442695
      %v683 = vpow.pop %v682
      %v684 = vsel %vm438, %v683, 0.0
      %685 = vadd.xlane.f32.xlu0 %v684
      %v686 = vpop.xlane.xlu0 %685
      %v687 = vrcp.pop %v686
      %v688 = vmul.f32 %v683, %v687
      %689 = vrot.lane.b32.xlu0 %v428, 56
      %v690 = vpop.permute.xlu0 %689
      %v693 = vsel %vm438, %v688, 0
      %695 = vmatprep.subr.mxu0 0.0
      %696 = vmatpush1.msra.mxu0 0.0
      %697 = vmatprep.subr.mxu0 0.0
      %698 = vmatpush1.msra.mxu0 0.0
      %699 = vmatprep.subr.mxu0 0.0
      %700 = vmatpush1.msra.mxu0 0.0
      %701 = vmatprep.subr.mxu0 0.0
      %702 = vmatpush1.msra.mxu0 0.0
      %703 = vmatprep.subr.mxu0 0.0
      %704 = vmatpush1.msra.mxu0 0.0
      %705 = vmatprep.subr.mxu0 0.0
      %706 = vmatpush1.msra.mxu0 0.0
      %707 = vmatprep.subr.mxu0 0.0
      %708 = vmatpush1.msra.mxu0 0.0
      %709 = vmatprep.subr.mxu0 0.0
      %710 = vmatpush1.msra.mxu0 0.0
      %711 = vmatprep.subr.mxu0 0.0
      %712 = vmatpush1.msra.mxu0 0.0
      %713 = vmatprep.subr.mxu0 0.0
      %714 = vmatpush1.msra.mxu0 0.0
      %715 = vmatprep.subr.mxu0 0.0
      %716 = vmatpush1.msra.mxu0 0.0
      %717 = vmatprep.subr.mxu0 0.0
      %718 = vmatpush1.msra.mxu0 0.0
      %719 = vmatprep.subr.mxu0 0.0
      %720 = vmatpush1.msra.mxu0 0.0
      %721 = vmatprep.subr.mxu0 0.0
      %722 = vmatpush1.msra.mxu0 0.0
      %723 = vmatprep.subr.mxu0 0.0
      %724 = vmatpush1.msra.mxu0 0.0
      %725 = vmatprep.subr.mxu0 0.0
      %726 = vmatpush1.msra.mxu0 %v690
      %727 = vmatprep.subr.mxu0 0.0
      %728 = vmatpush2.msra.mxu0 0.0
      %729 = vmatprep.subr.mxu0 0.0
      %730 = vmatpush2.msra.mxu0 0.0
      %731 = vmatprep.subr.mxu0 0.0
      %732 = vmatpush2.msra.mxu0 0.0
      %733 = vmatprep.subr.mxu0 0.0
      %734 = vmatpush2.msra.mxu0 0.0
      %735 = vmatprep.subr.mxu0 0.0
      %736 = vmatpush2.msra.mxu0 0.0
      %737 = vmatprep.subr.mxu0 0.0
      %738 = vmatpush2.msra.mxu0 0.0
      %739 = vmatprep.subr.mxu0 0.0
      %740 = vmatpush2.msra.mxu0 0.0
      %741 = vmatprep.subr.mxu0 0.0
      %742 = vmatpush2.msra.mxu0 0.0
      %743 = vmatprep.subr.mxu0 0.0
      %744 = vmatpush2.msra.mxu0 0.0
      %745 = vmatprep.subr.mxu0 0.0
      %746 = vmatpush2.msra.mxu0 0.0
      %747 = vmatprep.subr.mxu0 0.0
      %748 = vmatpush2.msra.mxu0 0.0
      %749 = vmatprep.subr.mxu0 0.0
      %750 = vmatpush2.msra.mxu0 0.0
      %751 = vmatprep.subr.mxu0 0.0
      %752 = vmatpush2.msra.mxu0 0.0
      %753 = vmatprep.subr.mxu0 0.0
      %754 = vmatpush2.msra.mxu0 0.0
      %755 = vmatprep.subr.mxu0 0.0
      %756 = vmatpush2.msra.mxu0 0.0
      %757 = vmatprep.subr.mxu0 0.0
      %758 = vmatpush2.msra.mxu0 0.0
      %759 = vmatprep.mubr.f32.mxu0 0.0
      %760 = vmatmul.mubr.f32.gmra.mxu0 %v693
      %v761 = vpop.f32.mrf.mxu0
      %v762 = vadd.f32 0.0, %v761
      %v763 = vpop.f32.mrf.mxu0
      %764 = vdwg.mxu0
      %v766 = vsel %vm438, %v762, 0
      %768 = vmatprep.subr.mxu0 0.0
      %769 = vmatpush1.msra.mxu0 0.0
      %770 = vmatprep.subr.mxu0 0.0
      %771 = vmatpush1.msra.mxu0 0.0
      %772 = vmatprep.subr.mxu0 0.0
      %773 = vmatpush1.msra.mxu0 0.0
      %774 = vmatprep.subr.mxu0 0.0
      %775 = vmatpush1.msra.mxu0 0.0
      %776 = vmatprep.subr.mxu0 0.0
      %777 = vmatpush1.msra.mxu0 0.0
      %778 = vmatprep.subr.mxu0 0.0
      %779 = vmatpush1.msra.mxu0 0.0
      %780 = vmatprep.subr.mxu0 0.0
      %781 = vmatpush1.msra.mxu0 0.0
      %782 = vmatprep.subr.mxu0 0.0
      %783 = vmatpush1.msra.mxu0 0.0
      %784 = vmatprep.subr.mxu0 0.0
      %785 = vmatpush1.msra.mxu0 0.0
      %786 = vmatprep.subr.mxu0 0.0
      %787 = vmatpush1.msra.mxu0 0.0
      %788 = vmatprep.subr.mxu0 0.0
      %789 = vmatpush1.msra.mxu0 0.0
      %790 = vmatprep.subr.mxu0 0.0
      %791 = vmatpush1.msra.mxu0 0.0
      %792 = vmatprep.subr.mxu0 0.0
      %793 = vmatpush1.msra.mxu0 0.0
      %794 = vmatprep.subr.mxu0 0.0
      %795 = vmatpush1.msra.mxu0 0.0
      %796 = vmatprep.subr.mxu0 0.0
      %797 = vmatpush1.msra.mxu0 0.0
      %798 = vmatprep.subr.mxu0 0.0
      %799 = vmatpush1.msra.mxu0 %v432
      %800 = vmatprep.subr.mxu0 0.0
      %801 = vmatpush2.msra.mxu0 0.0
      %802 = vmatprep.subr.mxu0 0.0
      %803 = vmatpush2.msra.mxu0 0.0
      %804 = vmatprep.subr.mxu0 0.0
      %805 = vmatpush2.msra.mxu0 0.0
      %806 = vmatprep.subr.mxu0 0.0
      %807 = vmatpush2.msra.mxu0 0.0
      %808 = vmatprep.subr.mxu0 0.0
      %809 = vmatpush2.msra.mxu0 0.0
      %810 = vmatprep.subr.mxu0 0.0
      %811 = vmatpush2.msra.mxu0 0.0
      %812 = vmatprep.subr.mxu0 0.0
      %813 = vmatpush2.msra.mxu0 0.0
      %814 = vmatprep.subr.mxu0 0.0
      %815 = vmatpush2.msra.mxu0 0.0
      %816 = vmatprep.subr.mxu0 0.0
      %817 = vmatpush2.msra.mxu0 0.0
      %818 = vmatprep.subr.mxu0 0.0
      %819 = vmatpush2.msra.mxu0 0.0
      %820 = vmatprep.subr.mxu0 0.0
      %821 = vmatpush2.msra.mxu0 0.0
      %822 = vmatprep.subr.mxu0 0.0
      %823 = vmatpush2.msra.mxu0 0.0
      %824 = vmatprep.subr.mxu0 0.0
      %825 = vmatpush2.msra.mxu0 0.0
      %826 = vmatprep.subr.mxu0 0.0
      %827 = vmatpush2.msra.mxu0 0.0
      %828 = vmatprep.subr.mxu0 0.0
      %829 = vmatpush2.msra.mxu0 0.0
      %830 = vmatprep.subr.mxu0 0.0
      %831 = vmatpush2.msra.mxu0 0.0
      %832 = vmatprep.mubr.f32.mxu0 0.0
      %833 = vmatmul.mubr.f32.gmra.mxu0 %v766
      %v834 = vpop.f32.mrf.mxu0
      %v835 = vadd.f32 0.0, %v834
      %v836 = vpop.f32.mrf.mxu0
      %837 = vdwg.mxu0
      %v839 = vsel %vm438, %v597, 0
      %841 = vmatprep.subr.mxu0 0.0
      %842 = vmatpush1.msra.mxu0 0.0
      %843 = vmatprep.subr.mxu0 0.0
      %844 = vmatpush1.msra.mxu0 0.0
      %845 = vmatprep.subr.mxu0 0.0
      %846 = vmatpush1.msra.mxu0 0.0
      %847 = vmatprep.subr.mxu0 0.0
      %848 = vmatpush1.msra.mxu0 0.0
      %849 = vmatprep.subr.mxu0 0.0
      %850 = vmatpush1.msra.mxu0 0.0
      %851 = vmatprep.subr.mxu0 0.0
      %852 = vmatpush1.msra.mxu0 0.0
      %853 = vmatprep.subr.mxu0 0.0
      %854 = vmatpush1.msra.mxu0 0.0
      %855 = vmatprep.subr.mxu0 0.0
      %856 = vmatpush1.msra.mxu0 0.0
      %857 = vmatprep.subr.mxu0 0.0
      %858 = vmatpush1.msra.mxu0 0.0
      %859 = vmatprep.subr.mxu0 0.0
      %860 = vmatpush1.msra.mxu0 0.0
      %861 = vmatprep.subr.mxu0 0.0
      %862 = vmatpush1.msra.mxu0 0.0
      %863 = vmatprep.subr.mxu0 0.0
      %864 = vmatpush1.msra.mxu0 0.0
      %865 = vmatprep.subr.mxu0 0.0
      %866 = vmatpush1.msra.mxu0 0.0
      %867 = vmatprep.subr.mxu0 0.0
      %868 = vmatpush1.msra.mxu0 0.0
      %869 = vmatprep.subr.mxu0 0.0
      %870 = vmatpush1.msra.mxu0 0.0
      %871 = vmatprep.subr.mxu0 0.0
      %872 = vmatpush1.msra.mxu0 %v431
      %873 = vmatprep.subr.mxu0 0.0
      %874 = vmatpush2.msra.mxu0 0.0
      %875 = vmatprep.subr.mxu0 0.0
      %876 = vmatpush2.msra.mxu0 0.0
      %877 = vmatprep.subr.mxu0 0.0
      %878 = vmatpush2.msra.mxu0 0.0
      %879 = vmatprep.subr.mxu0 0.0
      %880 = vmatpush2.msra.mxu0 0.0
      %881 = vmatprep.subr.mxu0 0.0
      %882 = vmatpush2.msra.mxu0 0.0
      %883 = vmatprep.subr.mxu0 0.0
      %884 = vmatpush2.msra.mxu0 0.0
      %885 = vmatprep.subr.mxu0 0.0
      %886 = vmatpush2.msra.mxu0 0.0
      %887 = vmatprep.subr.mxu0 0.0
      %888 = vmatpush2.msra.mxu0 0.0
      %889 = vmatprep.subr.mxu0 0.0
      %890 = vmatpush2.msra.mxu0 0.0
      %891 = vmatprep.subr.mxu0 0.0
      %892 = vmatpush2.msra.mxu0 0.0
      %893 = vmatprep.subr.mxu0 0.0
      %894 = vmatpush2.msra.mxu0 0.0
      %895 = vmatprep.subr.mxu0 0.0
      %896 = vmatpush2.msra.mxu0 0.0
      %897 = vmatprep.subr.mxu0 0.0
      %898 = vmatpush2.msra.mxu0 0.0
      %899 = vmatprep.subr.mxu0 0.0
      %900 = vmatpush2.msra.mxu0 0.0
      %901 = vmatprep.subr.mxu0 0.0
      %902 = vmatpush2.msra.mxu0 0.0
      %903 = vmatprep.subr.mxu0 0.0
      %904 = vmatpush2.msra.mxu0 0.0
      %905 = vmatprep.mubr.f32.mxu0 0.0
      %906 = vmatmul.mubr.f32.gmra.mxu0 %v839
      %v907 = vpop.f32.mrf.mxu0
      %v908 = vadd.f32 %v835, %v907
      %v909 = vpop.f32.mrf.mxu0
      %910 = vdwg.mxu0
      %911 = vrot.lane.b32.xlu0 %v428, 112
      %v912 = vpop.permute.xlu0 %911
      %913 = vrot.lane.b32.xlu0 %v428, 80
      %v914 = vpop.permute.xlu0 %913
      %v915 = vsel %vm438, %v912, 0
      %v917 = vsel %vm438, %v914, 0
      %919 = vmatprep.subr.mxu0 0.0
      %920 = vmatpush1.xpose.msra.mxu0 0.0
      %921 = vmatprep.subr.mxu0 0.0
      %922 = vmatpush1.xpose.msra.mxu0 0.0
      %923 = vmatprep.subr.mxu0 0.0
      %924 = vmatpush1.xpose.msra.mxu0 0.0
      %925 = vmatprep.subr.mxu0 0.0
      %926 = vmatpush1.xpose.msra.mxu0 0.0
      %927 = vmatprep.subr.mxu0 0.0
      %928 = vmatpush1.xpose.msra.mxu0 0.0
      %929 = vmatprep.subr.mxu0 0.0
      %930 = vmatpush1.xpose.msra.mxu0 0.0
      %931 = vmatprep.subr.mxu0 0.0
      %932 = vmatpush1.xpose.msra.mxu0 0.0
      %933 = vmatprep.subr.mxu0 0.0
      %934 = vmatpush1.xpose.msra.mxu0 0.0
      %935 = vmatprep.subr.mxu0 0.0
      %936 = vmatpush1.xpose.msra.mxu0 0.0
      %937 = vmatprep.subr.mxu0 0.0
      %938 = vmatpush1.xpose.msra.mxu0 0.0
      %939 = vmatprep.subr.mxu0 0.0
      %940 = vmatpush1.xpose.msra.mxu0 0.0
      %941 = vmatprep.subr.mxu0 0.0
      %942 = vmatpush1.xpose.msra.mxu0 0.0
      %943 = vmatprep.subr.mxu0 0.0
      %944 = vmatpush1.xpose.msra.mxu0 0.0
      %945 = vmatprep.subr.mxu0 0.0
      %946 = vmatpush1.xpose.msra.mxu0 0.0
      %947 = vmatprep.subr.mxu0 0.0
      %948 = vmatpush1.xpose.msra.mxu0 0.0
      %949 = vmatprep.subr.mxu0 0.0
      %950 = vmatpush1.xpose.msra.mxu0 %v917
      %951 = vmatprep.subr.mxu0 0.0
      %952 = vmatpush2.xpose.msra.mxu0 0.0
      %953 = vmatprep.subr.mxu0 0.0
      %954 = vmatpush2.xpose.msra.mxu0 0.0
      %955 = vmatprep.subr.mxu0 0.0
      %956 = vmatpush2.xpose.msra.mxu0 0.0
      %957 = vmatprep.subr.mxu0 0.0
      %958 = vmatpush2.xpose.msra.mxu0 0.0
      %959 = vmatprep.subr.mxu0 0.0
      %960 = vmatpush2.xpose.msra.mxu0 0.0
      %961 = vmatprep.subr.mxu0 0.0
      %962 = vmatpush2.xpose.msra.mxu0 0.0
      %963 = vmatprep.subr.mxu0 0.0
      %964 = vmatpush2.xpose.msra.mxu0 0.0
      %965 = vmatprep.subr.mxu0 0.0
      %966 = vmatpush2.xpose.msra.mxu0 0.0
      %967 = vmatprep.subr.mxu0 0.0
      %968 = vmatpush2.xpose.msra.mxu0 0.0
      %969 = vmatprep.subr.mxu0 0.0
      %970 = vmatpush2.xpose.msra.mxu0 0.0
      %971 = vmatprep.subr.mxu0 0.0
      %972 = vmatpush2.xpose.msra.mxu0 0.0
      %973 = vmatprep.subr.mxu0 0.0
      %974 = vmatpush2.xpose.msra.mxu0 0.0
      %975 = vmatprep.subr.mxu0 0.0
      %976 = vmatpush2.xpose.msra.mxu0 0.0
      %977 = vmatprep.subr.mxu0 0.0
      %978 = vmatpush2.xpose.msra.mxu0 0.0
      %979 = vmatprep.subr.mxu0 0.0
      %980 = vmatpush2.xpose.msra.mxu0 0.0
      %981 = vmatprep.subr.mxu0 0.0
      %982 = vmatpush2.xpose.msra.mxu0 0.0
      %983 = vmatprep.mubr.f32.mxu0 0.0
      %984 = vmatmul.mubr.f32.gmra.mxu0 %v915
      %v985 = vpop.f32.mrf.mxu0
      %v986 = vadd.f32 %v333, %v985
      %v987 = vpop.f32.mrf.mxu0
      %988 = vdwg.mxu0
      %v989 = vsel %vm438, %v986, -inf
      %990 = vmax.xlane.f32.xlu0 %v989
      %v991 = vpop.xlane.xlu0 %990
      %v992 = vsub.f32 %v986, %v991
      %v993 = vmul.f32 %v992, 1.442695
      %v994 = vpow.pop %v993
      %v995 = vsel %vm438, %v994, 0.0
      %996 = vadd.xlane.f32.xlu0 %v995
      %v997 = vpop.xlane.xlu0 %996
      %v998 = vrcp.pop %v997
      %v999 = vmul.f32 %v994, %v998
      %1000 = vrot.lane.b32.xlu0 %v428, 48
      %v1001 = vpop.permute.xlu0 %1000
      %v1004 = vsel %vm438, %v999, 0
      %1006 = vmatprep.subr.mxu0 0.0
      %1007 = vmatpush1.msra.mxu0 0.0
      %1008 = vmatprep.subr.mxu0 0.0
      %1009 = vmatpush1.msra.mxu0 0.0
      %1010 = vmatprep.subr.mxu0 0.0
      %1011 = vmatpush1.msra.mxu0 0.0
      %1012 = vmatprep.subr.mxu0 0.0
      %1013 = vmatpush1.msra.mxu0 0.0
      %1014 = vmatprep.subr.mxu0 0.0
      %1015 = vmatpush1.msra.mxu0 0.0
      %1016 = vmatprep.subr.mxu0 0.0
      %1017 = vmatpush1.msra.mxu0 0.0
      %1018 = vmatprep.subr.mxu0 0.0
      %1019 = vmatpush1.msra.mxu0 0.0
      %1020 = vmatprep.subr.mxu0 0.0
      %1021 = vmatpush1.msra.mxu0 0.0
      %1022 = vmatprep.subr.mxu0 0.0
      %1023 = vmatpush1.msra.mxu0 0.0
      %1024 = vmatprep.subr.mxu0 0.0
      %1025 = vmatpush1.msra.mxu0 0.0
      %1026 = vmatprep.subr.mxu0 0.0
      %1027 = vmatpush1.msra.mxu0 0.0
      %1028 = vmatprep.subr.mxu0 0.0
      %1029 = vmatpush1.msra.mxu0 0.0
      %1030 = vmatprep.subr.mxu0 0.0
      %1031 = vmatpush1.msra.mxu0 0.0
      %1032 = vmatprep.subr.mxu0 0.0
      %1033 = vmatpush1.msra.mxu0 0.0
      %1034 = vmatprep.subr.mxu0 0.0
      %1035 = vmatpush1.msra.mxu0 0.0
      %1036 = vmatprep.subr.mxu0 0.0
      %1037 = vmatpush1.msra.mxu0 %v1001
      %1038 = vmatprep.subr.mxu0 0.0
      %1039 = vmatpush2.msra.mxu0 0.0
      %1040 = vmatprep.subr.mxu0 0.0
      %1041 = vmatpush2.msra.mxu0 0.0
      %1042 = vmatprep.subr.mxu0 0.0
      %1043 = vmatpush2.msra.mxu0 0.0
      %1044 = vmatprep.subr.mxu0 0.0
      %1045 = vmatpush2.msra.mxu0 0.0
      %1046 = vmatprep.subr.mxu0 0.0
      %1047 = vmatpush2.msra.mxu0 0.0
      %1048 = vmatprep.subr.mxu0 0.0
      %1049 = vmatpush2.msra.mxu0 0.0
      %1050 = vmatprep.subr.mxu0 0.0
      %1051 = vmatpush2.msra.mxu0 0.0
      %1052 = vmatprep.subr.mxu0 0.0
      %1053 = vmatpush2.msra.mxu0 0.0
      %1054 = vmatprep.subr.mxu0 0.0
      %1055 = vmatpush2.msra.mxu0 0.0
      %1056 = vmatprep.subr.mxu0 0.0
      %1057 = vmatpush2.msra.mxu0 0.0
      %1058 = vmatprep.subr.mxu0 0.0
      %1059 = vmatpush2.msra.mxu0 0.0
      %1060 = vmatprep.subr.mxu0 0.0
      %1061 = vmatpush2.msra.mxu0 0.0
      %1062 = vmatprep.subr.mxu0 0.0
      %1063 = vmatpush2.msra.mxu0 0.0
      %1064 = vmatprep.subr.mxu0 0.0
      %1065 = vmatpush2.msra.mxu0 0.0
      %1066 = vmatprep.subr.mxu0 0.0
      %1067 = vmatpush2.msra.mxu0 0.0
      %1068 = vmatprep.subr.mxu0 0.0
      %1069 = vmatpush2.msra.mxu0 0.0
      %1070 = vmatprep.mubr.f32.mxu0 0.0
      %1071 = vmatmul.mubr.f32.gmra.mxu0 %v1004
      %v1072 = vpop.f32.mrf.mxu0
      %v1073 = vadd.f32 0.0, %v1072
      %v1074 = vpop.f32.mrf.mxu0
      %1075 = vdwg.mxu0
      %v1077 = vsel %vm438, %v1073, 0
      %1079 = vmatprep.subr.mxu0 0.0
      %1080 = vmatpush1.msra.mxu0 0.0
      %1081 = vmatprep.subr.mxu0 0.0
      %1082 = vmatpush1.msra.mxu0 0.0
      %1083 = vmatprep.subr.mxu0 0.0
      %1084 = vmatpush1.msra.mxu0 0.0
      %1085 = vmatprep.subr.mxu0 0.0
      %1086 = vmatpush1.msra.mxu0 0.0
      %1087 = vmatprep.subr.mxu0 0.0
      %1088 = vmatpush1.msra.mxu0 0.0
      %1089 = vmatprep.subr.mxu0 0.0
      %1090 = vmatpush1.msra.mxu0 0.0
      %1091 = vmatprep.subr.mxu0 0.0
      %1092 = vmatpush1.msra.mxu0 0.0
      %1093 = vmatprep.subr.mxu0 0.0
      %1094 = vmatpush1.msra.mxu0 0.0
      %1095 = vmatprep.subr.mxu0 0.0
      %1096 = vmatpush1.msra.mxu0 0.0
      %1097 = vmatprep.subr.mxu0 0.0
      %1098 = vmatpush1.msra.mxu0 0.0
      %1099 = vmatprep.subr.mxu0 0.0
      %1100 = vmatpush1.msra.mxu0 0.0
      %1101 = vmatprep.subr.mxu0 0.0
      %1102 = vmatpush1.msra.mxu0 0.0
      %1103 = vmatprep.subr.mxu0 0.0
      %1104 = vmatpush1.msra.mxu0 0.0
      %1105 = vmatprep.subr.mxu0 0.0
      %1106 = vmatpush1.msra.mxu0 0.0
      %1107 = vmatprep.subr.mxu0 0.0
      %1108 = vmatpush1.msra.mxu0 0.0
      %1109 = vmatprep.subr.mxu0 0.0
      %1110 = vmatpush1.msra.mxu0 %v433
      %1111 = vmatprep.subr.mxu0 0.0
      %1112 = vmatpush2.msra.mxu0 0.0
      %1113 = vmatprep.subr.mxu0 0.0
      %1114 = vmatpush2.msra.mxu0 0.0
      %1115 = vmatprep.subr.mxu0 0.0
      %1116 = vmatpush2.msra.mxu0 0.0
      %1117 = vmatprep.subr.mxu0 0.0
      %1118 = vmatpush2.msra.mxu0 0.0
      %1119 = vmatprep.subr.mxu0 0.0
      %1120 = vmatpush2.msra.mxu0 0.0
      %1121 = vmatprep.subr.mxu0 0.0
      %1122 = vmatpush2.msra.mxu0 0.0
      %1123 = vmatprep.subr.mxu0 0.0
      %1124 = vmatpush2.msra.mxu0 0.0
      %1125 = vmatprep.subr.mxu0 0.0
      %1126 = vmatpush2.msra.mxu0 0.0
      %1127 = vmatprep.subr.mxu0 0.0
      %1128 = vmatpush2.msra.mxu0 0.0
      %1129 = vmatprep.subr.mxu0 0.0
      %1130 = vmatpush2.msra.mxu0 0.0
      %1131 = vmatprep.subr.mxu0 0.0
      %1132 = vmatpush2.msra.mxu0 0.0
      %1133 = vmatprep.subr.mxu0 0.0
      %1134 = vmatpush2.msra.mxu0 0.0
      %1135 = vmatprep.subr.mxu0 0.0
      %1136 = vmatpush2.msra.mxu0 0.0
      %1137 = vmatprep.subr.mxu0 0.0
      %1138 = vmatpush2.msra.mxu0 0.0
      %1139 = vmatprep.subr.mxu0 0.0
      %1140 = vmatpush2.msra.mxu0 0.0
      %1141 = vmatprep.subr.mxu0 0.0
      %1142 = vmatpush2.msra.mxu0 0.0
      %1143 = vmatprep.mubr.f32.mxu0 0.0
      %1144 = vmatmul.mubr.f32.gmra.mxu0 %v1077
      %v1145 = vpop.f32.mrf.mxu0
      %v1146 = vadd.f32 0.0, %v1145
      %v1147 = vpop.f32.mrf.mxu0
      %1148 = vdwg.mxu0
      %v1149 = vadd.f32 %v908, %v1146
      %1150 = vrot.lane.b32.xlu0 %v428, 104
      %v1151 = vpop.permute.xlu0 %1150
      %1152 = vrot.lane.b32.xlu0 %v428, 72
      %v1153 = vpop.permute.xlu0 %1152
      %v1154 = vsel %vm438, %v1151, 0
      %v1156 = vsel %vm438, %v1153, 0
      %1158 = vmatprep.subr.mxu0 0.0
      %1159 = vmatpush1.xpose.msra.mxu0 0.0
      %1160 = vmatprep.subr.mxu0 0.0
      %1161 = vmatpush1.xpose.msra.mxu0 0.0
      %1162 = vmatprep.subr.mxu0 0.0
      %1163 = vmatpush1.xpose.msra.mxu0 0.0
      %1164 = vmatprep.subr.mxu0 0.0
      %1165 = vmatpush1.xpose.msra.mxu0 0.0
      %1166 = vmatprep.subr.mxu0 0.0
      %1167 = vmatpush1.xpose.msra.mxu0 0.0
      %1168 = vmatprep.subr.mxu0 0.0
      %1169 = vmatpush1.xpose.msra.mxu0 0.0
      %1170 = vmatprep.subr.mxu0 0.0
      %1171 = vmatpush1.xpose.msra.mxu0 0.0
      %1172 = vmatprep.subr.mxu0 0.0
      %1173 = vmatpush1.xpose.msra.mxu0 0.0
      %1174 = vmatprep.subr.mxu0 0.0
      %1175 = vmatpush1.xpose.msra.mxu0 0.0
      %1176 = vmatprep.subr.mxu0 0.0
      %1177 = vmatpush1.xpose.msra.mxu0 0.0
      %1178 = vmatprep.subr.mxu0 0.0
      %1179 = vmatpush1.xpose.msra.mxu0 0.0
      %1180 = vmatprep.subr.mxu0 0.0
      %1181 = vmatpush1.xpose.msra.mxu0 0.0
      %1182 = vmatprep.subr.mxu0 0.0
      %1183 = vmatpush1.xpose.msra.mxu0 0.0
      %1184 = vmatprep.subr.mxu0 0.0
      %1185 = vmatpush1.xpose.msra.mxu0 0.0
      %1186 = vmatprep.subr.mxu0 0.0
      %1187 = vmatpush1.xpose.msra.mxu0 0.0
      %1188 = vmatprep.subr.mxu0 0.0
      %1189 = vmatpush1.xpose.msra.mxu0 %v1156
      %1190 = vmatprep.subr.mxu0 0.0
      %1191 = vmatpush2.xpose.msra.mxu0 0.0
      %1192 = vmatprep.subr.mxu0 0.0
      %1193 = vmatpush2.xpose.msra.mxu0 0.0
      %1194 = vmatprep.subr.mxu0 0.0
      %1195 = vmatpush2.xpose.msra.mxu0 0.0
      %1196 = vmatprep.subr.mxu0 0.0
      %1197 = vmatpush2.xpose.msra.mxu0 0.0
      %1198 = vmatprep.subr.mxu0 0.0
      %1199 = vmatpush2.xpose.msra.mxu0 0.0
      %1200 = vmatprep.subr.mxu0 0.0
      %1201 = vmatpush2.xpose.msra.mxu0 0.0
      %1202 = vmatprep.subr.mxu0 0.0
      %1203 = vmatpush2.xpose.msra.mxu0 0.0
      %1204 = vmatprep.subr.mxu0 0.0
      %1205 = vmatpush2.xpose.msra.mxu0 0.0
      %1206 = vmatprep.subr.mxu0 0.0
      %1207 = vmatpush2.xpose.msra.mxu0 0.0
      %1208 = vmatprep.subr.mxu0 0.0
      %1209 = vmatpush2.xpose.msra.mxu0 0.0
      %1210 = vmatprep.subr.mxu0 0.0
      %1211 = vmatpush2.xpose.msra.mxu0 0.0
      %1212 = vmatprep.subr.mxu0 0.0
      %1213 = vmatpush2.xpose.msra.mxu0 0.0
      %1214 = vmatprep.subr.mxu0 0.0
      %1215 = vmatpush2.xpose.msra.mxu0 0.0
      %1216 = vmatprep.subr.mxu0 0.0
      %1217 = vmatpush2.xpose.msra.mxu0 0.0
      %1218 = vmatprep.subr.mxu0 0.0
      %1219 = vmatpush2.xpose.msra.mxu0 0.0
      %1220 = vmatprep.subr.mxu0 0.0
      %1221 = vmatpush2.xpose.msra.mxu0 0.0
      %1222 = vmatprep.mubr.f32.mxu0 0.0
      %1223 = vmatmul.mubr.f32.gmra.mxu0 %v1154
      %v1224 = vpop.f32.mrf.mxu0
      %v1225 = vadd.f32 %v335, %v1224
      %v1226 = vpop.f32.mrf.mxu0
      %1227 = vdwg.mxu0
      %v1228 = vsel %vm438, %v1225, -inf
      %1229 = vmax.xlane.f32.xlu0 %v1228
      %v1230 = vpop.xlane.xlu0 %1229
      %v1231 = vsub.f32 %v1225, %v1230
      %v1232 = vmul.f32 %v1231, 1.442695
      %v1233 = vpow.pop %v1232
      %v1234 = vsel %vm438, %v1233, 0.0
      %1235 = vadd.xlane.f32.xlu0 %v1234
      %v1236 = vpop.xlane.xlu0 %1235
      %v1237 = vrcp.pop %v1236
      %v1238 = vmul.f32 %v1233, %v1237
      %1239 = vrot.lane.b32.xlu0 %v428, 40
      %v1240 = vpop.permute.xlu0 %1239
      %v1243 = vsel %vm438, %v1238, 0
      %1245 = vmatprep.subr.mxu0 0.0
      %1246 = vmatpush1.msra.mxu0 0.0
      %1247 = vmatprep.subr.mxu0 0.0
      %1248 = vmatpush1.msra.mxu0 0.0
      %1249 = vmatprep.subr.mxu0 0.0
      %1250 = vmatpush1.msra.mxu0 0.0
      %1251 = vmatprep.subr.mxu0 0.0
      %1252 = vmatpush1.msra.mxu0 0.0
      %1253 = vmatprep.subr.mxu0 0.0
      %1254 = vmatpush1.msra.mxu0 0.0
      %1255 = vmatprep.subr.mxu0 0.0
      %1256 = vmatpush1.msra.mxu0 0.0
      %1257 = vmatprep.subr.mxu0 0.0
      %1258 = vmatpush1.msra.mxu0 0.0
      %1259 = vmatprep.subr.mxu0 0.0
      %1260 = vmatpush1.msra.mxu0 0.0
      %1261 = vmatprep.subr.mxu0 0.0
      %1262 = vmatpush1.msra.mxu0 0.0
      %1263 = vmatprep.subr.mxu0 0.0
      %1264 = vmatpush1.msra.mxu0 0.0
      %1265 = vmatprep.subr.mxu0 0.0
      %1266 = vmatpush1.msra.mxu0 0.0
      %1267 = vmatprep.subr.mxu0 0.0
      %1268 = vmatpush1.msra.mxu0 0.0
      %1269 = vmatprep.subr.mxu0 0.0
      %1270 = vmatpush1.msra.mxu0 0.0
      %1271 = vmatprep.subr.mxu0 0.0
      %1272 = vmatpush1.msra.mxu0 0.0
      %1273 = vmatprep.subr.mxu0 0.0
      %1274 = vmatpush1.msra.mxu0 0.0
      %1275 = vmatprep.subr.mxu0 0.0
      %1276 = vmatpush1.msra.mxu0 %v1240
      %1277 = vmatprep.subr.mxu0 0.0
      %1278 = vmatpush2.msra.mxu0 0.0
      %1279 = vmatprep.subr.mxu0 0.0
      %1280 = vmatpush2.msra.mxu0 0.0
      %1281 = vmatprep.subr.mxu0 0.0
      %1282 = vmatpush2.msra.mxu0 0.0
      %1283 = vmatprep.subr.mxu0 0.0
      %1284 = vmatpush2.msra.mxu0 0.0
      %1285 = vmatprep.subr.mxu0 0.0
      %1286 = vmatpush2.msra.mxu0 0.0
      %1287 = vmatprep.subr.mxu0 0.0
      %1288 = vmatpush2.msra.mxu0 0.0
      %1289 = vmatprep.subr.mxu0 0.0
      %1290 = vmatpush2.msra.mxu0 0.0
      %1291 = vmatprep.subr.mxu0 0.0
      %1292 = vmatpush2.msra.mxu0 0.0
      %1293 = vmatprep.subr.mxu0 0.0
      %1294 = vmatpush2.msra.mxu0 0.0
      %1295 = vmatprep.subr.mxu0 0.0
      %1296 = vmatpush2.msra.mxu0 0.0
      %1297 = vmatprep.subr.mxu0 0.0
      %1298 = vmatpush2.msra.mxu0 0.0
      %1299 = vmatprep.subr.mxu0 0.0
      %1300 = vmatpush2.msra.mxu0 0.0
      %1301 = vmatprep.subr.mxu0 0.0
      %1302 = vmatpush2.msra.mxu0 0.0
      %1303 = vmatprep.subr.mxu0 0.0
      %1304 = vmatpush2.msra.mxu0 0.0
      %1305 = vmatprep.subr.mxu0 0.0
      %1306 = vmatpush2.msra.mxu0 0.0
      %1307 = vmatprep.subr.mxu0 0.0
      %1308 = vmatpush2.msra.mxu0 0.0
      %1309 = vmatprep.mubr.f32.mxu0 0.0
      %1310 = vmatmul.mubr.f32.gmra.mxu0 %v1243
      %v1311 = vpop.f32.mrf.mxu0
      %v1312 = vadd.f32 0.0, %v1311
      %v1313 = vpop.f32.mrf.mxu0
      %1314 = vdwg.mxu0
      %v1316 = vsel %vm438, %v1312, 0
      %1318 = vmatprep.subr.mxu0 0.0
      %1319 = vmatpush1.msra.mxu0 0.0
      %1320 = vmatprep.subr.mxu0 0.0
      %1321 = vmatpush1.msra.mxu0 0.0
      %1322 = vmatprep.subr.mxu0 0.0
      %1323 = vmatpush1.msra.mxu0 0.0
      %1324 = vmatprep.subr.mxu0 0.0
      %1325 = vmatpush1.msra.mxu0 0.0
      %1326 = vmatprep.subr.mxu0 0.0
      %1327 = vmatpush1.msra.mxu0 0.0
      %1328 = vmatprep.subr.mxu0 0.0
      %1329 = vmatpush1.msra.mxu0 0.0
      %1330 = vmatprep.subr.mxu0 0.0
      %1331 = vmatpush1.msra.mxu0 0.0
      %1332 = vmatprep.subr.mxu0 0.0
      %1333 = vmatpush1.msra.mxu0 0.0
      %1334 = vmatprep.subr.mxu0 0.0
      %1335 = vmatpush1.msra.mxu0 0.0
      %1336 = vmatprep.subr.mxu0 0.0
      %1337 = vmatpush1.msra.mxu0 0.0
      %1338 = vmatprep.subr.mxu0 0.0
      %1339 = vmatpush1.msra.mxu0 0.0
      %1340 = vmatprep.subr.mxu0 0.0
      %1341 = vmatpush1.msra.mxu0 0.0
      %1342 = vmatprep.subr.mxu0 0.0
      %1343 = vmatpush1.msra.mxu0 0.0
      %1344 = vmatprep.subr.mxu0 0.0
      %1345 = vmatpush1.msra.mxu0 0.0
      %1346 = vmatprep.subr.mxu0 0.0
      %1347 = vmatpush1.msra.mxu0 0.0
      %1348 = vmatprep.subr.mxu0 0.0
      %1349 = vmatpush1.msra.mxu0 %v434
      %1350 = vmatprep.subr.mxu0 0.0
      %1351 = vmatpush2.msra.mxu0 0.0
      %1352 = vmatprep.subr.mxu0 0.0
      %1353 = vmatpush2.msra.mxu0 0.0
      %1354 = vmatprep.subr.mxu0 0.0
      %1355 = vmatpush2.msra.mxu0 0.0
      %1356 = vmatprep.subr.mxu0 0.0
      %1357 = vmatpush2.msra.mxu0 0.0
      %1358 = vmatprep.subr.mxu0 0.0
      %1359 = vmatpush2.msra.mxu0 0.0
      %1360 = vmatprep.subr.mxu0 0.0
      %1361 = vmatpush2.msra.mxu0 0.0
      %1362 = vmatprep.subr.mxu0 0.0
      %1363 = vmatpush2.msra.mxu0 0.0
      %1364 = vmatprep.subr.mxu0 0.0
      %1365 = vmatpush2.msra.mxu0 0.0
      %1366 = vmatprep.subr.mxu0 0.0
      %1367 = vmatpush2.msra.mxu0 0.0
      %1368 = vmatprep.subr.mxu0 0.0
      %1369 = vmatpush2.msra.mxu0 0.0
      %1370 = vmatprep.subr.mxu0 0.0
      %1371 = vmatpush2.msra.mxu0 0.0
      %1372 = vmatprep.subr.mxu0 0.0
      %1373 = vmatpush2.msra.mxu0 0.0
      %1374 = vmatprep.subr.mxu0 0.0
      %1375 = vmatpush2.msra.mxu0 0.0
      %1376 = vmatprep.subr.mxu0 0.0
      %1377 = vmatpush2.msra.mxu0 0.0
      %1378 = vmatprep.subr.mxu0 0.0
      %1379 = vmatpush2.msra.mxu0 0.0
      %1380 = vmatprep.subr.mxu0 0.0
      %1381 = vmatpush2.msra.mxu0 0.0
      %1382 = vmatprep.mubr.f32.mxu0 0.0
      %1383 = vmatmul.mubr.f32.gmra.mxu0 %v1316
      %v1384 = vpop.f32.mrf.mxu0
      %v1385 = vadd.f32 0.0, %v1384
      %v1386 = vpop.f32.mrf.mxu0
      %1387 = vdwg.mxu0
      %v1388 = vadd.f32 %v1149, %v1385
      %v1389 = vadd.f32 %v328, %v1388
      %v1390 = vld [vmem:[%s5] sm:$0x1]
      %v1391 = vmul.f32 %v1389, %v1389
      %v1392 = vsel %vm338, %v1391, 0.0
      %1393 = vadd.xlane.f32.xlu0 %v1392
      %v1394 = vpop.xlane.xlu0 %1393
      %v1395 = vmul.f32 %v1394, %v342
      %v1396 = vadd.f32 %v1395, 1e-06
      %v1397 = vrsqrt.pop %v1396
      %v1398 = vmul.f32 %v1389, %v1397
      %v1400 = vlaneseq
      %v1401 = vshrl.u32 %v1400, 7
      %v1402 = vsub.s32 0, %v1401
      %v1403 = vrot.slane %v1390, %v1402
      %v1405 = vmul.f32 %v1398, %v1403
      %v1406 = vld [vmem:[%s6] sm:$0xff]
      %v1407 = vld [vmem:[%s6 + $0x8] sm:$0xff]
      %v1408 = vld [vmem:[%s6 + $0x10] sm:$0xff]
      %v1409 = vld [vmem:[%s6 + $0x18] sm:$0xff]
      %v1411 = vsel %vm338, %v1405, 0
      %1413 = vmatprep.subr.mxu0 0.0
      %1414 = vmatpush1.msra.mxu0 0.0
      %1415 = vmatprep.subr.mxu0 0.0
      %1416 = vmatpush1.msra.mxu0 0.0
      %1417 = vmatprep.subr.mxu0 0.0
      %1418 = vmatpush1.msra.mxu0 0.0
      %1419 = vmatprep.subr.mxu0 0.0
      %1420 = vmatpush1.msra.mxu0 0.0
      %1421 = vmatprep.subr.mxu0 0.0
      %1422 = vmatpush1.msra.mxu0 0.0
      %1423 = vmatprep.subr.mxu0 0.0
      %1424 = vmatpush1.msra.mxu0 0.0
      %1425 = vmatprep.subr.mxu0 0.0
      %1426 = vmatpush1.msra.mxu0 0.0
      %1427 = vmatprep.subr.mxu0 0.0
      %1428 = vmatpush1.msra.mxu0 0.0
      %1429 = vmatprep.subr.mxu0 0.0
      %1430 = vmatpush1.msra.mxu0 0.0
      %1431 = vmatprep.subr.mxu0 0.0
      %1432 = vmatpush1.msra.mxu0 0.0
      %1433 = vmatprep.subr.mxu0 0.0
      %1434 = vmatpush1.msra.mxu0 0.0
      %1435 = vmatprep.subr.mxu0 0.0
      %1436 = vmatpush1.msra.mxu0 0.0
      %1437 = vmatprep.subr.mxu0 0.0
      %1438 = vmatpush1.msra.mxu0 %v1409
      %1439 = vmatprep.subr.mxu0 0.0
      %1440 = vmatpush1.msra.mxu0 %v1408
      %1441 = vmatprep.subr.mxu0 0.0
      %1442 = vmatpush1.msra.mxu0 %v1407
      %1443 = vmatprep.subr.mxu0 0.0
      %1444 = vmatpush1.msra.mxu0 %v1406
      %1445 = vmatprep.subr.mxu0 0.0
      %1446 = vmatpush2.msra.mxu0 0.0
      %1447 = vmatprep.subr.mxu0 0.0
      %1448 = vmatpush2.msra.mxu0 0.0
      %1449 = vmatprep.subr.mxu0 0.0
      %1450 = vmatpush2.msra.mxu0 0.0
      %1451 = vmatprep.subr.mxu0 0.0
      %1452 = vmatpush2.msra.mxu0 0.0
      %1453 = vmatprep.subr.mxu0 0.0
      %1454 = vmatpush2.msra.mxu0 0.0
      %1455 = vmatprep.subr.mxu0 0.0
      %1456 = vmatpush2.msra.mxu0 0.0
      %1457 = vmatprep.subr.mxu0 0.0
      %1458 = vmatpush2.msra.mxu0 0.0
      %1459 = vmatprep.subr.mxu0 0.0
      %1460 = vmatpush2.msra.mxu0 0.0
      %1461 = vmatprep.subr.mxu0 0.0
      %1462 = vmatpush2.msra.mxu0 0.0
      %1463 = vmatprep.subr.mxu0 0.0
      %1464 = vmatpush2.msra.mxu0 0.0
      %1465 = vmatprep.subr.mxu0 0.0
      %1466 = vmatpush2.msra.mxu0 0.0
      %1467 = vmatprep.subr.mxu0 0.0
      %1468 = vmatpush2.msra.mxu0 0.0
      %1469 = vmatprep.subr.mxu0 0.0
      %1470 = vmatpush2.msra.mxu0 0.0
      %1471 = vmatprep.subr.mxu0 0.0
      %1472 = vmatpush2.msra.mxu0 0.0
      %1473 = vmatprep.subr.mxu0 0.0
      %1474 = vmatpush2.msra.mxu0 0.0
      %1475 = vmatprep.subr.mxu0 0.0
      %1476 = vmatpush2.msra.mxu0 0.0
      %1477 = vmatprep.mubr.f32.mxu0 0.0
      %1478 = vmatmul.mubr.f32.gmra.mxu0 %v1411
      %v1479 = vpop.f32.mrf.mxu0
      %v1480 = vadd.f32 0.0, %v1479
      %v1481 = vpop.f32.mrf.mxu0
      %1482 = vdwg.mxu0
      %v1483 = vmax.f32 %v1480, 0.0
      %v1484 = vld [vmem:[%s7] sm:$0xff]
      %v1485 = vld [vmem:[%s7 + $0x8] sm:$0xff]
      %v1486 = vld [vmem:[%s7 + $0x10] sm:$0xff]
      %v1487 = vld [vmem:[%s7 + $0x18] sm:$0xff]
      %v1488 = vld [vmem:[%s7 + $0x20] sm:$0xff]
      %v1489 = vld [vmem:[%s7 + $0x28] sm:$0xff]
      %v1490 = vld [vmem:[%s7 + $0x30] sm:$0xff]
      %v1491 = vld [vmem:[%s7 + $0x38] sm:$0xff]
      %vm1492 = vcmask 523264
      %v1494 = vsel %vm1492, %v1483, 0
      %1496 = vmatprep.subr.mxu0 0.0
      %1497 = vmatpush1.msra.mxu0 0.0
      %1498 = vmatprep.subr.mxu0 0.0
      %1499 = vmatpush1.msra.mxu0 0.0
      %1500 = vmatprep.subr.mxu0 0.0
      %1501 = vmatpush1.msra.mxu0 0.0
      %1502 = vmatprep.subr.mxu0 0.0
      %1503 = vmatpush1.msra.mxu0 0.0
      %1504 = vmatprep.subr.mxu0 0.0
      %1505 = vmatpush1.msra.mxu0 0.0
      %1506 = vmatprep.subr.mxu0 0.0
      %1507 = vmatpush1.msra.mxu0 0.0
      %1508 = vmatprep.subr.mxu0 0.0
      %1509 = vmatpush1.msra.mxu0 0.0
      %1510 = vmatprep.subr.mxu0 0.0
      %1511 = vmatpush1.msra.mxu0 0.0
      %1512 = vmatprep.subr.mxu0 0.0
      %1513 = vmatpush1.msra.mxu0 %v1491
      %1514 = vmatprep.subr.mxu0 0.0
      %1515 = vmatpush1.msra.mxu0 %v1490
      %1516 = vmatprep.subr.mxu0 0.0
      %1517 = vmatpush1.msra.mxu0 %v1489
      %1518 = vmatprep.subr.mxu0 0.0
      %1519 = vmatpush1.msra.mxu0 %v1488
      %1520 = vmatprep.subr.mxu0 0.0
      %1521 = vmatpush1.msra.mxu0 %v1487
      %1522 = vmatprep.subr.mxu0 0.0
      %1523 = vmatpush1.msra.mxu0 %v1486
      %1524 = vmatprep.subr.mxu0 0.0
      %1525 = vmatpush1.msra.mxu0 %v1485
      %1526 = vmatprep.subr.mxu0 0.0
      %1527 = vmatpush1.msra.mxu0 %v1484
      %1528 = vmatprep.subr.mxu0 0.0
      %1529 = vmatpush2.msra.mxu0 0.0
      %1530 = vmatprep.subr.mxu0 0.0
      %1531 = vmatpush2.msra.mxu0 0.0
      %1532 = vmatprep.subr.mxu0 0.0
      %1533 = vmatpush2.msra.mxu0 0.0
      %1534 = vmatprep.subr.mxu0 0.0
      %1535 = vmatpush2.msra.mxu0 0.0
      %1536 = vmatprep.subr.mxu0 0.0
      %1537 = vmatpush2.msra.mxu0 0.0
      %1538 = vmatprep.subr.mxu0 0.0
      %1539 = vmatpush2.msra.mxu0 0.0
      %1540 = vmatprep.subr.mxu0 0.0
      %1541 = vmatpush2.msra.mxu0 0.0
      %1542 = vmatprep.subr.mxu0 0.0
      %1543 = vmatpush2.msra.mxu0 0.0
      %1544 = vmatprep.subr.mxu0 0.0
      %1545 = vmatpush2.msra.mxu0 0.0
      %1546 = vmatprep.subr.mxu0 0.0
      %1547 = vmatpush2.msra.mxu0 0.0
      %1548 = vmatprep.subr.mxu0 0.0
      %1549 = vmatpush2.msra.mxu0 0.0
      %1550 = vmatprep.subr.mxu0 0.0
      %1551 = vmatpush2.msra.mxu0 0.0
      %1552 = vmatprep.subr.mxu0 0.0
      %1553 = vmatpush2.msra.mxu0 0.0
      %1554 = vmatprep.subr.mxu0 0.0
      %1555 = vmatpush2.msra.mxu0 0.0
      %1556 = vmatprep.subr.mxu0 0.0
      %1557 = vmatpush2.msra.mxu0 0.0
      %1558 = vmatprep.subr.mxu0 0.0
      %1559 = vmatpush2.msra.mxu0 0.0
      %1560 = vmatprep.mubr.f32.mxu0 0.0
      %1561 = vmatmul.mubr.f32.gmra.mxu0 %v1494
      %v1562 = vpop.f32.mrf.mxu0
      %v1563 = vadd.f32 0.0, %v1562
      %v1564 = vpop.f32.mrf.mxu0
      %1565 = vdwg.mxu0
      %v1566 = vadd.f32 %v1389, %v1563
      %s1567 = scalar_lea.vmem %s2, 1
      %v1568 = vld [vmem:[%s1567] sm:$0x1]
      %v1569 = vmul.f32 %v1566, %v1566
      %v1570 = vsel %vm338, %v1569, 0.0
      %1571 = vadd.xlane.f32.xlu0 %v1570
      %v1572 = vpop.xlane.xlu0 %1571
      %v1573 = vmul.f32 %v1572, %v342
      %v1574 = vadd.f32 %v1573, 1e-06
      %v1575 = vrsqrt.pop %v1574
      %v1576 = vmul.f32 %v1566, %v1575
      %v1578 = vlaneseq
      %v1579 = vshrl.u32 %v1578, 7
      %v1580 = vsub.s32 0, %v1579
      %v1581 = vrot.slane %v1568, %v1580
      %v1583 = vmul.f32 %v1576, %v1581
      %s1584 = scalar_lea.vmem %s3, 32
      %v1585 = vld [vmem:[%s1584] sm:$0xff]
      %v1586 = vld [vmem:[%s1584 + $0x8] sm:$0xff]
      %v1587 = vld [vmem:[%s1584 + $0x10] sm:$0xff]
      %v1588 = vld [vmem:[%s1584 + $0x18] sm:$0xff]
      %v1590 = vsel %vm338, %v1583, 0
      %1592 = vmatprep.subr.mxu0 0.0
      %1593 = vmatpush1.msra.mxu0 0.0
      %1594 = vmatprep.subr.mxu0 0.0
      %1595 = vmatpush1.msra.mxu0 0.0
      %1596 = vmatprep.subr.mxu0 0.0
      %1597 = vmatpush1.msra.mxu0 0.0
      %1598 = vmatprep.subr.mxu0 0.0
      %1599 = vmatpush1.msra.mxu0 0.0
      %1600 = vmatprep.subr.mxu0 0.0
      %1601 = vmatpush1.msra.mxu0 0.0
      %1602 = vmatprep.subr.mxu0 0.0
      %1603 = vmatpush1.msra.mxu0 0.0
      %1604 = vmatprep.subr.mxu0 0.0
      %1605 = vmatpush1.msra.mxu0 0.0
      %1606 = vmatprep.subr.mxu0 0.0
      %1607 = vmatpush1.msra.mxu0 0.0
      %1608 = vmatprep.subr.mxu0 0.0
      %1609 = vmatpush1.msra.mxu0 0.0
      %1610 = vmatprep.subr.mxu0 0.0
      %1611 = vmatpush1.msra.mxu0 0.0
      %1612 = vmatprep.subr.mxu0 0.0
      %1613 = vmatpush1.msra.mxu0 0.0
      %1614 = vmatprep.subr.mxu0 0.0
      %1615 = vmatpush1.msra.mxu0 0.0
      %1616 = vmatprep.subr.mxu0 0.0
      %1617 = vmatpush1.msra.mxu0 %v1588
      %1618 = vmatprep.subr.mxu0 0.0
      %1619 = vmatpush1.msra.mxu0 %v1587
      %1620 = vmatprep.subr.mxu0 0.0
      %1621 = vmatpush1.msra.mxu0 %v1586
      %1622 = vmatprep.subr.mxu0 0.0
      %1623 = vmatpush1.msra.mxu0 %v1585
      %1624 = vmatprep.subr.mxu0 0.0
      %1625 = vmatpush2.msra.mxu0 0.0
      %1626 = vmatprep.subr.mxu0 0.0
      %1627 = vmatpush2.msra.mxu0 0.0
      %1628 = vmatprep.subr.mxu0 0.0
      %1629 = vmatpush2.msra.mxu0 0.0
      %1630 = vmatprep.subr.mxu0 0.0
      %1631 = vmatpush2.msra.mxu0 0.0
      %1632 = vmatprep.subr.mxu0 0.0
      %1633 = vmatpush2.msra.mxu0 0.0
      %1634 = vmatprep.subr.mxu0 0.0
      %1635 = vmatpush2.msra.mxu0 0.0
      %1636 = vmatprep.subr.mxu0 0.0
      %1637 = vmatpush2.msra.mxu0 0.0
      %1638 = vmatprep.subr.mxu0 0.0
      %1639 = vmatpush2.msra.mxu0 0.0
      %1640 = vmatprep.subr.mxu0 0.0
      %1641 = vmatpush2.msra.mxu0 0.0
      %1642 = vmatprep.subr.mxu0 0.0
      %1643 = vmatpush2.msra.mxu0 0.0
      %1644 = vmatprep.subr.mxu0 0.0
      %1645 = vmatpush2.msra.mxu0 0.0
      %1646 = vmatprep.subr.mxu0 0.0
      %1647 = vmatpush2.msra.mxu0 0.0
      %1648 = vmatprep.subr.mxu0 0.0
      %1649 = vmatpush2.msra.mxu0 0.0
      %1650 = vmatprep.subr.mxu0 0.0
      %1651 = vmatpush2.msra.mxu0 0.0
      %1652 = vmatprep.subr.mxu0 0.0
      %1653 = vmatpush2.msra.mxu0 0.0
      %1654 = vmatprep.subr.mxu0 0.0
      %1655 = vmatpush2.msra.mxu0 0.0
      %1656 = vmatprep.mubr.f32.mxu0 0.0
      %1657 = vmatmul.mubr.f32.gmra.mxu0 %v1590
      %v1658 = vpop.f32.mrf.mxu0
      %v1659 = vadd.f32 0.0, %v1658
      %v1660 = vpop.f32.mrf.mxu0
      %1661 = vdwg.mxu0
      %s1662 = scalar_lea.vmem %s4, 32
      %v1663 = vld [vmem:[%s1662] sm:$0xff]
      %v1664 = vld [vmem:[%s1662 + $0x8] sm:$0xff]
      %v1665 = vld [vmem:[%s1662 + $0x10] sm:$0xff]
      %v1666 = vld [vmem:[%s1662 + $0x18] sm:$0xff]
      %1668 = vrot.lane.b32.xlu0 %v1659, 96
      %v1669 = vpop.permute.xlu0 %1668
      %v1670 = vsel %vm438, %v1659, 0
      %v1672 = vsel %vm438, %v1669, 0
      %1674 = vmatprep.subr.mxu0 0.0
      %1675 = vmatpush1.xpose.msra.mxu0 0.0
      %1676 = vmatprep.subr.mxu0 0.0
      %1677 = vmatpush1.xpose.msra.mxu0 0.0
      %1678 = vmatprep.subr.mxu0 0.0
      %1679 = vmatpush1.xpose.msra.mxu0 0.0
      %1680 = vmatprep.subr.mxu0 0.0
      %1681 = vmatpush1.xpose.msra.mxu0 0.0
      %1682 = vmatprep.subr.mxu0 0.0
      %1683 = vmatpush1.xpose.msra.mxu0 0.0
      %1684 = vmatprep.subr.mxu0 0.0
      %1685 = vmatpush1.xpose.msra.mxu0 0.0
      %1686 = vmatprep.subr.mxu0 0.0
      %1687 = vmatpush1.xpose.msra.mxu0 0.0
      %1688 = vmatprep.subr.mxu0 0.0
      %1689 = vmatpush1.xpose.msra.mxu0 0.0
      %1690 = vmatprep.subr.mxu0 0.0
      %1691 = vmatpush1.xpose.msra.mxu0 0.0
      %1692 = vmatprep.subr.mxu0 0.0
      %1693 = vmatpush1.xpose.msra.mxu0 0.0
      %1694 = vmatprep.subr.mxu0 0.0
      %1695 = vmatpush1.xpose.msra.mxu0 0.0
      %1696 = vmatprep.subr.mxu0 0.0
      %1697 = vmatpush1.xpose.msra.mxu0 0.0
      %1698 = vmatprep.subr.mxu0 0.0
      %1699 = vmatpush1.xpose.msra.mxu0 0.0
      %1700 = vmatprep.subr.mxu0 0.0
      %1701 = vmatpush1.xpose.msra.mxu0 0.0
      %1702 = vmatprep.subr.mxu0 0.0
      %1703 = vmatpush1.xpose.msra.mxu0 0.0
      %1704 = vmatprep.subr.mxu0 0.0
      %1705 = vmatpush1.xpose.msra.mxu0 %v1672
      %1706 = vmatprep.subr.mxu0 0.0
      %1707 = vmatpush2.xpose.msra.mxu0 0.0
      %1708 = vmatprep.subr.mxu0 0.0
      %1709 = vmatpush2.xpose.msra.mxu0 0.0
      %1710 = vmatprep.subr.mxu0 0.0
      %1711 = vmatpush2.xpose.msra.mxu0 0.0
      %1712 = vmatprep.subr.mxu0 0.0
      %1713 = vmatpush2.xpose.msra.mxu0 0.0
      %1714 = vmatprep.subr.mxu0 0.0
      %1715 = vmatpush2.xpose.msra.mxu0 0.0
      %1716 = vmatprep.subr.mxu0 0.0
      %1717 = vmatpush2.xpose.msra.mxu0 0.0
      %1718 = vmatprep.subr.mxu0 0.0
      %1719 = vmatpush2.xpose.msra.mxu0 0.0
      %1720 = vmatprep.subr.mxu0 0.0
      %1721 = vmatpush2.xpose.msra.mxu0 0.0
      %1722 = vmatprep.subr.mxu0 0.0
      %1723 = vmatpush2.xpose.msra.mxu0 0.0
      %1724 = vmatprep.subr.mxu0 0.0
      %1725 = vmatpush2.xpose.msra.mxu0 0.0
      %1726 = vmatprep.subr.mxu0 0.0
      %1727 = vmatpush2.xpose.msra.mxu0 0.0
      %1728 = vmatprep.subr.mxu0 0.0
      %1729 = vmatpush2.xpose.msra.mxu0 0.0
      %1730 = vmatprep.subr.mxu0 0.0
      %1731 = vmatpush2.xpose.msra.mxu0 0.0
      %1732 = vmatprep.subr.mxu0 0.0
      %1733 = vmatpush2.xpose.msra.mxu0 0.0
      %1734 = vmatprep.subr.mxu0 0.0
      %1735 = vmatpush2.xpose.msra.mxu0 0.0
      %1736 = vmatprep.subr.mxu0 0.0
      %1737 = vmatpush2.xpose.msra.mxu0 0.0
      %1738 = vmatprep.mubr.f32.mxu0 0.0
      %1739 = vmatmul.mubr.f32.gmra.mxu0 %v1670
      %v1740 = vpop.f32.mrf.mxu0
      %v1741 = vadd.f32 %v329, %v1740
      %v1742 = vpop.f32.mrf.mxu0
      %1743 = vdwg.mxu0
      %v1744 = vsel %vm438, %v1741, -inf
      %1745 = vmax.xlane.f32.xlu0 %v1744
      %v1746 = vpop.xlane.xlu0 %1745
      %v1747 = vsub.f32 %v1741, %v1746
      %v1748 = vmul.f32 %v1747, 1.442695
      %v1749 = vpow.pop %v1748
      %v1750 = vsel %vm438, %v1749, 0.0
      %1751 = vadd.xlane.f32.xlu0 %v1750
      %v1752 = vpop.xlane.xlu0 %1751
      %v1753 = vrcp.pop %v1752
      %v1754 = vmul.f32 %v1749, %v1753
      %1755 = vrot.lane.b32.xlu0 %v1659, 64
      %v1756 = vpop.permute.xlu0 %1755
      %v1759 = vsel %vm438, %v1754, 0
      %1761 = vmatprep.subr.mxu0 0.0
      %1762 = vmatpush1.msra.mxu0 0.0
      %1763 = vmatprep.subr.mxu0 0.0
      %1764 = vmatpush1.msra.mxu0 0.0
      %1765 = vmatprep.subr.mxu0 0.0
      %1766 = vmatpush1.msra.mxu0 0.0
      %1767 = vmatprep.subr.mxu0 0.0
      %1768 = vmatpush1.msra.mxu0 0.0
      %1769 = vmatprep.subr.mxu0 0.0
      %1770 = vmatpush1.msra.mxu0 0.0
      %1771 = vmatprep.subr.mxu0 0.0
      %1772 = vmatpush1.msra.mxu0 0.0
      %1773 = vmatprep.subr.mxu0 0.0
      %1774 = vmatpush1.msra.mxu0 0.0
      %1775 = vmatprep.subr.mxu0 0.0
      %1776 = vmatpush1.msra.mxu0 0.0
      %1777 = vmatprep.subr.mxu0 0.0
      %1778 = vmatpush1.msra.mxu0 0.0
      %1779 = vmatprep.subr.mxu0 0.0
      %1780 = vmatpush1.msra.mxu0 0.0
      %1781 = vmatprep.subr.mxu0 0.0
      %1782 = vmatpush1.msra.mxu0 0.0
      %1783 = vmatprep.subr.mxu0 0.0
      %1784 = vmatpush1.msra.mxu0 0.0
      %1785 = vmatprep.subr.mxu0 0.0
      %1786 = vmatpush1.msra.mxu0 0.0
      %1787 = vmatprep.subr.mxu0 0.0
      %1788 = vmatpush1.msra.mxu0 0.0
      %1789 = vmatprep.subr.mxu0 0.0
      %1790 = vmatpush1.msra.mxu0 0.0
      %1791 = vmatprep.subr.mxu0 0.0
      %1792 = vmatpush1.msra.mxu0 %v1756
      %1793 = vmatprep.subr.mxu0 0.0
      %1794 = vmatpush2.msra.mxu0 0.0
      %1795 = vmatprep.subr.mxu0 0.0
      %1796 = vmatpush2.msra.mxu0 0.0
      %1797 = vmatprep.subr.mxu0 0.0
      %1798 = vmatpush2.msra.mxu0 0.0
      %1799 = vmatprep.subr.mxu0 0.0
      %1800 = vmatpush2.msra.mxu0 0.0
      %1801 = vmatprep.subr.mxu0 0.0
      %1802 = vmatpush2.msra.mxu0 0.0
      %1803 = vmatprep.subr.mxu0 0.0
      %1804 = vmatpush2.msra.mxu0 0.0
      %1805 = vmatprep.subr.mxu0 0.0
      %1806 = vmatpush2.msra.mxu0 0.0
      %1807 = vmatprep.subr.mxu0 0.0
      %1808 = vmatpush2.msra.mxu0 0.0
      %1809 = vmatprep.subr.mxu0 0.0
      %1810 = vmatpush2.msra.mxu0 0.0
      %1811 = vmatprep.subr.mxu0 0.0
      %1812 = vmatpush2.msra.mxu0 0.0
      %1813 = vmatprep.subr.mxu0 0.0
      %1814 = vmatpush2.msra.mxu0 0.0
      %1815 = vmatprep.subr.mxu0 0.0
      %1816 = vmatpush2.msra.mxu0 0.0
      %1817 = vmatprep.subr.mxu0 0.0
      %1818 = vmatpush2.msra.mxu0 0.0
      %1819 = vmatprep.subr.mxu0 0.0
      %1820 = vmatpush2.msra.mxu0 0.0
      %1821 = vmatprep.subr.mxu0 0.0
      %1822 = vmatpush2.msra.mxu0 0.0
      %1823 = vmatprep.subr.mxu0 0.0
      %1824 = vmatpush2.msra.mxu0 0.0
      %1825 = vmatprep.mubr.f32.mxu0 0.0
      %1826 = vmatmul.mubr.f32.gmra.mxu0 %v1759
      %v1827 = vpop.f32.mrf.mxu0
      %v1828 = vadd.f32 0.0, %v1827
      %v1829 = vpop.f32.mrf.mxu0
      %1830 = vdwg.mxu0
      %1831 = vrot.lane.b32.xlu0 %v1659, 120
      %v1832 = vpop.permute.xlu0 %1831
      %1833 = vrot.lane.b32.xlu0 %v1659, 88
      %v1834 = vpop.permute.xlu0 %1833
      %v1835 = vsel %vm438, %v1832, 0
      %v1837 = vsel %vm438, %v1834, 0
      %1839 = vmatprep.subr.mxu0 0.0
      %1840 = vmatpush1.xpose.msra.mxu0 0.0
      %1841 = vmatprep.subr.mxu0 0.0
      %1842 = vmatpush1.xpose.msra.mxu0 0.0
      %1843 = vmatprep.subr.mxu0 0.0
      %1844 = vmatpush1.xpose.msra.mxu0 0.0
      %1845 = vmatprep.subr.mxu0 0.0
      %1846 = vmatpush1.xpose.msra.mxu0 0.0
      %1847 = vmatprep.subr.mxu0 0.0
      %1848 = vmatpush1.xpose.msra.mxu0 0.0
      %1849 = vmatprep.subr.mxu0 0.0
      %1850 = vmatpush1.xpose.msra.mxu0 0.0
      %1851 = vmatprep.subr.mxu0 0.0
      %1852 = vmatpush1.xpose.msra.mxu0 0.0
      %1853 = vmatprep.subr.mxu0 0.0
      %1854 = vmatpush1.xpose.msra.mxu0 0.0
      %1855 = vmatprep.subr.mxu0 0.0
      %1856 = vmatpush1.xpose.msra.mxu0 0.0
      %1857 = vmatprep.subr.mxu0 0.0
      %1858 = vmatpush1.xpose.msra.mxu0 0.0
      %1859 = vmatprep.subr.mxu0 0.0
      %1860 = vmatpush1.xpose.msra.mxu0 0.0
      %1861 = vmatprep.subr.mxu0 0.0
      %1862 = vmatpush1.xpose.msra.mxu0 0.0
      %1863 = vmatprep.subr.mxu0 0.0
      %1864 = vmatpush1.xpose.msra.mxu0 0.0
      %1865 = vmatprep.subr.mxu0 0.0
      %1866 = vmatpush1.xpose.msra.mxu0 0.0
      %1867 = vmatprep.subr.mxu0 0.0
      %1868 = vmatpush1.xpose.msra.mxu0 0.0
      %1869 = vmatprep.subr.mxu0 0.0
      %1870 = vmatpush1.xpose.msra.mxu0 %v1837
      %1871 = vmatprep.subr.mxu0 0.0
      %1872 = vmatpush2.xpose.msra.mxu0 0.0
      %1873 = vmatprep.subr.mxu0 0.0
      %1874 = vmatpush2.xpose.msra.mxu0 0.0
      %1875 = vmatprep.subr.mxu0 0.0
      %1876 = vmatpush2.xpose.msra.mxu0 0.0
      %1877 = vmatprep.subr.mxu0 0.0
      %1878 = vmatpush2.xpose.msra.mxu0 0.0
      %1879 = vmatprep.subr.mxu0 0.0
      %1880 = vmatpush2.xpose.msra.mxu0 0.0
      %1881 = vmatprep.subr.mxu0 0.0
      %1882 = vmatpush2.xpose.msra.mxu0 0.0
      %1883 = vmatprep.subr.mxu0 0.0
      %1884 = vmatpush2.xpose.msra.mxu0 0.0
      %1885 = vmatprep.subr.mxu0 0.0
      %1886 = vmatpush2.xpose.msra.mxu0 0.0
      %1887 = vmatprep.subr.mxu0 0.0
      %1888 = vmatpush2.xpose.msra.mxu0 0.0
      %1889 = vmatprep.subr.mxu0 0.0
      %1890 = vmatpush2.xpose.msra.mxu0 0.0
      %1891 = vmatprep.subr.mxu0 0.0
      %1892 = vmatpush2.xpose.msra.mxu0 0.0
      %1893 = vmatprep.subr.mxu0 0.0
      %1894 = vmatpush2.xpose.msra.mxu0 0.0
      %1895 = vmatprep.subr.mxu0 0.0
      %1896 = vmatpush2.xpose.msra.mxu0 0.0
      %1897 = vmatprep.subr.mxu0 0.0
      %1898 = vmatpush2.xpose.msra.mxu0 0.0
      %1899 = vmatprep.subr.mxu0 0.0
      %1900 = vmatpush2.xpose.msra.mxu0 0.0
      %1901 = vmatprep.subr.mxu0 0.0
      %1902 = vmatpush2.xpose.msra.mxu0 0.0
      %1903 = vmatprep.mubr.f32.mxu0 0.0
      %1904 = vmatmul.mubr.f32.gmra.mxu0 %v1835
      %v1905 = vpop.f32.mrf.mxu0
      %v1906 = vadd.f32 %v331, %v1905
      %v1907 = vpop.f32.mrf.mxu0
      %1908 = vdwg.mxu0
      %v1909 = vsel %vm438, %v1906, -inf
      %1910 = vmax.xlane.f32.xlu0 %v1909
      %v1911 = vpop.xlane.xlu0 %1910
      %v1912 = vsub.f32 %v1906, %v1911
      %v1913 = vmul.f32 %v1912, 1.442695
      %v1914 = vpow.pop %v1913
      %v1915 = vsel %vm438, %v1914, 0.0
      %1916 = vadd.xlane.f32.xlu0 %v1915
      %v1917 = vpop.xlane.xlu0 %1916
      %v1918 = vrcp.pop %v1917
      %v1919 = vmul.f32 %v1914, %v1918
      %1920 = vrot.lane.b32.xlu0 %v1659, 56
      %v1921 = vpop.permute.xlu0 %1920
      %v1924 = vsel %vm438, %v1919, 0
      %1926 = vmatprep.subr.mxu0 0.0
      %1927 = vmatpush1.msra.mxu0 0.0
      %1928 = vmatprep.subr.mxu0 0.0
      %1929 = vmatpush1.msra.mxu0 0.0
      %1930 = vmatprep.subr.mxu0 0.0
      %1931 = vmatpush1.msra.mxu0 0.0
      %1932 = vmatprep.subr.mxu0 0.0
      %1933 = vmatpush1.msra.mxu0 0.0
      %1934 = vmatprep.subr.mxu0 0.0
      %1935 = vmatpush1.msra.mxu0 0.0
      %1936 = vmatprep.subr.mxu0 0.0
      %1937 = vmatpush1.msra.mxu0 0.0
      %1938 = vmatprep.subr.mxu0 0.0
      %1939 = vmatpush1.msra.mxu0 0.0
      %1940 = vmatprep.subr.mxu0 0.0
      %1941 = vmatpush1.msra.mxu0 0.0
      %1942 = vmatprep.subr.mxu0 0.0
      %1943 = vmatpush1.msra.mxu0 0.0
      %1944 = vmatprep.subr.mxu0 0.0
      %1945 = vmatpush1.msra.mxu0 0.0
      %1946 = vmatprep.subr.mxu0 0.0
      %1947 = vmatpush1.msra.mxu0 0.0
      %1948 = vmatprep.subr.mxu0 0.0
      %1949 = vmatpush1.msra.mxu0 0.0
      %1950 = vmatprep.subr.mxu0 0.0
      %1951 = vmatpush1.msra.mxu0 0.0
      %1952 = vmatprep.subr.mxu0 0.0
      %1953 = vmatpush1.msra.mxu0 0.0
      %1954 = vmatprep.subr.mxu0 0.0
      %1955 = vmatpush1.msra.mxu0 0.0
      %1956 = vmatprep.subr.mxu0 0.0
      %1957 = vmatpush1.msra.mxu0 %v1921
      %1958 = vmatprep.subr.mxu0 0.0
      %1959 = vmatpush2.msra.mxu0 0.0
      %1960 = vmatprep.subr.mxu0 0.0
      %1961 = vmatpush2.msra.mxu0 0.0
      %1962 = vmatprep.subr.mxu0 0.0
      %1963 = vmatpush2.msra.mxu0 0.0
      %1964 = vmatprep.subr.mxu0 0.0
      %1965 = vmatpush2.msra.mxu0 0.0
      %1966 = vmatprep.subr.mxu0 0.0
      %1967 = vmatpush2.msra.mxu0 0.0
      %1968 = vmatprep.subr.mxu0 0.0
      %1969 = vmatpush2.msra.mxu0 0.0
      %1970 = vmatprep.subr.mxu0 0.0
      %1971 = vmatpush2.msra.mxu0 0.0
      %1972 = vmatprep.subr.mxu0 0.0
      %1973 = vmatpush2.msra.mxu0 0.0
      %1974 = vmatprep.subr.mxu0 0.0
      %1975 = vmatpush2.msra.mxu0 0.0
      %1976 = vmatprep.subr.mxu0 0.0
      %1977 = vmatpush2.msra.mxu0 0.0
      %1978 = vmatprep.subr.mxu0 0.0
      %1979 = vmatpush2.msra.mxu0 0.0
      %1980 = vmatprep.subr.mxu0 0.0
      %1981 = vmatpush2.msra.mxu0 0.0
      %1982 = vmatprep.subr.mxu0 0.0
      %1983 = vmatpush2.msra.mxu0 0.0
      %1984 = vmatprep.subr.mxu0 0.0
      %1985 = vmatpush2.msra.mxu0 0.0
      %1986 = vmatprep.subr.mxu0 0.0
      %1987 = vmatpush2.msra.mxu0 0.0
      %1988 = vmatprep.subr.mxu0 0.0
      %1989 = vmatpush2.msra.mxu0 0.0
      %1990 = vmatprep.mubr.f32.mxu0 0.0
      %1991 = vmatmul.mubr.f32.gmra.mxu0 %v1924
      %v1992 = vpop.f32.mrf.mxu0
      %v1993 = vadd.f32 0.0, %v1992
      %v1994 = vpop.f32.mrf.mxu0
      %1995 = vdwg.mxu0
      %v1997 = vsel %vm438, %v1993, 0
      %1999 = vmatprep.subr.mxu0 0.0
      %2000 = vmatpush1.msra.mxu0 0.0
      %2001 = vmatprep.subr.mxu0 0.0
      %2002 = vmatpush1.msra.mxu0 0.0
      %2003 = vmatprep.subr.mxu0 0.0
      %2004 = vmatpush1.msra.mxu0 0.0
      %2005 = vmatprep.subr.mxu0 0.0
      %2006 = vmatpush1.msra.mxu0 0.0
      %2007 = vmatprep.subr.mxu0 0.0
      %2008 = vmatpush1.msra.mxu0 0.0
      %2009 = vmatprep.subr.mxu0 0.0
      %2010 = vmatpush1.msra.mxu0 0.0
      %2011 = vmatprep.subr.mxu0 0.0
      %2012 = vmatpush1.msra.mxu0 0.0
      %2013 = vmatprep.subr.mxu0 0.0
      %2014 = vmatpush1.msra.mxu0 0.0
      %2015 = vmatprep.subr.mxu0 0.0
      %2016 = vmatpush1.msra.mxu0 0.0
      %2017 = vmatprep.subr.mxu0 0.0
      %2018 = vmatpush1.msra.mxu0 0.0
      %2019 = vmatprep.subr.mxu0 0.0
      %2020 = vmatpush1.msra.mxu0 0.0
      %2021 = vmatprep.subr.mxu0 0.0
      %2022 = vmatpush1.msra.mxu0 0.0
      %2023 = vmatprep.subr.mxu0 0.0
      %2024 = vmatpush1.msra.mxu0 0.0
      %2025 = vmatprep.subr.mxu0 0.0
      %2026 = vmatpush1.msra.mxu0 0.0
      %2027 = vmatprep.subr.mxu0 0.0
      %2028 = vmatpush1.msra.mxu0 0.0
      %2029 = vmatprep.subr.mxu0 0.0
      %2030 = vmatpush1.msra.mxu0 %v1664
      %2031 = vmatprep.subr.mxu0 0.0
      %2032 = vmatpush2.msra.mxu0 0.0
      %2033 = vmatprep.subr.mxu0 0.0
      %2034 = vmatpush2.msra.mxu0 0.0
      %2035 = vmatprep.subr.mxu0 0.0
      %2036 = vmatpush2.msra.mxu0 0.0
      %2037 = vmatprep.subr.mxu0 0.0
      %2038 = vmatpush2.msra.mxu0 0.0
      %2039 = vmatprep.subr.mxu0 0.0
      %2040 = vmatpush2.msra.mxu0 0.0
      %2041 = vmatprep.subr.mxu0 0.0
      %2042 = vmatpush2.msra.mxu0 0.0
      %2043 = vmatprep.subr.mxu0 0.0
      %2044 = vmatpush2.msra.mxu0 0.0
      %2045 = vmatprep.subr.mxu0 0.0
      %2046 = vmatpush2.msra.mxu0 0.0
      %2047 = vmatprep.subr.mxu0 0.0
      %2048 = vmatpush2.msra.mxu0 0.0
      %2049 = vmatprep.subr.mxu0 0.0
      %2050 = vmatpush2.msra.mxu0 0.0
      %2051 = vmatprep.subr.mxu0 0.0
      %2052 = vmatpush2.msra.mxu0 0.0
      %2053 = vmatprep.subr.mxu0 0.0
      %2054 = vmatpush2.msra.mxu0 0.0
      %2055 = vmatprep.subr.mxu0 0.0
      %2056 = vmatpush2.msra.mxu0 0.0
      %2057 = vmatprep.subr.mxu0 0.0
      %2058 = vmatpush2.msra.mxu0 0.0
      %2059 = vmatprep.subr.mxu0 0.0
      %2060 = vmatpush2.msra.mxu0 0.0
      %2061 = vmatprep.subr.mxu0 0.0
      %2062 = vmatpush2.msra.mxu0 0.0
      %2063 = vmatprep.mubr.f32.mxu0 0.0
      %2064 = vmatmul.mubr.f32.gmra.mxu0 %v1997
      %v2065 = vpop.f32.mrf.mxu0
      %v2066 = vadd.f32 0.0, %v2065
      %v2067 = vpop.f32.mrf.mxu0
      %2068 = vdwg.mxu0
      %v2070 = vsel %vm438, %v1828, 0
      %2072 = vmatprep.subr.mxu0 0.0
      %2073 = vmatpush1.msra.mxu0 0.0
      %2074 = vmatprep.subr.mxu0 0.0
      %2075 = vmatpush1.msra.mxu0 0.0
      %2076 = vmatprep.subr.mxu0 0.0
      %2077 = vmatpush1.msra.mxu0 0.0
      %2078 = vmatprep.subr.mxu0 0.0
      %2079 = vmatpush1.msra.mxu0 0.0
      %2080 = vmatprep.subr.mxu0 0.0
      %2081 = vmatpush1.msra.mxu0 0.0
      %2082 = vmatprep.subr.mxu0 0.0
      %2083 = vmatpush1.msra.mxu0 0.0
      %2084 = vmatprep.subr.mxu0 0.0
      %2085 = vmatpush1.msra.mxu0 0.0
      %2086 = vmatprep.subr.mxu0 0.0
      %2087 = vmatpush1.msra.mxu0 0.0
      %2088 = vmatprep.subr.mxu0 0.0
      %2089 = vmatpush1.msra.mxu0 0.0
      %2090 = vmatprep.subr.mxu0 0.0
      %2091 = vmatpush1.msra.mxu0 0.0
      %2092 = vmatprep.subr.mxu0 0.0
      %2093 = vmatpush1.msra.mxu0 0.0
      %2094 = vmatprep.subr.mxu0 0.0
      %2095 = vmatpush1.msra.mxu0 0.0
      %2096 = vmatprep.subr.mxu0 0.0
      %2097 = vmatpush1.msra.mxu0 0.0
      %2098 = vmatprep.subr.mxu0 0.0
      %2099 = vmatpush1.msra.mxu0 0.0
      %2100 = vmatprep.subr.mxu0 0.0
      %2101 = vmatpush1.msra.mxu0 0.0
      %2102 = vmatprep.subr.mxu0 0.0
      %2103 = vmatpush1.msra.mxu0 %v1663
      %2104 = vmatprep.subr.mxu0 0.0
      %2105 = vmatpush2.msra.mxu0 0.0
      %2106 = vmatprep.subr.mxu0 0.0
      %2107 = vmatpush2.msra.mxu0 0.0
      %2108 = vmatprep.subr.mxu0 0.0
      %2109 = vmatpush2.msra.mxu0 0.0
      %2110 = vmatprep.subr.mxu0 0.0
      %2111 = vmatpush2.msra.mxu0 0.0
      %2112 = vmatprep.subr.mxu0 0.0
      %2113 = vmatpush2.msra.mxu0 0.0
      %2114 = vmatprep.subr.mxu0 0.0
      %2115 = vmatpush2.msra.mxu0 0.0
      %2116 = vmatprep.subr.mxu0 0.0
      %2117 = vmatpush2.msra.mxu0 0.0
      %2118 = vmatprep.subr.mxu0 0.0
      %2119 = vmatpush2.msra.mxu0 0.0
      %2120 = vmatprep.subr.mxu0 0.0
      %2121 = vmatpush2.msra.mxu0 0.0
      %2122 = vmatprep.subr.mxu0 0.0
      %2123 = vmatpush2.msra.mxu0 0.0
      %2124 = vmatprep.subr.mxu0 0.0
      %2125 = vmatpush2.msra.mxu0 0.0
      %2126 = vmatprep.subr.mxu0 0.0
      %2127 = vmatpush2.msra.mxu0 0.0
      %2128 = vmatprep.subr.mxu0 0.0
      %2129 = vmatpush2.msra.mxu0 0.0
      %2130 = vmatprep.subr.mxu0 0.0
      %2131 = vmatpush2.msra.mxu0 0.0
      %2132 = vmatprep.subr.mxu0 0.0
      %2133 = vmatpush2.msra.mxu0 0.0
      %2134 = vmatprep.subr.mxu0 0.0
      %2135 = vmatpush2.msra.mxu0 0.0
      %2136 = vmatprep.mubr.f32.mxu0 0.0
      %2137 = vmatmul.mubr.f32.gmra.mxu0 %v2070
      %v2138 = vpop.f32.mrf.mxu0
      %v2139 = vadd.f32 %v2066, %v2138
      %v2140 = vpop.f32.mrf.mxu0
      %2141 = vdwg.mxu0
      %2142 = vrot.lane.b32.xlu0 %v1659, 112
      %v2143 = vpop.permute.xlu0 %2142
      %2144 = vrot.lane.b32.xlu0 %v1659, 80
      %v2145 = vpop.permute.xlu0 %2144
      %v2146 = vsel %vm438, %v2143, 0
      %v2148 = vsel %vm438, %v2145, 0
      %2150 = vmatprep.subr.mxu0 0.0
      %2151 = vmatpush1.xpose.msra.mxu0 0.0
      %2152 = vmatprep.subr.mxu0 0.0
      %2153 = vmatpush1.xpose.msra.mxu0 0.0
      %2154 = vmatprep.subr.mxu0 0.0
      %2155 = vmatpush1.xpose.msra.mxu0 0.0
      %2156 = vmatprep.subr.mxu0 0.0
      %2157 = vmatpush1.xpose.msra.mxu0 0.0
      %2158 = vmatprep.subr.mxu0 0.0
      %2159 = vmatpush1.xpose.msra.mxu0 0.0
      %2160 = vmatprep.subr.mxu0 0.0
      %2161 = vmatpush1.xpose.msra.mxu0 0.0
      %2162 = vmatprep.subr.mxu0 0.0
      %2163 = vmatpush1.xpose.msra.mxu0 0.0
      %2164 = vmatprep.subr.mxu0 0.0
      %2165 = vmatpush1.xpose.msra.mxu0 0.0
      %2166 = vmatprep.subr.mxu0 0.0
      %2167 = vmatpush1.xpose.msra.mxu0 0.0
      %2168 = vmatprep.subr.mxu0 0.0
      %2169 = vmatpush1.xpose.msra.mxu0 0.0
      %2170 = vmatprep.subr.mxu0 0.0
      %2171 = vmatpush1.xpose.msra.mxu0 0.0
      %2172 = vmatprep.subr.mxu0 0.0
      %2173 = vmatpush1.xpose.msra.mxu0 0.0
      %2174 = vmatprep.subr.mxu0 0.0
      %2175 = vmatpush1.xpose.msra.mxu0 0.0
      %2176 = vmatprep.subr.mxu0 0.0
      %2177 = vmatpush1.xpose.msra.mxu0 0.0
      %2178 = vmatprep.subr.mxu0 0.0
      %2179 = vmatpush1.xpose.msra.mxu0 0.0
      %2180 = vmatprep.subr.mxu0 0.0
      %2181 = vmatpush1.xpose.msra.mxu0 %v2148
      %2182 = vmatprep.subr.mxu0 0.0
      %2183 = vmatpush2.xpose.msra.mxu0 0.0
      %2184 = vmatprep.subr.mxu0 0.0
      %2185 = vmatpush2.xpose.msra.mxu0 0.0
      %2186 = vmatprep.subr.mxu0 0.0
      %2187 = vmatpush2.xpose.msra.mxu0 0.0
      %2188 = vmatprep.subr.mxu0 0.0
      %2189 = vmatpush2.xpose.msra.mxu0 0.0
      %2190 = vmatprep.subr.mxu0 0.0
      %2191 = vmatpush2.xpose.msra.mxu0 0.0
      %2192 = vmatprep.subr.mxu0 0.0
      %2193 = vmatpush2.xpose.msra.mxu0 0.0
      %2194 = vmatprep.subr.mxu0 0.0
      %2195 = vmatpush2.xpose.msra.mxu0 0.0
      %2196 = vmatprep.subr.mxu0 0.0
      %2197 = vmatpush2.xpose.msra.mxu0 0.0
      %2198 = vmatprep.subr.mxu0 0.0
      %2199 = vmatpush2.xpose.msra.mxu0 0.0
      %2200 = vmatprep.subr.mxu0 0.0
      %2201 = vmatpush2.xpose.msra.mxu0 0.0
      %2202 = vmatprep.subr.mxu0 0.0
      %2203 = vmatpush2.xpose.msra.mxu0 0.0
      %2204 = vmatprep.subr.mxu0 0.0
      %2205 = vmatpush2.xpose.msra.mxu0 0.0
      %2206 = vmatprep.subr.mxu0 0.0
      %2207 = vmatpush2.xpose.msra.mxu0 0.0
      %2208 = vmatprep.subr.mxu0 0.0
      %2209 = vmatpush2.xpose.msra.mxu0 0.0
      %2210 = vmatprep.subr.mxu0 0.0
      %2211 = vmatpush2.xpose.msra.mxu0 0.0
      %2212 = vmatprep.subr.mxu0 0.0
      %2213 = vmatpush2.xpose.msra.mxu0 0.0
      %2214 = vmatprep.mubr.f32.mxu0 0.0
      %2215 = vmatmul.mubr.f32.gmra.mxu0 %v2146
      %v2216 = vpop.f32.mrf.mxu0
      %v2217 = vadd.f32 %v333, %v2216
      %v2218 = vpop.f32.mrf.mxu0
      %2219 = vdwg.mxu0
      %v2220 = vsel %vm438, %v2217, -inf
      %2221 = vmax.xlane.f32.xlu0 %v2220
      %v2222 = vpop.xlane.xlu0 %2221
      %v2223 = vsub.f32 %v2217, %v2222
      %v2224 = vmul.f32 %v2223, 1.442695
      %v2225 = vpow.pop %v2224
      %v2226 = vsel %vm438, %v2225, 0.0
      %2227 = vadd.xlane.f32.xlu0 %v2226
      %v2228 = vpop.xlane.xlu0 %2227
      %v2229 = vrcp.pop %v2228
      %v2230 = vmul.f32 %v2225, %v2229
      %2231 = vrot.lane.b32.xlu0 %v1659, 48
      %v2232 = vpop.permute.xlu0 %2231
      %v2235 = vsel %vm438, %v2230, 0
      %2237 = vmatprep.subr.mxu0 0.0
      %2238 = vmatpush1.msra.mxu0 0.0
      %2239 = vmatprep.subr.mxu0 0.0
      %2240 = vmatpush1.msra.mxu0 0.0
      %2241 = vmatprep.subr.mxu0 0.0
      %2242 = vmatpush1.msra.mxu0 0.0
      %2243 = vmatprep.subr.mxu0 0.0
      %2244 = vmatpush1.msra.mxu0 0.0
      %2245 = vmatprep.subr.mxu0 0.0
      %2246 = vmatpush1.msra.mxu0 0.0
      %2247 = vmatprep.subr.mxu0 0.0
      %2248 = vmatpush1.msra.mxu0 0.0
      %2249 = vmatprep.subr.mxu0 0.0
      %2250 = vmatpush1.msra.mxu0 0.0
      %2251 = vmatprep.subr.mxu0 0.0
      %2252 = vmatpush1.msra.mxu0 0.0
      %2253 = vmatprep.subr.mxu0 0.0
      %2254 = vmatpush1.msra.mxu0 0.0
      %2255 = vmatprep.subr.mxu0 0.0
      %2256 = vmatpush1.msra.mxu0 0.0
      %2257 = vmatprep.subr.mxu0 0.0
      %2258 = vmatpush1.msra.mxu0 0.0
      %2259 = vmatprep.subr.mxu0 0.0
      %2260 = vmatpush1.msra.mxu0 0.0
      %2261 = vmatprep.subr.mxu0 0.0
      %2262 = vmatpush1.msra.mxu0 0.0
      %2263 = vmatprep.subr.mxu0 0.0
      %2264 = vmatpush1.msra.mxu0 0.0
      %2265 = vmatprep.subr.mxu0 0.0
      %2266 = vmatpush1.msra.mxu0 0.0
      %2267 = vmatprep.subr.mxu0 0.0
      %2268 = vmatpush1.msra.mxu0 %v2232
      %2269 = vmatprep.subr.mxu0 0.0
      %2270 = vmatpush2.msra.mxu0 0.0
      %2271 = vmatprep.subr.mxu0 0.0
      %2272 = vmatpush2.msra.mxu0 0.0
      %2273 = vmatprep.subr.mxu0 0.0
      %2274 = vmatpush2.msra.mxu0 0.0
      %2275 = vmatprep.subr.mxu0 0.0
      %2276 = vmatpush2.msra.mxu0 0.0
      %2277 = vmatprep.subr.mxu0 0.0
      %2278 = vmatpush2.msra.mxu0 0.0
      %2279 = vmatprep.subr.mxu0 0.0
      %2280 = vmatpush2.msra.mxu0 0.0
      %2281 = vmatprep.subr.mxu0 0.0
      %2282 = vmatpush2.msra.mxu0 0.0
      %2283 = vmatprep.subr.mxu0 0.0
      %2284 = vmatpush2.msra.mxu0 0.0
      %2285 = vmatprep.subr.mxu0 0.0
      %2286 = vmatpush2.msra.mxu0 0.0
      %2287 = vmatprep.subr.mxu0 0.0
      %2288 = vmatpush2.msra.mxu0 0.0
      %2289 = vmatprep.subr.mxu0 0.0
      %2290 = vmatpush2.msra.mxu0 0.0
      %2291 = vmatprep.subr.mxu0 0.0
      %2292 = vmatpush2.msra.mxu0 0.0
      %2293 = vmatprep.subr.mxu0 0.0
      %2294 = vmatpush2.msra.mxu0 0.0
      %2295 = vmatprep.subr.mxu0 0.0
      %2296 = vmatpush2.msra.mxu0 0.0
      %2297 = vmatprep.subr.mxu0 0.0
      %2298 = vmatpush2.msra.mxu0 0.0
      %2299 = vmatprep.subr.mxu0 0.0
      %2300 = vmatpush2.msra.mxu0 0.0
      %2301 = vmatprep.mubr.f32.mxu0 0.0
      %2302 = vmatmul.mubr.f32.gmra.mxu0 %v2235
      %v2303 = vpop.f32.mrf.mxu0
      %v2304 = vadd.f32 0.0, %v2303
      %v2305 = vpop.f32.mrf.mxu0
      %2306 = vdwg.mxu0
      %v2308 = vsel %vm438, %v2304, 0
      %2310 = vmatprep.subr.mxu0 0.0
      %2311 = vmatpush1.msra.mxu0 0.0
      %2312 = vmatprep.subr.mxu0 0.0
      %2313 = vmatpush1.msra.mxu0 0.0
      %2314 = vmatprep.subr.mxu0 0.0
      %2315 = vmatpush1.msra.mxu0 0.0
      %2316 = vmatprep.subr.mxu0 0.0
      %2317 = vmatpush1.msra.mxu0 0.0
      %2318 = vmatprep.subr.mxu0 0.0
      %2319 = vmatpush1.msra.mxu0 0.0
      %2320 = vmatprep.subr.mxu0 0.0
      %2321 = vmatpush1.msra.mxu0 0.0
      %2322 = vmatprep.subr.mxu0 0.0
      %2323 = vmatpush1.msra.mxu0 0.0
      %2324 = vmatprep.subr.mxu0 0.0
      %2325 = vmatpush1.msra.mxu0 0.0
      %2326 = vmatprep.subr.mxu0 0.0
      %2327 = vmatpush1.msra.mxu0 0.0
      %2328 = vmatprep.subr.mxu0 0.0
      %2329 = vmatpush1.msra.mxu0 0.0
      %2330 = vmatprep.subr.mxu0 0.0
      %2331 = vmatpush1.msra.mxu0 0.0
      %2332 = vmatprep.subr.mxu0 0.0
      %2333 = vmatpush1.msra.mxu0 0.0
      %2334 = vmatprep.subr.mxu0 0.0
      %2335 = vmatpush1.msra.mxu0 0.0
      %2336 = vmatprep.subr.mxu0 0.0
      %2337 = vmatpush1.msra.mxu0 0.0
      %2338 = vmatprep.subr.mxu0 0.0
      %2339 = vmatpush1.msra.mxu0 0.0
      %2340 = vmatprep.subr.mxu0 0.0
      %2341 = vmatpush1.msra.mxu0 %v1665
      %2342 = vmatprep.subr.mxu0 0.0
      %2343 = vmatpush2.msra.mxu0 0.0
      %2344 = vmatprep.subr.mxu0 0.0
      %2345 = vmatpush2.msra.mxu0 0.0
      %2346 = vmatprep.subr.mxu0 0.0
      %2347 = vmatpush2.msra.mxu0 0.0
      %2348 = vmatprep.subr.mxu0 0.0
      %2349 = vmatpush2.msra.mxu0 0.0
      %2350 = vmatprep.subr.mxu0 0.0
      %2351 = vmatpush2.msra.mxu0 0.0
      %2352 = vmatprep.subr.mxu0 0.0
      %2353 = vmatpush2.msra.mxu0 0.0
      %2354 = vmatprep.subr.mxu0 0.0
      %2355 = vmatpush2.msra.mxu0 0.0
      %2356 = vmatprep.subr.mxu0 0.0
      %2357 = vmatpush2.msra.mxu0 0.0
      %2358 = vmatprep.subr.mxu0 0.0
      %2359 = vmatpush2.msra.mxu0 0.0
      %2360 = vmatprep.subr.mxu0 0.0
      %2361 = vmatpush2.msra.mxu0 0.0
      %2362 = vmatprep.subr.mxu0 0.0
      %2363 = vmatpush2.msra.mxu0 0.0
      %2364 = vmatprep.subr.mxu0 0.0
      %2365 = vmatpush2.msra.mxu0 0.0
      %2366 = vmatprep.subr.mxu0 0.0
      %2367 = vmatpush2.msra.mxu0 0.0
      %2368 = vmatprep.subr.mxu0 0.0
      %2369 = vmatpush2.msra.mxu0 0.0
      %2370 = vmatprep.subr.mxu0 0.0
      %2371 = vmatpush2.msra.mxu0 0.0
      %2372 = vmatprep.subr.mxu0 0.0
      %2373 = vmatpush2.msra.mxu0 0.0
      %2374 = vmatprep.mubr.f32.mxu0 0.0
      %2375 = vmatmul.mubr.f32.gmra.mxu0 %v2308
      %v2376 = vpop.f32.mrf.mxu0
      %v2377 = vadd.f32 0.0, %v2376
      %v2378 = vpop.f32.mrf.mxu0
      %2379 = vdwg.mxu0
      %v2380 = vadd.f32 %v2139, %v2377
      %2381 = vrot.lane.b32.xlu0 %v1659, 104
      %v2382 = vpop.permute.xlu0 %2381
      %2383 = vrot.lane.b32.xlu0 %v1659, 72
      %v2384 = vpop.permute.xlu0 %2383
      %v2385 = vsel %vm438, %v2382, 0
      %v2387 = vsel %vm438, %v2384, 0
      %2389 = vmatprep.subr.mxu0 0.0
      %2390 = vmatpush1.xpose.msra.mxu0 0.0
      %2391 = vmatprep.subr.mxu0 0.0
      %2392 = vmatpush1.xpose.msra.mxu0 0.0
      %2393 = vmatprep.subr.mxu0 0.0
      %2394 = vmatpush1.xpose.msra.mxu0 0.0
      %2395 = vmatprep.subr.mxu0 0.0
      %2396 = vmatpush1.xpose.msra.mxu0 0.0
      %2397 = vmatprep.subr.mxu0 0.0
      %2398 = vmatpush1.xpose.msra.mxu0 0.0
      %2399 = vmatprep.subr.mxu0 0.0
      %2400 = vmatpush1.xpose.msra.mxu0 0.0
      %2401 = vmatprep.subr.mxu0 0.0
      %2402 = vmatpush1.xpose.msra.mxu0 0.0
      %2403 = vmatprep.subr.mxu0 0.0
      %2404 = vmatpush1.xpose.msra.mxu0 0.0
      %2405 = vmatprep.subr.mxu0 0.0
      %2406 = vmatpush1.xpose.msra.mxu0 0.0
      %2407 = vmatprep.subr.mxu0 0.0
      %2408 = vmatpush1.xpose.msra.mxu0 0.0
      %2409 = vmatprep.subr.mxu0 0.0
      %2410 = vmatpush1.xpose.msra.mxu0 0.0
      %2411 = vmatprep.subr.mxu0 0.0
      %2412 = vmatpush1.xpose.msra.mxu0 0.0
      %2413 = vmatprep.subr.mxu0 0.0
      %2414 = vmatpush1.xpose.msra.mxu0 0.0
      %2415 = vmatprep.subr.mxu0 0.0
      %2416 = vmatpush1.xpose.msra.mxu0 0.0
      %2417 = vmatprep.subr.mxu0 0.0
      %2418 = vmatpush1.xpose.msra.mxu0 0.0
      %2419 = vmatprep.subr.mxu0 0.0
      %2420 = vmatpush1.xpose.msra.mxu0 %v2387
      %2421 = vmatprep.subr.mxu0 0.0
      %2422 = vmatpush2.xpose.msra.mxu0 0.0
      %2423 = vmatprep.subr.mxu0 0.0
      %2424 = vmatpush2.xpose.msra.mxu0 0.0
      %2425 = vmatprep.subr.mxu0 0.0
      %2426 = vmatpush2.xpose.msra.mxu0 0.0
      %2427 = vmatprep.subr.mxu0 0.0
      %2428 = vmatpush2.xpose.msra.mxu0 0.0
      %2429 = vmatprep.subr.mxu0 0.0
      %2430 = vmatpush2.xpose.msra.mxu0 0.0
      %2431 = vmatprep.subr.mxu0 0.0
      %2432 = vmatpush2.xpose.msra.mxu0 0.0
      %2433 = vmatprep.subr.mxu0 0.0
      %2434 = vmatpush2.xpose.msra.mxu0 0.0
      %2435 = vmatprep.subr.mxu0 0.0
      %2436 = vmatpush2.xpose.msra.mxu0 0.0
      %2437 = vmatprep.subr.mxu0 0.0
      %2438 = vmatpush2.xpose.msra.mxu0 0.0
      %2439 = vmatprep.subr.mxu0 0.0
      %2440 = vmatpush2.xpose.msra.mxu0 0.0
      %2441 = vmatprep.subr.mxu0 0.0
      %2442 = vmatpush2.xpose.msra.mxu0 0.0
      %2443 = vmatprep.subr.mxu0 0.0
      %2444 = vmatpush2.xpose.msra.mxu0 0.0
      %2445 = vmatprep.subr.mxu0 0.0
      %2446 = vmatpush2.xpose.msra.mxu0 0.0
      %2447 = vmatprep.subr.mxu0 0.0
      %2448 = vmatpush2.xpose.msra.mxu0 0.0
      %2449 = vmatprep.subr.mxu0 0.0
      %2450 = vmatpush2.xpose.msra.mxu0 0.0
      %2451 = vmatprep.subr.mxu0 0.0
      %2452 = vmatpush2.xpose.msra.mxu0 0.0
      %2453 = vmatprep.mubr.f32.mxu0 0.0
      %2454 = vmatmul.mubr.f32.gmra.mxu0 %v2385
      %v2455 = vpop.f32.mrf.mxu0
      %v2456 = vadd.f32 %v335, %v2455
      %v2457 = vpop.f32.mrf.mxu0
      %2458 = vdwg.mxu0
      %v2459 = vsel %vm438, %v2456, -inf
      %2460 = vmax.xlane.f32.xlu0 %v2459
      %v2461 = vpop.xlane.xlu0 %2460
      %v2462 = vsub.f32 %v2456, %v2461
      %v2463 = vmul.f32 %v2462, 1.442695
      %v2464 = vpow.pop %v2463
      %v2465 = vsel %vm438, %v2464, 0.0
      %2466 = vadd.xlane.f32.xlu0 %v2465
      %v2467 = vpop.xlane.xlu0 %2466
      %v2468 = vrcp.pop %v2467
      %v2469 = vmul.f32 %v2464, %v2468
      %2470 = vrot.lane.b32.xlu0 %v1659, 40
      %v2471 = vpop.permute.xlu0 %2470
      %v2474 = vsel %vm438, %v2469, 0
      %2476 = vmatprep.subr.mxu0 0.0
      %2477 = vmatpush1.msra.mxu0 0.0
      %2478 = vmatprep.subr.mxu0 0.0
      %2479 = vmatpush1.msra.mxu0 0.0
      %2480 = vmatprep.subr.mxu0 0.0
      %2481 = vmatpush1.msra.mxu0 0.0
      %2482 = vmatprep.subr.mxu0 0.0
      %2483 = vmatpush1.msra.mxu0 0.0
      %2484 = vmatprep.subr.mxu0 0.0
      %2485 = vmatpush1.msra.mxu0 0.0
      %2486 = vmatprep.subr.mxu0 0.0
      %2487 = vmatpush1.msra.mxu0 0.0
      %2488 = vmatprep.subr.mxu0 0.0
      %2489 = vmatpush1.msra.mxu0 0.0
      %2490 = vmatprep.subr.mxu0 0.0
      %2491 = vmatpush1.msra.mxu0 0.0
      %2492 = vmatprep.subr.mxu0 0.0
      %2493 = vmatpush1.msra.mxu0 0.0
      %2494 = vmatprep.subr.mxu0 0.0
      %2495 = vmatpush1.msra.mxu0 0.0
      %2496 = vmatprep.subr.mxu0 0.0
      %2497 = vmatpush1.msra.mxu0 0.0
      %2498 = vmatprep.subr.mxu0 0.0
      %2499 = vmatpush1.msra.mxu0 0.0
      %2500 = vmatprep.subr.mxu0 0.0
      %2501 = vmatpush1.msra.mxu0 0.0
      %2502 = vmatprep.subr.mxu0 0.0
      %2503 = vmatpush1.msra.mxu0 0.0
      %2504 = vmatprep.subr.mxu0 0.0
      %2505 = vmatpush1.msra.mxu0 0.0
      %2506 = vmatprep.subr.mxu0 0.0
      %2507 = vmatpush1.msra.mxu0 %v2471
      %2508 = vmatprep.subr.mxu0 0.0
      %2509 = vmatpush2.msra.mxu0 0.0
      %2510 = vmatprep.subr.mxu0 0.0
      %2511 = vmatpush2.msra.mxu0 0.0
      %2512 = vmatprep.subr.mxu0 0.0
      %2513 = vmatpush2.msra.mxu0 0.0
      %2514 = vmatprep.subr.mxu0 0.0
      %2515 = vmatpush2.msra.mxu0 0.0
      %2516 = vmatprep.subr.mxu0 0.0
      %2517 = vmatpush2.msra.mxu0 0.0
      %2518 = vmatprep.subr.mxu0 0.0
      %2519 = vmatpush2.msra.mxu0 0.0
      %2520 = vmatprep.subr.mxu0 0.0
      %2521 = vmatpush2.msra.mxu0 0.0
      %2522 = vmatprep.subr.mxu0 0.0
      %2523 = vmatpush2.msra.mxu0 0.0
      %2524 = vmatprep.subr.mxu0 0.0
      %2525 = vmatpush2.msra.mxu0 0.0
      %2526 = vmatprep.subr.mxu0 0.0
      %2527 = vmatpush2.msra.mxu0 0.0
      %2528 = vmatprep.subr.mxu0 0.0
      %2529 = vmatpush2.msra.mxu0 0.0
      %2530 = vmatprep.subr.mxu0 0.0
      %2531 = vmatpush2.msra.mxu0 0.0
      %2532 = vmatprep.subr.mxu0 0.0
      %2533 = vmatpush2.msra.mxu0 0.0
      %2534 = vmatprep.subr.mxu0 0.0
      %2535 = vmatpush2.msra.mxu0 0.0
      %2536 = vmatprep.subr.mxu0 0.0
      %2537 = vmatpush2.msra.mxu0 0.0
      %2538 = vmatprep.subr.mxu0 0.0
      %2539 = vmatpush2.msra.mxu0 0.0
      %2540 = vmatprep.mubr.f32.mxu0 0.0
      %2541 = vmatmul.mubr.f32.gmra.mxu0 %v2474
      %v2542 = vpop.f32.mrf.mxu0
      %v2543 = vadd.f32 0.0, %v2542
      %v2544 = vpop.f32.mrf.mxu0
      %2545 = vdwg.mxu0
      %v2547 = vsel %vm438, %v2543, 0
      %2549 = vmatprep.subr.mxu0 0.0
      %2550 = vmatpush1.msra.mxu0 0.0
      %2551 = vmatprep.subr.mxu0 0.0
      %2552 = vmatpush1.msra.mxu0 0.0
      %2553 = vmatprep.subr.mxu0 0.0
      %2554 = vmatpush1.msra.mxu0 0.0
      %2555 = vmatprep.subr.mxu0 0.0
      %2556 = vmatpush1.msra.mxu0 0.0
      %2557 = vmatprep.subr.mxu0 0.0
      %2558 = vmatpush1.msra.mxu0 0.0
      %2559 = vmatprep.subr.mxu0 0.0
      %2560 = vmatpush1.msra.mxu0 0.0
      %2561 = vmatprep.subr.mxu0 0.0
      %2562 = vmatpush1.msra.mxu0 0.0
      %2563 = vmatprep.subr.mxu0 0.0
      %2564 = vmatpush1.msra.mxu0 0.0
      %2565 = vmatprep.subr.mxu0 0.0
      %2566 = vmatpush1.msra.mxu0 0.0
      %2567 = vmatprep.subr.mxu0 0.0
      %2568 = vmatpush1.msra.mxu0 0.0
      %2569 = vmatprep.subr.mxu0 0.0
      %2570 = vmatpush1.msra.mxu0 0.0
      %2571 = vmatprep.subr.mxu0 0.0
      %2572 = vmatpush1.msra.mxu0 0.0
      %2573 = vmatprep.subr.mxu0 0.0
      %2574 = vmatpush1.msra.mxu0 0.0
      %2575 = vmatprep.subr.mxu0 0.0
      %2576 = vmatpush1.msra.mxu0 0.0
      %2577 = vmatprep.subr.mxu0 0.0
      %2578 = vmatpush1.msra.mxu0 0.0
      %2579 = vmatprep.subr.mxu0 0.0
      %2580 = vmatpush1.msra.mxu0 %v1666
      %2581 = vmatprep.subr.mxu0 0.0
      %2582 = vmatpush2.msra.mxu0 0.0
      %2583 = vmatprep.subr.mxu0 0.0
      %2584 = vmatpush2.msra.mxu0 0.0
      %2585 = vmatprep.subr.mxu0 0.0
      %2586 = vmatpush2.msra.mxu0 0.0
      %2587 = vmatprep.subr.mxu0 0.0
      %2588 = vmatpush2.msra.mxu0 0.0
      %2589 = vmatprep.subr.mxu0 0.0
      %2590 = vmatpush2.msra.mxu0 0.0
      %2591 = vmatprep.subr.mxu0 0.0
      %2592 = vmatpush2.msra.mxu0 0.0
      %2593 = vmatprep.subr.mxu0 0.0
      %2594 = vmatpush2.msra.mxu0 0.0
      %2595 = vmatprep.subr.mxu0 0.0
      %2596 = vmatpush2.msra.mxu0 0.0
      %2597 = vmatprep.subr.mxu0 0.0
      %2598 = vmatpush2.msra.mxu0 0.0
      %2599 = vmatprep.subr.mxu0 0.0
      %2600 = vmatpush2.msra.mxu0 0.0
      %2601 = vmatprep.subr.mxu0 0.0
      %2602 = vmatpush2.msra.mxu0 0.0
      %2603 = vmatprep.subr.mxu0 0.0
      %2604 = vmatpush2.msra.mxu0 0.0
      %2605 = vmatprep.subr.mxu0 0.0
      %2606 = vmatpush2.msra.mxu0 0.0
      %2607 = vmatprep.subr.mxu0 0.0
      %2608 = vmatpush2.msra.mxu0 0.0
      %2609 = vmatprep.subr.mxu0 0.0
      %2610 = vmatpush2.msra.mxu0 0.0
      %2611 = vmatprep.subr.mxu0 0.0
      %2612 = vmatpush2.msra.mxu0 0.0
      %2613 = vmatprep.mubr.f32.mxu0 0.0
      %2614 = vmatmul.mubr.f32.gmra.mxu0 %v2547
      %v2615 = vpop.f32.mrf.mxu0
      %v2616 = vadd.f32 0.0, %v2615
      %v2617 = vpop.f32.mrf.mxu0
      %2618 = vdwg.mxu0
      %v2619 = vadd.f32 %v2380, %v2616
      %v2620 = vadd.f32 %v1566, %v2619
      %s2621 = scalar_lea.vmem %s5, 1
      %v2622 = vld [vmem:[%s2621] sm:$0x1]
      %v2623 = vmul.f32 %v2620, %v2620
      %v2624 = vsel %vm338, %v2623, 0.0
      %2625 = vadd.xlane.f32.xlu0 %v2624
      %v2626 = vpop.xlane.xlu0 %2625
      %v2627 = vmul.f32 %v2626, %v342
      %v2628 = vadd.f32 %v2627, 1e-06
      %v2629 = vrsqrt.pop %v2628
      %v2630 = vmul.f32 %v2620, %v2629
      %v2632 = vlaneseq
      %v2633 = vshrl.u32 %v2632, 7
      %v2634 = vsub.s32 0, %v2633
      %v2635 = vrot.slane %v2622, %v2634
      %v2637 = vmul.f32 %v2630, %v2635
      %s2638 = scalar_lea.vmem %s6, 32
      %v2639 = vld [vmem:[%s2638] sm:$0xff]
      %v2640 = vld [vmem:[%s2638 + $0x8] sm:$0xff]
      %v2641 = vld [vmem:[%s2638 + $0x10] sm:$0xff]
      %v2642 = vld [vmem:[%s2638 + $0x18] sm:$0xff]
      %v2644 = vsel %vm338, %v2637, 0
      %2646 = vmatprep.subr.mxu0 0.0
      %2647 = vmatpush1.msra.mxu0 0.0
      %2648 = vmatprep.subr.mxu0 0.0
      %2649 = vmatpush1.msra.mxu0 0.0
      %2650 = vmatprep.subr.mxu0 0.0
      %2651 = vmatpush1.msra.mxu0 0.0
      %2652 = vmatprep.subr.mxu0 0.0
      %2653 = vmatpush1.msra.mxu0 0.0
      %2654 = vmatprep.subr.mxu0 0.0
      %2655 = vmatpush1.msra.mxu0 0.0
      %2656 = vmatprep.subr.mxu0 0.0
      %2657 = vmatpush1.msra.mxu0 0.0
      %2658 = vmatprep.subr.mxu0 0.0
      %2659 = vmatpush1.msra.mxu0 0.0
      %2660 = vmatprep.subr.mxu0 0.0
      %2661 = vmatpush1.msra.mxu0 0.0
      %2662 = vmatprep.subr.mxu0 0.0
      %2663 = vmatpush1.msra.mxu0 0.0
      %2664 = vmatprep.subr.mxu0 0.0
      %2665 = vmatpush1.msra.mxu0 0.0
      %2666 = vmatprep.subr.mxu0 0.0
      %2667 = vmatpush1.msra.mxu0 0.0
      %2668 = vmatprep.subr.mxu0 0.0
      %2669 = vmatpush1.msra.mxu0 0.0
      %2670 = vmatprep.subr.mxu0 0.0
      %2671 = vmatpush1.msra.mxu0 %v2642
      %2672 = vmatprep.subr.mxu0 0.0
      %2673 = vmatpush1.msra.mxu0 %v2641
      %2674 = vmatprep.subr.mxu0 0.0
      %2675 = vmatpush1.msra.mxu0 %v2640
      %2676 = vmatprep.subr.mxu0 0.0
      %2677 = vmatpush1.msra.mxu0 %v2639
      %2678 = vmatprep.subr.mxu0 0.0
      %2679 = vmatpush2.msra.mxu0 0.0
      %2680 = vmatprep.subr.mxu0 0.0
      %2681 = vmatpush2.msra.mxu0 0.0
      %2682 = vmatprep.subr.mxu0 0.0
      %2683 = vmatpush2.msra.mxu0 0.0
      %2684 = vmatprep.subr.mxu0 0.0
      %2685 = vmatpush2.msra.mxu0 0.0
      %2686 = vmatprep.subr.mxu0 0.0
      %2687 = vmatpush2.msra.mxu0 0.0
      %2688 = vmatprep.subr.mxu0 0.0
      %2689 = vmatpush2.msra.mxu0 0.0
      %2690 = vmatprep.subr.mxu0 0.0
      %2691 = vmatpush2.msra.mxu0 0.0
      %2692 = vmatprep.subr.mxu0 0.0
      %2693 = vmatpush2.msra.mxu0 0.0
      %2694 = vmatprep.subr.mxu0 0.0
      %2695 = vmatpush2.msra.mxu0 0.0
      %2696 = vmatprep.subr.mxu0 0.0
      %2697 = vmatpush2.msra.mxu0 0.0
      %2698 = vmatprep.subr.mxu0 0.0
      %2699 = vmatpush2.msra.mxu0 0.0
      %2700 = vmatprep.subr.mxu0 0.0
      %2701 = vmatpush2.msra.mxu0 0.0
      %2702 = vmatprep.subr.mxu0 0.0
      %2703 = vmatpush2.msra.mxu0 0.0
      %2704 = vmatprep.subr.mxu0 0.0
      %2705 = vmatpush2.msra.mxu0 0.0
      %2706 = vmatprep.subr.mxu0 0.0
      %2707 = vmatpush2.msra.mxu0 0.0
      %2708 = vmatprep.subr.mxu0 0.0
      %2709 = vmatpush2.msra.mxu0 0.0
      %2710 = vmatprep.mubr.f32.mxu0 0.0
      %2711 = vmatmul.mubr.f32.gmra.mxu0 %v2644
      %v2712 = vpop.f32.mrf.mxu0
      %v2713 = vadd.f32 0.0, %v2712
      %v2714 = vpop.f32.mrf.mxu0
      %2715 = vdwg.mxu0
      %v2716 = vmax.f32 %v2713, 0.0
      %s2717 = scalar_lea.vmem %s7, 64
      %v2718 = vld [vmem:[%s2717] sm:$0xff]
      %v2719 = vld [vmem:[%s2717 + $0x8] sm:$0xff]
      %v2720 = vld [vmem:[%s2717 + $0x10] sm:$0xff]
      %v2721 = vld [vmem:[%s2717 + $0x18] sm:$0xff]
      %v2722 = vld [vmem:[%s2717 + $0x20] sm:$0xff]
      %v2723 = vld [vmem:[%s2717 + $0x28] sm:$0xff]
      %v2724 = vld [vmem:[%s2717 + $0x30] sm:$0xff]
      %v2725 = vld [vmem:[%s2717 + $0x38] sm:$0xff]
      %v2727 = vsel %vm1492, %v2716, 0
      %2729 = vmatprep.subr.mxu0 0.0
      %2730 = vmatpush1.msra.mxu0 0.0
      %2731 = vmatprep.subr.mxu0 0.0
      %2732 = vmatpush1.msra.mxu0 0.0
      %2733 = vmatprep.subr.mxu0 0.0
      %2734 = vmatpush1.msra.mxu0 0.0
      %2735 = vmatprep.subr.mxu0 0.0
      %2736 = vmatpush1.msra.mxu0 0.0
      %2737 = vmatprep.subr.mxu0 0.0
      %2738 = vmatpush1.msra.mxu0 0.0
      %2739 = vmatprep.subr.mxu0 0.0
      %2740 = vmatpush1.msra.mxu0 0.0
      %2741 = vmatprep.subr.mxu0 0.0
      %2742 = vmatpush1.msra.mxu0 0.0
      %2743 = vmatprep.subr.mxu0 0.0
      %2744 = vmatpush1.msra.mxu0 0.0
      %2745 = vmatprep.subr.mxu0 0.0
      %2746 = vmatpush1.msra.mxu0 %v2725
      %2747 = vmatprep.subr.mxu0 0.0
      %2748 = vmatpush1.msra.mxu0 %v2724
      %2749 = vmatprep.subr.mxu0 0.0
      %2750 = vmatpush1.msra.mxu0 %v2723
      %2751 = vmatprep.subr.mxu0 0.0
      %2752 = vmatpush1.msra.mxu0 %v2722
      %2753 = vmatprep.subr.mxu0 0.0
      %2754 = vmatpush1.msra.mxu0 %v2721
      %2755 = vmatprep.subr.mxu0 0.0
      %2756 = vmatpush1.msra.mxu0 %v2720
      %2757 = vmatprep.subr.mxu0 0.0
      %2758 = vmatpush1.msra.mxu0 %v2719
      %2759 = vmatprep.subr.mxu0 0.0
      %2760 = vmatpush1.msra.mxu0 %v2718
      %2761 = vmatprep.subr.mxu0 0.0
      %2762 = vmatpush2.msra.mxu0 0.0
      %2763 = vmatprep.subr.mxu0 0.0
      %2764 = vmatpush2.msra.mxu0 0.0
      %2765 = vmatprep.subr.mxu0 0.0
      %2766 = vmatpush2.msra.mxu0 0.0
      %2767 = vmatprep.subr.mxu0 0.0
      %2768 = vmatpush2.msra.mxu0 0.0
      %2769 = vmatprep.subr.mxu0 0.0
      %2770 = vmatpush2.msra.mxu0 0.0
      %2771 = vmatprep.subr.mxu0 0.0
      %2772 = vmatpush2.msra.mxu0 0.0
      %2773 = vmatprep.subr.mxu0 0.0
      %2774 = vmatpush2.msra.mxu0 0.0
      %2775 = vmatprep.subr.mxu0 0.0
      %2776 = vmatpush2.msra.mxu0 0.0
      %2777 = vmatprep.subr.mxu0 0.0
      %2778 = vmatpush2.msra.mxu0 0.0
      %2779 = vmatprep.subr.mxu0 0.0
      %2780 = vmatpush2.msra.mxu0 0.0
      %2781 = vmatprep.subr.mxu0 0.0
      %2782 = vmatpush2.msra.mxu0 0.0
      %2783 = vmatprep.subr.mxu0 0.0
      %2784 = vmatpush2.msra.mxu0 0.0
      %2785 = vmatprep.subr.mxu0 0.0
      %2786 = vmatpush2.msra.mxu0 0.0
      %2787 = vmatprep.subr.mxu0 0.0
      %2788 = vmatpush2.msra.mxu0 0.0
      %2789 = vmatprep.subr.mxu0 0.0
      %2790 = vmatpush2.msra.mxu0 0.0
      %2791 = vmatprep.subr.mxu0 0.0
      %2792 = vmatpush2.msra.mxu0 0.0
      %2793 = vmatprep.mubr.f32.mxu0 0.0
      %2794 = vmatmul.mubr.f32.gmra.mxu0 %v2727
      %v2795 = vpop.f32.mrf.mxu0
      %v2796 = vadd.f32 0.0, %v2795
      %v2797 = vpop.f32.mrf.mxu0
      %2798 = vdwg.mxu0
      %v2799 = vadd.f32 %v2620, %v2796
      %v2800 = vld [vmem:[%s8] sm:$0x1]
      %v2801 = vmul.f32 %v2799, %v2799
      %v2802 = vsel %vm338, %v2801, 0.0
      %2803 = vadd.xlane.f32.xlu0 %v2802
      %v2804 = vpop.xlane.xlu0 %2803
      %v2805 = vmul.f32 %v2804, %v342
      %v2806 = vadd.f32 %v2805, 1e-06
      %v2807 = vrsqrt.pop %v2806
      %v2808 = vmul.f32 %v2799, %v2807
      %v2810 = vlaneseq
      %v2811 = vshrl.u32 %v2810, 7
      %v2812 = vsub.s32 0, %v2811
      %v2813 = vrot.slane %v2800, %v2812
      %v2815 = vmul.f32 %v2808, %v2813
      %2816 = vst.msk [vmem:[%s327] sm:$0xff] %vm338, %v2815
      %p2817 = scmp.lt.s32.totalorder %s20, 1
      %s2818 = scalar_select %p2817, %s20, 1
      %s2819 = smul.addr %s2818, 8
      %s2820 = scalar_lea.vmem %s9, %s2819
      // Predicated region
      $region57: #{clip_dsi_decoder_forward.2} parent=55 // pred_check
        %p2821 = pneg %p232
      $region58: #{clip_dsi_decoder_forward.2} parent=55 // pred_check_branch
        %2823 = sbr.rel (%p2821) target = $region60
      $region59: #{clip_dsi_decoder_forward.2} parent=55 // pred_region
        _
      $region60: #{clip_dsi_decoder_forward.2} parent=55 // pred_fallthru
        _
    $region56: #{clip_dsi_decoder_forward.2} parent=5 // pred_fallthru
      _
    %p2824 = scmp.le.s32.totalorder 2, %s15
    // Predicated region
    $region61: #{clip_dsi_decoder_forward.2} parent=5 // pred_check
      %p2825 = pneg %p2824
    $region62: #{clip_dsi_decoder_forward.2} parent=5 // pred_check_branch
      %2827 = sbr.rel (%p2825) target = $region64
    $region63: #{clip_dsi_decoder_forward.2} parent=5 // pred_region
      %s2828 = ssub.s32 %s15, 2
      // Predicated region
      $region65: #{clip_dsi_decoder_forward.2} parent=63 // pred_check
        %p2829 = pneg %p238
      $region66: #{clip_dsi_decoder_forward.2} parent=63 // pred_check_branch
        %2831 = sbr.rel (%p2829) target = $region68
      $region67: #{clip_dsi_decoder_forward.2} parent=63 // pred_region
        %p2832 = scmp.lt.s32.totalorder %s21, 1
        %s2833 = scalar_select %p2832, %s21, 1
        %s2834 = smul.addr %s2833, 8
        %s2835 = scalar_lea.vmem %s9, %s2834
      $region68: #{clip_dsi_decoder_forward.2} parent=63 // pred_fallthru
        _
    $region64: #{clip_dsi_decoder_forward.2} parent=5 // pred_fallthru
      _
  $region6: #{clip_dsi_decoder_forward.2} parent=0 // loop_footer
    %s19 = sadd.s32 1, %s15
  $region7: #{clip_dsi_decoder_forward.2} parent=0 // loop_footer_branch
    %14 = sbr.rel target = $region3
  $region8: #{clip_dsi_decoder_forward.2} parent=0 // loop_exit
    _

// kernel: clip_dsi_decoder_forward.3
$region0: #{clip_dsi_decoder_forward.3}
  #allocation0 [shape = 'u32[]', space=smem, size = 0x4, offset = 0x4, fixed_abs, tag = 'smem constant byte address 0x4 - core index']
  #allocation1 [shape = 'u32[144,128]{1,0:T(1,128)}', space=vmem, size = 0x12000, scoped, tag = 'internal scratch']
  %s0 = inlined_call_operand.vmem [shape: f32[2,8,32], index: 0, kind: input, shape index: {}]
  %s1 = inlined_call_operand.vmem [shape: f32[2,8,32], index: 1, kind: input, shape index: {}]
  %s2 = inlined_call_operand.vmem [shape: f32[4,8,8], index: 2, kind: input, shape index: {}]
  %s3 = inlined_call_operand.vmem [shape: s32[2,8,1], index: 3, kind: input, shape index: {}]
  %s4 = inlined_call_operand.vmem [shape: f32[2,1,32], index: 4, kind: input, shape index: {}]
  %s5 = inlined_call_operand.vmem [shape: f32[2,32,96], index: 5, kind: input, shape index: {}]
  %s6 = inlined_call_operand.vmem [shape: f32[2,32,32], index: 6, kind: input, shape index: {}]
  %s7 = inlined_call_operand.vmem [shape: f32[2,1,32], index: 7, kind: input, shape index: {}]
  %s8 = inlined_call_operand.vmem [shape: f32[2,32,32], index: 8, kind: input, shape index: {}]
  %s9 = inlined_call_operand.vmem [shape: f32[2,32,64], index: 9, kind: input, shape index: {}]
  %s10 = inlined_call_operand.vmem [shape: f32[2,32,32], index: 10, kind: input, shape index: {}]
  %s11 = inlined_call_operand.vmem [shape: f32[2,1,32], index: 11, kind: input, shape index: {}]
  %s12 = inlined_call_operand.vmem [shape: f32[2,32,64], index: 12, kind: input, shape index: {}]
  %s13 = inlined_call_operand.vmem [shape: f32[2,64,32], index: 13, kind: input, shape index: {}]
  %s14 = inlined_call_operand.vmem [shape: f32[1,32], index: 14, kind: input, shape index: {}]
  %s15 = inlined_call_operand.vmem [shape: f32[32,128], index: 15, kind: input, shape index: {}]
  %s16 = inlined_call_operand.hbm [shape: f32[2,8,128], index: 16, kind: output, shape index: {0}]
  %s17 = inlined_call_operand.vmem [shape: f32[2,8,1], index: 17, kind: output, shape index: {1}]
  %18 = xla_tuple %s16, %s17
  %s19 = sld [smem:[#allocation0]]
  $region105: #{clip_dsi_decoder_forward.3} parent=0
    _
  %s21 = ssub.s32 1, %s19
  %s22 = scalar_select 0, %s21, %s19
  $region1: #{clip_dsi_decoder_forward.3} parent=0
    #allocation2 [shape = 'u8[8192]{0}', space=vmem, size = 0x2000, scoped, tag = 'output window, operand 0']
    #allocation3 [shape = 's32[2]{0}', space=sflag, size = 0x8, scoped, tag = 'scoped memory for clip_dsi_decoder_forward.3']
    %23 = vsyncpa [#allocation3], 0
    %s24 = scalar_lea.sflag [#allocation3], 1
    %25 = vsyncpa %s24, 0
    loop: start=0, step=1, limit=4
    $region2: #{clip_dsi_decoder_forward.3} parent=1 // loop_pre_header
      _
    $region3: #{clip_dsi_decoder_forward.3} parent=1 // loop_header
      %s27 = sphi 0, %s31
      %p28 = scmp.ge.s32.totalorder %s27, 4
      %s37 = sphi 0, %s39
      %s40 = sphi 0, %s37
      %s41 = sphi 0, %s40
      %s57 = sphi 0, %s41
      %s63 = sphi 0, %s65
      %s66 = sphi 0, %s63
      %s67 = sphi 0, %s66
      %s83 = sphi 0, %s67
      %s87 = sphi 0, %s87
      %s89 = sphi 0, %s87
      %s90 = sphi 0, %s89
      %s104 = sphi 0, %s90
      %s110 = sphi 0, %s112
      %s113 = sphi 0, %s110
      %s114 = sphi 0, %s113
      %s130 = sphi 0, %s114
      %s134 = sphi 0, %s134
      %s136 = sphi 0, %s134
      %s137 = sphi 0, %s136
      %s151 = sphi 0, %s137
      %s155 = sphi 0, %s155
      %s157 = sphi 0, %s155
      %s158 = sphi 0, %s157
      %s172 = sphi 0, %s158
      %s176 = sphi 0, %s176
      %s178 = sphi 0, %s176
      %s179 = sphi 0, %s178
      %s193 = sphi 0, %s179
      %s197 = sphi 0, %s197
      %s199 = sphi 0, %s197
      %s200 = sphi 0, %s199
      %s214 = sphi 0, %s200
      %s218 = sphi 0, %s218
      %s220 = sphi 0, %s218
      %s221 = sphi 0, %s220
      %s235 = sphi 0, %s221
      %s239 = sphi 0, %s239
      %s241 = sphi 0, %s239
      %s242 = sphi 0, %s241
      %s256 = sphi 0, %s242
      %s260 = sphi 0, %s260
      %s262 = sphi 0, %s260
      %s263 = sphi 0, %s262
      %s277 = sphi 0, %s263
      %s281 = sphi 0, %s281
      %s283 = sphi 0, %s281
      %s284 = sphi 0, %s283
      %s298 = sphi 0, %s284
      %s302 = sphi 0, %s302
      %s304 = sphi 0, %s302
      %s305 = sphi 0, %s304
      %s319 = sphi 0, %s305
      %s323 = sphi 0, %s323
      %s325 = sphi 0, %s323
      %s326 = sphi 0, %s325
      %s340 = sphi 0, %s326
      %s344 = sphi 0, %s344
      %s346 = sphi 0, %s344
      %s347 = sphi 0, %s346
      %s361 = sphi 0, %s347
      %s365 = sphi 0, %s365
      %s367 = sphi 0, %s365
      %s368 = sphi 0, %s367
      %s382 = sphi 0, %s368
      %s388 = sphi 0, %s390
      %s391 = sphi 0, %s388
      %s392 = sphi 0, %s391
      %s408 = sphi 0, %s392
      %s414 = sphi 0, %s416
      %s417 = sphi 0, %s414
      %s418 = sphi 0, %s417
      %s434 = sphi 0, %s418
    $region4: #{clip_dsi_decoder_forward.3} parent=1 // loop_header_branch
      %30 = sbr.rel (%p28) target = $region8
    $region5: #{clip_dsi_decoder_forward.3} parent=1 // loop_body
      %s32 = ssub.s32 %s27, 1
      %s33 = ssub.s32 %s27, 2
      %s34 = sadd.s32 %s27, 1
      %s35 = ssub.s32 %s27, %s34
      %p36 = scmp.eq.s32.totalorder %s35, 0
      %s38 = sadd.s32 %s37, 1
      %s39 = scalar_select %p36, %s37, %s38
      %p42 = pneg %p36
      %p43 = scmp.eq.s32.totalorder %s27, 1
      %p44 = por %p42, %p43
      %p45 = scmp.ne.s32.totalorder %s37, %s40
      %p46 = scmp.eq.s32.totalorder %s27, 0
      %p47 = por %p45, %p46
      %p48 = scmp.ne.s32.totalorder %s37, %s40
      %p49 = scmp.eq.s32.totalorder %s32, 1
      %p50 = por %p48, %p49
      %p51 = scmp.ne.s32.totalorder %s40, %s41
      %p52 = scmp.eq.s32.totalorder %s32, 0
      %p53 = por %p51, %p52
      %p54 = scmp.ne.s32.totalorder %s40, %s41
      %p55 = scmp.eq.s32.totalorder %s33, 1
      %p56 = por %p54, %p55
      %p58 = scmp.ne.s32.totalorder %s41, %s57
      %p59 = scmp.eq.s32.totalorder %s33, 0
      %p60 = por %p58, %p59
      %s61 = ssub.s32 %s27, %s34
      %p62 = scmp.eq.s32.totalorder %s61, 0
      %s64 = sadd.s32 %s63, 1
      %s65 = scalar_select %p62, %s63, %s64
      %p68 = pneg %p62
      %p69 = scmp.eq.s32.totalorder %s27, 1
      %p70 = por %p68, %p69
      %p71 = scmp.ne.s32.totalorder %s63, %s66
      %p72 = scmp.eq.s32.totalorder %s27, 0
      %p73 = por %p71, %p72
      %p74 = scmp.ne.s32.totalorder %s63, %s66
      %p75 = scmp.eq.s32.totalorder %s32, 1
      %p76 = por %p74, %p75
      %p77 = scmp.ne.s32.totalorder %s66, %s67
      %p78 = scmp.eq.s32.totalorder %s32, 0
      %p79 = por %p77, %p78
      %p80 = scmp.ne.s32.totalorder %s66, %s67
      %p81 = scmp.eq.s32.totalorder %s33, 1
      %p82 = por %p80, %p81
      %p84 = scmp.ne.s32.totalorder %s67, %s83
      %p85 = scmp.eq.s32.totalorder %s33, 0
      %p86 = por %p84, %p85
      %s88 = sadd.s32 %s87, 1
      %p91 = scmp.eq.s32.totalorder %s27, 1
      %p92 = scmp.ne.s32.totalorder %s87, %s89
      %p93 = scmp.eq.s32.totalorder %s27, 0
      %p94 = por %p92, %p93
      %p95 = scmp.ne.s32.totalorder %s87, %s89
      %p96 = scmp.eq.s32.totalorder %s32, 1
      %p97 = por %p95, %p96
      %p98 = scmp.ne.s32.totalorder %s89, %s90
      %p99 = scmp.eq.s32.totalorder %s32, 0
      %p100 = por %p98, %p99
      %p101 = scmp.ne.s32.totalorder %s89, %s90
      %p102 = scmp.eq.s32.totalorder %s33, 1
      %p103 = por %p101, %p102
      %p105 = scmp.ne.s32.totalorder %s90, %s104
      %p106 = scmp.eq.s32.totalorder %s33, 0
      %p107 = por %p105, %p106
      %s108 = ssub.s32 %s27, %s34
      %p109 = scmp.eq.s32.totalorder %s108, 0
      %s111 = sadd.s32 %s110, 1
      %s112 = scalar_select %p109, %s110, %s111
      %p115 = pneg %p109
      %p116 = scmp.eq.s32.totalorder %s27, 1
      %p117 = por %p115, %p116
      %p118 = scmp.ne.s32.totalorder %s110, %s113
      %p119 = scmp.eq.s32.totalorder %s27, 0
      %p120 = por %p118, %p119
      %p121 = scmp.ne.s32.totalorder %s110, %s113
      %p122 = scmp.eq.s32.totalorder %s32, 1
      %p123 = por %p121, %p122
      %p124 = scmp.ne.s32.totalorder %s113, %s114
      %p125 = scmp.eq.s32.totalorder %s32, 0
      %p126 = por %p124, %p125
      %p127 = scmp.ne.s32.totalorder %s113, %s114
      %p128 = scmp.eq.s32.totalorder %s33, 1
      %p129 = por %p127, %p128
      %p131 = scmp.ne.s32.totalorder %s114, %s130
      %p132 = scmp.eq.s32.totalorder %s33, 0
      %p133 = por %p131, %p132
      %s135 = sadd.s32 %s134, 1
      %p138 = scmp.eq.s32.totalorder %s27, 1
      %p139 = scmp.ne.s32.totalorder %s134, %s136
      %p140 = scmp.eq.s32.totalorder %s27, 0
      %p141 = por %p139, %p140
      %p142 = scmp.ne.s32.totalorder %s134, %s136
      %p143 = scmp.eq.s32.totalorder %s32, 1
      %p144 = por %p142, %p143
      %p145 = scmp.ne.s32.totalorder %s136, %s137
      %p146 = scmp.eq.s32.totalorder %s32, 0
      %p147 = por %p145, %p146
      %p148 = scmp.ne.s32.totalorder %s136, %s137
      %p149 = scmp.eq.s32.totalorder %s33, 1
      %p150 = por %p148, %p149
      %p152 = scmp.ne.s32.totalorder %s137, %s151
      %p153 = scmp.eq.s32.totalorder %s33, 0
      %p154 = por %p152, %p153
      %s156 = sadd.s32 %s155, 1
      %p159 = scmp.eq.s32.totalorder %s27, 1
      %p160 = scmp.ne.s32.totalorder %s155, %s157
      %p161 = scmp.eq.s32.totalorder %s27, 0
      %p162 = por %p160, %p161
      %p163 = scmp.ne.s32.totalorder %s155, %s157
      %p164 = scmp.eq.s32.totalorder %s32, 1
      %p165 = por %p163, %p164
      %p166 = scmp.ne.s32.totalorder %s157, %s158
      %p167 = scmp.eq.s32.totalorder %s32, 0
      %p168 = por %p166, %p167
      %p169 = scmp.ne.s32.totalorder %s157, %s158
      %p170 = scmp.eq.s32.totalorder %s33, 1
      %p171 = por %p169, %p170
      %p173 = scmp.ne.s32.totalorder %s158, %s172
      %p174 = scmp.eq.s32.totalorder %s33, 0
      %p175 = por %p173, %p174
      %s177 = sadd.s32 %s176, 1
      %p180 = scmp.eq.s32.totalorder %s27, 1
      %p181 = scmp.ne.s32.totalorder %s176, %s178
      %p182 = scmp.eq.s32.totalorder %s27, 0
      %p183 = por %p181, %p182
      %p184 = scmp.ne.s32.totalorder %s176, %s178
      %p185 = scmp.eq.s32.totalorder %s32, 1
      %p186 = por %p184, %p185
      %p187 = scmp.ne.s32.totalorder %s178, %s179
      %p188 = scmp.eq.s32.totalorder %s32, 0
      %p189 = por %p187, %p188
      %p190 = scmp.ne.s32.totalorder %s178, %s179
      %p191 = scmp.eq.s32.totalorder %s33, 1
      %p192 = por %p190, %p191
      %p194 = scmp.ne.s32.totalorder %s179, %s193
      %p195 = scmp.eq.s32.totalorder %s33, 0
      %p196 = por %p194, %p195
      %s198 = sadd.s32 %s197, 1
      %p201 = scmp.eq.s32.totalorder %s27, 1
      %p202 = scmp.ne.s32.totalorder %s197, %s199
      %p203 = scmp.eq.s32.totalorder %s27, 0
      %p204 = por %p202, %p203
      %p205 = scmp.ne.s32.totalorder %s197, %s199
      %p206 = scmp.eq.s32.totalorder %s32, 1
      %p207 = por %p205, %p206
      %p208 = scmp.ne.s32.totalorder %s199, %s200
      %p209 = scmp.eq.s32.totalorder %s32, 0
      %p210 = por %p208, %p209
      %p211 = scmp.ne.s32.totalorder %s199, %s200
      %p212 = scmp.eq.s32.totalorder %s33, 1
      %p213 = por %p211, %p212
      %p215 = scmp.ne.s32.totalorder %s200, %s214
      %p216 = scmp.eq.s32.totalorder %s33, 0
      %p217 = por %p215, %p216
      %s219 = sadd.s32 %s218, 1
      %p222 = scmp.eq.s32.totalorder %s27, 1
      %p223 = scmp.ne.s32.totalorder %s218, %s220
      %p224 = scmp.eq.s32.totalorder %s27, 0
      %p225 = por %p223, %p224
      %p226 = scmp.ne.s32.totalorder %s218, %s220
      %p227 = scmp.eq.s32.totalorder %s32, 1
      %p228 = por %p226, %p227
      %p229 = scmp.ne.s32.totalorder %s220, %s221
      %p230 = scmp.eq.s32.totalorder %s32, 0
      %p231 = por %p229, %p230
      %p232 = scmp.ne.s32.totalorder %s220, %s221
      %p233 = scmp.eq.s32.totalorder %s33, 1
      %p234 = por %p232, %p233
      %p236 = scmp.ne.s32.totalorder %s221, %s235
      %p237 = scmp.eq.s32.totalorder %s33, 0
      %p238 = por %p236, %p237
      %s240 = sadd.s32 %s239, 1
      %p243 = scmp.eq.s32.totalorder %s27, 1
      %p244 = scmp.ne.s32.totalorder %s239, %s241
      %p245 = scmp.eq.s32.totalorder %s27, 0
      %p246 = por %p244, %p245
      %p247 = scmp.ne.s32.totalorder %s239, %s241
      %p248 = scmp.eq.s32.totalorder %s32, 1
      %p249 = por %p247, %p248
      %p250 = scmp.ne.s32.totalorder %s241, %s242
      %p251 = scmp.eq.s32.totalorder %s32, 0
      %p252 = por %p250, %p251
      %p253 = scmp.ne.s32.totalorder %s241, %s242
      %p254 = scmp.eq.s32.totalorder %s33, 1
      %p255 = por %p253, %p254
      %p257 = scmp.ne.s32.totalorder %s242, %s256
      %p258 = scmp.eq.s32.totalorder %s33, 0
      %p259 = por %p257, %p258
      %s261 = sadd.s32 %s260, 1
      %p264 = scmp.eq.s32.totalorder %s27, 1
      %p265 = scmp.ne.s32.totalorder %s260, %s262
      %p266 = scmp.eq.s32.totalorder %s27, 0
      %p267 = por %p265, %p266
      %p268 = scmp.ne.s32.totalorder %s260, %s262
      %p269 = scmp.eq.s32.totalorder %s32, 1
      %p270 = por %p268, %p269
      %p271 = scmp.ne.s32.totalorder %s262, %s263
      %p272 = scmp.eq.s32.totalorder %s32, 0
      %p273 = por %p271, %p272
      %p274 = scmp.ne.s32.totalorder %s262, %s263
      %p275 = scmp.eq.s32.totalorder %s33, 1
      %p276 = por %p274, %p275
      %p278 = scmp.ne.s32.totalorder %s263, %s277
      %p279 = scmp.eq.s32.totalorder %s33, 0
      %p280 = por %p278, %p279
      %s282 = sadd.s32 %s281, 1
      %p285 = scmp.eq.s32.totalorder %s27, 1
      %p286 = scmp.ne.s32.totalorder %s281, %s283
      %p287 = scmp.eq.s32.totalorder %s27, 0
      %p288 = por %p286, %p287
      %p289 = scmp.ne.s32.totalorder %s281, %s283
      %p290 = scmp.eq.s32.totalorder %s32, 1
      %p291 = por %p289, %p290
      %p292 = scmp.ne.s32.totalorder %s283, %s284
      %p293 = scmp.eq.s32.totalorder %s32, 0
      %p294 = por %p292, %p293
      %p295 = scmp.ne.s32.totalorder %s283, %s284
      %p296 = scmp.eq.s32.totalorder %s33, 1
      %p297 = por %p295, %p296
      %p299 = scmp.ne.s32.totalorder %s284, %s298
      %p300 = scmp.eq.s32.totalorder %s33, 0
      %p301 = por %p299, %p300
      %s303 = sadd.s32 %s302, 1
      %p306 = scmp.eq.s32.totalorder %s27, 1
      %p307 = scmp.ne.s32.totalorder %s302, %s304
      %p308 = scmp.eq.s32.totalorder %s27, 0
      %p309 = por %p307, %p308
      %p310 = scmp.ne.s32.totalorder %s302, %s304
      %p311 = scmp.eq.s32.totalorder %s32, 1
      %p312 = por %p310, %p311
      %p313 = scmp.ne.s32.totalorder %s304, %s305
      %p314 = scmp.eq.s32.totalorder %s32, 0
      %p315 = por %p313, %p314
      %p316 = scmp.ne.s32.totalorder %s304, %s305
      %p317 = scmp.eq.s32.totalorder %s33, 1
      %p318 = por %p316, %p317
      %p320 = scmp.ne.s32.totalorder %s305, %s319
      %p321 = scmp.eq.s32.totalorder %s33, 0
      %p322 = por %p320, %p321
      %s324 = sadd.s32 %s323, 1
      %p327 = scmp.eq.s32.totalorder %s27, 1
      %p328 = scmp.ne.s32.totalorder %s323, %s325
      %p329 = scmp.eq.s32.totalorder %s27, 0
      %p330 = por %p328, %p329
      %p331 = scmp.ne.s32.totalorder %s323, %s325
      %p332 = scmp.eq.s32.totalorder %s32, 1
      %p333 = por %p331, %p332
      %p334 = scmp.ne.s32.totalorder %s325, %s326
      %p335 = scmp.eq.s32.totalorder %s32, 0
      %p336 = por %p334, %p335
      %p337 = scmp.ne.s32.totalorder %s325, %s326
      %p338 = scmp.eq.s32.totalorder %s33, 1
      %p339 = por %p337, %p338
      %p341 = scmp.ne.s32.totalorder %s326, %s340
      %p342 = scmp.eq.s32.totalorder %s33, 0
      %p343 = por %p341, %p342
      %s345 = sadd.s32 %s344, 1
      %p348 = scmp.eq.s32.totalorder %s27, 1
      %p349 = scmp.ne.s32.totalorder %s344, %s346
      %p350 = scmp.eq.s32.totalorder %s27, 0
      %p351 = por %p349, %p350
      %p352 = scmp.ne.s32.totalorder %s344, %s346
      %p353 = scmp.eq.s32.totalorder %s32, 1
      %p354 = por %p352, %p353
      %p355 = scmp.ne.s32.totalorder %s346, %s347
      %p356 = scmp.eq.s32.totalorder %s32, 0
      %p357 = por %p355, %p356
      %p358 = scmp.ne.s32.totalorder %s346, %s347
      %p359 = scmp.eq.s32.totalorder %s33, 1
      %p360 = por %p358, %p359
      %p362 = scmp.ne.s32.totalorder %s347, %s361
      %p363 = scmp.eq.s32.totalorder %s33, 0
      %p364 = por %p362, %p363
      %s366 = sadd.s32 %s365, 1
      %p369 = scmp.eq.s32.totalorder %s27, 1
      %p370 = scmp.ne.s32.totalorder %s365, %s367
      %p371 = scmp.eq.s32.totalorder %s27, 0
      %p372 = por %p370, %p371
      %p373 = scmp.ne.s32.totalorder %s365, %s367
      %p374 = scmp.eq.s32.totalorder %s32, 1
      %p375 = por %p373, %p374
      %p376 = scmp.ne.s32.totalorder %s367, %s368
      %p377 = scmp.eq.s32.totalorder %s32, 0
      %p378 = por %p376, %p377
      %p379 = scmp.ne.s32.totalorder %s367, %s368
      %p380 = scmp.eq.s32.totalorder %s33, 1
      %p381 = por %p379, %p380
      %p383 = scmp.ne.s32.totalorder %s368, %s382
      %p384 = scmp.eq.s32.totalorder %s33, 0
      %p385 = por %p383, %p384
      %s386 = ssub.s32 %s27, %s34
      %p387 = scmp.eq.s32.totalorder %s386, 0
      %s389 = sadd.s32 %s388, 1
      %s390 = scalar_select %p387, %s388, %s389
      %p393 = pneg %p387
      %p394 = scmp.eq.s32.totalorder %s27, 1
      %p395 = por %p393, %p394
      %p396 = scmp.ne.s32.totalorder %s388, %s391
      %p397 = scmp.eq.s32.totalorder %s27, 0
      %p398 = por %p396, %p397
      %p399 = scmp.ne.s32.totalorder %s388, %s391
      %p400 = scmp.eq.s32.totalorder %s32, 1
      %p401 = por %p399, %p400
      %p402 = scmp.ne.s32.totalorder %s391, %s392
      %p403 = scmp.eq.s32.totalorder %s32, 0
      %p404 = por %p402, %p403
      %p405 = scmp.ne.s32.totalorder %s391, %s392
      %p406 = scmp.eq.s32.totalorder %s33, 1
      %p407 = por %p405, %p406
      %p409 = scmp.ne.s32.totalorder %s392, %s408
      %p410 = scmp.eq.s32.totalorder %s33, 0
      %p411 = por %p409, %p410
      %s412 = ssub.s32 %s27, %s34
      %p413 = scmp.eq.s32.totalorder %s412, 0
      %s415 = sadd.s32 %s414, 1
      %s416 = scalar_select %p413, %s414, %s415
      %p419 = pneg %p413
      %p420 = scmp.eq.s32.totalorder %s27, 1
      %p421 = por %p419, %p420
      %p422 = scmp.ne.s32.totalorder %s414, %s417
      %p423 = scmp.eq.s32.totalorder %s27, 0
      %p424 = por %p422, %p423
      %p425 = scmp.ne.s32.totalorder %s414, %s417
      %p426 = scmp.eq.s32.totalorder %s32, 1
      %p427 = por %p425, %p426
      %p428 = scmp.ne.s32.totalorder %s417, %s418
      %p429 = scmp.eq.s32.totalorder %s32, 0
      %p430 = por %p428, %p429
      %p431 = scmp.ne.s32.totalorder %s417, %s418
      %p432 = scmp.eq.s32.totalorder %s33, 1
      %p433 = por %p431, %p432
      %p435 = scmp.ne.s32.totalorder %s418, %s434
      %p436 = scmp.eq.s32.totalorder %s33, 0
      %p437 = por %p435, %p436
      %p438 = scmp.le.s32.totalorder 1, %s27
      %p439 = scmp.lt.s32.totalorder %s27, 3
      %p440 = pnand %p438, %p439
      %p441 = pneg %p440
      // Predicated region
      $region9: #{clip_dsi_decoder_forward.3} parent=5 // pred_check
        _
      $region10: #{clip_dsi_decoder_forward.3} parent=5 // pred_check_branch
        %443 = sbr.rel (%p440) target = $region12
      $region11: #{clip_dsi_decoder_forward.3} parent=5 // pred_region
        %s444 = ssub.s32 %s27, 1
        // Predicated region
        $region13: #{clip_dsi_decoder_forward.3} parent=11 // pred_check
          %p445 = pneg %p100
        $region14: #{clip_dsi_decoder_forward.3} parent=11 // pred_check_branch
          %447 = sbr.rel (%p445) target = $region16
        $region15: #{clip_dsi_decoder_forward.3} parent=11 // pred_region
          _
        $region16: #{clip_dsi_decoder_forward.3} parent=11 // pred_fallthru
          _
        // Predicated region
        $region17: #{clip_dsi_decoder_forward.3} parent=11 // pred_check
          %p448 = pneg %p147
        $region18: #{clip_dsi_decoder_forward.3} parent=11 // pred_check_branch
          %450 = sbr.rel (%p448) target = $region20
        $region19: #{clip_dsi_decoder_forward.3} parent=11 // pred_region
          _
        $region20: #{clip_dsi_decoder_forward.3} parent=11 // pred_fallthru
          _
        // Predicated region
        $region21: #{clip_dsi_decoder_forward.3} parent=11 // pred_check
          %p451 = pneg %p168
        $region22: #{clip_dsi_decoder_forward.3} parent=11 // pred_check_branch
          %453 = sbr.rel (%p451) target = $region24
        $region23: #{clip_dsi_decoder_forward.3} parent=11 // pred_region
          _
        $region24: #{clip_dsi_decoder_forward.3} parent=11 // pred_fallthru
          _
        // Predicated region
        $region25: #{clip_dsi_decoder_forward.3} parent=11 // pred_check
          %p454 = pneg %p189
        $region26: #{clip_dsi_decoder_forward.3} parent=11 // pred_check_branch
          %456 = sbr.rel (%p454) target = $region28
        $region27: #{clip_dsi_decoder_forward.3} parent=11 // pred_region
          _
        $region28: #{clip_dsi_decoder_forward.3} parent=11 // pred_fallthru
          _
        // Predicated region
        $region29: #{clip_dsi_decoder_forward.3} parent=11 // pred_check
          %p457 = pneg %p210
        $region30: #{clip_dsi_decoder_forward.3} parent=11 // pred_check_branch
          %459 = sbr.rel (%p457) target = $region32
        $region31: #{clip_dsi_decoder_forward.3} parent=11 // pred_region
          _
        $region32: #{clip_dsi_decoder_forward.3} parent=11 // pred_fallthru
          _
        // Predicated region
        $region33: #{clip_dsi_decoder_forward.3} parent=11 // pred_check
          %p460 = pneg %p231
        $region34: #{clip_dsi_decoder_forward.3} parent=11 // pred_check_branch
          %462 = sbr.rel (%p460) target = $region36
        $region35: #{clip_dsi_decoder_forward.3} parent=11 // pred_region
          _
        $region36: #{clip_dsi_decoder_forward.3} parent=11 // pred_fallthru
          _
        // Predicated region
        $region37: #{clip_dsi_decoder_forward.3} parent=11 // pred_check
          %p463 = pneg %p252
        $region38: #{clip_dsi_decoder_forward.3} parent=11 // pred_check_branch
          %465 = sbr.rel (%p463) target = $region40
        $region39: #{clip_dsi_decoder_forward.3} parent=11 // pred_region
          _
        $region40: #{clip_dsi_decoder_forward.3} parent=11 // pred_fallthru
          _
        // Predicated region
        $region41: #{clip_dsi_decoder_forward.3} parent=11 // pred_check
          %p466 = pneg %p273
        $region42: #{clip_dsi_decoder_forward.3} parent=11 // pred_check_branch
          %468 = sbr.rel (%p466) target = $region44
        $region43: #{clip_dsi_decoder_forward.3} parent=11 // pred_region
          _
        $region44: #{clip_dsi_decoder_forward.3} parent=11 // pred_fallthru
          _
        // Predicated region
        $region45: #{clip_dsi_decoder_forward.3} parent=11 // pred_check
          %p469 = pneg %p294
        $region46: #{clip_dsi_decoder_forward.3} parent=11 // pred_check_branch
          %471 = sbr.rel (%p469) target = $region48
        $region47: #{clip_dsi_decoder_forward.3} parent=11 // pred_region
          _
        $region48: #{clip_dsi_decoder_forward.3} parent=11 // pred_fallthru
          _
        // Predicated region
        $region49: #{clip_dsi_decoder_forward.3} parent=11 // pred_check
          %p472 = pneg %p315
        $region50: #{clip_dsi_decoder_forward.3} parent=11 // pred_check_branch
          %474 = sbr.rel (%p472) target = $region52
        $region51: #{clip_dsi_decoder_forward.3} parent=11 // pred_region
          _
        $region52: #{clip_dsi_decoder_forward.3} parent=11 // pred_fallthru
          _
        // Predicated region
        $region53: #{clip_dsi_decoder_forward.3} parent=11 // pred_check
          %p475 = pneg %p336
        $region54: #{clip_dsi_decoder_forward.3} parent=11 // pred_check_branch
          %477 = sbr.rel (%p475) target = $region56
        $region55: #{clip_dsi_decoder_forward.3} parent=11 // pred_region
          _
        $region56: #{clip_dsi_decoder_forward.3} parent=11 // pred_fallthru
          _
        // Predicated region
        $region57: #{clip_dsi_decoder_forward.3} parent=11 // pred_check
          %p478 = pneg %p357
        $region58: #{clip_dsi_decoder_forward.3} parent=11 // pred_check_branch
          %480 = sbr.rel (%p478) target = $region60
        $region59: #{clip_dsi_decoder_forward.3} parent=11 // pred_region
          _
        $region60: #{clip_dsi_decoder_forward.3} parent=11 // pred_fallthru
          _
        // Predicated region
        $region61: #{clip_dsi_decoder_forward.3} parent=11 // pred_check
          %p481 = pneg %p378
        $region62: #{clip_dsi_decoder_forward.3} parent=11 // pred_check_branch
          %483 = sbr.rel (%p481) target = $region64
        $region63: #{clip_dsi_decoder_forward.3} parent=11 // pred_region
          _
        $region64: #{clip_dsi_decoder_forward.3} parent=11 // pred_fallthru
          _
      $region12: #{clip_dsi_decoder_forward.3} parent=5 // pred_fallthru
        _
      %p484 = scmp.lt.s32.totalorder %s27, 2
      // Predicated region
      $region65: #{clip_dsi_decoder_forward.3} parent=5 // pred_check
        %p485 = pneg %p484
      $region66: #{clip_dsi_decoder_forward.3} parent=5 // pred_check_branch
        %487 = sbr.rel (%p485) target = $region68
      $region67: #{clip_dsi_decoder_forward.3} parent=5 // pred_region
        // Predicated region
        $region69: #{clip_dsi_decoder_forward.3} parent=67 // pred_check
          %p488 = pneg %p47
        $region70: #{clip_dsi_decoder_forward.3} parent=67 // pred_check_branch
          %490 = sbr.rel (%p488) target = $region72
        $region71: #{clip_dsi_decoder_forward.3} parent=67 // pred_region
          %p491 = scmp.lt.s32.totalorder %s27, 1
          %s492 = scalar_select %p491, %s27, 1
          %s493 = smul.addr %s492, 8
          %s494 = scalar_lea.vmem %s0, %s493
        $region72: #{clip_dsi_decoder_forward.3} parent=67 // pred_fallthru
          _
        // Predicated region
        $region73: #{clip_dsi_decoder_forward.3} parent=67 // pred_check
          %p495 = pneg %p73
        $region74: #{clip_dsi_decoder_forward.3} parent=67 // pred_check_branch
          %497 = sbr.rel (%p495) target = $region76
        $region75: #{clip_dsi_decoder_forward.3} parent=67 // pred_region
          %p498 = scmp.lt.s32.totalorder %s27, 1
          %s499 = scalar_select %p498, %s27, 1
          %s500 = smul.addr %s499, 8
          %s501 = scalar_lea.vmem %s1, %s500
        $region76: #{clip_dsi_decoder_forward.3} parent=67 // pred_fallthru
          _
        // Predicated region
        $region77: #{clip_dsi_decoder_forward.3} parent=67 // pred_check
          %p502 = pneg %p120
        $region78: #{clip_dsi_decoder_forward.3} parent=67 // pred_check_branch
          %504 = sbr.rel (%p502) target = $region80
        $region79: #{clip_dsi_decoder_forward.3} parent=67 // pred_region
          %p505 = scmp.lt.s32.totalorder %s27, 1
          %s506 = scalar_select %p505, %s27, 1
          %s507 = smul.addr %s506, 8
          %s508 = scalar_lea.vmem %s3, %s507
        $region80: #{clip_dsi_decoder_forward.3} parent=67 // pred_fallthru
          _
      $region68: #{clip_dsi_decoder_forward.3} parent=5 // pred_fallthru
        _
      %p509 = scmp.le.s32.totalorder 1, %s27
      %p510 = scmp.lt.s32.totalorder %s27, 3
      %p511 = pnand %p509, %p510
      %p512 = pneg %p511
      // Predicated region
      $region81: #{clip_dsi_decoder_forward.3} parent=5 // pred_check
        _
      $region82: #{clip_dsi_decoder_forward.3} parent=5 // pred_check_branch
        %514 = sbr.rel (%p511) target = $region84
      $region83: #{clip_dsi_decoder_forward.3} parent=5 // pred_region
        %s515 = ssub.s32 %s27, 1
        %p516 = scmp.lt.s32.totalorder %s32, 1
        %s517 = scalar_select %p516, %s32, 1
        %s518 = smul.addr %s517, 8
        %s519 = scalar_lea.vmem %s0, %s518
        %p520 = pneg %p53
        %p521 = pneg %p50
        %p522 = scmp.lt.s32.totalorder %s32, 1
        %s523 = scalar_select %p522, %s32, 1
        %s524 = smul.addr %s523, 8
        %s525 = scalar_lea.vmem %s1, %s524
        %p526 = pneg %p79
        %p527 = pneg %p76
        %p528 = pneg %p100
        %p529 = pneg %p97
        %p530 = scmp.lt.s32.totalorder %s32, 1
        %s531 = scalar_select %p530, %s32, 1
        %s532 = smul.addr %s531, 8
        %s533 = scalar_lea.vmem %s3, %s532
        %p534 = pneg %p126
        %p535 = pneg %p123
        %p536 = pneg %p147
        %p537 = pneg %p144
        %p538 = pneg %p168
        %p539 = pneg %p165
        %p540 = pneg %p189
        %p541 = pneg %p186
        %p542 = pneg %p210
        %p543 = pneg %p207
        %p544 = pneg %p231
        %p545 = pneg %p228
        %p546 = pneg %p252
        %p547 = pneg %p249
        %p548 = pneg %p273
        %p549 = pneg %p270
        %p550 = pneg %p294
        %p551 = pneg %p291
        %p552 = pneg %p315
        %p553 = pneg %p312
        %p554 = pneg %p336
        %p555 = pneg %p333
        %p556 = pneg %p357
        %p557 = pneg %p354
        %p558 = pneg %p378
        %p559 = pneg %p375
        %p560 = pneg %p404
        %p561 = pneg %p401
        %s562 = sand.u32 %s391, 1
        %s563 = scalar_lea.sflag [#allocation3], %s562
        %s564 = sand.u32 %s391, 1
        %s565 = smul.addr %s564, 8
        %s566 = scalar_lea.vmem [#allocation2], %s565
        %p567 = pneg %p430
        %p568 = pneg %p427
        %p569 = scmp.lt.s32.totalorder %s32, 1
        %s570 = scalar_select %p569, %s32, 1
        %s571 = smul.addr %s570, 8
        %s572 = scalar_lea.vmem %s17, %s571
        %p573 = scmp.lt.s32.totalorder %s32, 1
        %s574 = scalar_select %p573, %s32, 1
        %s575 = smul.addr %s574, 8
        %s576 = scalar_lea.vmem %s0, %s575
        %p577 = scmp.lt.s32.totalorder %s32, 1
        %s578 = scalar_select %p577, %s32, 1
        %s579 = smul.addr %s578, 8
        %s580 = scalar_lea.vmem %s1, %s579
        %p581 = scmp.lt.s32.totalorder %s32, 1
        %s582 = scalar_select %p581, %s32, 1
        %s583 = smul.addr %s582, 8
        %s584 = scalar_lea.vmem %s3, %s583
        %p585 = scmp.lt.s32.totalorder %s32, 1
        %s586 = scalar_select %p585, %s32, 1
        %s587 = smul.addr %s586, 8
        %s588 = scalar_lea.vmem %s17, %s587
        %v589 = vld [vmem:[%s576] sm:$0xff]
        %v590 = vld [vmem:[%s580] sm:$0xff]
        %v591 = vld [vmem:[%s2] sm:$0xff]
        %s592 = scalar_lea.vmem %s2, 8
        %v593 = vld [vmem:[%s592] sm:$0xff]
        %s594 = scalar_lea.vmem %s2, 16
        %v595 = vld [vmem:[%s594] sm:$0xff]
        %s596 = scalar_lea.vmem %s2, 24
        %v597 = vld [vmem:[%s596] sm:$0xff]
        %v598 = vld [vmem:[%s4] sm:$0x1]
        %v599 = vmul.f32 %v589, %v589
        %vm600 = vcmask 261120
        %v601 = vsel %vm600, %v599, 0.0
        %602 = vadd.xlane.f32.xlu0 %v601
        %v603 = vpop.xlane.xlu0 %602
        %v604 = vrcp.pop 32.0
        %v605 = vmul.f32 %v603, %v604
        %v606 = vadd.f32 %v605, 1e-06
        %v607 = vrsqrt.pop %v606
        %v608 = vmul.f32 %v589, %v607
        %v610 = vlaneseq
        %v611 = vshrl.u32 %v610, 7
        %v612 = vsub.s32 0, %v611
        %v613 = vrot.slane %v598, %v612
        %v615 = vmul.f32 %v608, %v613
        %v616 = vld [vmem:[%s5] sm:$0xff]
        %v617 = vld [vmem:[%s5 + $0x8] sm:$0xff]
        %v618 = vld [vmem:[%s5 + $0x10] sm:$0xff]
        %v619 = vld [vmem:[%s5 + $0x18] sm:$0xff]
        %v621 = vsel %vm600, %v615, 0
        %623 = vmatprep.subr.mxu0 0.0
        %624 = vmatpush1.msra.mxu0 0.0
        %625 = vmatprep.subr.mxu0 0.0
        %626 = vmatpush1.msra.mxu0 0.0
        %627 = vmatprep.subr.mxu0 0.0
        %628 = vmatpush1.msra.mxu0 0.0
        %629 = vmatprep.subr.mxu0 0.0
        %630 = vmatpush1.msra.mxu0 0.0
        %631 = vmatprep.subr.mxu0 0.0
        %632 = vmatpush1.msra.mxu0 0.0
        %633 = vmatprep.subr.mxu0 0.0
        %634 = vmatpush1.msra.mxu0 0.0
        %635 = vmatprep.subr.mxu0 0.0
        %636 = vmatpush1.msra.mxu0 0.0
        %637 = vmatprep.subr.mxu0 0.0
        %638 = vmatpush1.msra.mxu0 0.0
        %639 = vmatprep.subr.mxu0 0.0
        %640 = vmatpush1.msra.mxu0 0.0
        %641 = vmatprep.subr.mxu0 0.0
        %642 = vmatpush1.msra.mxu0 0.0
        %643 = vmatprep.subr.mxu0 0.0
        %644 = vmatpush1.msra.mxu0 0.0
        %645 = vmatprep.subr.mxu0 0.0
        %646 = vmatpush1.msra.mxu0 0.0
        %647 = vmatprep.subr.mxu0 0.0
        %648 = vmatpush1.msra.mxu0 %v619
        %649 = vmatprep.subr.mxu0 0.0
        %650 = vmatpush1.msra.mxu0 %v618
        %651 = vmatprep.subr.mxu0 0.0
        %652 = vmatpush1.msra.mxu0 %v617
        %653 = vmatprep.subr.mxu0 0.0
        %654 = vmatpush1.msra.mxu0 %v616
        %655 = vmatprep.subr.mxu0 0.0
        %656 = vmatpush2.msra.mxu0 0.0
        %657 = vmatprep.subr.mxu0 0.0
        %658 = vmatpush2.msra.mxu0 0.0
        %659 = vmatprep.subr.mxu0 0.0
        %660 = vmatpush2.msra.mxu0 0.0
        %661 = vmatprep.subr.mxu0 0.0
        %662 = vmatpush2.msra.mxu0 0.0
        %663 = vmatprep.subr.mxu0 0.0
        %664 = vmatpush2.msra.mxu0 0.0
        %665 = vmatprep.subr.mxu0 0.0
        %666 = vmatpush2.msra.mxu0 0.0
        %667 = vmatprep.subr.mxu0 0.0
        %668 = vmatpush2.msra.mxu0 0.0
        %669 = vmatprep.subr.mxu0 0.0
        %670 = vmatpush2.msra.mxu0 0.0
        %671 = vmatprep.subr.mxu0 0.0
        %672 = vmatpush2.msra.mxu0 0.0
        %673 = vmatprep.subr.mxu0 0.0
        %674 = vmatpush2.msra.mxu0 0.0
        %675 = vmatprep.subr.mxu0 0.0
        %676 = vmatpush2.msra.mxu0 0.0
        %677 = vmatprep.subr.mxu0 0.0
        %678 = vmatpush2.msra.mxu0 0.0
        %679 = vmatprep.subr.mxu0 0.0
        %680 = vmatpush2.msra.mxu0 0.0
        %681 = vmatprep.subr.mxu0 0.0
        %682 = vmatpush2.msra.mxu0 0.0
        %683 = vmatprep.subr.mxu0 0.0
        %684 = vmatpush2.msra.mxu0 0.0
        %685 = vmatprep.subr.mxu0 0.0
        %686 = vmatpush2.msra.mxu0 0.0
        %687 = vmatprep.mubr.f32.mxu0 0.0
        %688 = vmatmul.mubr.f32.gmra.mxu0 %v621
        %v689 = vpop.f32.mrf.mxu0
        %v690 = vadd.f32 0.0, %v689
        %v691 = vpop.f32.mrf.mxu0
        %692 = vdwg.mxu0
        %v693 = vld [vmem:[%s6] sm:$0xff]
        %v694 = vld [vmem:[%s6 + $0x8] sm:$0xff]
        %v695 = vld [vmem:[%s6 + $0x10] sm:$0xff]
        %v696 = vld [vmem:[%s6 + $0x18] sm:$0xff]
        %698 = vrot.lane.b32.xlu0 %v690, 96
        %v699 = vpop.permute.xlu0 %698
        %vm700 = vcmask 64512
        %v701 = vsel %vm700, %v690, 0
        %v703 = vsel %vm700, %v699, 0
        %705 = vmatprep.subr.mxu0 0.0
        %706 = vmatpush1.xpose.msra.mxu0 0.0
        %707 = vmatprep.subr.mxu0 0.0
        %708 = vmatpush1.xpose.msra.mxu0 0.0
        %709 = vmatprep.subr.mxu0 0.0
        %710 = vmatpush1.xpose.msra.mxu0 0.0
        %711 = vmatprep.subr.mxu0 0.0
        %712 = vmatpush1.xpose.msra.mxu0 0.0
        %713 = vmatprep.subr.mxu0 0.0
        %714 = vmatpush1.xpose.msra.mxu0 0.0
        %715 = vmatprep.subr.mxu0 0.0
        %716 = vmatpush1.xpose.msra.mxu0 0.0
        %717 = vmatprep.subr.mxu0 0.0
        %718 = vmatpush1.xpose.msra.mxu0 0.0
        %719 = vmatprep.subr.mxu0 0.0
        %720 = vmatpush1.xpose.msra.mxu0 0.0
        %721 = vmatprep.subr.mxu0 0.0
        %722 = vmatpush1.xpose.msra.mxu0 0.0
        %723 = vmatprep.subr.mxu0 0.0
        %724 = vmatpush1.xpose.msra.mxu0 0.0
        %725 = vmatprep.subr.mxu0 0.0
        %726 = vmatpush1.xpose.msra.mxu0 0.0
        %727 = vmatprep.subr.mxu0 0.0
        %728 = vmatpush1.xpose.msra.mxu0 0.0
        %729 = vmatprep.subr.mxu0 0.0
        %730 = vmatpush1.xpose.msra.mxu0 0.0
        %731 = vmatprep.subr.mxu0 0.0
        %732 = vmatpush1.xpose.msra.mxu0 0.0
        %733 = vmatprep.subr.mxu0 0.0
        %734 = vmatpush1.xpose.msra.mxu0 0.0
        %735 = vmatprep.subr.mxu0 0.0
        %736 = vmatpush1.xpose.msra.mxu0 %v703
        %737 = vmatprep.subr.mxu0 0.0
        %738 = vmatpush2.xpose.msra.mxu0 0.0
        %739 = vmatprep.subr.mxu0 0.0
        %740 = vmatpush2.xpose.msra.mxu0 0.0
        %741 = vmatprep.subr.mxu0 0.0
        %742 = vmatpush2.xpose.msra.mxu0 0.0
        %743 = vmatprep.subr.mxu0 0.0
        %744 = vmatpush2.xpose.msra.mxu0 0.0
        %745 = vmatprep.subr.mxu0 0.0
        %746 = vmatpush2.xpose.msra.mxu0 0.0
        %747 = vmatprep.subr.mxu0 0.0
        %748 = vmatpush2.xpose.msra.mxu0 0.0
        %749 = vmatprep.subr.mxu0 0.0
        %750 = vmatpush2.xpose.msra.mxu0 0.0
        %751 = vmatprep.subr.mxu0 0.0
        %752 = vmatpush2.xpose.msra.mxu0 0.0
        %753 = vmatprep.subr.mxu0 0.0
        %754 = vmatpush2.xpose.msra.mxu0 0.0
        %755 = vmatprep.subr.mxu0 0.0
        %756 = vmatpush2.xpose.msra.mxu0 0.0
        %757 = vmatprep.subr.mxu0 0.0
        %758 = vmatpush2.xpose.msra.mxu0 0.0
        %759 = vmatprep.subr.mxu0 0.0
        %760 = vmatpush2.xpose.msra.mxu0 0.0
        %761 = vmatprep.subr.mxu0 0.0
        %762 = vmatpush2.xpose.msra.mxu0 0.0
        %763 = vmatprep.subr.mxu0 0.0
        %764 = vmatpush2.xpose.msra.mxu0 0.0
        %765 = vmatprep.subr.mxu0 0.0
        %766 = vmatpush2.xpose.msra.mxu0 0.0
        %767 = vmatprep.subr.mxu0 0.0
        %768 = vmatpush2.xpose.msra.mxu0 0.0
        %769 = vmatprep.mubr.f32.mxu0 0.0
        %770 = vmatmul.mubr.f32.gmra.mxu0 %v701
        %v771 = vpop.f32.mrf.mxu0
        %v772 = vadd.f32 %v591, %v771
        %v773 = vpop.f32.mrf.mxu0
        %774 = vdwg.mxu0
        %v775 = vsel %vm700, %v772, -inf
        %776 = vmax.xlane.f32.xlu0 %v775
        %v777 = vpop.xlane.xlu0 %776
        %v778 = vsub.f32 %v772, %v777
        %v779 = vmul.f32 %v778, 1.442695
        %v780 = vpow.pop %v779
        %v781 = vsel %vm700, %v780, 0.0
        %782 = vadd.xlane.f32.xlu0 %v781
        %v783 = vpop.xlane.xlu0 %782
        %v784 = vrcp.pop %v783
        %v785 = vmul.f32 %v780, %v784
        %786 = vrot.lane.b32.xlu0 %v690, 64
        %v787 = vpop.permute.xlu0 %786
        %v790 = vsel %vm700, %v785, 0
        %792 = vmatprep.subr.mxu0 0.0
        %793 = vmatpush1.msra.mxu0 0.0
        %794 = vmatprep.subr.mxu0 0.0
        %795 = vmatpush1.msra.mxu0 0.0
        %796 = vmatprep.subr.mxu0 0.0
        %797 = vmatpush1.msra.mxu0 0.0
        %798 = vmatprep.subr.mxu0 0.0
        %799 = vmatpush1.msra.mxu0 0.0
        %800 = vmatprep.subr.mxu0 0.0
        %801 = vmatpush1.msra.mxu0 0.0
        %802 = vmatprep.subr.mxu0 0.0
        %803 = vmatpush1.msra.mxu0 0.0
        %804 = vmatprep.subr.mxu0 0.0
        %805 = vmatpush1.msra.mxu0 0.0
        %806 = vmatprep.subr.mxu0 0.0
        %807 = vmatpush1.msra.mxu0 0.0
        %808 = vmatprep.subr.mxu0 0.0
        %809 = vmatpush1.msra.mxu0 0.0
        %810 = vmatprep.subr.mxu0 0.0
        %811 = vmatpush1.msra.mxu0 0.0
        %812 = vmatprep.subr.mxu0 0.0
        %813 = vmatpush1.msra.mxu0 0.0
        %814 = vmatprep.subr.mxu0 0.0
        %815 = vmatpush1.msra.mxu0 0.0
        %816 = vmatprep.subr.mxu0 0.0
        %817 = vmatpush1.msra.mxu0 0.0
        %818 = vmatprep.subr.mxu0 0.0
        %819 = vmatpush1.msra.mxu0 0.0
        %820 = vmatprep.subr.mxu0 0.0
        %821 = vmatpush1.msra.mxu0 0.0
        %822 = vmatprep.subr.mxu0 0.0
        %823 = vmatpush1.msra.mxu0 %v787
        %824 = vmatprep.subr.mxu0 0.0
        %825 = vmatpush2.msra.mxu0 0.0
        %826 = vmatprep.subr.mxu0 0.0
        %827 = vmatpush2.msra.mxu0 0.0
        %828 = vmatprep.subr.mxu0 0.0
        %829 = vmatpush2.msra.mxu0 0.0
        %830 = vmatprep.subr.mxu0 0.0
        %831 = vmatpush2.msra.mxu0 0.0
        %832 = vmatprep.subr.mxu0 0.0
        %833 = vmatpush2.msra.mxu0 0.0
        %834 = vmatprep.subr.mxu0 0.0
        %835 = vmatpush2.msra.mxu0 0.0
        %836 = vmatprep.subr.mxu0 0.0
        %837 = vmatpush2.msra.mxu0 0.0
        %838 = vmatprep.subr.mxu0 0.0
        %839 = vmatpush2.msra.mxu0 0.0
        %840 = vmatprep.subr.mxu0 0.0
        %841 = vmatpush2.msra.mxu0 0.0
        %842 = vmatprep.subr.mxu0 0.0
        %843 = vmatpush2.msra.mxu0 0.0
        %844 = vmatprep.subr.mxu0 0.0
        %845 = vmatpush2.msra.mxu0 0.0
        %846 = vmatprep.subr.mxu0 0.0
        %847 = vmatpush2.msra.mxu0 0.0
        %848 = vmatprep.subr.mxu0 0.0
        %849 = vmatpush2.msra.mxu0 0.0
        %850 = vmatprep.subr.mxu0 0.0
        %851 = vmatpush2.msra.mxu0 0.0
        %852 = vmatprep.subr.mxu0 0.0
        %853 = vmatpush2.msra.mxu0 0.0
        %854 = vmatprep.subr.mxu0 0.0
        %855 = vmatpush2.msra.mxu0 0.0
        %856 = vmatprep.mubr.f32.mxu0 0.0
        %857 = vmatmul.mubr.f32.gmra.mxu0 %v790
        %v858 = vpop.f32.mrf.mxu0
        %v859 = vadd.f32 0.0, %v858
        %v860 = vpop.f32.mrf.mxu0
        %861 = vdwg.mxu0
        %862 = vrot.lane.b32.xlu0 %v690, 120
        %v863 = vpop.permute.xlu0 %862
        %864 = vrot.lane.b32.xlu0 %v690, 88
        %v865 = vpop.permute.xlu0 %864
        %v866 = vsel %vm700, %v863, 0
        %v868 = vsel %vm700, %v865, 0
        %870 = vmatprep.subr.mxu0 0.0
        %871 = vmatpush1.xpose.msra.mxu0 0.0
        %872 = vmatprep.subr.mxu0 0.0
        %873 = vmatpush1.xpose.msra.mxu0 0.0
        %874 = vmatprep.subr.mxu0 0.0
        %875 = vmatpush1.xpose.msra.mxu0 0.0
        %876 = vmatprep.subr.mxu0 0.0
        %877 = vmatpush1.xpose.msra.mxu0 0.0
        %878 = vmatprep.subr.mxu0 0.0
        %879 = vmatpush1.xpose.msra.mxu0 0.0
        %880 = vmatprep.subr.mxu0 0.0
        %881 = vmatpush1.xpose.msra.mxu0 0.0
        %882 = vmatprep.subr.mxu0 0.0
        %883 = vmatpush1.xpose.msra.mxu0 0.0
        %884 = vmatprep.subr.mxu0 0.0
        %885 = vmatpush1.xpose.msra.mxu0 0.0
        %886 = vmatprep.subr.mxu0 0.0
        %887 = vmatpush1.xpose.msra.mxu0 0.0
        %888 = vmatprep.subr.mxu0 0.0
        %889 = vmatpush1.xpose.msra.mxu0 0.0
        %890 = vmatprep.subr.mxu0 0.0
        %891 = vmatpush1.xpose.msra.mxu0 0.0
        %892 = vmatprep.subr.mxu0 0.0
        %893 = vmatpush1.xpose.msra.mxu0 0.0
        %894 = vmatprep.subr.mxu0 0.0
        %895 = vmatpush1.xpose.msra.mxu0 0.0
        %896 = vmatprep.subr.mxu0 0.0
        %897 = vmatpush1.xpose.msra.mxu0 0.0
        %898 = vmatprep.subr.mxu0 0.0
        %899 = vmatpush1.xpose.msra.mxu0 0.0
        %900 = vmatprep.subr.mxu0 0.0
        %901 = vmatpush1.xpose.msra.mxu0 %v868
        %902 = vmatprep.subr.mxu0 0.0
        %903 = vmatpush2.xpose.msra.mxu0 0.0
        %904 = vmatprep.subr.mxu0 0.0
        %905 = vmatpush2.xpose.msra.mxu0 0.0
        %906 = vmatprep.subr.mxu0 0.0
        %907 = vmatpush2.xpose.msra.mxu0 0.0
        %908 = vmatprep.subr.mxu0 0.0
        %909 = vmatpush2.xpose.msra.mxu0 0.0
        %910 = vmatprep.subr.mxu0 0.0
        %911 = vmatpush2.xpose.msra.mxu0 0.0
        %912 = vmatprep.subr.mxu0 0.0
        %913 = vmatpush2.xpose.msra.mxu0 0.0
        %914 = vmatprep.subr.mxu0 0.0
        %915 = vmatpush2.xpose.msra.mxu0 0.0
        %916 = vmatprep.subr.mxu0 0.0
        %917 = vmatpush2.xpose.msra.mxu0 0.0
        %918 = vmatprep.subr.mxu0 0.0
        %919 = vmatpush2.xpose.msra.mxu0 0.0
        %920 = vmatprep.subr.mxu0 0.0
        %921 = vmatpush2.xpose.msra.mxu0 0.0
        %922 = vmatprep.subr.mxu0 0.0
        %923 = vmatpush2.xpose.msra.mxu0 0.0
        %924 = vmatprep.subr.mxu0 0.0
        %925 = vmatpush2.xpose.msra.mxu0 0.0
        %926 = vmatprep.subr.mxu0 0.0
        %927 = vmatpush2.xpose.msra.mxu0 0.0
        %928 = vmatprep.subr.mxu0 0.0
        %929 = vmatpush2.xpose.msra.mxu0 0.0
        %930 = vmatprep.subr.mxu0 0.0
        %931 = vmatpush2.xpose.msra.mxu0 0.0
        %932 = vmatprep.subr.mxu0 0.0
        %933 = vmatpush2.xpose.msra.mxu0 0.0
        %934 = vmatprep.mubr.f32.mxu0 0.0
        %935 = vmatmul.mubr.f32.gmra.mxu0 %v866
        %v936 = vpop.f32.mrf.mxu0
        %v937 = vadd.f32 %v593, %v936
        %v938 = vpop.f32.mrf.mxu0
        %939 = vdwg.mxu0
        %v940 = vsel %vm700, %v937, -inf
        %941 = vmax.xlane.f32.xlu0 %v940
        %v942 = vpop.xlane.xlu0 %941
        %v943 = vsub.f32 %v937, %v942
        %v944 = vmul.f32 %v943, 1.442695
        %v945 = vpow.pop %v944
        %v946 = vsel %vm700, %v945, 0.0
        %947 = vadd.xlane.f32.xlu0 %v946
        %v948 = vpop.xlane.xlu0 %947
        %v949 = vrcp.pop %v948
        %v950 = vmul.f32 %v945, %v949
        %951 = vrot.lane.b32.xlu0 %v690, 56
        %v952 = vpop.permute.xlu0 %951
        %v955 = vsel %vm700, %v950, 0
        %957 = vmatprep.subr.mxu0 0.0
        %958 = vmatpush1.msra.mxu0 0.0
        %959 = vmatprep.subr.mxu0 0.0
        %960 = vmatpush1.msra.mxu0 0.0
        %961 = vmatprep.subr.mxu0 0.0
        %962 = vmatpush1.msra.mxu0 0.0
        %963 = vmatprep.subr.mxu0 0.0
        %964 = vmatpush1.msra.mxu0 0.0
        %965 = vmatprep.subr.mxu0 0.0
        %966 = vmatpush1.msra.mxu0 0.0
        %967 = vmatprep.subr.mxu0 0.0
        %968 = vmatpush1.msra.mxu0 0.0
        %969 = vmatprep.subr.mxu0 0.0
        %970 = vmatpush1.msra.mxu0 0.0
        %971 = vmatprep.subr.mxu0 0.0
        %972 = vmatpush1.msra.mxu0 0.0
        %973 = vmatprep.subr.mxu0 0.0
        %974 = vmatpush1.msra.mxu0 0.0
        %975 = vmatprep.subr.mxu0 0.0
        %976 = vmatpush1.msra.mxu0 0.0
        %977 = vmatprep.subr.mxu0 0.0
        %978 = vmatpush1.msra.mxu0 0.0
        %979 = vmatprep.subr.mxu0 0.0
        %980 = vmatpush1.msra.mxu0 0.0
        %981 = vmatprep.subr.mxu0 0.0
        %982 = vmatpush1.msra.mxu0 0.0
        %983 = vmatprep.subr.mxu0 0.0
        %984 = vmatpush1.msra.mxu0 0.0
        %985 = vmatprep.subr.mxu0 0.0
        %986 = vmatpush1.msra.mxu0 0.0
        %987 = vmatprep.subr.mxu0 0.0
        %988 = vmatpush1.msra.mxu0 %v952
        %989 = vmatprep.subr.mxu0 0.0
        %990 = vmatpush2.msra.mxu0 0.0
        %991 = vmatprep.subr.mxu0 0.0
        %992 = vmatpush2.msra.mxu0 0.0
        %993 = vmatprep.subr.mxu0 0.0
        %994 = vmatpush2.msra.mxu0 0.0
        %995 = vmatprep.subr.mxu0 0.0
        %996 = vmatpush2.msra.mxu0 0.0
        %997 = vmatprep.subr.mxu0 0.0
        %998 = vmatpush2.msra.mxu0 0.0
        %999 = vmatprep.subr.mxu0 0.0
        %1000 = vmatpush2.msra.mxu0 0.0
        %1001 = vmatprep.subr.mxu0 0.0
        %1002 = vmatpush2.msra.mxu0 0.0
        %1003 = vmatprep.subr.mxu0 0.0
        %1004 = vmatpush2.msra.mxu0 0.0
        %1005 = vmatprep.subr.mxu0 0.0
        %1006 = vmatpush2.msra.mxu0 0.0
        %1007 = vmatprep.subr.mxu0 0.0
        %1008 = vmatpush2.msra.mxu0 0.0
        %1009 = vmatprep.subr.mxu0 0.0
        %1010 = vmatpush2.msra.mxu0 0.0
        %1011 = vmatprep.subr.mxu0 0.0
        %1012 = vmatpush2.msra.mxu0 0.0
        %1013 = vmatprep.subr.mxu0 0.0
        %1014 = vmatpush2.msra.mxu0 0.0
        %1015 = vmatprep.subr.mxu0 0.0
        %1016 = vmatpush2.msra.mxu0 0.0
        %1017 = vmatprep.subr.mxu0 0.0
        %1018 = vmatpush2.msra.mxu0 0.0
        %1019 = vmatprep.subr.mxu0 0.0
        %1020 = vmatpush2.msra.mxu0 0.0
        %1021 = vmatprep.mubr.f32.mxu0 0.0
        %1022 = vmatmul.mubr.f32.gmra.mxu0 %v955
        %v1023 = vpop.f32.mrf.mxu0
        %v1024 = vadd.f32 0.0, %v1023
        %v1025 = vpop.f32.mrf.mxu0
        %1026 = vdwg.mxu0
        %v1028 = vsel %vm700, %v1024, 0
        %1030 = vmatprep.subr.mxu0 0.0
        %1031 = vmatpush1.msra.mxu0 0.0
        %1032 = vmatprep.subr.mxu0 0.0
        %1033 = vmatpush1.msra.mxu0 0.0
        %1034 = vmatprep.subr.mxu0 0.0
        %1035 = vmatpush1.msra.mxu0 0.0
        %1036 = vmatprep.subr.mxu0 0.0
        %1037 = vmatpush1.msra.mxu0 0.0
        %1038 = vmatprep.subr.mxu0 0.0
        %1039 = vmatpush1.msra.mxu0 0.0
        %1040 = vmatprep.subr.mxu0 0.0
        %1041 = vmatpush1.msra.mxu0 0.0
        %1042 = vmatprep.subr.mxu0 0.0
        %1043 = vmatpush1.msra.mxu0 0.0
        %1044 = vmatprep.subr.mxu0 0.0
        %1045 = vmatpush1.msra.mxu0 0.0
        %1046 = vmatprep.subr.mxu0 0.0
        %1047 = vmatpush1.msra.mxu0 0.0
        %1048 = vmatprep.subr.mxu0 0.0
        %1049 = vmatpush1.msra.mxu0 0.0
        %1050 = vmatprep.subr.mxu0 0.0
        %1051 = vmatpush1.msra.mxu0 0.0
        %1052 = vmatprep.subr.mxu0 0.0
        %1053 = vmatpush1.msra.mxu0 0.0
        %1054 = vmatprep.subr.mxu0 0.0
        %1055 = vmatpush1.msra.mxu0 0.0
        %1056 = vmatprep.subr.mxu0 0.0
        %1057 = vmatpush1.msra.mxu0 0.0
        %1058 = vmatprep.subr.mxu0 0.0
        %1059 = vmatpush1.msra.mxu0 0.0
        %1060 = vmatprep.subr.mxu0 0.0
        %1061 = vmatpush1.msra.mxu0 %v694
        %1062 = vmatprep.subr.mxu0 0.0
        %1063 = vmatpush2.msra.mxu0 0.0
        %1064 = vmatprep.subr.mxu0 0.0
        %1065 = vmatpush2.msra.mxu0 0.0
        %1066 = vmatprep.subr.mxu0 0.0
        %1067 = vmatpush2.msra.mxu0 0.0
        %1068 = vmatprep.subr.mxu0 0.0
        %1069 = vmatpush2.msra.mxu0 0.0
        %1070 = vmatprep.subr.mxu0 0.0
        %1071 = vmatpush2.msra.mxu0 0.0
        %1072 = vmatprep.subr.mxu0 0.0
        %1073 = vmatpush2.msra.mxu0 0.0
        %1074 = vmatprep.subr.mxu0 0.0
        %1075 = vmatpush2.msra.mxu0 0.0
        %1076 = vmatprep.subr.mxu0 0.0
        %1077 = vmatpush2.msra.mxu0 0.0
        %1078 = vmatprep.subr.mxu0 0.0
        %1079 = vmatpush2.msra.mxu0 0.0
        %1080 = vmatprep.subr.mxu0 0.0
        %1081 = vmatpush2.msra.mxu0 0.0
        %1082 = vmatprep.subr.mxu0 0.0
        %1083 = vmatpush2.msra.mxu0 0.0
        %1084 = vmatprep.subr.mxu0 0.0
        %1085 = vmatpush2.msra.mxu0 0.0
        %1086 = vmatprep.subr.mxu0 0.0
        %1087 = vmatpush2.msra.mxu0 0.0
        %1088 = vmatprep.subr.mxu0 0.0
        %1089 = vmatpush2.msra.mxu0 0.0
        %1090 = vmatprep.subr.mxu0 0.0
        %1091 = vmatpush2.msra.mxu0 0.0
        %1092 = vmatprep.subr.mxu0 0.0
        %1093 = vmatpush2.msra.mxu0 0.0
        %1094 = vmatprep.mubr.f32.mxu0 0.0
        %1095 = vmatmul.mubr.f32.gmra.mxu0 %v1028
        %v1096 = vpop.f32.mrf.mxu0
        %v1097 = vadd.f32 0.0, %v1096
        %v1098 = vpop.f32.mrf.mxu0
        %1099 = vdwg.mxu0
        %v1101 = vsel %vm700, %v859, 0
        %1103 = vmatprep.subr.mxu0 0.0
        %1104 = vmatpush1.msra.mxu0 0.0
        %1105 = vmatprep.subr.mxu0 0.0
        %1106 = vmatpush1.msra.mxu0 0.0
        %1107 = vmatprep.subr.mxu0 0.0
        %1108 = vmatpush1.msra.mxu0 0.0
        %1109 = vmatprep.subr.mxu0 0.0
        %1110 = vmatpush1.msra.mxu0 0.0
        %1111 = vmatprep.subr.mxu0 0.0
        %1112 = vmatpush1.msra.mxu0 0.0
        %1113 = vmatprep.subr.mxu0 0.0
        %1114 = vmatpush1.msra.mxu0 0.0
        %1115 = vmatprep.subr.mxu0 0.0
        %1116 = vmatpush1.msra.mxu0 0.0
        %1117 = vmatprep.subr.mxu0 0.0
        %1118 = vmatpush1.msra.mxu0 0.0
        %1119 = vmatprep.subr.mxu0 0.0
        %1120 = vmatpush1.msra.mxu0 0.0
        %1121 = vmatprep.subr.mxu0 0.0
        %1122 = vmatpush1.msra.mxu0 0.0
        %1123 = vmatprep.subr.mxu0 0.0
        %1124 = vmatpush1.msra.mxu0 0.0
        %1125 = vmatprep.subr.mxu0 0.0
        %1126 = vmatpush1.msra.mxu0 0.0
        %1127 = vmatprep.subr.mxu0 0.0
        %1128 = vmatpush1.msra.mxu0 0.0
        %1129 = vmatprep.subr.mxu0 0.0
        %1130 = vmatpush1.msra.mxu0 0.0
        %1131 = vmatprep.subr.mxu0 0.0
        %1132 = vmatpush1.msra.mxu0 0.0
        %1133 = vmatprep.subr.mxu0 0.0
        %1134 = vmatpush1.msra.mxu0 %v693
        %1135 = vmatprep.subr.mxu0 0.0
        %1136 = vmatpush2.msra.mxu0 0.0
        %1137 = vmatprep.subr.mxu0 0.0
        %1138 = vmatpush2.msra.mxu0 0.0
        %1139 = vmatprep.subr.mxu0 0.0
        %1140 = vmatpush2.msra.mxu0 0.0
        %1141 = vmatprep.subr.mxu0 0.0
        %1142 = vmatpush2.msra.mxu0 0.0
        %1143 = vmatprep.subr.mxu0 0.0
        %1144 = vmatpush2.msra.mxu0 0.0
        %1145 = vmatprep.subr.mxu0 0.0
        %1146 = vmatpush2.msra.mxu0 0.0
        %1147 = vmatprep.subr.mxu0 0.0
        %1148 = vmatpush2.msra.mxu0 0.0
        %1149 = vmatprep.subr.mxu0 0.0
        %1150 = vmatpush2.msra.mxu0 0.0
        %1151 = vmatprep.subr.mxu0 0.0
        %1152 = vmatpush2.msra.mxu0 0.0
        %1153 = vmatprep.subr.mxu0 0.0
        %1154 = vmatpush2.msra.mxu0 0.0
        %1155 = vmatprep.subr.mxu0 0.0
        %1156 = vmatpush2.msra.mxu0 0.0
        %1157 = vmatprep.subr.mxu0 0.0
        %1158 = vmatpush2.msra.mxu0 0.0
        %1159 = vmatprep.subr.mxu0 0.0
        %1160 = vmatpush2.msra.mxu0 0.0
        %1161 = vmatprep.subr.mxu0 0.0
        %1162 = vmatpush2.msra.mxu0 0.0
        %1163 = vmatprep.subr.mxu0 0.0
        %1164 = vmatpush2.msra.mxu0 0.0
        %1165 = vmatprep.subr.mxu0 0.0
        %1166 = vmatpush2.msra.mxu0 0.0
        %1167 = vmatprep.mubr.f32.mxu0 0.0
        %1168 = vmatmul.mubr.f32.gmra.mxu0 %v1101
        %v1169 = vpop.f32.mrf.mxu0
        %v1170 = vadd.f32 %v1097, %v1169
        %v1171 = vpop.f32.mrf.mxu0
        %1172 = vdwg.mxu0
        %1173 = vrot.lane.b32.xlu0 %v690, 112
        %v1174 = vpop.permute.xlu0 %1173
        %1175 = vrot.lane.b32.xlu0 %v690, 80
        %v1176 = vpop.permute.xlu0 %1175
        %v1177 = vsel %vm700, %v1174, 0
        %v1179 = vsel %vm700, %v1176, 0
        %1181 = vmatprep.subr.mxu0 0.0
        %1182 = vmatpush1.xpose.msra.mxu0 0.0
        %1183 = vmatprep.subr.mxu0 0.0
        %1184 = vmatpush1.xpose.msra.mxu0 0.0
        %1185 = vmatprep.subr.mxu0 0.0
        %1186 = vmatpush1.xpose.msra.mxu0 0.0
        %1187 = vmatprep.subr.mxu0 0.0
        %1188 = vmatpush1.xpose.msra.mxu0 0.0
        %1189 = vmatprep.subr.mxu0 0.0
        %1190 = vmatpush1.xpose.msra.mxu0 0.0
        %1191 = vmatprep.subr.mxu0 0.0
        %1192 = vmatpush1.xpose.msra.mxu0 0.0
        %1193 = vmatprep.subr.mxu0 0.0
        %1194 = vmatpush1.xpose.msra.mxu0 0.0
        %1195 = vmatprep.subr.mxu0 0.0
        %1196 = vmatpush1.xpose.msra.mxu0 0.0
        %1197 = vmatprep.subr.mxu0 0.0
        %1198 = vmatpush1.xpose.msra.mxu0 0.0
        %1199 = vmatprep.subr.mxu0 0.0
        %1200 = vmatpush1.xpose.msra.mxu0 0.0
        %1201 = vmatprep.subr.mxu0 0.0
        %1202 = vmatpush1.xpose.msra.mxu0 0.0
        %1203 = vmatprep.subr.mxu0 0.0
        %1204 = vmatpush1.xpose.msra.mxu0 0.0
        %1205 = vmatprep.subr.mxu0 0.0
        %1206 = vmatpush1.xpose.msra.mxu0 0.0
        %1207 = vmatprep.subr.mxu0 0.0
        %1208 = vmatpush1.xpose.msra.mxu0 0.0
        %1209 = vmatprep.subr.mxu0 0.0
        %1210 = vmatpush1.xpose.msra.mxu0 0.0
        %1211 = vmatprep.subr.mxu0 0.0
        %1212 = vmatpush1.xpose.msra.mxu0 %v1179
        %1213 = vmatprep.subr.mxu0 0.0
        %1214 = vmatpush2.xpose.msra.mxu0 0.0
        %1215 = vmatprep.subr.mxu0 0.0
        %1216 = vmatpush2.xpose.msra.mxu0 0.0
        %1217 = vmatprep.subr.mxu0 0.0
        %1218 = vmatpush2.xpose.msra.mxu0 0.0
        %1219 = vmatprep.subr.mxu0 0.0
        %1220 = vmatpush2.xpose.msra.mxu0 0.0
        %1221 = vmatprep.subr.mxu0 0.0
        %1222 = vmatpush2.xpose.msra.mxu0 0.0
        %1223 = vmatprep.subr.mxu0 0.0
        %1224 = vmatpush2.xpose.msra.mxu0 0.0
        %1225 = vmatprep.subr.mxu0 0.0
        %1226 = vmatpush2.xpose.msra.mxu0 0.0
        %1227 = vmatprep.subr.mxu0 0.0
        %1228 = vmatpush2.xpose.msra.mxu0 0.0
        %1229 = vmatprep.subr.mxu0 0.0
        %1230 = vmatpush2.xpose.msra.mxu0 0.0
        %1231 = vmatprep.subr.mxu0 0.0
        %1232 = vmatpush2.xpose.msra.mxu0 0.0
        %1233 = vmatprep.subr.mxu0 0.0
        %1234 = vmatpush2.xpose.msra.mxu0 0.0
        %1235 = vmatprep.subr.mxu0 0.0
        %1236 = vmatpush2.xpose.msra.mxu0 0.0
        %1237 = vmatprep.subr.mxu0 0.0
        %1238 = vmatpush2.xpose.msra.mxu0 0.0
        %1239 = vmatprep.subr.mxu0 0.0
        %1240 = vmatpush2.xpose.msra.mxu0 0.0
        %1241 = vmatprep.subr.mxu0 0.0
        %1242 = vmatpush2.xpose.msra.mxu0 0.0
        %1243 = vmatprep.subr.mxu0 0.0
        %1244 = vmatpush2.xpose.msra.mxu0 0.0
        %1245 = vmatprep.mubr.f32.mxu0 0.0
        %1246 = vmatmul.mubr.f32.gmra.mxu0 %v1177
        %v1247 = vpop.f32.mrf.mxu0
        %v1248 = vadd.f32 %v595, %v1247
        %v1249 = vpop.f32.mrf.mxu0
        %1250 = vdwg.mxu0
        %v1251 = vsel %vm700, %v1248, -inf
        %1252 = vmax.xlane.f32.xlu0 %v1251
        %v1253 = vpop.xlane.xlu0 %1252
        %v1254 = vsub.f32 %v1248, %v1253
        %v1255 = vmul.f32 %v1254, 1.442695
        %v1256 = vpow.pop %v1255
        %v1257 = vsel %vm700, %v1256, 0.0
        %1258 = vadd.xlane.f32.xlu0 %v1257
        %v1259 = vpop.xlane.xlu0 %1258
        %v1260 = vrcp.pop %v1259
        %v1261 = vmul.f32 %v1256, %v1260
        %1262 = vrot.lane.b32.xlu0 %v690, 48
        %v1263 = vpop.permute.xlu0 %1262
        %v1266 = vsel %vm700, %v1261, 0
        %1268 = vmatprep.subr.mxu0 0.0
        %1269 = vmatpush1.msra.mxu0 0.0
        %1270 = vmatprep.subr.mxu0 0.0
        %1271 = vmatpush1.msra.mxu0 0.0
        %1272 = vmatprep.subr.mxu0 0.0
        %1273 = vmatpush1.msra.mxu0 0.0
        %1274 = vmatprep.subr.mxu0 0.0
        %1275 = vmatpush1.msra.mxu0 0.0
        %1276 = vmatprep.subr.mxu0 0.0
        %1277 = vmatpush1.msra.mxu0 0.0
        %1278 = vmatprep.subr.mxu0 0.0
        %1279 = vmatpush1.msra.mxu0 0.0
        %1280 = vmatprep.subr.mxu0 0.0
        %1281 = vmatpush1.msra.mxu0 0.0
        %1282 = vmatprep.subr.mxu0 0.0
        %1283 = vmatpush1.msra.mxu0 0.0
        %1284 = vmatprep.subr.mxu0 0.0
        %1285 = vmatpush1.msra.mxu0 0.0
        %1286 = vmatprep.subr.mxu0 0.0
        %1287 = vmatpush1.msra.mxu0 0.0
        %1288 = vmatprep.subr.mxu0 0.0
        %1289 = vmatpush1.msra.mxu0 0.0
        %1290 = vmatprep.subr.mxu0 0.0
        %1291 = vmatpush1.msra.mxu0 0.0
        %1292 = vmatprep.subr.mxu0 0.0
        %1293 = vmatpush1.msra.mxu0 0.0
        %1294 = vmatprep.subr.mxu0 0.0
        %1295 = vmatpush1.msra.mxu0 0.0
        %1296 = vmatprep.subr.mxu0 0.0
        %1297 = vmatpush1.msra.mxu0 0.0
        %1298 = vmatprep.subr.mxu0 0.0
        %1299 = vmatpush1.msra.mxu0 %v1263
        %1300 = vmatprep.subr.mxu0 0.0
        %1301 = vmatpush2.msra.mxu0 0.0
        %1302 = vmatprep.subr.mxu0 0.0
        %1303 = vmatpush2.msra.mxu0 0.0
        %1304 = vmatprep.subr.mxu0 0.0
        %1305 = vmatpush2.msra.mxu0 0.0
        %1306 = vmatprep.subr.mxu0 0.0
        %1307 = vmatpush2.msra.mxu0 0.0
        %1308 = vmatprep.subr.mxu0 0.0
        %1309 = vmatpush2.msra.mxu0 0.0
        %1310 = vmatprep.subr.mxu0 0.0
        %1311 = vmatpush2.msra.mxu0 0.0
        %1312 = vmatprep.subr.mxu0 0.0
        %1313 = vmatpush2.msra.mxu0 0.0
        %1314 = vmatprep.subr.mxu0 0.0
        %1315 = vmatpush2.msra.mxu0 0.0
        %1316 = vmatprep.subr.mxu0 0.0
        %1317 = vmatpush2.msra.mxu0 0.0
        %1318 = vmatprep.subr.mxu0 0.0
        %1319 = vmatpush2.msra.mxu0 0.0
        %1320 = vmatprep.subr.mxu0 0.0
        %1321 = vmatpush2.msra.mxu0 0.0
        %1322 = vmatprep.subr.mxu0 0.0
        %1323 = vmatpush2.msra.mxu0 0.0
        %1324 = vmatprep.subr.mxu0 0.0
        %1325 = vmatpush2.msra.mxu0 0.0
        %1326 = vmatprep.subr.mxu0 0.0
        %1327 = vmatpush2.msra.mxu0 0.0
        %1328 = vmatprep.subr.mxu0 0.0
        %1329 = vmatpush2.msra.mxu0 0.0
        %1330 = vmatprep.subr.mxu0 0.0
        %1331 = vmatpush2.msra.mxu0 0.0
        %1332 = vmatprep.mubr.f32.mxu0 0.0
        %1333 = vmatmul.mubr.f32.gmra.mxu0 %v1266
        %v1334 = vpop.f32.mrf.mxu0
        %v1335 = vadd.f32 0.0, %v1334
        %v1336 = vpop.f32.mrf.mxu0
        %1337 = vdwg.mxu0
        %v1339 = vsel %vm700, %v1335, 0
        %1341 = vmatprep.subr.mxu0 0.0
        %1342 = vmatpush1.msra.mxu0 0.0
        %1343 = vmatprep.subr.mxu0 0.0
        %1344 = vmatpush1.msra.mxu0 0.0
        %1345 = vmatprep.subr.mxu0 0.0
        %1346 = vmatpush1.msra.mxu0 0.0
        %1347 = vmatprep.subr.mxu0 0.0
        %1348 = vmatpush1.msra.mxu0 0.0
        %1349 = vmatprep.subr.mxu0 0.0
        %1350 = vmatpush1.msra.mxu0 0.0
        %1351 = vmatprep.subr.mxu0 0.0
        %1352 = vmatpush1.msra.mxu0 0.0
        %1353 = vmatprep.subr.mxu0 0.0
        %1354 = vmatpush1.msra.mxu0 0.0
        %1355 = vmatprep.subr.mxu0 0.0
        %1356 = vmatpush1.msra.mxu0 0.0
        %1357 = vmatprep.subr.mxu0 0.0
        %1358 = vmatpush1.msra.mxu0 0.0
        %1359 = vmatprep.subr.mxu0 0.0
        %1360 = vmatpush1.msra.mxu0 0.0
        %1361 = vmatprep.subr.mxu0 0.0
        %1362 = vmatpush1.msra.mxu0 0.0
        %1363 = vmatprep.subr.mxu0 0.0
        %1364 = vmatpush1.msra.mxu0 0.0
        %1365 = vmatprep.subr.mxu0 0.0
        %1366 = vmatpush1.msra.mxu0 0.0
        %1367 = vmatprep.subr.mxu0 0.0
        %1368 = vmatpush1.msra.mxu0 0.0
        %1369 = vmatprep.subr.mxu0 0.0
        %1370 = vmatpush1.msra.mxu0 0.0
        %1371 = vmatprep.subr.mxu0 0.0
        %1372 = vmatpush1.msra.mxu0 %v695
        %1373 = vmatprep.subr.mxu0 0.0
        %1374 = vmatpush2.msra.mxu0 0.0
        %1375 = vmatprep.subr.mxu0 0.0
        %1376 = vmatpush2.msra.mxu0 0.0
        %1377 = vmatprep.subr.mxu0 0.0
        %1378 = vmatpush2.msra.mxu0 0.0
        %1379 = vmatprep.subr.mxu0 0.0
        %1380 = vmatpush2.msra.mxu0 0.0
        %1381 = vmatprep.subr.mxu0 0.0
        %1382 = vmatpush2.msra.mxu0 0.0
        %1383 = vmatprep.subr.mxu0 0.0
        %1384 = vmatpush2.msra.mxu0 0.0
        %1385 = vmatprep.subr.mxu0 0.0
        %1386 = vmatpush2.msra.mxu0 0.0
        %1387 = vmatprep.subr.mxu0 0.0
        %1388 = vmatpush2.msra.mxu0 0.0
        %1389 = vmatprep.subr.mxu0 0.0
        %1390 = vmatpush2.msra.mxu0 0.0
        %1391 = vmatprep.subr.mxu0 0.0
        %1392 = vmatpush2.msra.mxu0 0.0
        %1393 = vmatprep.subr.mxu0 0.0
        %1394 = vmatpush2.msra.mxu0 0.0
        %1395 = vmatprep.subr.mxu0 0.0
        %1396 = vmatpush2.msra.mxu0 0.0
        %1397 = vmatprep.subr.mxu0 0.0
        %1398 = vmatpush2.msra.mxu0 0.0
        %1399 = vmatprep.subr.mxu0 0.0
        %1400 = vmatpush2.msra.mxu0 0.0
        %1401 = vmatprep.subr.mxu0 0.0
        %1402 = vmatpush2.msra.mxu0 0.0
        %1403 = vmatprep.subr.mxu0 0.0
        %1404 = vmatpush2.msra.mxu0 0.0
        %1405 = vmatprep.mubr.f32.mxu0 0.0
        %1406 = vmatmul.mubr.f32.gmra.mxu0 %v1339
        %v1407 = vpop.f32.mrf.mxu0
        %v1408 = vadd.f32 0.0, %v1407
        %v1409 = vpop.f32.mrf.mxu0
        %1410 = vdwg.mxu0
        %v1411 = vadd.f32 %v1170, %v1408
        %1412 = vrot.lane.b32.xlu0 %v690, 104
        %v1413 = vpop.permute.xlu0 %1412
        %1414 = vrot.lane.b32.xlu0 %v690, 72
        %v1415 = vpop.permute.xlu0 %1414
        %v1416 = vsel %vm700, %v1413, 0
        %v1418 = vsel %vm700, %v1415, 0
        %1420 = vmatprep.subr.mxu0 0.0
        %1421 = vmatpush1.xpose.msra.mxu0 0.0
        %1422 = vmatprep.subr.mxu0 0.0
        %1423 = vmatpush1.xpose.msra.mxu0 0.0
        %1424 = vmatprep.subr.mxu0 0.0
        %1425 = vmatpush1.xpose.msra.mxu0 0.0
        %1426 = vmatprep.subr.mxu0 0.0
        %1427 = vmatpush1.xpose.msra.mxu0 0.0
        %1428 = vmatprep.subr.mxu0 0.0
        %1429 = vmatpush1.xpose.msra.mxu0 0.0
        %1430 = vmatprep.subr.mxu0 0.0
        %1431 = vmatpush1.xpose.msra.mxu0 0.0
        %1432 = vmatprep.subr.mxu0 0.0
        %1433 = vmatpush1.xpose.msra.mxu0 0.0
        %1434 = vmatprep.subr.mxu0 0.0
        %1435 = vmatpush1.xpose.msra.mxu0 0.0
        %1436 = vmatprep.subr.mxu0 0.0
        %1437 = vmatpush1.xpose.msra.mxu0 0.0
        %1438 = vmatprep.subr.mxu0 0.0
        %1439 = vmatpush1.xpose.msra.mxu0 0.0
        %1440 = vmatprep.subr.mxu0 0.0
        %1441 = vmatpush1.xpose.msra.mxu0 0.0
        %1442 = vmatprep.subr.mxu0 0.0
        %1443 = vmatpush1.xpose.msra.mxu0 0.0
        %1444 = vmatprep.subr.mxu0 0.0
        %1445 = vmatpush1.xpose.msra.mxu0 0.0
        %1446 = vmatprep.subr.mxu0 0.0
        %1447 = vmatpush1.xpose.msra.mxu0 0.0
        %1448 = vmatprep.subr.mxu0 0.0
        %1449 = vmatpush1.xpose.msra.mxu0 0.0
        %1450 = vmatprep.subr.mxu0 0.0
        %1451 = vmatpush1.xpose.msra.mxu0 %v1418
        %1452 = vmatprep.subr.mxu0 0.0
        %1453 = vmatpush2.xpose.msra.mxu0 0.0
        %1454 = vmatprep.subr.mxu0 0.0
        %1455 = vmatpush2.xpose.msra.mxu0 0.0
        %1456 = vmatprep.subr.mxu0 0.0
        %1457 = vmatpush2.xpose.msra.mxu0 0.0
        %1458 = vmatprep.subr.mxu0 0.0
        %1459 = vmatpush2.xpose.msra.mxu0 0.0
        %1460 = vmatprep.subr.mxu0 0.0
        %1461 = vmatpush2.xpose.msra.mxu0 0.0
        %1462 = vmatprep.subr.mxu0 0.0
        %1463 = vmatpush2.xpose.msra.mxu0 0.0
        %1464 = vmatprep.subr.mxu0 0.0
        %1465 = vmatpush2.xpose.msra.mxu0 0.0
        %1466 = vmatprep.subr.mxu0 0.0
        %1467 = vmatpush2.xpose.msra.mxu0 0.0
        %1468 = vmatprep.subr.mxu0 0.0
        %1469 = vmatpush2.xpose.msra.mxu0 0.0
        %1470 = vmatprep.subr.mxu0 0.0
        %1471 = vmatpush2.xpose.msra.mxu0 0.0
        %1472 = vmatprep.subr.mxu0 0.0
        %1473 = vmatpush2.xpose.msra.mxu0 0.0
        %1474 = vmatprep.subr.mxu0 0.0
        %1475 = vmatpush2.xpose.msra.mxu0 0.0
        %1476 = vmatprep.subr.mxu0 0.0
        %1477 = vmatpush2.xpose.msra.mxu0 0.0
        %1478 = vmatprep.subr.mxu0 0.0
        %1479 = vmatpush2.xpose.msra.mxu0 0.0
        %1480 = vmatprep.subr.mxu0 0.0
        %1481 = vmatpush2.xpose.msra.mxu0 0.0
        %1482 = vmatprep.subr.mxu0 0.0
        %1483 = vmatpush2.xpose.msra.mxu0 0.0
        %1484 = vmatprep.mubr.f32.mxu0 0.0
        %1485 = vmatmul.mubr.f32.gmra.mxu0 %v1416
        %v1486 = vpop.f32.mrf.mxu0
        %v1487 = vadd.f32 %v597, %v1486
        %v1488 = vpop.f32.mrf.mxu0
        %1489 = vdwg.mxu0
        %v1490 = vsel %vm700, %v1487, -inf
        %1491 = vmax.xlane.f32.xlu0 %v1490
        %v1492 = vpop.xlane.xlu0 %1491
        %v1493 = vsub.f32 %v1487, %v1492
        %v1494 = vmul.f32 %v1493, 1.442695
        %v1495 = vpow.pop %v1494
        %v1496 = vsel %vm700, %v1495, 0.0
        %1497 = vadd.xlane.f32.xlu0 %v1496
        %v1498 = vpop.xlane.xlu0 %1497
        %v1499 = vrcp.pop %v1498
        %v1500 = vmul.f32 %v1495, %v1499
        %1501 = vrot.lane.b32.xlu0 %v690, 40
        %v1502 = vpop.permute.xlu0 %1501
        %v1505 = vsel %vm700, %v1500, 0
        %1507 = vmatprep.subr.mxu0 0.0
        %1508 = vmatpush1.msra.mxu0 0.0
        %1509 = vmatprep.subr.mxu0 0.0
        %1510 = vmatpush1.msra.mxu0 0.0
        %1511 = vmatprep.subr.mxu0 0.0
        %1512 = vmatpush1.msra.mxu0 0.0
        %1513 = vmatprep.subr.mxu0 0.0
        %1514 = vmatpush1.msra.mxu0 0.0
        %1515 = vmatprep.subr.mxu0 0.0
        %1516 = vmatpush1.msra.mxu0 0.0
        %1517 = vmatprep.subr.mxu0 0.0
        %1518 = vmatpush1.msra.mxu0 0.0
        %1519 = vmatprep.subr.mxu0 0.0
        %1520 = vmatpush1.msra.mxu0 0.0
        %1521 = vmatprep.subr.mxu0 0.0
        %1522 = vmatpush1.msra.mxu0 0.0
        %1523 = vmatprep.subr.mxu0 0.0
        %1524 = vmatpush1.msra.mxu0 0.0
        %1525 = vmatprep.subr.mxu0 0.0
        %1526 = vmatpush1.msra.mxu0 0.0
        %1527 = vmatprep.subr.mxu0 0.0
        %1528 = vmatpush1.msra.mxu0 0.0
        %1529 = vmatprep.subr.mxu0 0.0
        %1530 = vmatpush1.msra.mxu0 0.0
        %1531 = vmatprep.subr.mxu0 0.0
        %1532 = vmatpush1.msra.mxu0 0.0
        %1533 = vmatprep.subr.mxu0 0.0
        %1534 = vmatpush1.msra.mxu0 0.0
        %1535 = vmatprep.subr.mxu0 0.0
        %1536 = vmatpush1.msra.mxu0 0.0
        %1537 = vmatprep.subr.mxu0 0.0
        %1538 = vmatpush1.msra.mxu0 %v1502
        %1539 = vmatprep.subr.mxu0 0.0
        %1540 = vmatpush2.msra.mxu0 0.0
        %1541 = vmatprep.subr.mxu0 0.0
        %1542 = vmatpush2.msra.mxu0 0.0
        %1543 = vmatprep.subr.mxu0 0.0
        %1544 = vmatpush2.msra.mxu0 0.0
        %1545 = vmatprep.subr.mxu0 0.0
        %1546 = vmatpush2.msra.mxu0 0.0
        %1547 = vmatprep.subr.mxu0 0.0
        %1548 = vmatpush2.msra.mxu0 0.0
        %1549 = vmatprep.subr.mxu0 0.0
        %1550 = vmatpush2.msra.mxu0 0.0
        %1551 = vmatprep.subr.mxu0 0.0
        %1552 = vmatpush2.msra.mxu0 0.0
        %1553 = vmatprep.subr.mxu0 0.0
        %1554 = vmatpush2.msra.mxu0 0.0
        %1555 = vmatprep.subr.mxu0 0.0
        %1556 = vmatpush2.msra.mxu0 0.0
        %1557 = vmatprep.subr.mxu0 0.0
        %1558 = vmatpush2.msra.mxu0 0.0
        %1559 = vmatprep.subr.mxu0 0.0
        %1560 = vmatpush2.msra.mxu0 0.0
        %1561 = vmatprep.subr.mxu0 0.0
        %1562 = vmatpush2.msra.mxu0 0.0
        %1563 = vmatprep.subr.mxu0 0.0
        %1564 = vmatpush2.msra.mxu0 0.0
        %1565 = vmatprep.subr.mxu0 0.0
        %1566 = vmatpush2.msra.mxu0 0.0
        %1567 = vmatprep.subr.mxu0 0.0
        %1568 = vmatpush2.msra.mxu0 0.0
        %1569 = vmatprep.subr.mxu0 0.0
        %1570 = vmatpush2.msra.mxu0 0.0
        %1571 = vmatprep.mubr.f32.mxu0 0.0
        %1572 = vmatmul.mubr.f32.gmra.mxu0 %v1505
        %v1573 = vpop.f32.mrf.mxu0
        %v1574 = vadd.f32 0.0, %v1573
        %v1575 = vpop.f32.mrf.mxu0
        %1576 = vdwg.mxu0
        %v1578 = vsel %vm700, %v1574, 0
        %1580 = vmatprep.subr.mxu0 0.0
        %1581 = vmatpush1.msra.mxu0 0.0
        %1582 = vmatprep.subr.mxu0 0.0
        %1583 = vmatpush1.msra.mxu0 0.0
        %1584 = vmatprep.subr.mxu0 0.0
        %1585 = vmatpush1.msra.mxu0 0.0
        %1586 = vmatprep.subr.mxu0 0.0
        %1587 = vmatpush1.msra.mxu0 0.0
        %1588 = vmatprep.subr.mxu0 0.0
        %1589 = vmatpush1.msra.mxu0 0.0
        %1590 = vmatprep.subr.mxu0 0.0
        %1591 = vmatpush1.msra.mxu0 0.0
        %1592 = vmatprep.subr.mxu0 0.0
        %1593 = vmatpush1.msra.mxu0 0.0
        %1594 = vmatprep.subr.mxu0 0.0
        %1595 = vmatpush1.msra.mxu0 0.0
        %1596 = vmatprep.subr.mxu0 0.0
        %1597 = vmatpush1.msra.mxu0 0.0
        %1598 = vmatprep.subr.mxu0 0.0
        %1599 = vmatpush1.msra.mxu0 0.0
        %1600 = vmatprep.subr.mxu0 0.0
        %1601 = vmatpush1.msra.mxu0 0.0
        %1602 = vmatprep.subr.mxu0 0.0
        %1603 = vmatpush1.msra.mxu0 0.0
        %1604 = vmatprep.subr.mxu0 0.0
        %1605 = vmatpush1.msra.mxu0 0.0
        %1606 = vmatprep.subr.mxu0 0.0
        %1607 = vmatpush1.msra.mxu0 0.0
        %1608 = vmatprep.subr.mxu0 0.0
        %1609 = vmatpush1.msra.mxu0 0.0
        %1610 = vmatprep.subr.mxu0 0.0
        %1611 = vmatpush1.msra.mxu0 %v696
        %1612 = vmatprep.subr.mxu0 0.0
        %1613 = vmatpush2.msra.mxu0 0.0
        %1614 = vmatprep.subr.mxu0 0.0
        %1615 = vmatpush2.msra.mxu0 0.0
        %1616 = vmatprep.subr.mxu0 0.0
        %1617 = vmatpush2.msra.mxu0 0.0
        %1618 = vmatprep.subr.mxu0 0.0
        %1619 = vmatpush2.msra.mxu0 0.0
        %1620 = vmatprep.subr.mxu0 0.0
        %1621 = vmatpush2.msra.mxu0 0.0
        %1622 = vmatprep.subr.mxu0 0.0
        %1623 = vmatpush2.msra.mxu0 0.0
        %1624 = vmatprep.subr.mxu0 0.0
        %1625 = vmatpush2.msra.mxu0 0.0
        %1626 = vmatprep.subr.mxu0 0.0
        %1627 = vmatpush2.msra.mxu0 0.0
        %1628 = vmatprep.subr.mxu0 0.0
        %1629 = vmatpush2.msra.mxu0 0.0
        %1630 = vmatprep.subr.mxu0 0.0
        %1631 = vmatpush2.msra.mxu0 0.0
        %1632 = vmatprep.subr.mxu0 0.0
        %1633 = vmatpush2.msra.mxu0 0.0
        %1634 = vmatprep.subr.mxu0 0.0
        %1635 = vmatpush2.msra.mxu0 0.0
        %1636 = vmatprep.subr.mxu0 0.0
        %1637 = vmatpush2.msra.mxu0 0.0
        %1638 = vmatprep.subr.mxu0 0.0
        %1639 = vmatpush2.msra.mxu0 0.0
        %1640 = vmatprep.subr.mxu0 0.0
        %1641 = vmatpush2.msra.mxu0 0.0
        %1642 = vmatprep.subr.mxu0 0.0
        %1643 = vmatpush2.msra.mxu0 0.0
        %1644 = vmatprep.mubr.f32.mxu0 0.0
        %1645 = vmatmul.mubr.f32.gmra.mxu0 %v1578
        %v1646 = vpop.f32.mrf.mxu0
        %v1647 = vadd.f32 0.0, %v1646
        %v1648 = vpop.f32.mrf.mxu0
        %1649 = vdwg.mxu0
        %v1650 = vadd.f32 %v1411, %v1647
        %v1651 = vadd.f32 %v589, %v1650
        %v1652 = vld [vmem:[%s7] sm:$0x1]
        %v1653 = vmul.f32 %v1651, %v1651
        %v1654 = vsel %vm600, %v1653, 0.0
        %1655 = vadd.xlane.f32.xlu0 %v1654
        %v1656 = vpop.xlane.xlu0 %1655
        %v1657 = vmul.f32 %v1656, %v604
        %v1658 = vadd.f32 %v1657, 1e-06
        %v1659 = vrsqrt.pop %v1658
        %v1660 = vmul.f32 %v1651, %v1659
        %v1662 = vlaneseq
        %v1663 = vshrl.u32 %v1662, 7
        %v1664 = vsub.s32 0, %v1663
        %v1665 = vrot.slane %v1652, %v1664
        %v1667 = vmul.f32 %v1660, %v1665
        %v1668 = vld [vmem:[%s8] sm:$0xff]
        %v1669 = vld [vmem:[%s8 + $0x8] sm:$0xff]
        %v1670 = vld [vmem:[%s8 + $0x10] sm:$0xff]
        %v1671 = vld [vmem:[%s8 + $0x18] sm:$0xff]
        %v1673 = vsel %vm600, %v1667, 0
        %1675 = vmatprep.subr.mxu0 0.0
        %1676 = vmatpush1.msra.mxu0 0.0
        %1677 = vmatprep.subr.mxu0 0.0
        %1678 = vmatpush1.msra.mxu0 0.0
        %1679 = vmatprep.subr.mxu0 0.0
        %1680 = vmatpush1.msra.mxu0 0.0
        %1681 = vmatprep.subr.mxu0 0.0
        %1682 = vmatpush1.msra.mxu0 0.0
        %1683 = vmatprep.subr.mxu0 0.0
        %1684 = vmatpush1.msra.mxu0 0.0
        %1685 = vmatprep.subr.mxu0 0.0
        %1686 = vmatpush1.msra.mxu0 0.0
        %1687 = vmatprep.subr.mxu0 0.0
        %1688 = vmatpush1.msra.mxu0 0.0
        %1689 = vmatprep.subr.mxu0 0.0
        %1690 = vmatpush1.msra.mxu0 0.0
        %1691 = vmatprep.subr.mxu0 0.0
        %1692 = vmatpush1.msra.mxu0 0.0
        %1693 = vmatprep.subr.mxu0 0.0
        %1694 = vmatpush1.msra.mxu0 0.0
        %1695 = vmatprep.subr.mxu0 0.0
        %1696 = vmatpush1.msra.mxu0 0.0
        %1697 = vmatprep.subr.mxu0 0.0
        %1698 = vmatpush1.msra.mxu0 0.0
        %1699 = vmatprep.subr.mxu0 0.0
        %1700 = vmatpush1.msra.mxu0 %v1671
        %1701 = vmatprep.subr.mxu0 0.0
        %1702 = vmatpush1.msra.mxu0 %v1670
        %1703 = vmatprep.subr.mxu0 0.0
        %1704 = vmatpush1.msra.mxu0 %v1669
        %1705 = vmatprep.subr.mxu0 0.0
        %1706 = vmatpush1.msra.mxu0 %v1668
        %1707 = vmatprep.subr.mxu0 0.0
        %1708 = vmatpush2.msra.mxu0 0.0
        %1709 = vmatprep.subr.mxu0 0.0
        %1710 = vmatpush2.msra.mxu0 0.0
        %1711 = vmatprep.subr.mxu0 0.0
        %1712 = vmatpush2.msra.mxu0 0.0
        %1713 = vmatprep.subr.mxu0 0.0
        %1714 = vmatpush2.msra.mxu0 0.0
        %1715 = vmatprep.subr.mxu0 0.0
        %1716 = vmatpush2.msra.mxu0 0.0
        %1717 = vmatprep.subr.mxu0 0.0
        %1718 = vmatpush2.msra.mxu0 0.0
        %1719 = vmatprep.subr.mxu0 0.0
        %1720 = vmatpush2.msra.mxu0 0.0
        %1721 = vmatprep.subr.mxu0 0.0
        %1722 = vmatpush2.msra.mxu0 0.0
        %1723 = vmatprep.subr.mxu0 0.0
        %1724 = vmatpush2.msra.mxu0 0.0
        %1725 = vmatprep.subr.mxu0 0.0
        %1726 = vmatpush2.msra.mxu0 0.0
        %1727 = vmatprep.subr.mxu0 0.0
        %1728 = vmatpush2.msra.mxu0 0.0
        %1729 = vmatprep.subr.mxu0 0.0
        %1730 = vmatpush2.msra.mxu0 0.0
        %1731 = vmatprep.subr.mxu0 0.0
        %1732 = vmatpush2.msra.mxu0 0.0
        %1733 = vmatprep.subr.mxu0 0.0
        %1734 = vmatpush2.msra.mxu0 0.0
        %1735 = vmatprep.subr.mxu0 0.0
        %1736 = vmatpush2.msra.mxu0 0.0
        %1737 = vmatprep.subr.mxu0 0.0
        %1738 = vmatpush2.msra.mxu0 0.0
        %1739 = vmatprep.mubr.f32.mxu0 0.0
        %1740 = vmatmul.mubr.f32.gmra.mxu0 %v1673
        %v1741 = vpop.f32.mrf.mxu0
        %v1742 = vadd.f32 0.0, %v1741
        %v1743 = vpop.f32.mrf.mxu0
        %1744 = vdwg.mxu0
        %v1745 = vld [vmem:[%s9] sm:$0xff]
        %v1746 = vld [vmem:[%s9 + $0x8] sm:$0xff]
        %v1747 = vld [vmem:[%s9 + $0x10] sm:$0xff]
        %v1748 = vld [vmem:[%s9 + $0x18] sm:$0xff]
        %v1750 = vsel %vm600, %v590, 0
        %1752 = vmatprep.subr.mxu0 0.0
        %1753 = vmatpush1.msra.mxu0 0.0
        %1754 = vmatprep.subr.mxu0 0.0
        %1755 = vmatpush1.msra.mxu0 0.0
        %1756 = vmatprep.subr.mxu0 0.0
        %1757 = vmatpush1.msra.mxu0 0.0
        %1758 = vmatprep.subr.mxu0 0.0
        %1759 = vmatpush1.msra.mxu0 0.0
        %1760 = vmatprep.subr.mxu0 0.0
        %1761 = vmatpush1.msra.mxu0 0.0
        %1762 = vmatprep.subr.mxu0 0.0
        %1763 = vmatpush1.msra.mxu0 0.0
        %1764 = vmatprep.subr.mxu0 0.0
        %1765 = vmatpush1.msra.mxu0 0.0
        %1766 = vmatprep.subr.mxu0 0.0
        %1767 = vmatpush1.msra.mxu0 0.0
        %1768 = vmatprep.subr.mxu0 0.0
        %1769 = vmatpush1.msra.mxu0 0.0
        %1770 = vmatprep.subr.mxu0 0.0
        %1771 = vmatpush1.msra.mxu0 0.0
        %1772 = vmatprep.subr.mxu0 0.0
        %1773 = vmatpush1.msra.mxu0 0.0
        %1774 = vmatprep.subr.mxu0 0.0
        %1775 = vmatpush1.msra.mxu0 0.0
        %1776 = vmatprep.subr.mxu0 0.0
        %1777 = vmatpush1.msra.mxu0 %v1748
        %1778 = vmatprep.subr.mxu0 0.0
        %1779 = vmatpush1.msra.mxu0 %v1747
        %1780 = vmatprep.subr.mxu0 0.0
        %1781 = vmatpush1.msra.mxu0 %v1746
        %1782 = vmatprep.subr.mxu0 0.0
        %1783 = vmatpush1.msra.mxu0 %v1745
        %1784 = vmatprep.subr.mxu0 0.0
        %1785 = vmatpush2.msra.mxu0 0.0
        %1786 = vmatprep.subr.mxu0 0.0
        %1787 = vmatpush2.msra.mxu0 0.0
        %1788 = vmatprep.subr.mxu0 0.0
        %1789 = vmatpush2.msra.mxu0 0.0
        %1790 = vmatprep.subr.mxu0 0.0
        %1791 = vmatpush2.msra.mxu0 0.0
        %1792 = vmatprep.subr.mxu0 0.0
        %1793 = vmatpush2.msra.mxu0 0.0
        %1794 = vmatprep.subr.mxu0 0.0
        %1795 = vmatpush2.msra.mxu0 0.0
        %1796 = vmatprep.subr.mxu0 0.0
        %1797 = vmatpush2.msra.mxu0 0.0
        %1798 = vmatprep.subr.mxu0 0.0
        %1799 = vmatpush2.msra.mxu0 0.0
        %1800 = vmatprep.subr.mxu0 0.0
        %1801 = vmatpush2.msra.mxu0 0.0
        %1802 = vmatprep.subr.mxu0 0.0
        %1803 = vmatpush2.msra.mxu0 0.0
        %1804 = vmatprep.subr.mxu0 0.0
        %1805 = vmatpush2.msra.mxu0 0.0
        %1806 = vmatprep.subr.mxu0 0.0
        %1807 = vmatpush2.msra.mxu0 0.0
        %1808 = vmatprep.subr.mxu0 0.0
        %1809 = vmatpush2.msra.mxu0 0.0
        %1810 = vmatprep.subr.mxu0 0.0
        %1811 = vmatpush2.msra.mxu0 0.0
        %1812 = vmatprep.subr.mxu0 0.0
        %1813 = vmatpush2.msra.mxu0 0.0
        %1814 = vmatprep.subr.mxu0 0.0
        %1815 = vmatpush2.msra.mxu0 0.0
        %1816 = vmatprep.mubr.f32.mxu0 0.0
        %1817 = vmatmul.mubr.f32.gmra.mxu0 %v1750
        %v1818 = vpop.f32.mrf.mxu0
        %v1819 = vadd.f32 0.0, %v1818
        %v1820 = vpop.f32.mrf.mxu0
        %1821 = vdwg.mxu0
        %v1822 = vld [vmem:[%s10] sm:$0xff]
        %v1823 = vld [vmem:[%s10 + $0x8] sm:$0xff]
        %v1824 = vld [vmem:[%s10 + $0x10] sm:$0xff]
        %v1825 = vld [vmem:[%s10 + $0x18] sm:$0xff]
        %v1827 = vsel %vm700, %v1742, 0
        %v1830 = vsel %vm700, %v1819, 0
        %1832 = vmatprep.subr.mxu0 0.0
        %1833 = vmatpush1.xpose.msra.mxu0 0.0
        %1834 = vmatprep.subr.mxu0 0.0
        %1835 = vmatpush1.xpose.msra.mxu0 0.0
        %1836 = vmatprep.subr.mxu0 0.0
        %1837 = vmatpush1.xpose.msra.mxu0 0.0
        %1838 = vmatprep.subr.mxu0 0.0
        %1839 = vmatpush1.xpose.msra.mxu0 0.0
        %1840 = vmatprep.subr.mxu0 0.0
        %1841 = vmatpush1.xpose.msra.mxu0 0.0
        %1842 = vmatprep.subr.mxu0 0.0
        %1843 = vmatpush1.xpose.msra.mxu0 0.0
        %1844 = vmatprep.subr.mxu0 0.0
        %1845 = vmatpush1.xpose.msra.mxu0 0.0
        %1846 = vmatprep.subr.mxu0 0.0
        %1847 = vmatpush1.xpose.msra.mxu0 0.0
        %1848 = vmatprep.subr.mxu0 0.0
        %1849 = vmatpush1.xpose.msra.mxu0 0.0
        %1850 = vmatprep.subr.mxu0 0.0
        %1851 = vmatpush1.xpose.msra.mxu0 0.0
        %1852 = vmatprep.subr.mxu0 0.0
        %1853 = vmatpush1.xpose.msra.mxu0 0.0
        %1854 = vmatprep.subr.mxu0 0.0
        %1855 = vmatpush1.xpose.msra.mxu0 0.0
        %1856 = vmatprep.subr.mxu0 0.0
        %1857 = vmatpush1.xpose.msra.mxu0 0.0
        %1858 = vmatprep.subr.mxu0 0.0
        %1859 = vmatpush1.xpose.msra.mxu0 0.0
        %1860 = vmatprep.subr.mxu0 0.0
        %1861 = vmatpush1.xpose.msra.mxu0 0.0
        %1862 = vmatprep.subr.mxu0 0.0
        %1863 = vmatpush1.xpose.msra.mxu0 %v1830
        %1864 = vmatprep.subr.mxu0 0.0
        %1865 = vmatpush2.xpose.msra.mxu0 0.0
        %1866 = vmatprep.subr.mxu0 0.0
        %1867 = vmatpush2.xpose.msra.mxu0 0.0
        %1868 = vmatprep.subr.mxu0 0.0
        %1869 = vmatpush2.xpose.msra.mxu0 0.0
        %1870 = vmatprep.subr.mxu0 0.0
        %1871 = vmatpush2.xpose.msra.mxu0 0.0
        %1872 = vmatprep.subr.mxu0 0.0
        %1873 = vmatpush2.xpose.msra.mxu0 0.0
        %1874 = vmatprep.subr.mxu0 0.0
        %1875 = vmatpush2.xpose.msra.mxu0 0.0
        %1876 = vmatprep.subr.mxu0 0.0
        %1877 = vmatpush2.xpose.msra.mxu0 0.0
        %1878 = vmatprep.subr.mxu0 0.0
        %1879 = vmatpush2.xpose.msra.mxu0 0.0
        %1880 = vmatprep.subr.mxu0 0.0
        %1881 = vmatpush2.xpose.msra.mxu0 0.0
        %1882 = vmatprep.subr.mxu0 0.0
        %1883 = vmatpush2.xpose.msra.mxu0 0.0
        %1884 = vmatprep.subr.mxu0 0.0
        %1885 = vmatpush2.xpose.msra.mxu0 0.0
        %1886 = vmatprep.subr.mxu0 0.0
        %1887 = vmatpush2.xpose.msra.mxu0 0.0
        %1888 = vmatprep.subr.mxu0 0.0
        %1889 = vmatpush2.xpose.msra.mxu0 0.0
        %1890 = vmatprep.subr.mxu0 0.0
        %1891 = vmatpush2.xpose.msra.mxu0 0.0
        %1892 = vmatprep.subr.mxu0 0.0
        %1893 = vmatpush2.xpose.msra.mxu0 0.0
        %1894 = vmatprep.subr.mxu0 0.0
        %1895 = vmatpush2.xpose.msra.mxu0 0.0
        %1896 = vmatprep.mubr.f32.mxu0 0.0
        %1897 = vmatmul.mubr.f32.gmra.mxu0 %v1827
        %v1898 = vpop.f32.mrf.mxu0
        %v1899 = vadd.f32 0.0, %v1898
        %v1900 = vpop.f32.mrf.mxu0
        %1901 = vdwg.mxu0
        %v1902 = vsel %vm700, %v1899, -inf
        %1903 = vmax.xlane.f32.xlu0 %v1902
        %v1904 = vpop.xlane.xlu0 %1903
        %v1905 = vsub.f32 %v1899, %v1904
        %v1906 = vmul.f32 %v1905, 1.442695
        %v1907 = vpow.pop %v1906
        %v1908 = vsel %vm700, %v1907, 0.0
        %1909 = vadd.xlane.f32.xlu0 %v1908
        %v1910 = vpop.xlane.xlu0 %1909
        %v1911 = vrcp.pop %v1910
        %v1912 = vmul.f32 %v1907, %v1911
        %1913 = vrot.lane.b32.xlu0 %v1819, 96
        %v1914 = vpop.permute.xlu0 %1913
        %v1917 = vsel %vm700, %v1912, 0
        %1919 = vmatprep.subr.mxu0 0.0
        %1920 = vmatpush1.msra.mxu0 0.0
        %1921 = vmatprep.subr.mxu0 0.0
        %1922 = vmatpush1.msra.mxu0 0.0
        %1923 = vmatprep.subr.mxu0 0.0
        %1924 = vmatpush1.msra.mxu0 0.0
        %1925 = vmatprep.subr.mxu0 0.0
        %1926 = vmatpush1.msra.mxu0 0.0
        %1927 = vmatprep.subr.mxu0 0.0
        %1928 = vmatpush1.msra.mxu0 0.0
        %1929 = vmatprep.subr.mxu0 0.0
        %1930 = vmatpush1.msra.mxu0 0.0
        %1931 = vmatprep.subr.mxu0 0.0
        %1932 = vmatpush1.msra.mxu0 0.0
        %1933 = vmatprep.subr.mxu0 0.0
        %1934 = vmatpush1.msra.mxu0 0.0
        %1935 = vmatprep.subr.mxu0 0.0
        %1936 = vmatpush1.msra.mxu0 0.0
        %1937 = vmatprep.subr.mxu0 0.0
        %1938 = vmatpush1.msra.mxu0 0.0
        %1939 = vmatprep.subr.mxu0 0.0
        %1940 = vmatpush1.msra.mxu0 0.0
        %1941 = vmatprep.subr.mxu0 0.0
        %1942 = vmatpush1.msra.mxu0 0.0
        %1943 = vmatprep.subr.mxu0 0.0
        %1944 = vmatpush1.msra.mxu0 0.0
        %1945 = vmatprep.subr.mxu0 0.0
        %1946 = vmatpush1.msra.mxu0 0.0
        %1947 = vmatprep.subr.mxu0 0.0
        %1948 = vmatpush1.msra.mxu0 0.0
        %1949 = vmatprep.subr.mxu0 0.0
        %1950 = vmatpush1.msra.mxu0 %v1914
        %1951 = vmatprep.subr.mxu0 0.0
        %1952 = vmatpush2.msra.mxu0 0.0
        %1953 = vmatprep.subr.mxu0 0.0
        %1954 = vmatpush2.msra.mxu0 0.0
        %1955 = vmatprep.subr.mxu0 0.0
        %1956 = vmatpush2.msra.mxu0 0.0
        %1957 = vmatprep.subr.mxu0 0.0
        %1958 = vmatpush2.msra.mxu0 0.0
        %1959 = vmatprep.subr.mxu0 0.0
        %1960 = vmatpush2.msra.mxu0 0.0
        %1961 = vmatprep.subr.mxu0 0.0
        %1962 = vmatpush2.msra.mxu0 0.0
        %1963 = vmatprep.subr.mxu0 0.0
        %1964 = vmatpush2.msra.mxu0 0.0
        %1965 = vmatprep.subr.mxu0 0.0
        %1966 = vmatpush2.msra.mxu0 0.0
        %1967 = vmatprep.subr.mxu0 0.0
        %1968 = vmatpush2.msra.mxu0 0.0
        %1969 = vmatprep.subr.mxu0 0.0
        %1970 = vmatpush2.msra.mxu0 0.0
        %1971 = vmatprep.subr.mxu0 0.0
        %1972 = vmatpush2.msra.mxu0 0.0
        %1973 = vmatprep.subr.mxu0 0.0
        %1974 = vmatpush2.msra.mxu0 0.0
        %1975 = vmatprep.subr.mxu0 0.0
        %1976 = vmatpush2.msra.mxu0 0.0
        %1977 = vmatprep.subr.mxu0 0.0
        %1978 = vmatpush2.msra.mxu0 0.0
        %1979 = vmatprep.subr.mxu0 0.0
        %1980 = vmatpush2.msra.mxu0 0.0
        %1981 = vmatprep.subr.mxu0 0.0
        %1982 = vmatpush2.msra.mxu0 0.0
        %1983 = vmatprep.mubr.f32.mxu0 0.0
        %1984 = vmatmul.mubr.f32.gmra.mxu0 %v1917
        %v1985 = vpop.f32.mrf.mxu0
        %v1986 = vadd.f32 0.0, %v1985
        %v1987 = vpop.f32.mrf.mxu0
        %1988 = vdwg.mxu0
        %1989 = vrot.lane.b32.xlu0 %v1742, 120
        %v1990 = vpop.permute.xlu0 %1989
        %1991 = vrot.lane.b32.xlu0 %v1819, 120
        %v1992 = vpop.permute.xlu0 %1991
        %v1993 = vsel %vm700, %v1990, 0
        %v1995 = vsel %vm700, %v1992, 0
        %1997 = vmatprep.subr.mxu0 0.0
        %1998 = vmatpush1.xpose.msra.mxu0 0.0
        %1999 = vmatprep.subr.mxu0 0.0
        %2000 = vmatpush1.xpose.msra.mxu0 0.0
        %2001 = vmatprep.subr.mxu0 0.0
        %2002 = vmatpush1.xpose.msra.mxu0 0.0
        %2003 = vmatprep.subr.mxu0 0.0
        %2004 = vmatpush1.xpose.msra.mxu0 0.0
        %2005 = vmatprep.subr.mxu0 0.0
        %2006 = vmatpush1.xpose.msra.mxu0 0.0
        %2007 = vmatprep.subr.mxu0 0.0
        %2008 = vmatpush1.xpose.msra.mxu0 0.0
        %2009 = vmatprep.subr.mxu0 0.0
        %2010 = vmatpush1.xpose.msra.mxu0 0.0
        %2011 = vmatprep.subr.mxu0 0.0
        %2012 = vmatpush1.xpose.msra.mxu0 0.0
        %2013 = vmatprep.subr.mxu0 0.0
        %2014 = vmatpush1.xpose.msra.mxu0 0.0
        %2015 = vmatprep.subr.mxu0 0.0
        %2016 = vmatpush1.xpose.msra.mxu0 0.0
        %2017 = vmatprep.subr.mxu0 0.0
        %2018 = vmatpush1.xpose.msra.mxu0 0.0
        %2019 = vmatprep.subr.mxu0 0.0
        %2020 = vmatpush1.xpose.msra.mxu0 0.0
        %2021 = vmatprep.subr.mxu0 0.0
        %2022 = vmatpush1.xpose.msra.mxu0 0.0
        %2023 = vmatprep.subr.mxu0 0.0
        %2024 = vmatpush1.xpose.msra.mxu0 0.0
        %2025 = vmatprep.subr.mxu0 0.0
        %2026 = vmatpush1.xpose.msra.mxu0 0.0
        %2027 = vmatprep.subr.mxu0 0.0
        %2028 = vmatpush1.xpose.msra.mxu0 %v1995
        %2029 = vmatprep.subr.mxu0 0.0
        %2030 = vmatpush2.xpose.msra.mxu0 0.0
        %2031 = vmatprep.subr.mxu0 0.0
        %2032 = vmatpush2.xpose.msra.mxu0 0.0
        %2033 = vmatprep.subr.mxu0 0.0
        %2034 = vmatpush2.xpose.msra.mxu0 0.0
        %2035 = vmatprep.subr.mxu0 0.0
        %2036 = vmatpush2.xpose.msra.mxu0 0.0
        %2037 = vmatprep.subr.mxu0 0.0
        %2038 = vmatpush2.xpose.msra.mxu0 0.0
        %2039 = vmatprep.subr.mxu0 0.0
        %2040 = vmatpush2.xpose.msra.mxu0 0.0
        %2041 = vmatprep.subr.mxu0 0.0
        %2042 = vmatpush2.xpose.msra.mxu0 0.0
        %2043 = vmatprep.subr.mxu0 0.0
        %2044 = vmatpush2.xpose.msra.mxu0 0.0
        %2045 = vmatprep.subr.mxu0 0.0
        %2046 = vmatpush2.xpose.msra.mxu0 0.0
        %2047 = vmatprep.subr.mxu0 0.0
        %2048 = vmatpush2.xpose.msra.mxu0 0.0
        %2049 = vmatprep.subr.mxu0 0.0
        %2050 = vmatpush2.xpose.msra.mxu0 0.0
        %2051 = vmatprep.subr.mxu0 0.0
        %2052 = vmatpush2.xpose.msra.mxu0 0.0
        %2053 = vmatprep.subr.mxu0 0.0
        %2054 = vmatpush2.xpose.msra.mxu0 0.0
        %2055 = vmatprep.subr.mxu0 0.0
        %2056 = vmatpush2.xpose.msra.mxu0 0.0
        %2057 = vmatprep.subr.mxu0 0.0
        %2058 = vmatpush2.xpose.msra.mxu0 0.0
        %2059 = vmatprep.subr.mxu0 0.0
        %2060 = vmatpush2.xpose.msra.mxu0 0.0
        %2061 = vmatprep.mubr.f32.mxu0 0.0
        %2062 = vmatmul.mubr.f32.gmra.mxu0 %v1993
        %v2063 = vpop.f32.mrf.mxu0
        %v2064 = vadd.f32 0.0, %v2063
        %v2065 = vpop.f32.mrf.mxu0
        %2066 = vdwg.mxu0
        %v2067 = vsel %vm700, %v2064, -inf
        %2068 = vmax.xlane.f32.xlu0 %v2067
        %v2069 = vpop.xlane.xlu0 %2068
        %v2070 = vsub.f32 %v2064, %v2069
        %v2071 = vmul.f32 %v2070, 1.442695
        %v2072 = vpow.pop %v2071
        %v2073 = vsel %vm700, %v2072, 0.0
        %2074 = vadd.xlane.f32.xlu0 %v2073
        %v2075 = vpop.xlane.xlu0 %2074
        %v2076 = vrcp.pop %v2075
        %v2077 = vmul.f32 %v2072, %v2076
        %2078 = vrot.lane.b32.xlu0 %v1819, 88
        %v2079 = vpop.permute.xlu0 %2078
        %v2082 = vsel %vm700, %v2077, 0
        %2084 = vmatprep.subr.mxu0 0.0
        %2085 = vmatpush1.msra.mxu0 0.0
        %2086 = vmatprep.subr.mxu0 0.0
        %2087 = vmatpush1.msra.mxu0 0.0
        %2088 = vmatprep.subr.mxu0 0.0
        %2089 = vmatpush1.msra.mxu0 0.0
        %2090 = vmatprep.subr.mxu0 0.0
        %2091 = vmatpush1.msra.mxu0 0.0
        %2092 = vmatprep.subr.mxu0 0.0
        %2093 = vmatpush1.msra.mxu0 0.0
        %2094 = vmatprep.subr.mxu0 0.0
        %2095 = vmatpush1.msra.mxu0 0.0
        %2096 = vmatprep.subr.mxu0 0.0
        %2097 = vmatpush1.msra.mxu0 0.0
        %2098 = vmatprep.subr.mxu0 0.0
        %2099 = vmatpush1.msra.mxu0 0.0
        %2100 = vmatprep.subr.mxu0 0.0
        %2101 = vmatpush1.msra.mxu0 0.0
        %2102 = vmatprep.subr.mxu0 0.0
        %2103 = vmatpush1.msra.mxu0 0.0
        %2104 = vmatprep.subr.mxu0 0.0
        %2105 = vmatpush1.msra.mxu0 0.0
        %2106 = vmatprep.subr.mxu0 0.0
        %2107 = vmatpush1.msra.mxu0 0.0
        %2108 = vmatprep.subr.mxu0 0.0
        %2109 = vmatpush1.msra.mxu0 0.0
        %2110 = vmatprep.subr.mxu0 0.0
        %2111 = vmatpush1.msra.mxu0 0.0
        %2112 = vmatprep.subr.mxu0 0.0
        %2113 = vmatpush1.msra.mxu0 0.0
        %2114 = vmatprep.subr.mxu0 0.0
        %2115 = vmatpush1.msra.mxu0 %v2079
        %2116 = vmatprep.subr.mxu0 0.0
        %2117 = vmatpush2.msra.mxu0 0.0
        %2118 = vmatprep.subr.mxu0 0.0
        %2119 = vmatpush2.msra.mxu0 0.0
        %2120 = vmatprep.subr.mxu0 0.0
        %2121 = vmatpush2.msra.mxu0 0.0
        %2122 = vmatprep.subr.mxu0 0.0
        %2123 = vmatpush2.msra.mxu0 0.0
        %2124 = vmatprep.subr.mxu0 0.0
        %2125 = vmatpush2.msra.mxu0 0.0
        %2126 = vmatprep.subr.mxu0 0.0
        %2127 = vmatpush2.msra.mxu0 0.0
        %2128 = vmatprep.subr.mxu0 0.0
        %2129 = vmatpush2.msra.mxu0 0.0
        %2130 = vmatprep.subr.mxu0 0.0
        %2131 = vmatpush2.msra.mxu0 0.0
        %2132 = vmatprep.subr.mxu0 0.0
        %2133 = vmatpush2.msra.mxu0 0.0
        %2134 = vmatprep.subr.mxu0 0.0
        %2135 = vmatpush2.msra.mxu0 0.0
        %2136 = vmatprep.subr.mxu0 0.0
        %2137 = vmatpush2.msra.mxu0 0.0
        %2138 = vmatprep.subr.mxu0 0.0
        %2139 = vmatpush2.msra.mxu0 0.0
        %2140 = vmatprep.subr.mxu0 0.0
        %2141 = vmatpush2.msra.mxu0 0.0
        %2142 = vmatprep.subr.mxu0 0.0
        %2143 = vmatpush2.msra.mxu0 0.0
        %2144 = vmatprep.subr.mxu0 0.0
        %2145 = vmatpush2.msra.mxu0 0.0
        %2146 = vmatprep.subr.mxu0 0.0
        %2147 = vmatpush2.msra.mxu0 0.0
        %2148 = vmatprep.mubr.f32.mxu0 0.0
        %2149 = vmatmul.mubr.f32.gmra.mxu0 %v2082
        %v2150 = vpop.f32.mrf.mxu0
        %v2151 = vadd.f32 0.0, %v2150
        %v2152 = vpop.f32.mrf.mxu0
        %2153 = vdwg.mxu0
        %v2155 = vsel %vm700, %v2151, 0
        %2157 = vmatprep.subr.mxu0 0.0
        %2158 = vmatpush1.msra.mxu0 0.0
        %2159 = vmatprep.subr.mxu0 0.0
        %2160 = vmatpush1.msra.mxu0 0.0
        %2161 = vmatprep.subr.mxu0 0.0
        %2162 = vmatpush1.msra.mxu0 0.0
        %2163 = vmatprep.subr.mxu0 0.0
        %2164 = vmatpush1.msra.mxu0 0.0
        %2165 = vmatprep.subr.mxu0 0.0
        %2166 = vmatpush1.msra.mxu0 0.0
        %2167 = vmatprep.subr.mxu0 0.0
        %2168 = vmatpush1.msra.mxu0 0.0
        %2169 = vmatprep.subr.mxu0 0.0
        %2170 = vmatpush1.msra.mxu0 0.0
        %2171 = vmatprep.subr.mxu0 0.0
        %2172 = vmatpush1.msra.mxu0 0.0
        %2173 = vmatprep.subr.mxu0 0.0
        %2174 = vmatpush1.msra.mxu0 0.0
        %2175 = vmatprep.subr.mxu0 0.0
        %2176 = vmatpush1.msra.mxu0 0.0
        %2177 = vmatprep.subr.mxu0 0.0
        %2178 = vmatpush1.msra.mxu0 0.0
        %2179 = vmatprep.subr.mxu0 0.0
        %2180 = vmatpush1.msra.mxu0 0.0
        %2181 = vmatprep.subr.mxu0 0.0
        %2182 = vmatpush1.msra.mxu0 0.0
        %2183 = vmatprep.subr.mxu0 0.0
        %2184 = vmatpush1.msra.mxu0 0.0
        %2185 = vmatprep.subr.mxu0 0.0
        %2186 = vmatpush1.msra.mxu0 0.0
        %2187 = vmatprep.subr.mxu0 0.0
        %2188 = vmatpush1.msra.mxu0 %v1823
        %2189 = vmatprep.subr.mxu0 0.0
        %2190 = vmatpush2.msra.mxu0 0.0
        %2191 = vmatprep.subr.mxu0 0.0
        %2192 = vmatpush2.msra.mxu0 0.0
        %2193 = vmatprep.subr.mxu0 0.0
        %2194 = vmatpush2.msra.mxu0 0.0
        %2195 = vmatprep.subr.mxu0 0.0
        %2196 = vmatpush2.msra.mxu0 0.0
        %2197 = vmatprep.subr.mxu0 0.0
        %2198 = vmatpush2.msra.mxu0 0.0
        %2199 = vmatprep.subr.mxu0 0.0
        %2200 = vmatpush2.msra.mxu0 0.0
        %2201 = vmatprep.subr.mxu0 0.0
        %2202 = vmatpush2.msra.mxu0 0.0
        %2203 = vmatprep.subr.mxu0 0.0
        %2204 = vmatpush2.msra.mxu0 0.0
        %2205 = vmatprep.subr.mxu0 0.0
        %2206 = vmatpush2.msra.mxu0 0.0
        %2207 = vmatprep.subr.mxu0 0.0
        %2208 = vmatpush2.msra.mxu0 0.0
        %2209 = vmatprep.subr.mxu0 0.0
        %2210 = vmatpush2.msra.mxu0 0.0
        %2211 = vmatprep.subr.mxu0 0.0
        %2212 = vmatpush2.msra.mxu0 0.0
        %2213 = vmatprep.subr.mxu0 0.0
        %2214 = vmatpush2.msra.mxu0 0.0
        %2215 = vmatprep.subr.mxu0 0.0
        %2216 = vmatpush2.msra.mxu0 0.0
        %2217 = vmatprep.subr.mxu0 0.0
        %2218 = vmatpush2.msra.mxu0 0.0
        %2219 = vmatprep.subr.mxu0 0.0
        %2220 = vmatpush2.msra.mxu0 0.0
        %2221 = vmatprep.mubr.f32.mxu0 0.0
        %2222 = vmatmul.mubr.f32.gmra.mxu0 %v2155
        %v2223 = vpop.f32.mrf.mxu0
        %v2224 = vadd.f32 0.0, %v2223
        %v2225 = vpop.f32.mrf.mxu0
        %2226 = vdwg.mxu0
        %v2228 = vsel %vm700, %v1986, 0
        %2230 = vmatprep.subr.mxu0 0.0
        %2231 = vmatpush1.msra.mxu0 0.0
        %2232 = vmatprep.subr.mxu0 0.0
        %2233 = vmatpush1.msra.mxu0 0.0
        %2234 = vmatprep.subr.mxu0 0.0
        %2235 = vmatpush1.msra.mxu0 0.0
        %2236 = vmatprep.subr.mxu0 0.0
        %2237 = vmatpush1.msra.mxu0 0.0
        %2238 = vmatprep.subr.mxu0 0.0
        %2239 = vmatpush1.msra.mxu0 0.0
        %2240 = vmatprep.subr.mxu0 0.0
        %2241 = vmatpush1.msra.mxu0 0.0
        %2242 = vmatprep.subr.mxu0 0.0
        %2243 = vmatpush1.msra.mxu0 0.0
        %2244 = vmatprep.subr.mxu0 0.0
        %2245 = vmatpush1.msra.mxu0 0.0
        %2246 = vmatprep.subr.mxu0 0.0
        %2247 = vmatpush1.msra.mxu0 0.0
        %2248 = vmatprep.subr.mxu0 0.0
        %2249 = vmatpush1.msra.mxu0 0.0
        %2250 = vmatprep.subr.mxu0 0.0
        %2251 = vmatpush1.msra.mxu0 0.0
        %2252 = vmatprep.subr.mxu0 0.0
        %2253 = vmatpush1.msra.mxu0 0.0
        %2254 = vmatprep.subr.mxu0 0.0
        %2255 = vmatpush1.msra.mxu0 0.0
        %2256 = vmatprep.subr.mxu0 0.0
        %2257 = vmatpush1.msra.mxu0 0.0
        %2258 = vmatprep.subr.mxu0 0.0
        %2259 = vmatpush1.msra.mxu0 0.0
        %2260 = vmatprep.subr.mxu0 0.0
        %2261 = vmatpush1.msra.mxu0 %v1822
        %2262 = vmatprep.subr.mxu0 0.0
        %2263 = vmatpush2.msra.mxu0 0.0
        %2264 = vmatprep.subr.mxu0 0.0
        %2265 = vmatpush2.msra.mxu0 0.0
        %2266 = vmatprep.subr.mxu0 0.0
        %2267 = vmatpush2.msra.mxu0 0.0
        %2268 = vmatprep.subr.mxu0 0.0
        %2269 = vmatpush2.msra.mxu0 0.0
        %2270 = vmatprep.subr.mxu0 0.0
        %2271 = vmatpush2.msra.mxu0 0.0
        %2272 = vmatprep.subr.mxu0 0.0
        %2273 = vmatpush2.msra.mxu0 0.0
        %2274 = vmatprep.subr.mxu0 0.0
        %2275 = vmatpush2.msra.mxu0 0.0
        %2276 = vmatprep.subr.mxu0 0.0
        %2277 = vmatpush2.msra.mxu0 0.0
        %2278 = vmatprep.subr.mxu0 0.0
        %2279 = vmatpush2.msra.mxu0 0.0
        %2280 = vmatprep.subr.mxu0 0.0
        %2281 = vmatpush2.msra.mxu0 0.0
        %2282 = vmatprep.subr.mxu0 0.0
        %2283 = vmatpush2.msra.mxu0 0.0
        %2284 = vmatprep.subr.mxu0 0.0
        %2285 = vmatpush2.msra.mxu0 0.0
        %2286 = vmatprep.subr.mxu0 0.0
        %2287 = vmatpush2.msra.mxu0 0.0
        %2288 = vmatprep.subr.mxu0 0.0
        %2289 = vmatpush2.msra.mxu0 0.0
        %2290 = vmatprep.subr.mxu0 0.0
        %2291 = vmatpush2.msra.mxu0 0.0
        %2292 = vmatprep.subr.mxu0 0.0
        %2293 = vmatpush2.msra.mxu0 0.0
        %2294 = vmatprep.mubr.f32.mxu0 0.0
        %2295 = vmatmul.mubr.f32.gmra.mxu0 %v2228
        %v2296 = vpop.f32.mrf.mxu0
        %v2297 = vadd.f32 %v2224, %v2296
        %v2298 = vpop.f32.mrf.mxu0
        %2299 = vdwg.mxu0
        %2300 = vrot.lane.b32.xlu0 %v1742, 112
        %v2301 = vpop.permute.xlu0 %2300
        %2302 = vrot.lane.b32.xlu0 %v1819, 112
        %v2303 = vpop.permute.xlu0 %2302
        %v2304 = vsel %vm700, %v2301, 0
        %v2306 = vsel %vm700, %v2303, 0
        %2308 = vmatprep.subr.mxu0 0.0
        %2309 = vmatpush1.xpose.msra.mxu0 0.0
        %2310 = vmatprep.subr.mxu0 0.0
        %2311 = vmatpush1.xpose.msra.mxu0 0.0
        %2312 = vmatprep.subr.mxu0 0.0
        %2313 = vmatpush1.xpose.msra.mxu0 0.0
        %2314 = vmatprep.subr.mxu0 0.0
        %2315 = vmatpush1.xpose.msra.mxu0 0.0
        %2316 = vmatprep.subr.mxu0 0.0
        %2317 = vmatpush1.xpose.msra.mxu0 0.0
        %2318 = vmatprep.subr.mxu0 0.0
        %2319 = vmatpush1.xpose.msra.mxu0 0.0
        %2320 = vmatprep.subr.mxu0 0.0
        %2321 = vmatpush1.xpose.msra.mxu0 0.0
        %2322 = vmatprep.subr.mxu0 0.0
        %2323 = vmatpush1.xpose.msra.mxu0 0.0
        %2324 = vmatprep.subr.mxu0 0.0
        %2325 = vmatpush1.xpose.msra.mxu0 0.0
        %2326 = vmatprep.subr.mxu0 0.0
        %2327 = vmatpush1.xpose.msra.mxu0 0.0
        %2328 = vmatprep.subr.mxu0 0.0
        %2329 = vmatpush1.xpose.msra.mxu0 0.0
        %2330 = vmatprep.subr.mxu0 0.0
        %2331 = vmatpush1.xpose.msra.mxu0 0.0
        %2332 = vmatprep.subr.mxu0 0.0
        %2333 = vmatpush1.xpose.msra.mxu0 0.0
        %2334 = vmatprep.subr.mxu0 0.0
        %2335 = vmatpush1.xpose.msra.mxu0 0.0
        %2336 = vmatprep.subr.mxu0 0.0
        %2337 = vmatpush1.xpose.msra.mxu0 0.0
        %2338 = vmatprep.subr.mxu0 0.0
        %2339 = vmatpush1.xpose.msra.mxu0 %v2306
        %2340 = vmatprep.subr.mxu0 0.0
        %2341 = vmatpush2.xpose.msra.mxu0 0.0
        %2342 = vmatprep.subr.mxu0 0.0
        %2343 = vmatpush2.xpose.msra.mxu0 0.0
        %2344 = vmatprep.subr.mxu0 0.0
        %2345 = vmatpush2.xpose.msra.mxu0 0.0
        %2346 = vmatprep.subr.mxu0 0.0
        %2347 = vmatpush2.xpose.msra.mxu0 0.0
        %2348 = vmatprep.subr.mxu0 0.0
        %2349 = vmatpush2.xpose.msra.mxu0 0.0
        %2350 = vmatprep.subr.mxu0 0.0
        %2351 = vmatpush2.xpose.msra.mxu0 0.0
        %2352 = vmatprep.subr.mxu0 0.0
        %2353 = vmatpush2.xpose.msra.mxu0 0.0
        %2354 = vmatprep.subr.mxu0 0.0
        %2355 = vmatpush2.xpose.msra.mxu0 0.0
        %2356 = vmatprep.subr.mxu0 0.0
        %2357 = vmatpush2.xpose.msra.mxu0 0.0
        %2358 = vmatprep.subr.mxu0 0.0
        %2359 = vmatpush2.xpose.msra.mxu0 0.0
        %2360 = vmatprep.subr.mxu0 0.0
        %2361 = vmatpush2.xpose.msra.mxu0 0.0
        %2362 = vmatprep.subr.mxu0 0.0
        %2363 = vmatpush2.xpose.msra.mxu0 0.0
        %2364 = vmatprep.subr.mxu0 0.0
        %2365 = vmatpush2.xpose.msra.mxu0 0.0
        %2366 = vmatprep.subr.mxu0 0.0
        %2367 = vmatpush2.xpose.msra.mxu0 0.0
        %2368 = vmatprep.subr.mxu0 0.0
        %2369 = vmatpush2.xpose.msra.mxu0 0.0
        %2370 = vmatprep.subr.mxu0 0.0
        %2371 = vmatpush2.xpose.msra.mxu0 0.0
        %2372 = vmatprep.mubr.f32.mxu0 0.0
        %2373 = vmatmul.mubr.f32.gmra.mxu0 %v2304
        %v2374 = vpop.f32.mrf.mxu0
        %v2375 = vadd.f32 0.0, %v2374
        %v2376 = vpop.f32.mrf.mxu0
        %2377 = vdwg.mxu0
        %v2378 = vsel %vm700, %v2375, -inf
        %2379 = vmax.xlane.f32.xlu0 %v2378
        %v2380 = vpop.xlane.xlu0 %2379
        %v2381 = vsub.f32 %v2375, %v2380
        %v2382 = vmul.f32 %v2381, 1.442695
        %v2383 = vpow.pop %v2382
        %v2384 = vsel %vm700, %v2383, 0.0
        %2385 = vadd.xlane.f32.xlu0 %v2384
        %v2386 = vpop.xlane.xlu0 %2385
        %v2387 = vrcp.pop %v2386
        %v2388 = vmul.f32 %v2383, %v2387
        %2389 = vrot.lane.b32.xlu0 %v1819, 80
        %v2390 = vpop.permute.xlu0 %2389
        %v2393 = vsel %vm700, %v2388, 0
        %2395 = vmatprep.subr.mxu0 0.0
        %2396 = vmatpush1.msra.mxu0 0.0
        %2397 = vmatprep.subr.mxu0 0.0
        %2398 = vmatpush1.msra.mxu0 0.0
        %2399 = vmatprep.subr.mxu0 0.0
        %2400 = vmatpush1.msra.mxu0 0.0
        %2401 = vmatprep.subr.mxu0 0.0
        %2402 = vmatpush1.msra.mxu0 0.0
        %2403 = vmatprep.subr.mxu0 0.0
        %2404 = vmatpush1.msra.mxu0 0.0
        %2405 = vmatprep.subr.mxu0 0.0
        %2406 = vmatpush1.msra.mxu0 0.0
        %2407 = vmatprep.subr.mxu0 0.0
        %2408 = vmatpush1.msra.mxu0 0.0
        %2409 = vmatprep.subr.mxu0 0.0
        %2410 = vmatpush1.msra.mxu0 0.0
        %2411 = vmatprep.subr.mxu0 0.0
        %2412 = vmatpush1.msra.mxu0 0.0
        %2413 = vmatprep.subr.mxu0 0.0
        %2414 = vmatpush1.msra.mxu0 0.0
        %2415 = vmatprep.subr.mxu0 0.0
        %2416 = vmatpush1.msra.mxu0 0.0
        %2417 = vmatprep.subr.mxu0 0.0
        %2418 = vmatpush1.msra.mxu0 0.0
        %2419 = vmatprep.subr.mxu0 0.0
        %2420 = vmatpush1.msra.mxu0 0.0
        %2421 = vmatprep.subr.mxu0 0.0
        %2422 = vmatpush1.msra.mxu0 0.0
        %2423 = vmatprep.subr.mxu0 0.0
        %2424 = vmatpush1.msra.mxu0 0.0
        %2425 = vmatprep.subr.mxu0 0.0
        %2426 = vmatpush1.msra.mxu0 %v2390
        %2427 = vmatprep.subr.mxu0 0.0
        %2428 = vmatpush2.msra.mxu0 0.0
        %2429 = vmatprep.subr.mxu0 0.0
        %2430 = vmatpush2.msra.mxu0 0.0
        %2431 = vmatprep.subr.mxu0 0.0
        %2432 = vmatpush2.msra.mxu0 0.0
        %2433 = vmatprep.subr.mxu0 0.0
        %2434 = vmatpush2.msra.mxu0 0.0
        %2435 = vmatprep.subr.mxu0 0.0
        %2436 = vmatpush2.msra.mxu0 0.0
        %2437 = vmatprep.subr.mxu0 0.0
        %2438 = vmatpush2.msra.mxu0 0.0
        %2439 = vmatprep.subr.mxu0 0.0
        %2440 = vmatpush2.msra.mxu0 0.0
        %2441 = vmatprep.subr.mxu0 0.0
        %2442 = vmatpush2.msra.mxu0 0.0
        %2443 = vmatprep.subr.mxu0 0.0
        %2444 = vmatpush2.msra.mxu0 0.0
        %2445 = vmatprep.subr.mxu0 0.0
        %2446 = vmatpush2.msra.mxu0 0.0
        %2447 = vmatprep.subr.mxu0 0.0
        %2448 = vmatpush2.msra.mxu0 0.0
        %2449 = vmatprep.subr.mxu0 0.0
        %2450 = vmatpush2.msra.mxu0 0.0
        %2451 = vmatprep.subr.mxu0 0.0
        %2452 = vmatpush2.msra.mxu0 0.0
        %2453 = vmatprep.subr.mxu0 0.0
        %2454 = vmatpush2.msra.mxu0 0.0
        %2455 = vmatprep.subr.mxu0 0.0
        %2456 = vmatpush2.msra.mxu0 0.0
        %2457 = vmatprep.subr.mxu0 0.0
        %2458 = vmatpush2.msra.mxu0 0.0
        %2459 = vmatprep.mubr.f32.mxu0 0.0
        %2460 = vmatmul.mubr.f32.gmra.mxu0 %v2393
        %v2461 = vpop.f32.mrf.mxu0
        %v2462 = vadd.f32 0.0, %v2461
        %v2463 = vpop.f32.mrf.mxu0
        %2464 = vdwg.mxu0
        %v2466 = vsel %vm700, %v2462, 0
        %2468 = vmatprep.subr.mxu0 0.0
        %2469 = vmatpush1.msra.mxu0 0.0
        %2470 = vmatprep.subr.mxu0 0.0
        %2471 = vmatpush1.msra.mxu0 0.0
        %2472 = vmatprep.subr.mxu0 0.0
        %2473 = vmatpush1.msra.mxu0 0.0
        %2474 = vmatprep.subr.mxu0 0.0
        %2475 = vmatpush1.msra.mxu0 0.0
        %2476 = vmatprep.subr.mxu0 0.0
        %2477 = vmatpush1.msra.mxu0 0.0
        %2478 = vmatprep.subr.mxu0 0.0
        %2479 = vmatpush1.msra.mxu0 0.0
        %2480 = vmatprep.subr.mxu0 0.0
        %2481 = vmatpush1.msra.mxu0 0.0
        %2482 = vmatprep.subr.mxu0 0.0
        %2483 = vmatpush1.msra.mxu0 0.0
        %2484 = vmatprep.subr.mxu0 0.0
        %2485 = vmatpush1.msra.mxu0 0.0
        %2486 = vmatprep.subr.mxu0 0.0
        %2487 = vmatpush1.msra.mxu0 0.0
        %2488 = vmatprep.subr.mxu0 0.0
        %2489 = vmatpush1.msra.mxu0 0.0
        %2490 = vmatprep.subr.mxu0 0.0
        %2491 = vmatpush1.msra.mxu0 0.0
        %2492 = vmatprep.subr.mxu0 0.0
        %2493 = vmatpush1.msra.mxu0 0.0
        %2494 = vmatprep.subr.mxu0 0.0
        %2495 = vmatpush1.msra.mxu0 0.0
        %2496 = vmatprep.subr.mxu0 0.0
        %2497 = vmatpush1.msra.mxu0 0.0
        %2498 = vmatprep.subr.mxu0 0.0
        %2499 = vmatpush1.msra.mxu0 %v1824
        %2500 = vmatprep.subr.mxu0 0.0
        %2501 = vmatpush2.msra.mxu0 0.0
        %2502 = vmatprep.subr.mxu0 0.0
        %2503 = vmatpush2.msra.mxu0 0.0
        %2504 = vmatprep.subr.mxu0 0.0
        %2505 = vmatpush2.msra.mxu0 0.0
        %2506 = vmatprep.subr.mxu0 0.0
        %2507 = vmatpush2.msra.mxu0 0.0
        %2508 = vmatprep.subr.mxu0 0.0
        %2509 = vmatpush2.msra.mxu0 0.0
        %2510 = vmatprep.subr.mxu0 0.0
        %2511 = vmatpush2.msra.mxu0 0.0
        %2512 = vmatprep.subr.mxu0 0.0
        %2513 = vmatpush2.msra.mxu0 0.0
        %2514 = vmatprep.subr.mxu0 0.0
        %2515 = vmatpush2.msra.mxu0 0.0
        %2516 = vmatprep.subr.mxu0 0.0
        %2517 = vmatpush2.msra.mxu0 0.0
        %2518 = vmatprep.subr.mxu0 0.0
        %2519 = vmatpush2.msra.mxu0 0.0
        %2520 = vmatprep.subr.mxu0 0.0
        %2521 = vmatpush2.msra.mxu0 0.0
        %2522 = vmatprep.subr.mxu0 0.0
        %2523 = vmatpush2.msra.mxu0 0.0
        %2524 = vmatprep.subr.mxu0 0.0
        %2525 = vmatpush2.msra.mxu0 0.0
        %2526 = vmatprep.subr.mxu0 0.0
        %2527 = vmatpush2.msra.mxu0 0.0
        %2528 = vmatprep.subr.mxu0 0.0
        %2529 = vmatpush2.msra.mxu0 0.0
        %2530 = vmatprep.subr.mxu0 0.0
        %2531 = vmatpush2.msra.mxu0 0.0
        %2532 = vmatprep.mubr.f32.mxu0 0.0
        %2533 = vmatmul.mubr.f32.gmra.mxu0 %v2466
        %v2534 = vpop.f32.mrf.mxu0
        %v2535 = vadd.f32 0.0, %v2534
        %v2536 = vpop.f32.mrf.mxu0
        %2537 = vdwg.mxu0
        %v2538 = vadd.f32 %v2297, %v2535
        %2539 = vrot.lane.b32.xlu0 %v1742, 104
        %v2540 = vpop.permute.xlu0 %2539
        %2541 = vrot.lane.b32.xlu0 %v1819, 104
        %v2542 = vpop.permute.xlu0 %2541
        %v2543 = vsel %vm700, %v2540, 0
        %v2545 = vsel %vm700, %v2542, 0
        %2547 = vmatprep.subr.mxu0 0.0
        %2548 = vmatpush1.xpose.msra.mxu0 0.0
        %2549 = vmatprep.subr.mxu0 0.0
        %2550 = vmatpush1.xpose.msra.mxu0 0.0
        %2551 = vmatprep.subr.mxu0 0.0
        %2552 = vmatpush1.xpose.msra.mxu0 0.0
        %2553 = vmatprep.subr.mxu0 0.0
        %2554 = vmatpush1.xpose.msra.mxu0 0.0
        %2555 = vmatprep.subr.mxu0 0.0
        %2556 = vmatpush1.xpose.msra.mxu0 0.0
        %2557 = vmatprep.subr.mxu0 0.0
        %2558 = vmatpush1.xpose.msra.mxu0 0.0
        %2559 = vmatprep.subr.mxu0 0.0
        %2560 = vmatpush1.xpose.msra.mxu0 0.0
        %2561 = vmatprep.subr.mxu0 0.0
        %2562 = vmatpush1.xpose.msra.mxu0 0.0
        %2563 = vmatprep.subr.mxu0 0.0
        %2564 = vmatpush1.xpose.msra.mxu0 0.0
        %2565 = vmatprep.subr.mxu0 0.0
        %2566 = vmatpush1.xpose.msra.mxu0 0.0
        %2567 = vmatprep.subr.mxu0 0.0
        %2568 = vmatpush1.xpose.msra.mxu0 0.0
        %2569 = vmatprep.subr.mxu0 0.0
        %2570 = vmatpush1.xpose.msra.mxu0 0.0
        %2571 = vmatprep.subr.mxu0 0.0
        %2572 = vmatpush1.xpose.msra.mxu0 0.0
        %2573 = vmatprep.subr.mxu0 0.0
        %2574 = vmatpush1.xpose.msra.mxu0 0.0
        %2575 = vmatprep.subr.mxu0 0.0
        %2576 = vmatpush1.xpose.msra.mxu0 0.0
        %2577 = vmatprep.subr.mxu0 0.0
        %2578 = vmatpush1.xpose.msra.mxu0 %v2545
        %2579 = vmatprep.subr.mxu0 0.0
        %2580 = vmatpush2.xpose.msra.mxu0 0.0
        %2581 = vmatprep.subr.mxu0 0.0
        %2582 = vmatpush2.xpose.msra.mxu0 0.0
        %2583 = vmatprep.subr.mxu0 0.0
        %2584 = vmatpush2.xpose.msra.mxu0 0.0
        %2585 = vmatprep.subr.mxu0 0.0
        %2586 = vmatpush2.xpose.msra.mxu0 0.0
        %2587 = vmatprep.subr.mxu0 0.0
        %2588 = vmatpush2.xpose.msra.mxu0 0.0
        %2589 = vmatprep.subr.mxu0 0.0
        %2590 = vmatpush2.xpose.msra.mxu0 0.0
        %2591 = vmatprep.subr.mxu0 0.0
        %2592 = vmatpush2.xpose.msra.mxu0 0.0
        %2593 = vmatprep.subr.mxu0 0.0
        %2594 = vmatpush2.xpose.msra.mxu0 0.0
        %2595 = vmatprep.subr.mxu0 0.0
        %2596 = vmatpush2.xpose.msra.mxu0 0.0
        %2597 = vmatprep.subr.mxu0 0.0
        %2598 = vmatpush2.xpose.msra.mxu0 0.0
        %2599 = vmatprep.subr.mxu0 0.0
        %2600 = vmatpush2.xpose.msra.mxu0 0.0
        %2601 = vmatprep.subr.mxu0 0.0
        %2602 = vmatpush2.xpose.msra.mxu0 0.0
        %2603 = vmatprep.subr.mxu0 0.0
        %2604 = vmatpush2.xpose.msra.mxu0 0.0
        %2605 = vmatprep.subr.mxu0 0.0
        %2606 = vmatpush2.xpose.msra.mxu0 0.0
        %2607 = vmatprep.subr.mxu0 0.0
        %2608 = vmatpush2.xpose.msra.mxu0 0.0
        %2609 = vmatprep.subr.mxu0 0.0
        %2610 = vmatpush2.xpose.msra.mxu0 0.0
        %2611 = vmatprep.mubr.f32.mxu0 0.0
        %2612 = vmatmul.mubr.f32.gmra.mxu0 %v2543
        %v2613 = vpop.f32.mrf.mxu0
        %v2614 = vadd.f32 0.0, %v2613
        %v2615 = vpop.f32.mrf.mxu0
        %2616 = vdwg.mxu0
        %v2617 = vsel %vm700, %v2614, -inf
        %2618 = vmax.xlane.f32.xlu0 %v2617
        %v2619 = vpop.xlane.xlu0 %2618
        %v2620 = vsub.f32 %v2614, %v2619
        %v2621 = vmul.f32 %v2620, 1.442695
        %v2622 = vpow.pop %v2621
        %v2623 = vsel %vm700, %v2622, 0.0
        %2624 = vadd.xlane.f32.xlu0 %v2623
        %v2625 = vpop.xlane.xlu0 %2624
        %v2626 = vrcp.pop %v2625
        %v2627 = vmul.f32 %v2622, %v2626
        %2628 = vrot.lane.b32.xlu0 %v1819, 72
        %v2629 = vpop.permute.xlu0 %2628
        %v2632 = vsel %vm700, %v2627, 0
        %2634 = vmatprep.subr.mxu0 0.0
        %2635 = vmatpush1.msra.mxu0 0.0
        %2636 = vmatprep.subr.mxu0 0.0
        %2637 = vmatpush1.msra.mxu0 0.0
        %2638 = vmatprep.subr.mxu0 0.0
        %2639 = vmatpush1.msra.mxu0 0.0
        %2640 = vmatprep.subr.mxu0 0.0
        %2641 = vmatpush1.msra.mxu0 0.0
        %2642 = vmatprep.subr.mxu0 0.0
        %2643 = vmatpush1.msra.mxu0 0.0
        %2644 = vmatprep.subr.mxu0 0.0
        %2645 = vmatpush1.msra.mxu0 0.0
        %2646 = vmatprep.subr.mxu0 0.0
        %2647 = vmatpush1.msra.mxu0 0.0
        %2648 = vmatprep.subr.mxu0 0.0
        %2649 = vmatpush1.msra.mxu0 0.0
        %2650 = vmatprep.subr.mxu0 0.0
        %2651 = vmatpush1.msra.mxu0 0.0
        %2652 = vmatprep.subr.mxu0 0.0
        %2653 = vmatpush1.msra.mxu0 0.0
        %2654 = vmatprep.subr.mxu0 0.0
        %2655 = vmatpush1.msra.mxu0 0.0
        %2656 = vmatprep.subr.mxu0 0.0
        %2657 = vmatpush1.msra.mxu0 0.0
        %2658 = vmatprep.subr.mxu0 0.0
        %2659 = vmatpush1.msra.mxu0 0.0
        %2660 = vmatprep.subr.mxu0 0.0
        %2661 = vmatpush1.msra.mxu0 0.0
        %2662 = vmatprep.subr.mxu0 0.0
        %2663 = vmatpush1.msra.mxu0 0.0
        %2664 = vmatprep.subr.mxu0 0.0
        %2665 = vmatpush1.msra.mxu0 %v2629
        %2666 = vmatprep.subr.mxu0 0.0
        %2667 = vmatpush2.msra.mxu0 0.0
        %2668 = vmatprep.subr.mxu0 0.0
        %2669 = vmatpush2.msra.mxu0 0.0
        %2670 = vmatprep.subr.mxu0 0.0
        %2671 = vmatpush2.msra.mxu0 0.0
        %2672 = vmatprep.subr.mxu0 0.0
        %2673 = vmatpush2.msra.mxu0 0.0
        %2674 = vmatprep.subr.mxu0 0.0
        %2675 = vmatpush2.msra.mxu0 0.0
        %2676 = vmatprep.subr.mxu0 0.0
        %2677 = vmatpush2.msra.mxu0 0.0
        %2678 = vmatprep.subr.mxu0 0.0
        %2679 = vmatpush2.msra.mxu0 0.0
        %2680 = vmatprep.subr.mxu0 0.0
        %2681 = vmatpush2.msra.mxu0 0.0
        %2682 = vmatprep.subr.mxu0 0.0
        %2683 = vmatpush2.msra.mxu0 0.0
        %2684 = vmatprep.subr.mxu0 0.0
        %2685 = vmatpush2.msra.mxu0 0.0
        %2686 = vmatprep.subr.mxu0 0.0
        %2687 = vmatpush2.msra.mxu0 0.0
        %2688 = vmatprep.subr.mxu0 0.0
        %2689 = vmatpush2.msra.mxu0 0.0
        %2690 = vmatprep.subr.mxu0 0.0
        %2691 = vmatpush2.msra.mxu0 0.0
        %2692 = vmatprep.subr.mxu0 0.0
        %2693 = vmatpush2.msra.mxu0 0.0
        %2694 = vmatprep.subr.mxu0 0.0
        %2695 = vmatpush2.msra.mxu0 0.0
        %2696 = vmatprep.subr.mxu0 0.0
        %2697 = vmatpush2.msra.mxu0 0.0
        %2698 = vmatprep.mubr.f32.mxu0 0.0
        %2699 = vmatmul.mubr.f32.gmra.mxu0 %v2632
        %v2700 = vpop.f32.mrf.mxu0
        %v2701 = vadd.f32 0.0, %v2700
        %v2702 = vpop.f32.mrf.mxu0
        %2703 = vdwg.mxu0
        %v2705 = vsel %vm700, %v2701, 0
        %2707 = vmatprep.subr.mxu0 0.0
        %2708 = vmatpush1.msra.mxu0 0.0
        %2709 = vmatprep.subr.mxu0 0.0
        %2710 = vmatpush1.msra.mxu0 0.0
        %2711 = vmatprep.subr.mxu0 0.0
        %2712 = vmatpush1.msra.mxu0 0.0
        %2713 = vmatprep.subr.mxu0 0.0
        %2714 = vmatpush1.msra.mxu0 0.0
        %2715 = vmatprep.subr.mxu0 0.0
        %2716 = vmatpush1.msra.mxu0 0.0
        %2717 = vmatprep.subr.mxu0 0.0
        %2718 = vmatpush1.msra.mxu0 0.0
        %2719 = vmatprep.subr.mxu0 0.0
        %2720 = vmatpush1.msra.mxu0 0.0
        %2721 = vmatprep.subr.mxu0 0.0
        %2722 = vmatpush1.msra.mxu0 0.0
        %2723 = vmatprep.subr.mxu0 0.0
        %2724 = vmatpush1.msra.mxu0 0.0
        %2725 = vmatprep.subr.mxu0 0.0
        %2726 = vmatpush1.msra.mxu0 0.0
        %2727 = vmatprep.subr.mxu0 0.0
        %2728 = vmatpush1.msra.mxu0 0.0
        %2729 = vmatprep.subr.mxu0 0.0
        %2730 = vmatpush1.msra.mxu0 0.0
        %2731 = vmatprep.subr.mxu0 0.0
        %2732 = vmatpush1.msra.mxu0 0.0
        %2733 = vmatprep.subr.mxu0 0.0
        %2734 = vmatpush1.msra.mxu0 0.0
        %2735 = vmatprep.subr.mxu0 0.0
        %2736 = vmatpush1.msra.mxu0 0.0
        %2737 = vmatprep.subr.mxu0 0.0
        %2738 = vmatpush1.msra.mxu0 %v1825
        %2739 = vmatprep.subr.mxu0 0.0
        %2740 = vmatpush2.msra.mxu0 0.0
        %2741 = vmatprep.subr.mxu0 0.0
        %2742 = vmatpush2.msra.mxu0 0.0
        %2743 = vmatprep.subr.mxu0 0.0
        %2744 = vmatpush2.msra.mxu0 0.0
        %2745 = vmatprep.subr.mxu0 0.0
        %2746 = vmatpush2.msra.mxu0 0.0
        %2747 = vmatprep.subr.mxu0 0.0
        %2748 = vmatpush2.msra.mxu0 0.0
        %2749 = vmatprep.subr.mxu0 0.0
        %2750 = vmatpush2.msra.mxu0 0.0
        %2751 = vmatprep.subr.mxu0 0.0
        %2752 = vmatpush2.msra.mxu0 0.0
        %2753 = vmatprep.subr.mxu0 0.0
        %2754 = vmatpush2.msra.mxu0 0.0
        %2755 = vmatprep.subr.mxu0 0.0
        %2756 = vmatpush2.msra.mxu0 0.0
        %2757 = vmatprep.subr.mxu0 0.0
        %2758 = vmatpush2.msra.mxu0 0.0
        %2759 = vmatprep.subr.mxu0 0.0
        %2760 = vmatpush2.msra.mxu0 0.0
        %2761 = vmatprep.subr.mxu0 0.0
        %2762 = vmatpush2.msra.mxu0 0.0
        %2763 = vmatprep.subr.mxu0 0.0
        %2764 = vmatpush2.msra.mxu0 0.0
        %2765 = vmatprep.subr.mxu0 0.0
        %2766 = vmatpush2.msra.mxu0 0.0
        %2767 = vmatprep.subr.mxu0 0.0
        %2768 = vmatpush2.msra.mxu0 0.0
        %2769 = vmatprep.subr.mxu0 0.0
        %2770 = vmatpush2.msra.mxu0 0.0
        %2771 = vmatprep.mubr.f32.mxu0 0.0
        %2772 = vmatmul.mubr.f32.gmra.mxu0 %v2705
        %v2773 = vpop.f32.mrf.mxu0
        %v2774 = vadd.f32 0.0, %v2773
        %v2775 = vpop.f32.mrf.mxu0
        %2776 = vdwg.mxu0
        %v2777 = vadd.f32 %v2538, %v2774
        %v2778 = vadd.f32 %v1651, %v2777
        %v2779 = vld [vmem:[%s11] sm:$0x1]
        %v2780 = vmul.f32 %v2778, %v2778
        %v2781 = vsel %vm600, %v2780, 0.0
        %2782 = vadd.xlane.f32.xlu0 %v2781
        %v2783 = vpop.xlane.xlu0 %2782
        %v2784 = vmul.f32 %v2783, %v604
        %v2785 = vadd.f32 %v2784, 1e-06
        %v2786 = vrsqrt.pop %v2785
        %v2787 = vmul.f32 %v2778, %v2786
        %v2789 = vlaneseq
        %v2790 = vshrl.u32 %v2789, 7
        %v2791 = vsub.s32 0, %v2790
        %v2792 = vrot.slane %v2779, %v2791
        %v2794 = vmul.f32 %v2787, %v2792
        %v2795 = vld [vmem:[%s12] sm:$0xff]
        %v2796 = vld [vmem:[%s12 + $0x8] sm:$0xff]
        %v2797 = vld [vmem:[%s12 + $0x10] sm:$0xff]
        %v2798 = vld [vmem:[%s12 + $0x18] sm:$0xff]
        %v2800 = vsel %vm600, %v2794, 0
        %2802 = vmatprep.subr.mxu0 0.0
        %2803 = vmatpush1.msra.mxu0 0.0
        %2804 = vmatprep.subr.mxu0 0.0
        %2805 = vmatpush1.msra.mxu0 0.0
        %2806 = vmatprep.subr.mxu0 0.0
        %2807 = vmatpush1.msra.mxu0 0.0
        %2808 = vmatprep.subr.mxu0 0.0
        %2809 = vmatpush1.msra.mxu0 0.0
        %2810 = vmatprep.subr.mxu0 0.0
        %2811 = vmatpush1.msra.mxu0 0.0
        %2812 = vmatprep.subr.mxu0 0.0
        %2813 = vmatpush1.msra.mxu0 0.0
        %2814 = vmatprep.subr.mxu0 0.0
        %2815 = vmatpush1.msra.mxu0 0.0
        %2816 = vmatprep.subr.mxu0 0.0
        %2817 = vmatpush1.msra.mxu0 0.0
        %2818 = vmatprep.subr.mxu0 0.0
        %2819 = vmatpush1.msra.mxu0 0.0
        %2820 = vmatprep.subr.mxu0 0.0
        %2821 = vmatpush1.msra.mxu0 0.0
        %2822 = vmatprep.subr.mxu0 0.0
        %2823 = vmatpush1.msra.mxu0 0.0
        %2824 = vmatprep.subr.mxu0 0.0
        %2825 = vmatpush1.msra.mxu0 0.0
        %2826 = vmatprep.subr.mxu0 0.0
        %2827 = vmatpush1.msra.mxu0 %v2798
        %2828 = vmatprep.subr.mxu0 0.0
        %2829 = vmatpush1.msra.mxu0 %v2797
        %2830 = vmatprep.subr.mxu0 0.0
        %2831 = vmatpush1.msra.mxu0 %v2796
        %2832 = vmatprep.subr.mxu0 0.0
        %2833 = vmatpush1.msra.mxu0 %v2795
        %2834 = vmatprep.subr.mxu0 0.0
        %2835 = vmatpush2.msra.mxu0 0.0
        %2836 = vmatprep.subr.mxu0 0.0
        %2837 = vmatpush2.msra.mxu0 0.0
        %2838 = vmatprep.subr.mxu0 0.0
        %2839 = vmatpush2.msra.mxu0 0.0
        %2840 = vmatprep.subr.mxu0 0.0
        %2841 = vmatpush2.msra.mxu0 0.0
        %2842 = vmatprep.subr.mxu0 0.0
        %2843 = vmatpush2.msra.mxu0 0.0
        %2844 = vmatprep.subr.mxu0 0.0
        %2845 = vmatpush2.msra.mxu0 0.0
        %2846 = vmatprep.subr.mxu0 0.0
        %2847 = vmatpush2.msra.mxu0 0.0
        %2848 = vmatprep.subr.mxu0 0.0
        %2849 = vmatpush2.msra.mxu0 0.0
        %2850 = vmatprep.subr.mxu0 0.0
        %2851 = vmatpush2.msra.mxu0 0.0
        %2852 = vmatprep.subr.mxu0 0.0
        %2853 = vmatpush2.msra.mxu0 0.0
        %2854 = vmatprep.subr.mxu0 0.0
        %2855 = vmatpush2.msra.mxu0 0.0
        %2856 = vmatprep.subr.mxu0 0.0
        %2857 = vmatpush2.msra.mxu0 0.0
        %2858 = vmatprep.subr.mxu0 0.0
        %2859 = vmatpush2.msra.mxu0 0.0
        %2860 = vmatprep.subr.mxu0 0.0
        %2861 = vmatpush2.msra.mxu0 0.0
        %2862 = vmatprep.subr.mxu0 0.0
        %2863 = vmatpush2.msra.mxu0 0.0
        %2864 = vmatprep.subr.mxu0 0.0
        %2865 = vmatpush2.msra.mxu0 0.0
        %2866 = vmatprep.mubr.f32.mxu0 0.0
        %2867 = vmatmul.mubr.f32.gmra.mxu0 %v2800
        %v2868 = vpop.f32.mrf.mxu0
        %v2869 = vadd.f32 0.0, %v2868
        %v2870 = vpop.f32.mrf.mxu0
        %2871 = vdwg.mxu0
        %v2872 = vmax.f32 %v2869, 0.0
        %v2873 = vld [vmem:[%s13] sm:$0xff]
        %v2874 = vld [vmem:[%s13 + $0x8] sm:$0xff]
        %v2875 = vld [vmem:[%s13 + $0x10] sm:$0xff]
        %v2876 = vld [vmem:[%s13 + $0x18] sm:$0xff]
        %v2877 = vld [vmem:[%s13 + $0x20] sm:$0xff]
        %v2878 = vld [vmem:[%s13 + $0x28] sm:$0xff]
        %v2879 = vld [vmem:[%s13 + $0x30] sm:$0xff]
        %v2880 = vld [vmem:[%s13 + $0x38] sm:$0xff]
        %vm2881 = vcmask 523264
        %v2883 = vsel %vm2881, %v2872, 0
        %2885 = vmatprep.subr.mxu0 0.0
        %2886 = vmatpush1.msra.mxu0 0.0
        %2887 = vmatprep.subr.mxu0 0.0
        %2888 = vmatpush1.msra.mxu0 0.0
        %2889 = vmatprep.subr.mxu0 0.0
        %2890 = vmatpush1.msra.mxu0 0.0
        %2891 = vmatprep.subr.mxu0 0.0
        %2892 = vmatpush1.msra.mxu0 0.0
        %2893 = vmatprep.subr.mxu0 0.0
        %2894 = vmatpush1.msra.mxu0 0.0
        %2895 = vmatprep.subr.mxu0 0.0
        %2896 = vmatpush1.msra.mxu0 0.0
        %2897 = vmatprep.subr.mxu0 0.0
        %2898 = vmatpush1.msra.mxu0 0.0
        %2899 = vmatprep.subr.mxu0 0.0
        %2900 = vmatpush1.msra.mxu0 0.0
        %2901 = vmatprep.subr.mxu0 0.0
        %2902 = vmatpush1.msra.mxu0 %v2880
        %2903 = vmatprep.subr.mxu0 0.0
        %2904 = vmatpush1.msra.mxu0 %v2879
        %2905 = vmatprep.subr.mxu0 0.0
        %2906 = vmatpush1.msra.mxu0 %v2878
        %2907 = vmatprep.subr.mxu0 0.0
        %2908 = vmatpush1.msra.mxu0 %v2877
        %2909 = vmatprep.subr.mxu0 0.0
        %2910 = vmatpush1.msra.mxu0 %v2876
        %2911 = vmatprep.subr.mxu0 0.0
        %2912 = vmatpush1.msra.mxu0 %v2875
        %2913 = vmatprep.subr.mxu0 0.0
        %2914 = vmatpush1.msra.mxu0 %v2874
        %2915 = vmatprep.subr.mxu0 0.0
        %2916 = vmatpush1.msra.mxu0 %v2873
        %2917 = vmatprep.subr.mxu0 0.0
        %2918 = vmatpush2.msra.mxu0 0.0
        %2919 = vmatprep.subr.mxu0 0.0
        %2920 = vmatpush2.msra.mxu0 0.0
        %2921 = vmatprep.subr.mxu0 0.0
        %2922 = vmatpush2.msra.mxu0 0.0
        %2923 = vmatprep.subr.mxu0 0.0
        %2924 = vmatpush2.msra.mxu0 0.0
        %2925 = vmatprep.subr.mxu0 0.0
        %2926 = vmatpush2.msra.mxu0 0.0
        %2927 = vmatprep.subr.mxu0 0.0
        %2928 = vmatpush2.msra.mxu0 0.0
        %2929 = vmatprep.subr.mxu0 0.0
        %2930 = vmatpush2.msra.mxu0 0.0
        %2931 = vmatprep.subr.mxu0 0.0
        %2932 = vmatpush2.msra.mxu0 0.0
        %2933 = vmatprep.subr.mxu0 0.0
        %2934 = vmatpush2.msra.mxu0 0.0
        %2935 = vmatprep.subr.mxu0 0.0
        %2936 = vmatpush2.msra.mxu0 0.0
        %2937 = vmatprep.subr.mxu0 0.0
        %2938 = vmatpush2.msra.mxu0 0.0
        %2939 = vmatprep.subr.mxu0 0.0
        %2940 = vmatpush2.msra.mxu0 0.0
        %2941 = vmatprep.subr.mxu0 0.0
        %2942 = vmatpush2.msra.mxu0 0.0
        %2943 = vmatprep.subr.mxu0 0.0
        %2944 = vmatpush2.msra.mxu0 0.0
        %2945 = vmatprep.subr.mxu0 0.0
        %2946 = vmatpush2.msra.mxu0 0.0
        %2947 = vmatprep.subr.mxu0 0.0
        %2948 = vmatpush2.msra.mxu0 0.0
        %2949 = vmatprep.mubr.f32.mxu0 0.0
        %2950 = vmatmul.mubr.f32.gmra.mxu0 %v2883
        %v2951 = vpop.f32.mrf.mxu0
        %v2952 = vadd.f32 0.0, %v2951
        %v2953 = vpop.f32.mrf.mxu0
        %2954 = vdwg.mxu0
        %v2955 = vadd.f32 %v2778, %v2952
        %s2956 = scalar_lea.vmem %s4, 1
        %v2957 = vld [vmem:[%s2956] sm:$0x1]
        %v2958 = vmul.f32 %v2955, %v2955
        %v2959 = vsel %vm600, %v2958, 0.0
        %2960 = vadd.xlane.f32.xlu0 %v2959
        %v2961 = vpop.xlane.xlu0 %2960
        %v2962 = vmul.f32 %v2961, %v604
        %v2963 = vadd.f32 %v2962, 1e-06
        %v2964 = vrsqrt.pop %v2963
        %v2965 = vmul.f32 %v2955, %v2964
        %v2967 = vlaneseq
        %v2968 = vshrl.u32 %v2967, 7
        %v2969 = vsub.s32 0, %v2968
        %v2970 = vrot.slane %v2957, %v2969
        %v2972 = vmul.f32 %v2965, %v2970
        %s2973 = scalar_lea.vmem %s5, 32
        %v2974 = vld [vmem:[%s2973] sm:$0xff]
        %v2975 = vld [vmem:[%s2973 + $0x8] sm:$0xff]
        %v2976 = vld [vmem:[%s2973 + $0x10] sm:$0xff]
        %v2977 = vld [vmem:[%s2973 + $0x18] sm:$0xff]
        %v2979 = vsel %vm600, %v2972, 0
        %2981 = vmatprep.subr.mxu0 0.0
        %2982 = vmatpush1.msra.mxu0 0.0
        %2983 = vmatprep.subr.mxu0 0.0
        %2984 = vmatpush1.msra.mxu0 0.0
        %2985 = vmatprep.subr.mxu0 0.0
        %2986 = vmatpush1.msra.mxu0 0.0
        %2987 = vmatprep.subr.mxu0 0.0
        %2988 = vmatpush1.msra.mxu0 0.0
        %2989 = vmatprep.subr.mxu0 0.0
        %2990 = vmatpush1.msra.mxu0 0.0
        %2991 = vmatprep.subr.mxu0 0.0
        %2992 = vmatpush1.msra.mxu0 0.0
        %2993 = vmatprep.subr.mxu0 0.0
        %2994 = vmatpush1.msra.mxu0 0.0
        %2995 = vmatprep.subr.mxu0 0.0
        %2996 = vmatpush1.msra.mxu0 0.0
        %2997 = vmatprep.subr.mxu0 0.0
        %2998 = vmatpush1.msra.mxu0 0.0
        %2999 = vmatprep.subr.mxu0 0.0
        %3000 = vmatpush1.msra.mxu0 0.0
        %3001 = vmatprep.subr.mxu0 0.0
        %3002 = vmatpush1.msra.mxu0 0.0
        %3003 = vmatprep.subr.mxu0 0.0
        %3004 = vmatpush1.msra.mxu0 0.0
        %3005 = vmatprep.subr.mxu0 0.0
        %3006 = vmatpush1.msra.mxu0 %v2977
        %3007 = vmatprep.subr.mxu0 0.0
        %3008 = vmatpush1.msra.mxu0 %v2976
        %3009 = vmatprep.subr.mxu0 0.0
        %3010 = vmatpush1.msra.mxu0 %v2975
        %3011 = vmatprep.subr.mxu0 0.0
        %3012 = vmatpush1.msra.mxu0 %v2974
        %3013 = vmatprep.subr.mxu0 0.0
        %3014 = vmatpush2.msra.mxu0 0.0
        %3015 = vmatprep.subr.mxu0 0.0
        %3016 = vmatpush2.msra.mxu0 0.0
        %3017 = vmatprep.subr.mxu0 0.0
        %3018 = vmatpush2.msra.mxu0 0.0
        %3019 = vmatprep.subr.mxu0 0.0
        %3020 = vmatpush2.msra.mxu0 0.0
        %3021 = vmatprep.subr.mxu0 0.0
        %3022 = vmatpush2.msra.mxu0 0.0
        %3023 = vmatprep.subr.mxu0 0.0
        %3024 = vmatpush2.msra.mxu0 0.0
        %3025 = vmatprep.subr.mxu0 0.0
        %3026 = vmatpush2.msra.mxu0 0.0
        %3027 = vmatprep.subr.mxu0 0.0
        %3028 = vmatpush2.msra.mxu0 0.0
        %3029 = vmatprep.subr.mxu0 0.0
        %3030 = vmatpush2.msra.mxu0 0.0
        %3031 = vmatprep.subr.mxu0 0.0
        %3032 = vmatpush2.msra.mxu0 0.0
        %3033 = vmatprep.subr.mxu0 0.0
        %3034 = vmatpush2.msra.mxu0 0.0
        %3035 = vmatprep.subr.mxu0 0.0
        %3036 = vmatpush2.msra.mxu0 0.0
        %3037 = vmatprep.subr.mxu0 0.0
        %3038 = vmatpush2.msra.mxu0 0.0
        %3039 = vmatprep.subr.mxu0 0.0
        %3040 = vmatpush2.msra.mxu0 0.0
        %3041 = vmatprep.subr.mxu0 0.0
        %3042 = vmatpush2.msra.mxu0 0.0
        %3043 = vmatprep.subr.mxu0 0.0
        %3044 = vmatpush2.msra.mxu0 0.0
        %3045 = vmatprep.mubr.f32.mxu0 0.0
        %3046 = vmatmul.mubr.f32.gmra.mxu0 %v2979
        %v3047 = vpop.f32.mrf.mxu0
        %v3048 = vadd.f32 0.0, %v3047
        %v3049 = vpop.f32.mrf.mxu0
        %3050 = vdwg.mxu0
        %s3051 = scalar_lea.vmem %s6, 32
        %v3052 = vld [vmem:[%s3051] sm:$0xff]
        %v3053 = vld [vmem:[%s3051 + $0x8] sm:$0xff]
        %v3054 = vld [vmem:[%s3051 + $0x10] sm:$0xff]
        %v3055 = vld [vmem:[%s3051 + $0x18] sm:$0xff]
        %3057 = vrot.lane.b32.xlu0 %v3048, 96
        %v3058 = vpop.permute.xlu0 %3057
        %v3059 = vsel %vm700, %v3048, 0
        %v3061 = vsel %vm700, %v3058, 0
        %3063 = vmatprep.subr.mxu0 0.0
        %3064 = vmatpush1.xpose.msra.mxu0 0.0
        %3065 = vmatprep.subr.mxu0 0.0
        %3066 = vmatpush1.xpose.msra.mxu0 0.0
        %3067 = vmatprep.subr.mxu0 0.0
        %3068 = vmatpush1.xpose.msra.mxu0 0.0
        %3069 = vmatprep.subr.mxu0 0.0
        %3070 = vmatpush1.xpose.msra.mxu0 0.0
        %3071 = vmatprep.subr.mxu0 0.0
        %3072 = vmatpush1.xpose.msra.mxu0 0.0
        %3073 = vmatprep.subr.mxu0 0.0
        %3074 = vmatpush1.xpose.msra.mxu0 0.0
        %3075 = vmatprep.subr.mxu0 0.0
        %3076 = vmatpush1.xpose.msra.mxu0 0.0
        %3077 = vmatprep.subr.mxu0 0.0
        %3078 = vmatpush1.xpose.msra.mxu0 0.0
        %3079 = vmatprep.subr.mxu0 0.0
        %3080 = vmatpush1.xpose.msra.mxu0 0.0
        %3081 = vmatprep.subr.mxu0 0.0
        %3082 = vmatpush1.xpose.msra.mxu0 0.0
        %3083 = vmatprep.subr.mxu0 0.0
        %3084 = vmatpush1.xpose.msra.mxu0 0.0
        %3085 = vmatprep.subr.mxu0 0.0
        %3086 = vmatpush1.xpose.msra.mxu0 0.0
        %3087 = vmatprep.subr.mxu0 0.0
        %3088 = vmatpush1.xpose.msra.mxu0 0.0
        %3089 = vmatprep.subr.mxu0 0.0
        %3090 = vmatpush1.xpose.msra.mxu0 0.0
        %3091 = vmatprep.subr.mxu0 0.0
        %3092 = vmatpush1.xpose.msra.mxu0 0.0
        %3093 = vmatprep.subr.mxu0 0.0
        %3094 = vmatpush1.xpose.msra.mxu0 %v3061
        %3095 = vmatprep.subr.mxu0 0.0
        %3096 = vmatpush2.xpose.msra.mxu0 0.0
        %3097 = vmatprep.subr.mxu0 0.0
        %3098 = vmatpush2.xpose.msra.mxu0 0.0
        %3099 = vmatprep.subr.mxu0 0.0
        %3100 = vmatpush2.xpose.msra.mxu0 0.0
        %3101 = vmatprep.subr.mxu0 0.0
        %3102 = vmatpush2.xpose.msra.mxu0 0.0
        %3103 = vmatprep.subr.mxu0 0.0
        %3104 = vmatpush2.xpose.msra.mxu0 0.0
        %3105 = vmatprep.subr.mxu0 0.0
        %3106 = vmatpush2.xpose.msra.mxu0 0.0
        %3107 = vmatprep.subr.mxu0 0.0
        %3108 = vmatpush2.xpose.msra.mxu0 0.0
        %3109 = vmatprep.subr.mxu0 0.0
        %3110 = vmatpush2.xpose.msra.mxu0 0.0
        %3111 = vmatprep.subr.mxu0 0.0
        %3112 = vmatpush2.xpose.msra.mxu0 0.0
        %3113 = vmatprep.subr.mxu0 0.0
        %3114 = vmatpush2.xpose.msra.mxu0 0.0
        %3115 = vmatprep.subr.mxu0 0.0
        %3116 = vmatpush2.xpose.msra.mxu0 0.0
        %3117 = vmatprep.subr.mxu0 0.0
        %3118 = vmatpush2.xpose.msra.mxu0 0.0
        %3119 = vmatprep.subr.mxu0 0.0
        %3120 = vmatpush2.xpose.msra.mxu0 0.0
        %3121 = vmatprep.subr.mxu0 0.0
        %3122 = vmatpush2.xpose.msra.mxu0 0.0
        %3123 = vmatprep.subr.mxu0 0.0
        %3124 = vmatpush2.xpose.msra.mxu0 0.0
        %3125 = vmatprep.subr.mxu0 0.0
        %3126 = vmatpush2.xpose.msra.mxu0 0.0
        %3127 = vmatprep.mubr.f32.mxu0 0.0
        %3128 = vmatmul.mubr.f32.gmra.mxu0 %v3059
        %v3129 = vpop.f32.mrf.mxu0
        %v3130 = vadd.f32 %v591, %v3129
        %v3131 = vpop.f32.mrf.mxu0
        %3132 = vdwg.mxu0
        %v3133 = vsel %vm700, %v3130, -inf
        %3134 = vmax.xlane.f32.xlu0 %v3133
        %v3135 = vpop.xlane.xlu0 %3134
        %v3136 = vsub.f32 %v3130, %v3135
        %v3137 = vmul.f32 %v3136, 1.442695
        %v3138 = vpow.pop %v3137
        %v3139 = vsel %vm700, %v3138, 0.0
        %3140 = vadd.xlane.f32.xlu0 %v3139
        %v3141 = vpop.xlane.xlu0 %3140
        %v3142 = vrcp.pop %v3141
        %v3143 = vmul.f32 %v3138, %v3142
        %3144 = vrot.lane.b32.xlu0 %v3048, 64
        %v3145 = vpop.permute.xlu0 %3144
        %v3148 = vsel %vm700, %v3143, 0
        %3150 = vmatprep.subr.mxu0 0.0
        %3151 = vmatpush1.msra.mxu0 0.0
        %3152 = vmatprep.subr.mxu0 0.0
        %3153 = vmatpush1.msra.mxu0 0.0
        %3154 = vmatprep.subr.mxu0 0.0
        %3155 = vmatpush1.msra.mxu0 0.0
        %3156 = vmatprep.subr.mxu0 0.0
        %3157 = vmatpush1.msra.mxu0 0.0
        %3158 = vmatprep.subr.mxu0 0.0
        %3159 = vmatpush1.msra.mxu0 0.0
        %3160 = vmatprep.subr.mxu0 0.0
        %3161 = vmatpush1.msra.mxu0 0.0
        %3162 = vmatprep.subr.mxu0 0.0
        %3163 = vmatpush1.msra.mxu0 0.0
        %3164 = vmatprep.subr.mxu0 0.0
        %3165 = vmatpush1.msra.mxu0 0.0
        %3166 = vmatprep.subr.mxu0 0.0
        %3167 = vmatpush1.msra.mxu0 0.0
        %3168 = vmatprep.subr.mxu0 0.0
        %3169 = vmatpush1.msra.mxu0 0.0
        %3170 = vmatprep.subr.mxu0 0.0
        %3171 = vmatpush1.msra.mxu0 0.0
        %3172 = vmatprep.subr.mxu0 0.0
        %3173 = vmatpush1.msra.mxu0 0.0
        %3174 = vmatprep.subr.mxu0 0.0
        %3175 = vmatpush1.msra.mxu0 0.0
        %3176 = vmatprep.subr.mxu0 0.0
        %3177 = vmatpush1.msra.mxu0 0.0
        %3178 = vmatprep.subr.mxu0 0.0
        %3179 = vmatpush1.msra.mxu0 0.0
        %3180 = vmatprep.subr.mxu0 0.0
        %3181 = vmatpush1.msra.mxu0 %v3145
        %3182 = vmatprep.subr.mxu0 0.0
        %3183 = vmatpush2.msra.mxu0 0.0
        %3184 = vmatprep.subr.mxu0 0.0
        %3185 = vmatpush2.msra.mxu0 0.0
        %3186 = vmatprep.subr.mxu0 0.0
        %3187 = vmatpush2.msra.mxu0 0.0
        %3188 = vmatprep.subr.mxu0 0.0
        %3189 = vmatpush2.msra.mxu0 0.0
        %3190 = vmatprep.subr.mxu0 0.0
        %3191 = vmatpush2.msra.mxu0 0.0
        %3192 = vmatprep.subr.mxu0 0.0
        %3193 = vmatpush2.msra.mxu0 0.0
        %3194 = vmatprep.subr.mxu0 0.0
        %3195 = vmatpush2.msra.mxu0 0.0
        %3196 = vmatprep.subr.mxu0 0.0
        %3197 = vmatpush2.msra.mxu0 0.0
        %3198 = vmatprep.subr.mxu0 0.0
        %3199 = vmatpush2.msra.mxu0 0.0
        %3200 = vmatprep.subr.mxu0 0.0
        %3201 = vmatpush2.msra.mxu0 0.0
        %3202 = vmatprep.subr.mxu0 0.0
        %3203 = vmatpush2.msra.mxu0 0.0
        %3204 = vmatprep.subr.mxu0 0.0
        %3205 = vmatpush2.msra.mxu0 0.0
        %3206 = vmatprep.subr.mxu0 0.0
        %3207 = vmatpush2.msra.mxu0 0.0
        %3208 = vmatprep.subr.mxu0 0.0
        %3209 = vmatpush2.msra.mxu0 0.0
        %3210 = vmatprep.subr.mxu0 0.0
        %3211 = vmatpush2.msra.mxu0 0.0
        %3212 = vmatprep.subr.mxu0 0.0
        %3213 = vmatpush2.msra.mxu0 0.0
        %3214 = vmatprep.mubr.f32.mxu0 0.0
        %3215 = vmatmul.mubr.f32.gmra.mxu0 %v3148
        %v3216 = vpop.f32.mrf.mxu0
        %v3217 = vadd.f32 0.0, %v3216
        %v3218 = vpop.f32.mrf.mxu0
        %3219 = vdwg.mxu0
        %3220 = vrot.lane.b32.xlu0 %v3048, 120
        %v3221 = vpop.permute.xlu0 %3220
        %3222 = vrot.lane.b32.xlu0 %v3048, 88
        %v3223 = vpop.permute.xlu0 %3222
        %v3224 = vsel %vm700, %v3221, 0
        %v3226 = vsel %vm700, %v3223, 0
        %3228 = vmatprep.subr.mxu0 0.0
        %3229 = vmatpush1.xpose.msra.mxu0 0.0
        %3230 = vmatprep.subr.mxu0 0.0
        %3231 = vmatpush1.xpose.msra.mxu0 0.0
        %3232 = vmatprep.subr.mxu0 0.0
        %3233 = vmatpush1.xpose.msra.mxu0 0.0
        %3234 = vmatprep.subr.mxu0 0.0
        %3235 = vmatpush1.xpose.msra.mxu0 0.0
        %3236 = vmatprep.subr.mxu0 0.0
        %3237 = vmatpush1.xpose.msra.mxu0 0.0
        %3238 = vmatprep.subr.mxu0 0.0
        %3239 = vmatpush1.xpose.msra.mxu0 0.0
        %3240 = vmatprep.subr.mxu0 0.0
        %3241 = vmatpush1.xpose.msra.mxu0 0.0
        %3242 = vmatprep.subr.mxu0 0.0
        %3243 = vmatpush1.xpose.msra.mxu0 0.0
        %3244 = vmatprep.subr.mxu0 0.0
        %3245 = vmatpush1.xpose.msra.mxu0 0.0
        %3246 = vmatprep.subr.mxu0 0.0
        %3247 = vmatpush1.xpose.msra.mxu0 0.0
        %3248 = vmatprep.subr.mxu0 0.0
        %3249 = vmatpush1.xpose.msra.mxu0 0.0
        %3250 = vmatprep.subr.mxu0 0.0
        %3251 = vmatpush1.xpose.msra.mxu0 0.0
        %3252 = vmatprep.subr.mxu0 0.0
        %3253 = vmatpush1.xpose.msra.mxu0 0.0
        %3254 = vmatprep.subr.mxu0 0.0
        %3255 = vmatpush1.xpose.msra.mxu0 0.0
        %3256 = vmatprep.subr.mxu0 0.0
        %3257 = vmatpush1.xpose.msra.mxu0 0.0
        %3258 = vmatprep.subr.mxu0 0.0
        %3259 = vmatpush1.xpose.msra.mxu0 %v3226
        %3260 = vmatprep.subr.mxu0 0.0
        %3261 = vmatpush2.xpose.msra.mxu0 0.0
        %3262 = vmatprep.subr.mxu0 0.0
        %3263 = vmatpush2.xpose.msra.mxu0 0.0
        %3264 = vmatprep.subr.mxu0 0.0
        %3265 = vmatpush2.xpose.msra.mxu0 0.0
        %3266 = vmatprep.subr.mxu0 0.0
        %3267 = vmatpush2.xpose.msra.mxu0 0.0
        %3268 = vmatprep.subr.mxu0 0.0
        %3269 = vmatpush2.xpose.msra.mxu0 0.0
        %3270 = vmatprep.subr.mxu0 0.0
        %3271 = vmatpush2.xpose.msra.mxu0 0.0
        %3272 = vmatprep.subr.mxu0 0.0
        %3273 = vmatpush2.xpose.msra.mxu0 0.0
        %3274 = vmatprep.subr.mxu0 0.0
        %3275 = vmatpush2.xpose.msra.mxu0 0.0
        %3276 = vmatprep.subr.mxu0 0.0
        %3277 = vmatpush2.xpose.msra.mxu0 0.0
        %3278 = vmatprep.subr.mxu0 0.0
        %3279 = vmatpush2.xpose.msra.mxu0 0.0
        %3280 = vmatprep.subr.mxu0 0.0
        %3281 = vmatpush2.xpose.msra.mxu0 0.0
        %3282 = vmatprep.subr.mxu0 0.0
        %3283 = vmatpush2.xpose.msra.mxu0 0.0
        %3284 = vmatprep.subr.mxu0 0.0
        %3285 = vmatpush2.xpose.msra.mxu0 0.0
        %3286 = vmatprep.subr.mxu0 0.0
        %3287 = vmatpush2.xpose.msra.mxu0 0.0
        %3288 = vmatprep.subr.mxu0 0.0
        %3289 = vmatpush2.xpose.msra.mxu0 0.0
        %3290 = vmatprep.subr.mxu0 0.0
        %3291 = vmatpush2.xpose.msra.mxu0 0.0
        %3292 = vmatprep.mubr.f32.mxu0 0.0
        %3293 = vmatmul.mubr.f32.gmra.mxu0 %v3224
        %v3294 = vpop.f32.mrf.mxu0
        %v3295 = vadd.f32 %v593, %v3294
        %v3296 = vpop.f32.mrf.mxu0
        %3297 = vdwg.mxu0
        %v3298 = vsel %vm700, %v3295, -inf
        %3299 = vmax.xlane.f32.xlu0 %v3298
        %v3300 = vpop.xlane.xlu0 %3299
        %v3301 = vsub.f32 %v3295, %v3300
        %v3302 = vmul.f32 %v3301, 1.442695
        %v3303 = vpow.pop %v3302
        %v3304 = vsel %vm700, %v3303, 0.0
        %3305 = vadd.xlane.f32.xlu0 %v3304
        %v3306 = vpop.xlane.xlu0 %3305
        %v3307 = vrcp.pop %v3306
        %v3308 = vmul.f32 %v3303, %v3307
        %3309 = vrot.lane.b32.xlu0 %v3048, 56
        %v3310 = vpop.permute.xlu0 %3309
        %v3313 = vsel %vm700, %v3308, 0
        %3315 = vmatprep.subr.mxu0 0.0
        %3316 = vmatpush1.msra.mxu0 0.0
        %3317 = vmatprep.subr.mxu0 0.0
        %3318 = vmatpush1.msra.mxu0 0.0
        %3319 = vmatprep.subr.mxu0 0.0
        %3320 = vmatpush1.msra.mxu0 0.0
        %3321 = vmatprep.subr.mxu0 0.0
        %3322 = vmatpush1.msra.mxu0 0.0
        %3323 = vmatprep.subr.mxu0 0.0
        %3324 = vmatpush1.msra.mxu0 0.0
        %3325 = vmatprep.subr.mxu0 0.0
        %3326 = vmatpush1.msra.mxu0 0.0
        %3327 = vmatprep.subr.mxu0 0.0
        %3328 = vmatpush1.msra.mxu0 0.0
        %3329 = vmatprep.subr.mxu0 0.0
        %3330 = vmatpush1.msra.mxu0 0.0
        %3331 = vmatprep.subr.mxu0 0.0
        %3332 = vmatpush1.msra.mxu0 0.0
        %3333 = vmatprep.subr.mxu0 0.0
        %3334 = vmatpush1.msra.mxu0 0.0
        %3335 = vmatprep.subr.mxu0 0.0
        %3336 = vmatpush1.msra.mxu0 0.0
        %3337 = vmatprep.subr.mxu0 0.0
        %3338 = vmatpush1.msra.mxu0 0.0
        %3339 = vmatprep.subr.mxu0 0.0
        %3340 = vmatpush1.msra.mxu0 0.0
        %3341 = vmatprep.subr.mxu0 0.0
        %3342 = vmatpush1.msra.mxu0 0.0
        %3343 = vmatprep.subr.mxu0 0.0
        %3344 = vmatpush1.msra.mxu0 0.0
        %3345 = vmatprep.subr.mxu0 0.0
        %3346 = vmatpush1.msra.mxu0 %v3310
        %3347 = vmatprep.subr.mxu0 0.0
        %3348 = vmatpush2.msra.mxu0 0.0
        %3349 = vmatprep.subr.mxu0 0.0
        %3350 = vmatpush2.msra.mxu0 0.0
        %3351 = vmatprep.subr.mxu0 0.0
        %3352 = vmatpush2.msra.mxu0 0.0
        %3353 = vmatprep.subr.mxu0 0.0
        %3354 = vmatpush2.msra.mxu0 0.0
        %3355 = vmatprep.subr.mxu0 0.0
        %3356 = vmatpush2.msra.mxu0 0.0
        %3357 = vmatprep.subr.mxu0 0.0
        %3358 = vmatpush2.msra.mxu0 0.0
        %3359 = vmatprep.subr.mxu0 0.0
        %3360 = vmatpush2.msra.mxu0 0.0
        %3361 = vmatprep.subr.mxu0 0.0
        %3362 = vmatpush2.msra.mxu0 0.0
        %3363 = vmatprep.subr.mxu0 0.0
        %3364 = vmatpush2.msra.mxu0 0.0
        %3365 = vmatprep.subr.mxu0 0.0
        %3366 = vmatpush2.msra.mxu0 0.0
        %3367 = vmatprep.subr.mxu0 0.0
        %3368 = vmatpush2.msra.mxu0 0.0
        %3369 = vmatprep.subr.mxu0 0.0
        %3370 = vmatpush2.msra.mxu0 0.0
        %3371 = vmatprep.subr.mxu0 0.0
        %3372 = vmatpush2.msra.mxu0 0.0
        %3373 = vmatprep.subr.mxu0 0.0
        %3374 = vmatpush2.msra.mxu0 0.0
        %3375 = vmatprep.subr.mxu0 0.0
        %3376 = vmatpush2.msra.mxu0 0.0
        %3377 = vmatprep.subr.mxu0 0.0
        %3378 = vmatpush2.msra.mxu0 0.0
        %3379 = vmatprep.mubr.f32.mxu0 0.0
        %3380 = vmatmul.mubr.f32.gmra.mxu0 %v3313
        %v3381 = vpop.f32.mrf.mxu0
        %v3382 = vadd.f32 0.0, %v3381
        %v3383 = vpop.f32.mrf.mxu0
        %3384 = vdwg.mxu0
        %v3386 = vsel %vm700, %v3382, 0
        %3388 = vmatprep.subr.mxu0 0.0
        %3389 = vmatpush1.msra.mxu0 0.0
        %3390 = vmatprep.subr.mxu0 0.0
        %3391 = vmatpush1.msra.mxu0 0.0
        %3392 = vmatprep.subr.mxu0 0.0
        %3393 = vmatpush1.msra.mxu0 0.0
        %3394 = vmatprep.subr.mxu0 0.0
        %3395 = vmatpush1.msra.mxu0 0.0
        %3396 = vmatprep.subr.mxu0 0.0
        %3397 = vmatpush1.msra.mxu0 0.0
        %3398 = vmatprep.subr.mxu0 0.0
        %3399 = vmatpush1.msra.mxu0 0.0
        %3400 = vmatprep.subr.mxu0 0.0
        %3401 = vmatpush1.msra.mxu0 0.0
        %3402 = vmatprep.subr.mxu0 0.0
        %3403 = vmatpush1.msra.mxu0 0.0
        %3404 = vmatprep.subr.mxu0 0.0
        %3405 = vmatpush1.msra.mxu0 0.0
        %3406 = vmatprep.subr.mxu0 0.0
        %3407 = vmatpush1.msra.mxu0 0.0
        %3408 = vmatprep.subr.mxu0 0.0
        %3409 = vmatpush1.msra.mxu0 0.0
        %3410 = vmatprep.subr.mxu0 0.0
        %3411 = vmatpush1.msra.mxu0 0.0
        %3412 = vmatprep.subr.mxu0 0.0
        %3413 = vmatpush1.msra.mxu0 0.0
        %3414 = vmatprep.subr.mxu0 0.0
        %3415 = vmatpush1.msra.mxu0 0.0
        %3416 = vmatprep.subr.mxu0 0.0
        %3417 = vmatpush1.msra.mxu0 0.0
        %3418 = vmatprep.subr.mxu0 0.0
        %3419 = vmatpush1.msra.mxu0 %v3053
        %3420 = vmatprep.subr.mxu0 0.0
        %3421 = vmatpush2.msra.mxu0 0.0
        %3422 = vmatprep.subr.mxu0 0.0
        %3423 = vmatpush2.msra.mxu0 0.0
        %3424 = vmatprep.subr.mxu0 0.0
        %3425 = vmatpush2.msra.mxu0 0.0
        %3426 = vmatprep.subr.mxu0 0.0
        %3427 = vmatpush2.msra.mxu0 0.0
        %3428 = vmatprep.subr.mxu0 0.0
        %3429 = vmatpush2.msra.mxu0 0.0
        %3430 = vmatprep.subr.mxu0 0.0
        %3431 = vmatpush2.msra.mxu0 0.0
        %3432 = vmatprep.subr.mxu0 0.0
        %3433 = vmatpush2.msra.mxu0 0.0
        %3434 = vmatprep.subr.mxu0 0.0
        %3435 = vmatpush2.msra.mxu0 0.0
        %3436 = vmatprep.subr.mxu0 0.0
        %3437 = vmatpush2.msra.mxu0 0.0
        %3438 = vmatprep.subr.mxu0 0.0
        %3439 = vmatpush2.msra.mxu0 0.0
        %3440 = vmatprep.subr.mxu0 0.0
        %3441 = vmatpush2.msra.mxu0 0.0
        %3442 = vmatprep.subr.mxu0 0.0
        %3443 = vmatpush2.msra.mxu0 0.0
        %3444 = vmatprep.subr.mxu0 0.0
        %3445 = vmatpush2.msra.mxu0 0.0
        %3446 = vmatprep.subr.mxu0 0.0
        %3447 = vmatpush2.msra.mxu0 0.0
        %3448 = vmatprep.subr.mxu0 0.0
        %3449 = vmatpush2.msra.mxu0 0.0
        %3450 = vmatprep.subr.mxu0 0.0
        %3451 = vmatpush2.msra.mxu0 0.0
        %3452 = vmatprep.mubr.f32.mxu0 0.0
        %3453 = vmatmul.mubr.f32.gmra.mxu0 %v3386
        %v3454 = vpop.f32.mrf.mxu0
        %v3455 = vadd.f32 0.0, %v3454
        %v3456 = vpop.f32.mrf.mxu0
        %3457 = vdwg.mxu0
        %v3459 = vsel %vm700, %v3217, 0
        %3461 = vmatprep.subr.mxu0 0.0
        %3462 = vmatpush1.msra.mxu0 0.0
        %3463 = vmatprep.subr.mxu0 0.0
        %3464 = vmatpush1.msra.mxu0 0.0
        %3465 = vmatprep.subr.mxu0 0.0
        %3466 = vmatpush1.msra.mxu0 0.0
        %3467 = vmatprep.subr.mxu0 0.0
        %3468 = vmatpush1.msra.mxu0 0.0
        %3469 = vmatprep.subr.mxu0 0.0
        %3470 = vmatpush1.msra.mxu0 0.0
        %3471 = vmatprep.subr.mxu0 0.0
        %3472 = vmatpush1.msra.mxu0 0.0
        %3473 = vmatprep.subr.mxu0 0.0
        %3474 = vmatpush1.msra.mxu0 0.0
        %3475 = vmatprep.subr.mxu0 0.0
        %3476 = vmatpush1.msra.mxu0 0.0
        %3477 = vmatprep.subr.mxu0 0.0
        %3478 = vmatpush1.msra.mxu0 0.0
        %3479 = vmatprep.subr.mxu0 0.0
        %3480 = vmatpush1.msra.mxu0 0.0
        %3481 = vmatprep.subr.mxu0 0.0
        %3482 = vmatpush1.msra.mxu0 0.0
        %3483 = vmatprep.subr.mxu0 0.0
        %3484 = vmatpush1.msra.mxu0 0.0
        %3485 = vmatprep.subr.mxu0 0.0
        %3486 = vmatpush1.msra.mxu0 0.0
        %3487 = vmatprep.subr.mxu0 0.0
        %3488 = vmatpush1.msra.mxu0 0.0
        %3489 = vmatprep.subr.mxu0 0.0
        %3490 = vmatpush1.msra.mxu0 0.0
        %3491 = vmatprep.subr.mxu0 0.0
        %3492 = vmatpush1.msra.mxu0 %v3052
        %3493 = vmatprep.subr.mxu0 0.0
        %3494 = vmatpush2.msra.mxu0 0.0
        %3495 = vmatprep.subr.mxu0 0.0
        %3496 = vmatpush2.msra.mxu0 0.0
        %3497 = vmatprep.subr.mxu0 0.0
        %3498 = vmatpush2.msra.mxu0 0.0
        %3499 = vmatprep.subr.mxu0 0.0
        %3500 = vmatpush2.msra.mxu0 0.0
        %3501 = vmatprep.subr.mxu0 0.0
        %3502 = vmatpush2.msra.mxu0 0.0
        %3503 = vmatprep.subr.mxu0 0.0
        %3504 = vmatpush2.msra.mxu0 0.0
        %3505 = vmatprep.subr.mxu0 0.0
        %3506 = vmatpush2.msra.mxu0 0.0
        %3507 = vmatprep.subr.mxu0 0.0
        %3508 = vmatpush2.msra.mxu0 0.0
        %3509 = vmatprep.subr.mxu0 0.0
        %3510 = vmatpush2.msra.mxu0 0.0
        %3511 = vmatprep.subr.mxu0 0.0
        %3512 = vmatpush2.msra.mxu0 0.0
        %3513 = vmatprep.subr.mxu0 0.0
        %3514 = vmatpush2.msra.mxu0 0.0
        %3515 = vmatprep.subr.mxu0 0.0
        %3516 = vmatpush2.msra.mxu0 0.0
        %3517 = vmatprep.subr.mxu0 0.0
        %3518 = vmatpush2.msra.mxu0 0.0
        %3519 = vmatprep.subr.mxu0 0.0
        %3520 = vmatpush2.msra.mxu0 0.0
        %3521 = vmatprep.subr.mxu0 0.0
        %3522 = vmatpush2.msra.mxu0 0.0
        %3523 = vmatprep.subr.mxu0 0.0
        %3524 = vmatpush2.msra.mxu0 0.0
        %3525 = vmatprep.mubr.f32.mxu0 0.0
        %3526 = vmatmul.mubr.f32.gmra.mxu0 %v3459
        %v3527 = vpop.f32.mrf.mxu0
        %v3528 = vadd.f32 %v3455, %v3527
        %v3529 = vpop.f32.mrf.mxu0
        %3530 = vdwg.mxu0
        %3531 = vrot.lane.b32.xlu0 %v3048, 112
        %v3532 = vpop.permute.xlu0 %3531
        %3533 = vrot.lane.b32.xlu0 %v3048, 80
        %v3534 = vpop.permute.xlu0 %3533
        %v3535 = vsel %vm700, %v3532, 0
        %v3537 = vsel %vm700, %v3534, 0
        %3539 = vmatprep.subr.mxu0 0.0
        %3540 = vmatpush1.xpose.msra.mxu0 0.0
        %3541 = vmatprep.subr.mxu0 0.0
        %3542 = vmatpush1.xpose.msra.mxu0 0.0
        %3543 = vmatprep.subr.mxu0 0.0
        %3544 = vmatpush1.xpose.msra.mxu0 0.0
        %3545 = vmatprep.subr.mxu0 0.0
        %3546 = vmatpush1.xpose.msra.mxu0 0.0
        %3547 = vmatprep.subr.mxu0 0.0
        %3548 = vmatpush1.xpose.msra.mxu0 0.0
        %3549 = vmatprep.subr.mxu0 0.0
        %3550 = vmatpush1.xpose.msra.mxu0 0.0
        %3551 = vmatprep.subr.mxu0 0.0
        %3552 = vmatpush1.xpose.msra.mxu0 0.0
        %3553 = vmatprep.subr.mxu0 0.0
        %3554 = vmatpush1.xpose.msra.mxu0 0.0
        %3555 = vmatprep.subr.mxu0 0.0
        %3556 = vmatpush1.xpose.msra.mxu0 0.0
        %3557 = vmatprep.subr.mxu0 0.0
        %3558 = vmatpush1.xpose.msra.mxu0 0.0
        %3559 = vmatprep.subr.mxu0 0.0
        %3560 = vmatpush1.xpose.msra.mxu0 0.0
        %3561 = vmatprep.subr.mxu0 0.0
        %3562 = vmatpush1.xpose.msra.mxu0 0.0
        %3563 = vmatprep.subr.mxu0 0.0
        %3564 = vmatpush1.xpose.msra.mxu0 0.0
        %3565 = vmatprep.subr.mxu0 0.0
        %3566 = vmatpush1.xpose.msra.mxu0 0.0
        %3567 = vmatprep.subr.mxu0 0.0
        %3568 = vmatpush1.xpose.msra.mxu0 0.0
        %3569 = vmatprep.subr.mxu0 0.0
        %3570 = vmatpush1.xpose.msra.mxu0 %v3537
        %3571 = vmatprep.subr.mxu0 0.0
        %3572 = vmatpush2.xpose.msra.mxu0 0.0
        %3573 = vmatprep.subr.mxu0 0.0
        %3574 = vmatpush2.xpose.msra.mxu0 0.0
        %3575 = vmatprep.subr.mxu0 0.0
        %3576 = vmatpush2.xpose.msra.mxu0 0.0
        %3577 = vmatprep.subr.mxu0 0.0
        %3578 = vmatpush2.xpose.msra.mxu0 0.0
        %3579 = vmatprep.subr.mxu0 0.0
        %3580 = vmatpush2.xpose.msra.mxu0 0.0
        %3581 = vmatprep.subr.mxu0 0.0
        %3582 = vmatpush2.xpose.msra.mxu0 0.0
        %3583 = vmatprep.subr.mxu0 0.0
        %3584 = vmatpush2.xpose.msra.mxu0 0.0
        %3585 = vmatprep.subr.mxu0 0.0
        %3586 = vmatpush2.xpose.msra.mxu0 0.0
        %3587 = vmatprep.subr.mxu0 0.0
        %3588 = vmatpush2.xpose.msra.mxu0 0.0
        %3589 = vmatprep.subr.mxu0 0.0
        %3590 = vmatpush2.xpose.msra.mxu0 0.0
        %3591 = vmatprep.subr.mxu0 0.0
        %3592 = vmatpush2.xpose.msra.mxu0 0.0
        %3593 = vmatprep.subr.mxu0 0.0
        %3594 = vmatpush2.xpose.msra.mxu0 0.0
        %3595 = vmatprep.subr.mxu0 0.0
        %3596 = vmatpush2.xpose.msra.mxu0 0.0
        %3597 = vmatprep.subr.mxu0 0.0
        %3598 = vmatpush2.xpose.msra.mxu0 0.0
        %3599 = vmatprep.subr.mxu0 0.0
        %3600 = vmatpush2.xpose.msra.mxu0 0.0
        %3601 = vmatprep.subr.mxu0 0.0
        %3602 = vmatpush2.xpose.msra.mxu0 0.0
        %3603 = vmatprep.mubr.f32.mxu0 0.0
        %3604 = vmatmul.mubr.f32.gmra.mxu0 %v3535
        %v3605 = vpop.f32.mrf.mxu0
        %v3606 = vadd.f32 %v595, %v3605
        %v3607 = vpop.f32.mrf.mxu0
        %3608 = vdwg.mxu0
        %v3609 = vsel %vm700, %v3606, -inf
        %3610 = vmax.xlane.f32.xlu0 %v3609
        %v3611 = vpop.xlane.xlu0 %3610
        %v3612 = vsub.f32 %v3606, %v3611
        %v3613 = vmul.f32 %v3612, 1.442695
        %v3614 = vpow.pop %v3613
        %v3615 = vsel %vm700, %v3614, 0.0
        %3616 = vadd.xlane.f32.xlu0 %v3615
        %v3617 = vpop.xlane.xlu0 %3616
        %v3618 = vrcp.pop %v3617
        %v3619 = vmul.f32 %v3614, %v3618
        %3620 = vrot.lane.b32.xlu0 %v3048, 48
        %v3621 = vpop.permute.xlu0 %3620
        %v3624 = vsel %vm700, %v3619, 0
        %3626 = vmatprep.subr.mxu0 0.0
        %3627 = vmatpush1.msra.mxu0 0.0
        %3628 = vmatprep.subr.mxu0 0.0
        %3629 = vmatpush1.msra.mxu0 0.0
        %3630 = vmatprep.subr.mxu0 0.0
        %3631 = vmatpush1.msra.mxu0 0.0
        %3632 = vmatprep.subr.mxu0 0.0
        %3633 = vmatpush1.msra.mxu0 0.0
        %3634 = vmatprep.subr.mxu0 0.0
        %3635 = vmatpush1.msra.mxu0 0.0
        %3636 = vmatprep.subr.mxu0 0.0
        %3637 = vmatpush1.msra.mxu0 0.0
        %3638 = vmatprep.subr.mxu0 0.0
        %3639 = vmatpush1.msra.mxu0 0.0
        %3640 = vmatprep.subr.mxu0 0.0
        %3641 = vmatpush1.msra.mxu0 0.0
        %3642 = vmatprep.subr.mxu0 0.0
        %3643 = vmatpush1.msra.mxu0 0.0
        %3644 = vmatprep.subr.mxu0 0.0
        %3645 = vmatpush1.msra.mxu0 0.0
        %3646 = vmatprep.subr.mxu0 0.0
        %3647 = vmatpush1.msra.mxu0 0.0
        %3648 = vmatprep.subr.mxu0 0.0
        %3649 = vmatpush1.msra.mxu0 0.0
        %3650 = vmatprep.subr.mxu0 0.0
        %3651 = vmatpush1.msra.mxu0 0.0
        %3652 = vmatprep.subr.mxu0 0.0
        %3653 = vmatpush1.msra.mxu0 0.0
        %3654 = vmatprep.subr.mxu0 0.0
        %3655 = vmatpush1.msra.mxu0 0.0
        %3656 = vmatprep.subr.mxu0 0.0
        %3657 = vmatpush1.msra.mxu0 %v3621
        %3658 = vmatprep.subr.mxu0 0.0
        %3659 = vmatpush2.msra.mxu0 0.0
        %3660 = vmatprep.subr.mxu0 0.0
        %3661 = vmatpush2.msra.mxu0 0.0
        %3662 = vmatprep.subr.mxu0 0.0
        %3663 = vmatpush2.msra.mxu0 0.0
        %3664 = vmatprep.subr.mxu0 0.0
        %3665 = vmatpush2.msra.mxu0 0.0
        %3666 = vmatprep.subr.mxu0 0.0
        %3667 = vmatpush2.msra.mxu0 0.0
        %3668 = vmatprep.subr.mxu0 0.0
        %3669 = vmatpush2.msra.mxu0 0.0
        %3670 = vmatprep.subr.mxu0 0.0
        %3671 = vmatpush2.msra.mxu0 0.0
        %3672 = vmatprep.subr.mxu0 0.0
        %3673 = vmatpush2.msra.mxu0 0.0
        %3674 = vmatprep.subr.mxu0 0.0
        %3675 = vmatpush2.msra.mxu0 0.0
        %3676 = vmatprep.subr.mxu0 0.0
        %3677 = vmatpush2.msra.mxu0 0.0
        %3678 = vmatprep.subr.mxu0 0.0
        %3679 = vmatpush2.msra.mxu0 0.0
        %3680 = vmatprep.subr.mxu0 0.0
        %3681 = vmatpush2.msra.mxu0 0.0
        %3682 = vmatprep.subr.mxu0 0.0
        %3683 = vmatpush2.msra.mxu0 0.0
        %3684 = vmatprep.subr.mxu0 0.0
        %3685 = vmatpush2.msra.mxu0 0.0
        %3686 = vmatprep.subr.mxu0 0.0
        %3687 = vmatpush2.msra.mxu0 0.0
        %3688 = vmatprep.subr.mxu0 0.0
        %3689 = vmatpush2.msra.mxu0 0.0
        %3690 = vmatprep.mubr.f32.mxu0 0.0
        %3691 = vmatmul.mubr.f32.gmra.mxu0 %v3624
        %v3692 = vpop.f32.mrf.mxu0
        %v3693 = vadd.f32 0.0, %v3692
        %v3694 = vpop.f32.mrf.mxu0
        %3695 = vdwg.mxu0
        %v3697 = vsel %vm700, %v3693, 0
        %3699 = vmatprep.subr.mxu0 0.0
        %3700 = vmatpush1.msra.mxu0 0.0
        %3701 = vmatprep.subr.mxu0 0.0
        %3702 = vmatpush1.msra.mxu0 0.0
        %3703 = vmatprep.subr.mxu0 0.0
        %3704 = vmatpush1.msra.mxu0 0.0
        %3705 = vmatprep.subr.mxu0 0.0
        %3706 = vmatpush1.msra.mxu0 0.0
        %3707 = vmatprep.subr.mxu0 0.0
        %3708 = vmatpush1.msra.mxu0 0.0
        %3709 = vmatprep.subr.mxu0 0.0
        %3710 = vmatpush1.msra.mxu0 0.0
        %3711 = vmatprep.subr.mxu0 0.0
        %3712 = vmatpush1.msra.mxu0 0.0
        %3713 = vmatprep.subr.mxu0 0.0
        %3714 = vmatpush1.msra.mxu0 0.0
        %3715 = vmatprep.subr.mxu0 0.0
        %3716 = vmatpush1.msra.mxu0 0.0
        %3717 = vmatprep.subr.mxu0 0.0
        %3718 = vmatpush1.msra.mxu0 0.0
        %3719 = vmatprep.subr.mxu0 0.0
        %3720 = vmatpush1.msra.mxu0 0.0
        %3721 = vmatprep.subr.mxu0 0.0
        %3722 = vmatpush1.msra.mxu0 0.0
        %3723 = vmatprep.subr.mxu0 0.0
        %3724 = vmatpush1.msra.mxu0 0.0
        %3725 = vmatprep.subr.mxu0 0.0
        %3726 = vmatpush1.msra.mxu0 0.0
        %3727 = vmatprep.subr.mxu0 0.0
        %3728 = vmatpush1.msra.mxu0 0.0
        %3729 = vmatprep.subr.mxu0 0.0
        %3730 = vmatpush1.msra.mxu0 %v3054
        %3731 = vmatprep.subr.mxu0 0.0
        %3732 = vmatpush2.msra.mxu0 0.0
        %3733 = vmatprep.subr.mxu0 0.0
        %3734 = vmatpush2.msra.mxu0 0.0
        %3735 = vmatprep.subr.mxu0 0.0
        %3736 = vmatpush2.msra.mxu0 0.0
        %3737 = vmatprep.subr.mxu0 0.0
        %3738 = vmatpush2.msra.mxu0 0.0
        %3739 = vmatprep.subr.mxu0 0.0
        %3740 = vmatpush2.msra.mxu0 0.0
        %3741 = vmatprep.subr.mxu0 0.0
        %3742 = vmatpush2.msra.mxu0 0.0
        %3743 = vmatprep.subr.mxu0 0.0
        %3744 = vmatpush2.msra.mxu0 0.0
        %3745 = vmatprep.subr.mxu0 0.0
        %3746 = vmatpush2.msra.mxu0 0.0
        %3747 = vmatprep.subr.mxu0 0.0
        %3748 = vmatpush2.msra.mxu0 0.0
        %3749 = vmatprep.subr.mxu0 0.0
        %3750 = vmatpush2.msra.mxu0 0.0
        %3751 = vmatprep.subr.mxu0 0.0
        %3752 = vmatpush2.msra.mxu0 0.0
        %3753 = vmatprep.subr.mxu0 0.0
        %3754 = vmatpush2.msra.mxu0 0.0
        %3755 = vmatprep.subr.mxu0 0.0
        %3756 = vmatpush2.msra.mxu0 0.0
        %3757 = vmatprep.subr.mxu0 0.0
        %3758 = vmatpush2.msra.mxu0 0.0
        %3759 = vmatprep.subr.mxu0 0.0
        %3760 = vmatpush2.msra.mxu0 0.0
        %3761 = vmatprep.subr.mxu0 0.0
        %3762 = vmatpush2.msra.mxu0 0.0
        %3763 = vmatprep.mubr.f32.mxu0 0.0
        %3764 = vmatmul.mubr.f32.gmra.mxu0 %v3697
        %v3765 = vpop.f32.mrf.mxu0
        %v3766 = vadd.f32 0.0, %v3765
        %v3767 = vpop.f32.mrf.mxu0
        %3768 = vdwg.mxu0
        %v3769 = vadd.f32 %v3528, %v3766
        %3770 = vrot.lane.b32.xlu0 %v3048, 104
        %v3771 = vpop.permute.xlu0 %3770
        %3772 = vrot.lane.b32.xlu0 %v3048, 72
        %v3773 = vpop.permute.xlu0 %3772
        %v3774 = vsel %vm700, %v3771, 0
        %v3776 = vsel %vm700, %v3773, 0
        %3778 = vmatprep.subr.mxu0 0.0
        %3779 = vmatpush1.xpose.msra.mxu0 0.0
        %3780 = vmatprep.subr.mxu0 0.0
        %3781 = vmatpush1.xpose.msra.mxu0 0.0
        %3782 = vmatprep.subr.mxu0 0.0
        %3783 = vmatpush1.xpose.msra.mxu0 0.0
        %3784 = vmatprep.subr.mxu0 0.0
        %3785 = vmatpush1.xpose.msra.mxu0 0.0
        %3786 = vmatprep.subr.mxu0 0.0
        %3787 = vmatpush1.xpose.msra.mxu0 0.0
        %3788 = vmatprep.subr.mxu0 0.0
        %3789 = vmatpush1.xpose.msra.mxu0 0.0
        %3790 = vmatprep.subr.mxu0 0.0
        %3791 = vmatpush1.xpose.msra.mxu0 0.0
        %3792 = vmatprep.subr.mxu0 0.0
        %3793 = vmatpush1.xpose.msra.mxu0 0.0
        %3794 = vmatprep.subr.mxu0 0.0
        %3795 = vmatpush1.xpose.msra.mxu0 0.0
        %3796 = vmatprep.subr.mxu0 0.0
        %3797 = vmatpush1.xpose.msra.mxu0 0.0
        %3798 = vmatprep.subr.mxu0 0.0
        %3799 = vmatpush1.xpose.msra.mxu0 0.0
        %3800 = vmatprep.subr.mxu0 0.0
        %3801 = vmatpush1.xpose.msra.mxu0 0.0
        %3802 = vmatprep.subr.mxu0 0.0
        %3803 = vmatpush1.xpose.msra.mxu0 0.0
        %3804 = vmatprep.subr.mxu0 0.0
        %3805 = vmatpush1.xpose.msra.mxu0 0.0
        %3806 = vmatprep.subr.mxu0 0.0
        %3807 = vmatpush1.xpose.msra.mxu0 0.0
        %3808 = vmatprep.subr.mxu0 0.0
        %3809 = vmatpush1.xpose.msra.mxu0 %v3776
        %3810 = vmatprep.subr.mxu0 0.0
        %3811 = vmatpush2.xpose.msra.mxu0 0.0
        %3812 = vmatprep.subr.mxu0 0.0
        %3813 = vmatpush2.xpose.msra.mxu0 0.0
        %3814 = vmatprep.subr.mxu0 0.0
        %3815 = vmatpush2.xpose.msra.mxu0 0.0
        %3816 = vmatprep.subr.mxu0 0.0
        %3817 = vmatpush2.xpose.msra.mxu0 0.0
        %3818 = vmatprep.subr.mxu0 0.0
        %3819 = vmatpush2.xpose.msra.mxu0 0.0
        %3820 = vmatprep.subr.mxu0 0.0
        %3821 = vmatpush2.xpose.msra.mxu0 0.0
        %3822 = vmatprep.subr.mxu0 0.0
        %3823 = vmatpush2.xpose.msra.mxu0 0.0
        %3824 = vmatprep.subr.mxu0 0.0
        %3825 = vmatpush2.xpose.msra.mxu0 0.0
        %3826 = vmatprep.subr.mxu0 0.0
        %3827 = vmatpush2.xpose.msra.mxu0 0.0
        %3828 = vmatprep.subr.mxu0 0.0
        %3829 = vmatpush2.xpose.msra.mxu0 0.0
        %3830 = vmatprep.subr.mxu0 0.0
        %3831 = vmatpush2.xpose.msra.mxu0 0.0
        %3832 = vmatprep.subr.mxu0 0.0
        %3833 = vmatpush2.xpose.msra.mxu0 0.0
        %3834 = vmatprep.subr.mxu0 0.0
        %3835 = vmatpush2.xpose.msra.mxu0 0.0
        %3836 = vmatprep.subr.mxu0 0.0
        %3837 = vmatpush2.xpose.msra.mxu0 0.0
        %3838 = vmatprep.subr.mxu0 0.0
        %3839 = vmatpush2.xpose.msra.mxu0 0.0
        %3840 = vmatprep.subr.mxu0 0.0
        %3841 = vmatpush2.xpose.msra.mxu0 0.0
        %3842 = vmatprep.mubr.f32.mxu0 0.0
        %3843 = vmatmul.mubr.f32.gmra.mxu0 %v3774
        %v3844 = vpop.f32.mrf.mxu0
        %v3845 = vadd.f32 %v597, %v3844
        %v3846 = vpop.f32.mrf.mxu0
        %3847 = vdwg.mxu0
        %v3848 = vsel %vm700, %v3845, -inf
        %3849 = vmax.xlane.f32.xlu0 %v3848
        %v3850 = vpop.xlane.xlu0 %3849
        %v3851 = vsub.f32 %v3845, %v3850
        %v3852 = vmul.f32 %v3851, 1.442695
        %v3853 = vpow.pop %v3852
        %v3854 = vsel %vm700, %v3853, 0.0
        %3855 = vadd.xlane.f32.xlu0 %v3854
        %v3856 = vpop.xlane.xlu0 %3855
        %v3857 = vrcp.pop %v3856
        %v3858 = vmul.f32 %v3853, %v3857
        %3859 = vrot.lane.b32.xlu0 %v3048, 40
        %v3860 = vpop.permute.xlu0 %3859
        %v3863 = vsel %vm700, %v3858, 0
        %3865 = vmatprep.subr.mxu0 0.0
        %3866 = vmatpush1.msra.mxu0 0.0
        %3867 = vmatprep.subr.mxu0 0.0
        %3868 = vmatpush1.msra.mxu0 0.0
        %3869 = vmatprep.subr.mxu0 0.0
        %3870 = vmatpush1.msra.mxu0 0.0
        %3871 = vmatprep.subr.mxu0 0.0
        %3872 = vmatpush1.msra.mxu0 0.0
        %3873 = vmatprep.subr.mxu0 0.0
        %3874 = vmatpush1.msra.mxu0 0.0
        %3875 = vmatprep.subr.mxu0 0.0
        %3876 = vmatpush1.msra.mxu0 0.0
        %3877 = vmatprep.subr.mxu0 0.0
        %3878 = vmatpush1.msra.mxu0 0.0
        %3879 = vmatprep.subr.mxu0 0.0
        %3880 = vmatpush1.msra.mxu0 0.0
        %3881 = vmatprep.subr.mxu0 0.0
        %3882 = vmatpush1.msra.mxu0 0.0
        %3883 = vmatprep.subr.mxu0 0.0
        %3884 = vmatpush1.msra.mxu0 0.0
        %3885 = vmatprep.subr.mxu0 0.0
        %3886 = vmatpush1.msra.mxu0 0.0
        %3887 = vmatprep.subr.mxu0 0.0
        %3888 = vmatpush1.msra.mxu0 0.0
        %3889 = vmatprep.subr.mxu0 0.0
        %3890 = vmatpush1.msra.mxu0 0.0
        %3891 = vmatprep.subr.mxu0 0.0
        %3892 = vmatpush1.msra.mxu0 0.0
        %3893 = vmatprep.subr.mxu0 0.0
        %3894 = vmatpush1.msra.mxu0 0.0
        %3895 = vmatprep.subr.mxu0 0.0
        %3896 = vmatpush1.msra.mxu0 %v3860
        %3897 = vmatprep.subr.mxu0 0.0
        %3898 = vmatpush2.msra.mxu0 0.0
        %3899 = vmatprep.subr.mxu0 0.0
        %3900 = vmatpush2.msra.mxu0 0.0
        %3901 = vmatprep.subr.mxu0 0.0
        %3902 = vmatpush2.msra.mxu0 0.0
        %3903 = vmatprep.subr.mxu0 0.0
        %3904 = vmatpush2.msra.mxu0 0.0
        %3905 = vmatprep.subr.mxu0 0.0
        %3906 = vmatpush2.msra.mxu0 0.0
        %3907 = vmatprep.subr.mxu0 0.0
        %3908 = vmatpush2.msra.mxu0 0.0
        %3909 = vmatprep.subr.mxu0 0.0
        %3910 = vmatpush2.msra.mxu0 0.0
        %3911 = vmatprep.subr.mxu0 0.0
        %3912 = vmatpush2.msra.mxu0 0.0
        %3913 = vmatprep.subr.mxu0 0.0
        %3914 = vmatpush2.msra.mxu0 0.0
        %3915 = vmatprep.subr.mxu0 0.0
        %3916 = vmatpush2.msra.mxu0 0.0
        %3917 = vmatprep.subr.mxu0 0.0
        %3918 = vmatpush2.msra.mxu0 0.0
        %3919 = vmatprep.subr.mxu0 0.0
        %3920 = vmatpush2.msra.mxu0 0.0
        %3921 = vmatprep.subr.mxu0 0.0
        %3922 = vmatpush2.msra.mxu0 0.0
        %3923 = vmatprep.subr.mxu0 0.0
        %3924 = vmatpush2.msra.mxu0 0.0
        %3925 = vmatprep.subr.mxu0 0.0
        %3926 = vmatpush2.msra.mxu0 0.0
        %3927 = vmatprep.subr.mxu0 0.0
        %3928 = vmatpush2.msra.mxu0 0.0
        %3929 = vmatprep.mubr.f32.mxu0 0.0
        %3930 = vmatmul.mubr.f32.gmra.mxu0 %v3863
        %v3931 = vpop.f32.mrf.mxu0
        %v3932 = vadd.f32 0.0, %v3931
        %v3933 = vpop.f32.mrf.mxu0
        %3934 = vdwg.mxu0
        %v3936 = vsel %vm700, %v3932, 0
        %3938 = vmatprep.subr.mxu0 0.0
        %3939 = vmatpush1.msra.mxu0 0.0
        %3940 = vmatprep.subr.mxu0 0.0
        %3941 = vmatpush1.msra.mxu0 0.0
        %3942 = vmatprep.subr.mxu0 0.0
        %3943 = vmatpush1.msra.mxu0 0.0
        %3944 = vmatprep.subr.mxu0 0.0
        %3945 = vmatpush1.msra.mxu0 0.0
        %3946 = vmatprep.subr.mxu0 0.0
        %3947 = vmatpush1.msra.mxu0 0.0
        %3948 = vmatprep.subr.mxu0 0.0
        %3949 = vmatpush1.msra.mxu0 0.0
        %3950 = vmatprep.subr.mxu0 0.0
        %3951 = vmatpush1.msra.mxu0 0.0
        %3952 = vmatprep.subr.mxu0 0.0
        %3953 = vmatpush1.msra.mxu0 0.0
        %3954 = vmatprep.subr.mxu0 0.0
        %3955 = vmatpush1.msra.mxu0 0.0
        %3956 = vmatprep.subr.mxu0 0.0
        %3957 = vmatpush1.msra.mxu0 0.0
        %3958 = vmatprep.subr.mxu0 0.0
        %3959 = vmatpush1.msra.mxu0 0.0
        %3960 = vmatprep.subr.mxu0 0.0
        %3961 = vmatpush1.msra.mxu0 0.0
        %3962 = vmatprep.subr.mxu0 0.0
        %3963 = vmatpush1.msra.mxu0 0.0
        %3964 = vmatprep.subr.mxu0 0.0
        %3965 = vmatpush1.msra.mxu0 0.0
        %3966 = vmatprep.subr.mxu0 0.0
        %3967 = vmatpush1.msra.mxu0 0.0
        %3968 = vmatprep.subr.mxu0 0.0
        %3969 = vmatpush1.msra.mxu0 %v3055
        %3970 = vmatprep.subr.mxu0 0.0
        %3971 = vmatpush2.msra.mxu0 0.0
        %3972 = vmatprep.subr.mxu0 0.0
        %3973 = vmatpush2.msra.mxu0 0.0
        %3974 = vmatprep.subr.mxu0 0.0
        %3975 = vmatpush2.msra.mxu0 0.0
        %3976 = vmatprep.subr.mxu0 0.0
        %3977 = vmatpush2.msra.mxu0 0.0
        %3978 = vmatprep.subr.mxu0 0.0
        %3979 = vmatpush2.msra.mxu0 0.0
        %3980 = vmatprep.subr.mxu0 0.0
        %3981 = vmatpush2.msra.mxu0 0.0
        %3982 = vmatprep.subr.mxu0 0.0
        %3983 = vmatpush2.msra.mxu0 0.0
        %3984 = vmatprep.subr.mxu0 0.0
        %3985 = vmatpush2.msra.mxu0 0.0
        %3986 = vmatprep.subr.mxu0 0.0
        %3987 = vmatpush2.msra.mxu0 0.0
        %3988 = vmatprep.subr.mxu0 0.0
        %3989 = vmatpush2.msra.mxu0 0.0
        %3990 = vmatprep.subr.mxu0 0.0
        %3991 = vmatpush2.msra.mxu0 0.0
        %3992 = vmatprep.subr.mxu0 0.0
        %3993 = vmatpush2.msra.mxu0 0.0
        %3994 = vmatprep.subr.mxu0 0.0
        %3995 = vmatpush2.msra.mxu0 0.0
        %3996 = vmatprep.subr.mxu0 0.0
        %3997 = vmatpush2.msra.mxu0 0.0
        %3998 = vmatprep.subr.mxu0 0.0
        %3999 = vmatpush2.msra.mxu0 0.0
        %4000 = vmatprep.subr.mxu0 0.0
        %4001 = vmatpush2.msra.mxu0 0.0
        %4002 = vmatprep.mubr.f32.mxu0 0.0
        %4003 = vmatmul.mubr.f32.gmra.mxu0 %v3936
        %v4004 = vpop.f32.mrf.mxu0
        %v4005 = vadd.f32 0.0, %v4004
        %v4006 = vpop.f32.mrf.mxu0
        %4007 = vdwg.mxu0
        %v4008 = vadd.f32 %v3769, %v4005
        %v4009 = vadd.f32 %v2955, %v4008
        %s4010 = scalar_lea.vmem %s7, 1
        %v4011 = vld [vmem:[%s4010] sm:$0x1]
        %v4012 = vmul.f32 %v4009, %v4009
        %v4013 = vsel %vm600, %v4012, 0.0
        %4014 = vadd.xlane.f32.xlu0 %v4013
        %v4015 = vpop.xlane.xlu0 %4014
        %v4016 = vmul.f32 %v4015, %v604
        %v4017 = vadd.f32 %v4016, 1e-06
        %v4018 = vrsqrt.pop %v4017
        %v4019 = vmul.f32 %v4009, %v4018
        %v4021 = vlaneseq
        %v4022 = vshrl.u32 %v4021, 7
        %v4023 = vsub.s32 0, %v4022
        %v4024 = vrot.slane %v4011, %v4023
        %v4026 = vmul.f32 %v4019, %v4024
        %s4027 = scalar_lea.vmem %s8, 32
        %v4028 = vld [vmem:[%s4027] sm:$0xff]
        %v4029 = vld [vmem:[%s4027 + $0x8] sm:$0xff]
        %v4030 = vld [vmem:[%s4027 + $0x10] sm:$0xff]
        %v4031 = vld [vmem:[%s4027 + $0x18] sm:$0xff]
        %v4033 = vsel %vm600, %v4026, 0
        %4035 = vmatprep.subr.mxu0 0.0
        %4036 = vmatpush1.msra.mxu0 0.0
        %4037 = vmatprep.subr.mxu0 0.0
        %4038 = vmatpush1.msra.mxu0 0.0
        %4039 = vmatprep.subr.mxu0 0.0
        %4040 = vmatpush1.msra.mxu0 0.0
        %4041 = vmatprep.subr.mxu0 0.0
        %4042 = vmatpush1.msra.mxu0 0.0
        %4043 = vmatprep.subr.mxu0 0.0
        %4044 = vmatpush1.msra.mxu0 0.0
        %4045 = vmatprep.subr.mxu0 0.0
        %4046 = vmatpush1.msra.mxu0 0.0
        %4047 = vmatprep.subr.mxu0 0.0
        %4048 = vmatpush1.msra.mxu0 0.0
        %4049 = vmatprep.subr.mxu0 0.0
        %4050 = vmatpush1.msra.mxu0 0.0
        %4051 = vmatprep.subr.mxu0 0.0
        %4052 = vmatpush1.msra.mxu0 0.0
        %4053 = vmatprep.subr.mxu0 0.0
        %4054 = vmatpush1.msra.mxu0 0.0
        %4055 = vmatprep.subr.mxu0 0.0
        %4056 = vmatpush1.msra.mxu0 0.0
        %4057 = vmatprep.subr.mxu0 0.0
        %4058 = vmatpush1.msra.mxu0 0.0
        %4059 = vmatprep.subr.mxu0 0.0
        %4060 = vmatpush1.msra.mxu0 %v4031
        %4061 = vmatprep.subr.mxu0 0.0
        %4062 = vmatpush1.msra.mxu0 %v4030
        %4063 = vmatprep.subr.mxu0 0.0
        %4064 = vmatpush1.msra.mxu0 %v4029
        %4065 = vmatprep.subr.mxu0 0.0
        %4066 = vmatpush1.msra.mxu0 %v4028
        %4067 = vmatprep.subr.mxu0 0.0
        %4068 = vmatpush2.msra.mxu0 0.0
        %4069 = vmatprep.subr.mxu0 0.0
        %4070 = vmatpush2.msra.mxu0 0.0
        %4071 = vmatprep.subr.mxu0 0.0
        %4072 = vmatpush2.msra.mxu0 0.0
        %4073 = vmatprep.subr.mxu0 0.0
        %4074 = vmatpush2.msra.mxu0 0.0
        %4075 = vmatprep.subr.mxu0 0.0
        %4076 = vmatpush2.msra.mxu0 0.0
        %4077 = vmatprep.subr.mxu0 0.0
        %4078 = vmatpush2.msra.mxu0 0.0
        %4079 = vmatprep.subr.mxu0 0.0
        %4080 = vmatpush2.msra.mxu0 0.0
        %4081 = vmatprep.subr.mxu0 0.0
        %4082 = vmatpush2.msra.mxu0 0.0
        %4083 = vmatprep.subr.mxu0 0.0
        %4084 = vmatpush2.msra.mxu0 0.0
        %4085 = vmatprep.subr.mxu0 0.0
        %4086 = vmatpush2.msra.mxu0 0.0
        %4087 = vmatprep.subr.mxu0 0.0
        %4088 = vmatpush2.msra.mxu0 0.0
        %4089 = vmatprep.subr.mxu0 0.0
        %4090 = vmatpush2.msra.mxu0 0.0
        %4091 = vmatprep.subr.mxu0 0.0
        %4092 = vmatpush2.msra.mxu0 0.0
        %4093 = vmatprep.subr.mxu0 0.0
        %4094 = vmatpush2.msra.mxu0 0.0
        %4095 = vmatprep.subr.mxu0 0.0
        %4096 = vmatpush2.msra.mxu0 0.0
        %4097 = vmatprep.subr.mxu0 0.0
        %4098 = vmatpush2.msra.mxu0 0.0
        %4099 = vmatprep.mubr.f32.mxu0 0.0
        %4100 = vmatmul.mubr.f32.gmra.mxu0 %v4033
        %v4101 = vpop.f32.mrf.mxu0
        %v4102 = vadd.f32 0.0, %v4101
        %v4103 = vpop.f32.mrf.mxu0
        %4104 = vdwg.mxu0
        %s4105 = scalar_lea.vmem %s9, 32
        %v4106 = vld [vmem:[%s4105] sm:$0xff]
        %v4107 = vld [vmem:[%s4105 + $0x8] sm:$0xff]
        %v4108 = vld [vmem:[%s4105 + $0x10] sm:$0xff]
        %v4109 = vld [vmem:[%s4105 + $0x18] sm:$0xff]
        %4110 = vmatprep.subr.mxu0 0.0
        %4111 = vmatpush1.msra.mxu0 0.0
        %4112 = vmatprep.subr.mxu0 0.0
        %4113 = vmatpush1.msra.mxu0 0.0
        %4114 = vmatprep.subr.mxu0 0.0
        %4115 = vmatpush1.msra.mxu0 0.0
        %4116 = vmatprep.subr.mxu0 0.0
        %4117 = vmatpush1.msra.mxu0 0.0
        %4118 = vmatprep.subr.mxu0 0.0
        %4119 = vmatpush1.msra.mxu0 0.0
        %4120 = vmatprep.subr.mxu0 0.0
        %4121 = vmatpush1.msra.mxu0 0.0
        %4122 = vmatprep.subr.mxu0 0.0
        %4123 = vmatpush1.msra.mxu0 0.0
        %4124 = vmatprep.subr.mxu0 0.0
        %4125 = vmatpush1.msra.mxu0 0.0
        %4126 = vmatprep.subr.mxu0 0.0
        %4127 = vmatpush1.msra.mxu0 0.0
        %4128 = vmatprep.subr.mxu0 0.0
        %4129 = vmatpush1.msra.mxu0 0.0
        %4130 = vmatprep.subr.mxu0 0.0
        %4131 = vmatpush1.msra.mxu0 0.0
        %4132 = vmatprep.subr.mxu0 0.0
        %4133 = vmatpush1.msra.mxu0 0.0
        %4134 = vmatprep.subr.mxu0 0.0
        %4135 = vmatpush1.msra.mxu0 %v4109
        %4136 = vmatprep.subr.mxu0 0.0
        %4137 = vmatpush1.msra.mxu0 %v4108
        %4138 = vmatprep.subr.mxu0 0.0
        %4139 = vmatpush1.msra.mxu0 %v4107
        %4140 = vmatprep.subr.mxu0 0.0
        %4141 = vmatpush1.msra.mxu0 %v4106
        %4142 = vmatprep.subr.mxu0 0.0
        %4143 = vmatpush2.msra.mxu0 0.0
        %4144 = vmatprep.subr.mxu0 0.0
        %4145 = vmatpush2.msra.mxu0 0.0
        %4146 = vmatprep.subr.mxu0 0.0
        %4147 = vmatpush2.msra.mxu0 0.0
        %4148 = vmatprep.subr.mxu0 0.0
        %4149 = vmatpush2.msra.mxu0 0.0
        %4150 = vmatprep.subr.mxu0 0.0
        %4151 = vmatpush2.msra.mxu0 0.0
        %4152 = vmatprep.subr.mxu0 0.0
        %4153 = vmatpush2.msra.mxu0 0.0
        %4154 = vmatprep.subr.mxu0 0.0
        %4155 = vmatpush2.msra.mxu0 0.0
        %4156 = vmatprep.subr.mxu0 0.0
        %4157 = vmatpush2.msra.mxu0 0.0
        %4158 = vmatprep.subr.mxu0 0.0
        %4159 = vmatpush2.msra.mxu0 0.0
        %4160 = vmatprep.subr.mxu0 0.0
        %4161 = vmatpush2.msra.mxu0 0.0
        %4162 = vmatprep.subr.mxu0 0.0
        %4163 = vmatpush2.msra.mxu0 0.0
        %4164 = vmatprep.subr.mxu0 0.0
        %4165 = vmatpush2.msra.mxu0 0.0
        %4166 = vmatprep.subr.mxu0 0.0
        %4167 = vmatpush2.msra.mxu0 0.0
        %4168 = vmatprep.subr.mxu0 0.0
        %4169 = vmatpush2.msra.mxu0 0.0
        %4170 = vmatprep.subr.mxu0 0.0
        %4171 = vmatpush2.msra.mxu0 0.0
        %4172 = vmatprep.subr.mxu0 0.0
        %4173 = vmatpush2.msra.mxu0 0.0
        %4174 = vmatprep.mubr.f32.mxu0 0.0
        %4175 = vmatmul.mubr.f32.gmra.mxu0 %v1750
        %v4176 = vpop.f32.mrf.mxu0
        %v4177 = vadd.f32 0.0, %v4176
        %v4178 = vpop.f32.mrf.mxu0
        %4179 = vdwg.mxu0
        %s4180 = scalar_lea.vmem %s10, 32
        %v4181 = vld [vmem:[%s4180] sm:$0xff]
        %v4182 = vld [vmem:[%s4180 + $0x8] sm:$0xff]
        %v4183 = vld [vmem:[%s4180 + $0x10] sm:$0xff]
        %v4184 = vld [vmem:[%s4180 + $0x18] sm:$0xff]
        %v4186 = vsel %vm700, %v4102, 0
        %v4189 = vsel %vm700, %v4177, 0
        %4191 = vmatprep.subr.mxu0 0.0
        %4192 = vmatpush1.xpose.msra.mxu0 0.0
        %4193 = vmatprep.subr.mxu0 0.0
        %4194 = vmatpush1.xpose.msra.mxu0 0.0
        %4195 = vmatprep.subr.mxu0 0.0
        %4196 = vmatpush1.xpose.msra.mxu0 0.0
        %4197 = vmatprep.subr.mxu0 0.0
        %4198 = vmatpush1.xpose.msra.mxu0 0.0
        %4199 = vmatprep.subr.mxu0 0.0
        %4200 = vmatpush1.xpose.msra.mxu0 0.0
        %4201 = vmatprep.subr.mxu0 0.0
        %4202 = vmatpush1.xpose.msra.mxu0 0.0
        %4203 = vmatprep.subr.mxu0 0.0
        %4204 = vmatpush1.xpose.msra.mxu0 0.0
        %4205 = vmatprep.subr.mxu0 0.0
        %4206 = vmatpush1.xpose.msra.mxu0 0.0
        %4207 = vmatprep.subr.mxu0 0.0
        %4208 = vmatpush1.xpose.msra.mxu0 0.0
        %4209 = vmatprep.subr.mxu0 0.0
        %4210 = vmatpush1.xpose.msra.mxu0 0.0
        %4211 = vmatprep.subr.mxu0 0.0
        %4212 = vmatpush1.xpose.msra.mxu0 0.0
        %4213 = vmatprep.subr.mxu0 0.0
        %4214 = vmatpush1.xpose.msra.mxu0 0.0
        %4215 = vmatprep.subr.mxu0 0.0
        %4216 = vmatpush1.xpose.msra.mxu0 0.0
        %4217 = vmatprep.subr.mxu0 0.0
        %4218 = vmatpush1.xpose.msra.mxu0 0.0
        %4219 = vmatprep.subr.mxu0 0.0
        %4220 = vmatpush1.xpose.msra.mxu0 0.0
        %4221 = vmatprep.subr.mxu0 0.0
        %4222 = vmatpush1.xpose.msra.mxu0 %v4189
        %4223 = vmatprep.subr.mxu0 0.0
        %4224 = vmatpush2.xpose.msra.mxu0 0.0
        %4225 = vmatprep.subr.mxu0 0.0
        %4226 = vmatpush2.xpose.msra.mxu0 0.0
        %4227 = vmatprep.subr.mxu0 0.0
        %4228 = vmatpush2.xpose.msra.mxu0 0.0
        %4229 = vmatprep.subr.mxu0 0.0
        %4230 = vmatpush2.xpose.msra.mxu0 0.0
        %4231 = vmatprep.subr.mxu0 0.0
        %4232 = vmatpush2.xpose.msra.mxu0 0.0
        %4233 = vmatprep.subr.mxu0 0.0
        %4234 = vmatpush2.xpose.msra.mxu0 0.0
        %4235 = vmatprep.subr.mxu0 0.0
        %4236 = vmatpush2.xpose.msra.mxu0 0.0
        %4237 = vmatprep.subr.mxu0 0.0
        %4238 = vmatpush2.xpose.msra.mxu0 0.0
        %4239 = vmatprep.subr.mxu0 0.0
        %4240 = vmatpush2.xpose.msra.mxu0 0.0
        %4241 = vmatprep.subr.mxu0 0.0
        %4242 = vmatpush2.xpose.msra.mxu0 0.0
        %4243 = vmatprep.subr.mxu0 0.0
        %4244 = vmatpush2.xpose.msra.mxu0 0.0
        %4245 = vmatprep.subr.mxu0 0.0
        %4246 = vmatpush2.xpose.msra.mxu0 0.0
        %4247 = vmatprep.subr.mxu0 0.0
        %4248 = vmatpush2.xpose.msra.mxu0 0.0
        %4249 = vmatprep.subr.mxu0 0.0
        %4250 = vmatpush2.xpose.msra.mxu0 0.0
        %4251 = vmatprep.subr.mxu0 0.0
        %4252 = vmatpush2.xpose.msra.mxu0 0.0
        %4253 = vmatprep.subr.mxu0 0.0
        %4254 = vmatpush2.xpose.msra.mxu0 0.0
        %4255 = vmatprep.mubr.f32.mxu0 0.0
        %4256 = vmatmul.mubr.f32.gmra.mxu0 %v4186
        %v4257 = vpop.f32.mrf.mxu0
        %v4258 = vadd.f32 0.0, %v4257
        %v4259 = vpop.f32.mrf.mxu0
        %4260 = vdwg.mxu0
        %v4261 = vsel %vm700, %v4258, -inf
        %4262 = vmax.xlane.f32.xlu0 %v4261
        %v4263 = vpop.xlane.xlu0 %4262
        %v4264 = vsub.f32 %v4258, %v4263
        %v4265 = vmul.f32 %v4264, 1.442695
        %v4266 = vpow.pop %v4265
        %v4267 = vsel %vm700, %v4266, 0.0
        %4268 = vadd.xlane.f32.xlu0 %v4267
        %v4269 = vpop.xlane.xlu0 %4268
        %v4270 = vrcp.pop %v4269
        %v4271 = vmul.f32 %v4266, %v4270
        %4272 = vrot.lane.b32.xlu0 %v4177, 96
        %v4273 = vpop.permute.xlu0 %4272
        %v4276 = vsel %vm700, %v4271, 0
        %4278 = vmatprep.subr.mxu0 0.0
        %4279 = vmatpush1.msra.mxu0 0.0
        %4280 = vmatprep.subr.mxu0 0.0
        %4281 = vmatpush1.msra.mxu0 0.0
        %4282 = vmatprep.subr.mxu0 0.0
        %4283 = vmatpush1.msra.mxu0 0.0
        %4284 = vmatprep.subr.mxu0 0.0
        %4285 = vmatpush1.msra.mxu0 0.0
        %4286 = vmatprep.subr.mxu0 0.0
        %4287 = vmatpush1.msra.mxu0 0.0
        %4288 = vmatprep.subr.mxu0 0.0
        %4289 = vmatpush1.msra.mxu0 0.0
        %4290 = vmatprep.subr.mxu0 0.0
        %4291 = vmatpush1.msra.mxu0 0.0
        %4292 = vmatprep.subr.mxu0 0.0
        %4293 = vmatpush1.msra.mxu0 0.0
        %4294 = vmatprep.subr.mxu0 0.0
        %4295 = vmatpush1.msra.mxu0 0.0
        %4296 = vmatprep.subr.mxu0 0.0
        %4297 = vmatpush1.msra.mxu0 0.0
        %4298 = vmatprep.subr.mxu0 0.0
        %4299 = vmatpush1.msra.mxu0 0.0
        %4300 = vmatprep.subr.mxu0 0.0
        %4301 = vmatpush1.msra.mxu0 0.0
        %4302 = vmatprep.subr.mxu0 0.0
        %4303 = vmatpush1.msra.mxu0 0.0
        %4304 = vmatprep.subr.mxu0 0.0
        %4305 = vmatpush1.msra.mxu0 0.0
        %4306 = vmatprep.subr.mxu0 0.0
        %4307 = vmatpush1.msra.mxu0 0.0
        %4308 = vmatprep.subr.mxu0 0.0
        %4309 = vmatpush1.msra.mxu0 %v4273
        %4310 = vmatprep.subr.mxu0 0.0
        %4311 = vmatpush2.msra.mxu0 0.0
        %4312 = vmatprep.subr.mxu0 0.0
        %4313 = vmatpush2.msra.mxu0 0.0
        %4314 = vmatprep.subr.mxu0 0.0
        %4315 = vmatpush2.msra.mxu0 0.0
        %4316 = vmatprep.subr.mxu0 0.0
        %4317 = vmatpush2.msra.mxu0 0.0
        %4318 = vmatprep.subr.mxu0 0.0
        %4319 = vmatpush2.msra.mxu0 0.0
        %4320 = vmatprep.subr.mxu0 0.0
        %4321 = vmatpush2.msra.mxu0 0.0
        %4322 = vmatprep.subr.mxu0 0.0
        %4323 = vmatpush2.msra.mxu0 0.0
        %4324 = vmatprep.subr.mxu0 0.0
        %4325 = vmatpush2.msra.mxu0 0.0
        %4326 = vmatprep.subr.mxu0 0.0
        %4327 = vmatpush2.msra.mxu0 0.0
        %4328 = vmatprep.subr.mxu0 0.0
        %4329 = vmatpush2.msra.mxu0 0.0
        %4330 = vmatprep.subr.mxu0 0.0
        %4331 = vmatpush2.msra.mxu0 0.0
        %4332 = vmatprep.subr.mxu0 0.0
        %4333 = vmatpush2.msra.mxu0 0.0
        %4334 = vmatprep.subr.mxu0 0.0
        %4335 = vmatpush2.msra.mxu0 0.0
        %4336 = vmatprep.subr.mxu0 0.0
        %4337 = vmatpush2.msra.mxu0 0.0
        %4338 = vmatprep.subr.mxu0 0.0
        %4339 = vmatpush2.msra.mxu0 0.0
        %4340 = vmatprep.subr.mxu0 0.0
        %4341 = vmatpush2.msra.mxu0 0.0
        %4342 = vmatprep.mubr.f32.mxu0 0.0
        %4343 = vmatmul.mubr.f32.gmra.mxu0 %v4276
        %v4344 = vpop.f32.mrf.mxu0
        %v4345 = vadd.f32 0.0, %v4344
        %v4346 = vpop.f32.mrf.mxu0
        %4347 = vdwg.mxu0
        %4348 = vrot.lane.b32.xlu0 %v4102, 120
        %v4349 = vpop.permute.xlu0 %4348
        %4350 = vrot.lane.b32.xlu0 %v4177, 120
        %v4351 = vpop.permute.xlu0 %4350
        %v4352 = vsel %vm700, %v4349, 0
        %v4354 = vsel %vm700, %v4351, 0
        %4356 = vmatprep.subr.mxu0 0.0
        %4357 = vmatpush1.xpose.msra.mxu0 0.0
        %4358 = vmatprep.subr.mxu0 0.0
        %4359 = vmatpush1.xpose.msra.mxu0 0.0
        %4360 = vmatprep.subr.mxu0 0.0
        %4361 = vmatpush1.xpose.msra.mxu0 0.0
        %4362 = vmatprep.subr.mxu0 0.0
        %4363 = vmatpush1.xpose.msra.mxu0 0.0
        %4364 = vmatprep.subr.mxu0 0.0
        %4365 = vmatpush1.xpose.msra.mxu0 0.0
        %4366 = vmatprep.subr.mxu0 0.0
        %4367 = vmatpush1.xpose.msra.mxu0 0.0
        %4368 = vmatprep.subr.mxu0 0.0
        %4369 = vmatpush1.xpose.msra.mxu0 0.0
        %4370 = vmatprep.subr.mxu0 0.0
        %4371 = vmatpush1.xpose.msra.mxu0 0.0
        %4372 = vmatprep.subr.mxu0 0.0
        %4373 = vmatpush1.xpose.msra.mxu0 0.0
        %4374 = vmatprep.subr.mxu0 0.0
        %4375 = vmatpush1.xpose.msra.mxu0 0.0
        %4376 = vmatprep.subr.mxu0 0.0
        %4377 = vmatpush1.xpose.msra.mxu0 0.0
        %4378 = vmatprep.subr.mxu0 0.0
        %4379 = vmatpush1.xpose.msra.mxu0 0.0
        %4380 = vmatprep.subr.mxu0 0.0
        %4381 = vmatpush1.xpose.msra.mxu0 0.0
        %4382 = vmatprep.subr.mxu0 0.0
        %4383 = vmatpush1.xpose.msra.mxu0 0.0
        %4384 = vmatprep.subr.mxu0 0.0
        %4385 = vmatpush1.xpose.msra.mxu0 0.0
        %4386 = vmatprep.subr.mxu0 0.0
        %4387 = vmatpush1.xpose.msra.mxu0 %v4354
        %4388 = vmatprep.subr.mxu0 0.0
        %4389 = vmatpush2.xpose.msra.mxu0 0.0
        %4390 = vmatprep.subr.mxu0 0.0
        %4391 = vmatpush2.xpose.msra.mxu0 0.0
        %4392 = vmatprep.subr.mxu0 0.0
        %4393 = vmatpush2.xpose.msra.mxu0 0.0
        %4394 = vmatprep.subr.mxu0 0.0
        %4395 = vmatpush2.xpose.msra.mxu0 0.0
        %4396 = vmatprep.subr.mxu0 0.0
        %4397 = vmatpush2.xpose.msra.mxu0 0.0
        %4398 = vmatprep.subr.mxu0 0.0
        %4399 = vmatpush2.xpose.msra.mxu0 0.0
        %4400 = vmatprep.subr.mxu0 0.0
        %4401 = vmatpush2.xpose.msra.mxu0 0.0
        %4402 = vmatprep.subr.mxu0 0.0
        %4403 = vmatpush2.xpose.msra.mxu0 0.0
        %4404 = vmatprep.subr.mxu0 0.0
        %4405 = vmatpush2.xpose.msra.mxu0 0.0
        %4406 = vmatprep.subr.mxu0 0.0
        %4407 = vmatpush2.xpose.msra.mxu0 0.0
        %4408 = vmatprep.subr.mxu0 0.0
        %4409 = vmatpush2.xpose.msra.mxu0 0.0
        %4410 = vmatprep.subr.mxu0 0.0
        %4411 = vmatpush2.xpose.msra.mxu0 0.0
        %4412 = vmatprep.subr.mxu0 0.0
        %4413 = vmatpush2.xpose.msra.mxu0 0.0
        %4414 = vmatprep.subr.mxu0 0.0
        %4415 = vmatpush2.xpose.msra.mxu0 0.0
        %4416 = vmatprep.subr.mxu0 0.0
        %4417 = vmatpush2.xpose.msra.mxu0 0.0
        %4418 = vmatprep.subr.mxu0 0.0
        %4419 = vmatpush2.xpose.msra.mxu0 0.0
        %4420 = vmatprep.mubr.f32.mxu0 0.0
        %4421 = vmatmul.mubr.f32.gmra.mxu0 %v4352
        %v4422 = vpop.f32.mrf.mxu0
        %v4423 = vadd.f32 0.0, %v4422
        %v4424 = vpop.f32.mrf.mxu0
        %4425 = vdwg.mxu0
        %v4426 = vsel %vm700, %v4423, -inf
        %4427 = vmax.xlane.f32.xlu0 %v4426
        %v4428 = vpop.xlane.xlu0 %4427
        %v4429 = vsub.f32 %v4423, %v4428
        %v4430 = vmul.f32 %v4429, 1.442695
        %v4431 = vpow.pop %v4430
        %v4432 = vsel %vm700, %v4431, 0.0
        %4433 = vadd.xlane.f32.xlu0 %v4432
        %v4434 = vpop.xlane.xlu0 %4433
        %v4435 = vrcp.pop %v4434
        %v4436 = vmul.f32 %v4431, %v4435
        %4437 = vrot.lane.b32.xlu0 %v4177, 88
        %v4438 = vpop.permute.xlu0 %4437
        %v4441 = vsel %vm700, %v4436, 0
        %4443 = vmatprep.subr.mxu0 0.0
        %4444 = vmatpush1.msra.mxu0 0.0
        %4445 = vmatprep.subr.mxu0 0.0
        %4446 = vmatpush1.msra.mxu0 0.0
        %4447 = vmatprep.subr.mxu0 0.0
        %4448 = vmatpush1.msra.mxu0 0.0
        %4449 = vmatprep.subr.mxu0 0.0
        %4450 = vmatpush1.msra.mxu0 0.0
        %4451 = vmatprep.subr.mxu0 0.0
        %4452 = vmatpush1.msra.mxu0 0.0
        %4453 = vmatprep.subr.mxu0 0.0
        %4454 = vmatpush1.msra.mxu0 0.0
        %4455 = vmatprep.subr.mxu0 0.0
        %4456 = vmatpush1.msra.mxu0 0.0
        %4457 = vmatprep.subr.mxu0 0.0
        %4458 = vmatpush1.msra.mxu0 0.0
        %4459 = vmatprep.subr.mxu0 0.0
        %4460 = vmatpush1.msra.mxu0 0.0
        %4461 = vmatprep.subr.mxu0 0.0
        %4462 = vmatpush1.msra.mxu0 0.0
        %4463 = vmatprep.subr.mxu0 0.0
        %4464 = vmatpush1.msra.mxu0 0.0
        %4465 = vmatprep.subr.mxu0 0.0
        %4466 = vmatpush1.msra.mxu0 0.0
        %4467 = vmatprep.subr.mxu0 0.0
        %4468 = vmatpush1.msra.mxu0 0.0
        %4469 = vmatprep.subr.mxu0 0.0
        %4470 = vmatpush1.msra.mxu0 0.0
        %4471 = vmatprep.subr.mxu0 0.0
        %4472 = vmatpush1.msra.mxu0 0.0
        %4473 = vmatprep.subr.mxu0 0.0
        %4474 = vmatpush1.msra.mxu0 %v4438
        %4475 = vmatprep.subr.mxu0 0.0
        %4476 = vmatpush2.msra.mxu0 0.0
        %4477 = vmatprep.subr.mxu0 0.0
        %4478 = vmatpush2.msra.mxu0 0.0
        %4479 = vmatprep.subr.mxu0 0.0
        %4480 = vmatpush2.msra.mxu0 0.0
        %4481 = vmatprep.subr.mxu0 0.0
        %4482 = vmatpush2.msra.mxu0 0.0
        %4483 = vmatprep.subr.mxu0 0.0
        %4484 = vmatpush2.msra.mxu0 0.0
        %4485 = vmatprep.subr.mxu0 0.0
        %4486 = vmatpush2.msra.mxu0 0.0
        %4487 = vmatprep.subr.mxu0 0.0
        %4488 = vmatpush2.msra.mxu0 0.0
        %4489 = vmatprep.subr.mxu0 0.0
        %4490 = vmatpush2.msra.mxu0 0.0
        %4491 = vmatprep.subr.mxu0 0.0
        %4492 = vmatpush2.msra.mxu0 0.0
        %4493 = vmatprep.subr.mxu0 0.0
        %4494 = vmatpush2.msra.mxu0 0.0
        %4495 = vmatprep.subr.mxu0 0.0
        %4496 = vmatpush2.msra.mxu0 0.0
        %4497 = vmatprep.subr.mxu0 0.0
        %4498 = vmatpush2.msra.mxu0 0.0
        %4499 = vmatprep.subr.mxu0 0.0
        %4500 = vmatpush2.msra.mxu0 0.0
        %4501 = vmatprep.subr.mxu0 0.0
        %4502 = vmatpush2.msra.mxu0 0.0
        %4503 = vmatprep.subr.mxu0 0.0
        %4504 = vmatpush2.msra.mxu0 0.0
        %4505 = vmatprep.subr.mxu0 0.0
        %4506 = vmatpush2.msra.mxu0 0.0
        %4507 = vmatprep.mubr.f32.mxu0 0.0
        %4508 = vmatmul.mubr.f32.gmra.mxu0 %v4441
        %v4509 = vpop.f32.mrf.mxu0
        %v4510 = vadd.f32 0.0, %v4509
        %v4511 = vpop.f32.mrf.mxu0
        %4512 = vdwg.mxu0
        %v4514 = vsel %vm700, %v4510, 0
        %4516 = vmatprep.subr.mxu0 0.0
        %4517 = vmatpush1.msra.mxu0 0.0
        %4518 = vmatprep.subr.mxu0 0.0
        %4519 = vmatpush1.msra.mxu0 0.0
        %4520 = vmatprep.subr.mxu0 0.0
        %4521 = vmatpush1.msra.mxu0 0.0
        %4522 = vmatprep.subr.mxu0 0.0
        %4523 = vmatpush1.msra.mxu0 0.0
        %4524 = vmatprep.subr.mxu0 0.0
        %4525 = vmatpush1.msra.mxu0 0.0
        %4526 = vmatprep.subr.mxu0 0.0
        %4527 = vmatpush1.msra.mxu0 0.0
        %4528 = vmatprep.subr.mxu0 0.0
        %4529 = vmatpush1.msra.mxu0 0.0
        %4530 = vmatprep.subr.mxu0 0.0
        %4531 = vmatpush1.msra.mxu0 0.0
        %4532 = vmatprep.subr.mxu0 0.0
        %4533 = vmatpush1.msra.mxu0 0.0
        %4534 = vmatprep.subr.mxu0 0.0
        %4535 = vmatpush1.msra.mxu0 0.0
        %4536 = vmatprep.subr.mxu0 0.0
        %4537 = vmatpush1.msra.mxu0 0.0
        %4538 = vmatprep.subr.mxu0 0.0
        %4539 = vmatpush1.msra.mxu0 0.0
        %4540 = vmatprep.subr.mxu0 0.0
        %4541 = vmatpush1.msra.mxu0 0.0
        %4542 = vmatprep.subr.mxu0 0.0
        %4543 = vmatpush1.msra.mxu0 0.0
        %4544 = vmatprep.subr.mxu0 0.0
        %4545 = vmatpush1.msra.mxu0 0.0
        %4546 = vmatprep.subr.mxu0 0.0
        %4547 = vmatpush1.msra.mxu0 %v4182
        %4548 = vmatprep.subr.mxu0 0.0
        %4549 = vmatpush2.msra.mxu0 0.0
        %4550 = vmatprep.subr.mxu0 0.0
        %4551 = vmatpush2.msra.mxu0 0.0
        %4552 = vmatprep.subr.mxu0 0.0
        %4553 = vmatpush2.msra.mxu0 0.0
        %4554 = vmatprep.subr.mxu0 0.0
        %4555 = vmatpush2.msra.mxu0 0.0
        %4556 = vmatprep.subr.mxu0 0.0
        %4557 = vmatpush2.msra.mxu0 0.0
        %4558 = vmatprep.subr.mxu0 0.0
        %4559 = vmatpush2.msra.mxu0 0.0
        %4560 = vmatprep.subr.mxu0 0.0
        %4561 = vmatpush2.msra.mxu0 0.0
        %4562 = vmatprep.subr.mxu0 0.0
        %4563 = vmatpush2.msra.mxu0 0.0
        %4564 = vmatprep.subr.mxu0 0.0
        %4565 = vmatpush2.msra.mxu0 0.0
        %4566 = vmatprep.subr.mxu0 0.0
        %4567 = vmatpush2.msra.mxu0 0.0
        %4568 = vmatprep.subr.mxu0 0.0
        %4569 = vmatpush2.msra.mxu0 0.0
        %4570 = vmatprep.subr.mxu0 0.0
        %4571 = vmatpush2.msra.mxu0 0.0
        %4572 = vmatprep.subr.mxu0 0.0
        %4573 = vmatpush2.msra.mxu0 0.0
        %4574 = vmatprep.subr.mxu0 0.0
        %4575 = vmatpush2.msra.mxu0 0.0
        %4576 = vmatprep.subr.mxu0 0.0
        %4577 = vmatpush2.msra.mxu0 0.0
        %4578 = vmatprep.subr.mxu0 0.0
        %4579 = vmatpush2.msra.mxu0 0.0
        %4580 = vmatprep.mubr.f32.mxu0 0.0
        %4581 = vmatmul.mubr.f32.gmra.mxu0 %v4514
        %v4582 = vpop.f32.mrf.mxu0
        %v4583 = vadd.f32 0.0, %v4582
        %v4584 = vpop.f32.mrf.mxu0
        %4585 = vdwg.mxu0
        %v4587 = vsel %vm700, %v4345, 0
        %4589 = vmatprep.subr.mxu0 0.0
        %4590 = vmatpush1.msra.mxu0 0.0
        %4591 = vmatprep.subr.mxu0 0.0
        %4592 = vmatpush1.msra.mxu0 0.0
        %4593 = vmatprep.subr.mxu0 0.0
        %4594 = vmatpush1.msra.mxu0 0.0
        %4595 = vmatprep.subr.mxu0 0.0
        %4596 = vmatpush1.msra.mxu0 0.0
        %4597 = vmatprep.subr.mxu0 0.0
        %4598 = vmatpush1.msra.mxu0 0.0
        %4599 = vmatprep.subr.mxu0 0.0
        %4600 = vmatpush1.msra.mxu0 0.0
        %4601 = vmatprep.subr.mxu0 0.0
        %4602 = vmatpush1.msra.mxu0 0.0
        %4603 = vmatprep.subr.mxu0 0.0
        %4604 = vmatpush1.msra.mxu0 0.0
        %4605 = vmatprep.subr.mxu0 0.0
        %4606 = vmatpush1.msra.mxu0 0.0
        %4607 = vmatprep.subr.mxu0 0.0
        %4608 = vmatpush1.msra.mxu0 0.0
        %4609 = vmatprep.subr.mxu0 0.0
        %4610 = vmatpush1.msra.mxu0 0.0
        %4611 = vmatprep.subr.mxu0 0.0
        %4612 = vmatpush1.msra.mxu0 0.0
        %4613 = vmatprep.subr.mxu0 0.0
        %4614 = vmatpush1.msra.mxu0 0.0
        %4615 = vmatprep.subr.mxu0 0.0
        %4616 = vmatpush1.msra.mxu0 0.0
        %4617 = vmatprep.subr.mxu0 0.0
        %4618 = vmatpush1.msra.mxu0 0.0
        %4619 = vmatprep.subr.mxu0 0.0
        %4620 = vmatpush1.msra.mxu0 %v4181
        %4621 = vmatprep.subr.mxu0 0.0
        %4622 = vmatpush2.msra.mxu0 0.0
        %4623 = vmatprep.subr.mxu0 0.0
        %4624 = vmatpush2.msra.mxu0 0.0
        %4625 = vmatprep.subr.mxu0 0.0
        %4626 = vmatpush2.msra.mxu0 0.0
        %4627 = vmatprep.subr.mxu0 0.0
        %4628 = vmatpush2.msra.mxu0 0.0
        %4629 = vmatprep.subr.mxu0 0.0
        %4630 = vmatpush2.msra.mxu0 0.0
        %4631 = vmatprep.subr.mxu0 0.0
        %4632 = vmatpush2.msra.mxu0 0.0
        %4633 = vmatprep.subr.mxu0 0.0
        %4634 = vmatpush2.msra.mxu0 0.0
        %4635 = vmatprep.subr.mxu0 0.0
        %4636 = vmatpush2.msra.mxu0 0.0
        %4637 = vmatprep.subr.mxu0 0.0
        %4638 = vmatpush2.msra.mxu0 0.0
        %4639 = vmatprep.subr.mxu0 0.0
        %4640 = vmatpush2.msra.mxu0 0.0
        %4641 = vmatprep.subr.mxu0 0.0
        %4642 = vmatpush2.msra.mxu0 0.0
        %4643 = vmatprep.subr.mxu0 0.0
        %4644 = vmatpush2.msra.mxu0 0.0
        %4645 = vmatprep.subr.mxu0 0.0
        %4646 = vmatpush2.msra.mxu0 0.0
        %4647 = vmatprep.subr.mxu0 0.0
        %4648 = vmatpush2.msra.mxu0 0.0
        %4649 = vmatprep.subr.mxu0 0.0
        %4650 = vmatpush2.msra.mxu0 0.0
        %4651 = vmatprep.subr.mxu0 0.0
        %4652 = vmatpush2.msra.mxu0 0.0
        %4653 = vmatprep.mubr.f32.mxu0 0.0
        %4654 = vmatmul.mubr.f32.gmra.mxu0 %v4587
        %v4655 = vpop.f32.mrf.mxu0
        %v4656 = vadd.f32 %v4583, %v4655
        %v4657 = vpop.f32.mrf.mxu0
        %4658 = vdwg.mxu0
        %4659 = vrot.lane.b32.xlu0 %v4102, 112
        %v4660 = vpop.permute.xlu0 %4659
        %4661 = vrot.lane.b32.xlu0 %v4177, 112
        %v4662 = vpop.permute.xlu0 %4661
        %v4663 = vsel %vm700, %v4660, 0
        %v4665 = vsel %vm700, %v4662, 0
        %4667 = vmatprep.subr.mxu0 0.0
        %4668 = vmatpush1.xpose.msra.mxu0 0.0
        %4669 = vmatprep.subr.mxu0 0.0
        %4670 = vmatpush1.xpose.msra.mxu0 0.0
        %4671 = vmatprep.subr.mxu0 0.0
        %4672 = vmatpush1.xpose.msra.mxu0 0.0
        %4673 = vmatprep.subr.mxu0 0.0
        %4674 = vmatpush1.xpose.msra.mxu0 0.0
        %4675 = vmatprep.subr.mxu0 0.0
        %4676 = vmatpush1.xpose.msra.mxu0 0.0
        %4677 = vmatprep.subr.mxu0 0.0
        %4678 = vmatpush1.xpose.msra.mxu0 0.0
        %4679 = vmatprep.subr.mxu0 0.0
        %4680 = vmatpush1.xpose.msra.mxu0 0.0
        %4681 = vmatprep.subr.mxu0 0.0
        %4682 = vmatpush1.xpose.msra.mxu0 0.0
        %4683 = vmatprep.subr.mxu0 0.0
        %4684 = vmatpush1.xpose.msra.mxu0 0.0
        %4685 = vmatprep.subr.mxu0 0.0
        %4686 = vmatpush1.xpose.msra.mxu0 0.0
        %4687 = vmatprep.subr.mxu0 0.0
        %4688 = vmatpush1.xpose.msra.mxu0 0.0
        %4689 = vmatprep.subr.mxu0 0.0
        %4690 = vmatpush1.xpose.msra.mxu0 0.0
        %4691 = vmatprep.subr.mxu0 0.0
        %4692 = vmatpush1.xpose.msra.mxu0 0.0
        %4693 = vmatprep.subr.mxu0 0.0
        %4694 = vmatpush1.xpose.msra.mxu0 0.0
        %4695 = vmatprep.subr.mxu0 0.0
        %4696 = vmatpush1.xpose.msra.mxu0 0.0
        %4697 = vmatprep.subr.mxu0 0.0
        %4698 = vmatpush1.xpose.msra.mxu0 %v4665
        %4699 = vmatprep.subr.mxu0 0.0
        %4700 = vmatpush2.xpose.msra.mxu0 0.0
        %4701 = vmatprep.subr.mxu0 0.0
        %4702 = vmatpush2.xpose.msra.mxu0 0.0
        %4703 = vmatprep.subr.mxu0 0.0
        %4704 = vmatpush2.xpose.msra.mxu0 0.0
        %4705 = vmatprep.subr.mxu0 0.0
        %4706 = vmatpush2.xpose.msra.mxu0 0.0
        %4707 = vmatprep.subr.mxu0 0.0
        %4708 = vmatpush2.xpose.msra.mxu0 0.0
        %4709 = vmatprep.subr.mxu0 0.0
        %4710 = vmatpush2.xpose.msra.mxu0 0.0
        %4711 = vmatprep.subr.mxu0 0.0
        %4712 = vmatpush2.xpose.msra.mxu0 0.0
        %4713 = vmatprep.subr.mxu0 0.0
        %4714 = vmatpush2.xpose.msra.mxu0 0.0
        %4715 = vmatprep.subr.mxu0 0.0
        %4716 = vmatpush2.xpose.msra.mxu0 0.0
        %4717 = vmatprep.subr.mxu0 0.0
        %4718 = vmatpush2.xpose.msra.mxu0 0.0
        %4719 = vmatprep.subr.mxu0 0.0
        %4720 = vmatpush2.xpose.msra.mxu0 0.0
        %4721 = vmatprep.subr.mxu0 0.0
        %4722 = vmatpush2.xpose.msra.mxu0 0.0
        %4723 = vmatprep.subr.mxu0 0.0
        %4724 = vmatpush2.xpose.msra.mxu0 0.0
        %4725 = vmatprep.subr.mxu0 0.0
        %4726 = vmatpush2.xpose.msra.mxu0 0.0
        %4727 = vmatprep.subr.mxu0 0.0
        %4728 = vmatpush2.xpose.msra.mxu0 0.0
        %4729 = vmatprep.subr.mxu0 0.0
        %4730 = vmatpush2.xpose.msra.mxu0 0.0
        %4731 = vmatprep.mubr.f32.mxu0 0.0
        %4732 = vmatmul.mubr.f32.gmra.mxu0 %v4663
        %v4733 = vpop.f32.mrf.mxu0
        %v4734 = vadd.f32 0.0, %v4733
        %v4735 = vpop.f32.mrf.mxu0
        %4736 = vdwg.mxu0
        %v4737 = vsel %vm700, %v4734, -inf
        %4738 = vmax.xlane.f32.xlu0 %v4737
        %v4739 = vpop.xlane.xlu0 %4738
        %v4740 = vsub.f32 %v4734, %v4739
        %v4741 = vmul.f32 %v4740, 1.442695
        %v4742 = vpow.pop %v4741
        %v4743 = vsel %vm700, %v4742, 0.0
        %4744 = vadd.xlane.f32.xlu0 %v4743
        %v4745 = vpop.xlane.xlu0 %4744
        %v4746 = vrcp.pop %v4745
        %v4747 = vmul.f32 %v4742, %v4746
        %4748 = vrot.lane.b32.xlu0 %v4177, 80
        %v4749 = vpop.permute.xlu0 %4748
        %v4752 = vsel %vm700, %v4747, 0
        %4754 = vmatprep.subr.mxu0 0.0
        %4755 = vmatpush1.msra.mxu0 0.0
        %4756 = vmatprep.subr.mxu0 0.0
        %4757 = vmatpush1.msra.mxu0 0.0
        %4758 = vmatprep.subr.mxu0 0.0
        %4759 = vmatpush1.msra.mxu0 0.0
        %4760 = vmatprep.subr.mxu0 0.0
        %4761 = vmatpush1.msra.mxu0 0.0
        %4762 = vmatprep.subr.mxu0 0.0
        %4763 = vmatpush1.msra.mxu0 0.0
        %4764 = vmatprep.subr.mxu0 0.0
        %4765 = vmatpush1.msra.mxu0 0.0
        %4766 = vmatprep.subr.mxu0 0.0
        %4767 = vmatpush1.msra.mxu0 0.0
        %4768 = vmatprep.subr.mxu0 0.0
        %4769 = vmatpush1.msra.mxu0 0.0
        %4770 = vmatprep.subr.mxu0 0.0
        %4771 = vmatpush1.msra.mxu0 0.0
        %4772 = vmatprep.subr.mxu0 0.0
        %4773 = vmatpush1.msra.mxu0 0.0
        %4774 = vmatprep.subr.mxu0 0.0
        %4775 = vmatpush1.msra.mxu0 0.0
        %4776 = vmatprep.subr.mxu0 0.0
        %4777 = vmatpush1.msra.mxu0 0.0
        %4778 = vmatprep.subr.mxu0 0.0
        %4779 = vmatpush1.msra.mxu0 0.0
        %4780 = vmatprep.subr.mxu0 0.0
        %4781 = vmatpush1.msra.mxu0 0.0
        %4782 = vmatprep.subr.mxu0 0.0
        %4783 = vmatpush1.msra.mxu0 0.0
        %4784 = vmatprep.subr.mxu0 0.0
        %4785 = vmatpush1.msra.mxu0 %v4749
        %4786 = vmatprep.subr.mxu0 0.0
        %4787 = vmatpush2.msra.mxu0 0.0
        %4788 = vmatprep.subr.mxu0 0.0
        %4789 = vmatpush2.msra.mxu0 0.0
        %4790 = vmatprep.subr.mxu0 0.0
        %4791 = vmatpush2.msra.mxu0 0.0
        %4792 = vmatprep.subr.mxu0 0.0
        %4793 = vmatpush2.msra.mxu0 0.0
        %4794 = vmatprep.subr.mxu0 0.0
        %4795 = vmatpush2.msra.mxu0 0.0
        %4796 = vmatprep.subr.mxu0 0.0
        %4797 = vmatpush2.msra.mxu0 0.0
        %4798 = vmatprep.subr.mxu0 0.0
        %4799 = vmatpush2.msra.mxu0 0.0
        %4800 = vmatprep.subr.mxu0 0.0
        %4801 = vmatpush2.msra.mxu0 0.0
        %4802 = vmatprep.subr.mxu0 0.0
        %4803 = vmatpush2.msra.mxu0 0.0
        %4804 = vmatprep.subr.mxu0 0.0
        %4805 = vmatpush2.msra.mxu0 0.0
        %4806 = vmatprep.subr.mxu0 0.0
        %4807 = vmatpush2.msra.mxu0 0.0
        %4808 = vmatprep.subr.mxu0 0.0
        %4809 = vmatpush2.msra.mxu0 0.0
        %4810 = vmatprep.subr.mxu0 0.0
        %4811 = vmatpush2.msra.mxu0 0.0
        %4812 = vmatprep.subr.mxu0 0.0
        %4813 = vmatpush2.msra.mxu0 0.0
        %4814 = vmatprep.subr.mxu0 0.0
        %4815 = vmatpush2.msra.mxu0 0.0
        %4816 = vmatprep.subr.mxu0 0.0
        %4817 = vmatpush2.msra.mxu0 0.0
        %4818 = vmatprep.mubr.f32.mxu0 0.0
        %4819 = vmatmul.mubr.f32.gmra.mxu0 %v4752
        %v4820 = vpop.f32.mrf.mxu0
        %v4821 = vadd.f32 0.0, %v4820
        %v4822 = vpop.f32.mrf.mxu0
        %4823 = vdwg.mxu0
        %v4825 = vsel %vm700, %v4821, 0
        %4827 = vmatprep.subr.mxu0 0.0
        %4828 = vmatpush1.msra.mxu0 0.0
        %4829 = vmatprep.subr.mxu0 0.0
        %4830 = vmatpush1.msra.mxu0 0.0
        %4831 = vmatprep.subr.mxu0 0.0
        %4832 = vmatpush1.msra.mxu0 0.0
        %4833 = vmatprep.subr.mxu0 0.0
        %4834 = vmatpush1.msra.mxu0 0.0
        %4835 = vmatprep.subr.mxu0 0.0
        %4836 = vmatpush1.msra.mxu0 0.0
        %4837 = vmatprep.subr.mxu0 0.0
        %4838 = vmatpush1.msra.mxu0 0.0
        %4839 = vmatprep.subr.mxu0 0.0
        %4840 = vmatpush1.msra.mxu0 0.0
        %4841 = vmatprep.subr.mxu0 0.0
        %4842 = vmatpush1.msra.mxu0 0.0
        %4843 = vmatprep.subr.mxu0 0.0
        %4844 = vmatpush1.msra.mxu0 0.0
        %4845 = vmatprep.subr.mxu0 0.0
        %4846 = vmatpush1.msra.mxu0 0.0
        %4847 = vmatprep.subr.mxu0 0.0
        %4848 = vmatpush1.msra.mxu0 0.0
        %4849 = vmatprep.subr.mxu0 0.0
        %4850 = vmatpush1.msra.mxu0 0.0
        %4851 = vmatprep.subr.mxu0 0.0
        %4852 = vmatpush1.msra.mxu0 0.0
        %4853 = vmatprep.subr.mxu0 0.0
        %4854 = vmatpush1.msra.mxu0 0.0
        %4855 = vmatprep.subr.mxu0 0.0
        %4856 = vmatpush1.msra.mxu0 0.0
        %4857 = vmatprep.subr.mxu0 0.0
        %4858 = vmatpush1.msra.mxu0 %v4183
        %4859 = vmatprep.subr.mxu0 0.0
        %4860 = vmatpush2.msra.mxu0 0.0
        %4861 = vmatprep.subr.mxu0 0.0
        %4862 = vmatpush2.msra.mxu0 0.0
        %4863 = vmatprep.subr.mxu0 0.0
        %4864 = vmatpush2.msra.mxu0 0.0
        %4865 = vmatprep.subr.mxu0 0.0
        %4866 = vmatpush2.msra.mxu0 0.0
        %4867 = vmatprep.subr.mxu0 0.0
        %4868 = vmatpush2.msra.mxu0 0.0
        %4869 = vmatprep.subr.mxu0 0.0
        %4870 = vmatpush2.msra.mxu0 0.0
        %4871 = vmatprep.subr.mxu0 0.0
        %4872 = vmatpush2.msra.mxu0 0.0
        %4873 = vmatprep.subr.mxu0 0.0
        %4874 = vmatpush2.msra.mxu0 0.0
        %4875 = vmatprep.subr.mxu0 0.0
        %4876 = vmatpush2.msra.mxu0 0.0
        %4877 = vmatprep.subr.mxu0 0.0
        %4878 = vmatpush2.msra.mxu0 0.0
        %4879 = vmatprep.subr.mxu0 0.0
        %4880 = vmatpush2.msra.mxu0 0.0
        %4881 = vmatprep.subr.mxu0 0.0
        %4882 = vmatpush2.msra.mxu0 0.0
        %4883 = vmatprep.subr.mxu0 0.0
        %4884 = vmatpush2.msra.mxu0 0.0
        %4885 = vmatprep.subr.mxu0 0.0
        %4886 = vmatpush2.msra.mxu0 0.0
        %4887 = vmatprep.subr.mxu0 0.0
        %4888 = vmatpush2.msra.mxu0 0.0
        %4889 = vmatprep.subr.mxu0 0.0
        %4890 = vmatpush2.msra.mxu0 0.0
        %4891 = vmatprep.mubr.f32.mxu0 0.0
        %4892 = vmatmul.mubr.f32.gmra.mxu0 %v4825
        %v4893 = vpop.f32.mrf.mxu0
        %v4894 = vadd.f32 0.0, %v4893
        %v4895 = vpop.f32.mrf.mxu0
        %4896 = vdwg.mxu0
        %v4897 = vadd.f32 %v4656, %v4894
        %4898 = vrot.lane.b32.xlu0 %v4102, 104
        %v4899 = vpop.permute.xlu0 %4898
        %4900 = vrot.lane.b32.xlu0 %v4177, 104
        %v4901 = vpop.permute.xlu0 %4900
        %v4902 = vsel %vm700, %v4899, 0
        %v4904 = vsel %vm700, %v4901, 0
        %4906 = vmatprep.subr.mxu0 0.0
        %4907 = vmatpush1.xpose.msra.mxu0 0.0
        %4908 = vmatprep.subr.mxu0 0.0
        %4909 = vmatpush1.xpose.msra.mxu0 0.0
        %4910 = vmatprep.subr.mxu0 0.0
        %4911 = vmatpush1.xpose.msra.mxu0 0.0
        %4912 = vmatprep.subr.mxu0 0.0
        %4913 = vmatpush1.xpose.msra.mxu0 0.0
        %4914 = vmatprep.subr.mxu0 0.0
        %4915 = vmatpush1.xpose.msra.mxu0 0.0
        %4916 = vmatprep.subr.mxu0 0.0
        %4917 = vmatpush1.xpose.msra.mxu0 0.0
        %4918 = vmatprep.subr.mxu0 0.0
        %4919 = vmatpush1.xpose.msra.mxu0 0.0
        %4920 = vmatprep.subr.mxu0 0.0
        %4921 = vmatpush1.xpose.msra.mxu0 0.0
        %4922 = vmatprep.subr.mxu0 0.0
        %4923 = vmatpush1.xpose.msra.mxu0 0.0
        %4924 = vmatprep.subr.mxu0 0.0
        %4925 = vmatpush1.xpose.msra.mxu0 0.0
        %4926 = vmatprep.subr.mxu0 0.0
        %4927 = vmatpush1.xpose.msra.mxu0 0.0
        %4928 = vmatprep.subr.mxu0 0.0
        %4929 = vmatpush1.xpose.msra.mxu0 0.0
        %4930 = vmatprep.subr.mxu0 0.0
        %4931 = vmatpush1.xpose.msra.mxu0 0.0
        %4932 = vmatprep.subr.mxu0 0.0
        %4933 = vmatpush1.xpose.msra.mxu0 0.0
        %4934 = vmatprep.subr.mxu0 0.0
        %4935 = vmatpush1.xpose.msra.mxu0 0.0
        %4936 = vmatprep.subr.mxu0 0.0
        %4937 = vmatpush1.xpose.msra.mxu0 %v4904
        %4938 = vmatprep.subr.mxu0 0.0
        %4939 = vmatpush2.xpose.msra.mxu0 0.0
        %4940 = vmatprep.subr.mxu0 0.0
        %4941 = vmatpush2.xpose.msra.mxu0 0.0
        %4942 = vmatprep.subr.mxu0 0.0
        %4943 = vmatpush2.xpose.msra.mxu0 0.0
        %4944 = vmatprep.subr.mxu0 0.0
        %4945 = vmatpush2.xpose.msra.mxu0 0.0
        %4946 = vmatprep.subr.mxu0 0.0
        %4947 = vmatpush2.xpose.msra.mxu0 0.0
        %4948 = vmatprep.subr.mxu0 0.0
        %4949 = vmatpush2.xpose.msra.mxu0 0.0
        %4950 = vmatprep.subr.mxu0 0.0
        %4951 = vmatpush2.xpose.msra.mxu0 0.0
        %4952 = vmatprep.subr.mxu0 0.0
        %4953 = vmatpush2.xpose.msra.mxu0 0.0
        %4954 = vmatprep.subr.mxu0 0.0
        %4955 = vmatpush2.xpose.msra.mxu0 0.0
        %4956 = vmatprep.subr.mxu0 0.0
        %4957 = vmatpush2.xpose.msra.mxu0 0.0
        %4958 = vmatprep.subr.mxu0 0.0
        %4959 = vmatpush2.xpose.msra.mxu0 0.0
        %4960 = vmatprep.subr.mxu0 0.0
        %4961 = vmatpush2.xpose.msra.mxu0 0.0
        %4962 = vmatprep.subr.mxu0 0.0
        %4963 = vmatpush2.xpose.msra.mxu0 0.0
        %4964 = vmatprep.subr.mxu0 0.0
        %4965 = vmatpush2.xpose.msra.mxu0 0.0
        %4966 = vmatprep.subr.mxu0 0.0
        %4967 = vmatpush2.xpose.msra.mxu0 0.0
        %4968 = vmatprep.subr.mxu0 0.0
        %4969 = vmatpush2.xpose.msra.mxu0 0.0
        %4970 = vmatprep.mubr.f32.mxu0 0.0
        %4971 = vmatmul.mubr.f32.gmra.mxu0 %v4902
        %v4972 = vpop.f32.mrf.mxu0
        %v4973 = vadd.f32 0.0, %v4972
        %v4974 = vpop.f32.mrf.mxu0
        %4975 = vdwg.mxu0
        %v4976 = vsel %vm700, %v4973, -inf
        %4977 = vmax.xlane.f32.xlu0 %v4976
        %v4978 = vpop.xlane.xlu0 %4977
        %v4979 = vsub.f32 %v4973, %v4978
        %v4980 = vmul.f32 %v4979, 1.442695
        %v4981 = vpow.pop %v4980
        %v4982 = vsel %vm700, %v4981, 0.0
        %4983 = vadd.xlane.f32.xlu0 %v4982
        %v4984 = vpop.xlane.xlu0 %4983
        %v4985 = vrcp.pop %v4984
        %v4986 = vmul.f32 %v4981, %v4985
        %4987 = vrot.lane.b32.xlu0 %v4177, 72
        %v4988 = vpop.permute.xlu0 %4987
        %v4991 = vsel %vm700, %v4986, 0
        %4993 = vmatprep.subr.mxu0 0.0
        %4994 = vmatpush1.msra.mxu0 0.0
        %4995 = vmatprep.subr.mxu0 0.0
        %4996 = vmatpush1.msra.mxu0 0.0
        %4997 = vmatprep.subr.mxu0 0.0
        %4998 = vmatpush1.msra.mxu0 0.0
        %4999 = vmatprep.subr.mxu0 0.0
        %5000 = vmatpush1.msra.mxu0 0.0
        %5001 = vmatprep.subr.mxu0 0.0
        %5002 = vmatpush1.msra.mxu0 0.0
        %5003 = vmatprep.subr.mxu0 0.0
        %5004 = vmatpush1.msra.mxu0 0.0
        %5005 = vmatprep.subr.mxu0 0.0
        %5006 = vmatpush1.msra.mxu0 0.0
        %5007 = vmatprep.subr.mxu0 0.0
        %5008 = vmatpush1.msra.mxu0 0.0
        %5009 = vmatprep.subr.mxu0 0.0
        %5010 = vmatpush1.msra.mxu0 0.0
        %5011 = vmatprep.subr.mxu0 0.0
        %5012 = vmatpush1.msra.mxu0 0.0
        %5013 = vmatprep.subr.mxu0 0.0
        %5014 = vmatpush1.msra.mxu0 0.0
        %5015 = vmatprep.subr.mxu0 0.0
        %5016 = vmatpush1.msra.mxu0 0.0
        %5017 = vmatprep.subr.mxu0 0.0
        %5018 = vmatpush1.msra.mxu0 0.0
        %5019 = vmatprep.subr.mxu0 0.0
        %5020 = vmatpush1.msra.mxu0 0.0
        %5021 = vmatprep.subr.mxu0 0.0
        %5022 = vmatpush1.msra.mxu0 0.0
        %5023 = vmatprep.subr.mxu0 0.0
        %5024 = vmatpush1.msra.mxu0 %v4988
        %5025 = vmatprep.subr.mxu0 0.0
        %5026 = vmatpush2.msra.mxu0 0.0
        %5027 = vmatprep.subr.mxu0 0.0
        %5028 = vmatpush2.msra.mxu0 0.0
        %5029 = vmatprep.subr.mxu0 0.0
        %5030 = vmatpush2.msra.mxu0 0.0
        %5031 = vmatprep.subr.mxu0 0.0
        %5032 = vmatpush2.msra.mxu0 0.0
        %5033 = vmatprep.subr.mxu0 0.0
        %5034 = vmatpush2.msra.mxu0 0.0
        %5035 = vmatprep.subr.mxu0 0.0
        %5036 = vmatpush2.msra.mxu0 0.0
        %5037 = vmatprep.subr.mxu0 0.0
        %5038 = vmatpush2.msra.mxu0 0.0
        %5039 = vmatprep.subr.mxu0 0.0
        %5040 = vmatpush2.msra.mxu0 0.0
        %5041 = vmatprep.subr.mxu0 0.0
        %5042 = vmatpush2.msra.mxu0 0.0
        %5043 = vmatprep.subr.mxu0 0.0
        %5044 = vmatpush2.msra.mxu0 0.0
        %5045 = vmatprep.subr.mxu0 0.0
        %5046 = vmatpush2.msra.mxu0 0.0
        %5047 = vmatprep.subr.mxu0 0.0
        %5048 = vmatpush2.msra.mxu0 0.0
        %5049 = vmatprep.subr.mxu0 0.0
        %5050 = vmatpush2.msra.mxu0 0.0
        %5051 = vmatprep.subr.mxu0 0.0
        %5052 = vmatpush2.msra.mxu0 0.0
        %5053 = vmatprep.subr.mxu0 0.0
        %5054 = vmatpush2.msra.mxu0 0.0
        %5055 = vmatprep.subr.mxu0 0.0
        %5056 = vmatpush2.msra.mxu0 0.0
        %5057 = vmatprep.mubr.f32.mxu0 0.0
        %5058 = vmatmul.mubr.f32.gmra.mxu0 %v4991
        %v5059 = vpop.f32.mrf.mxu0
        %v5060 = vadd.f32 0.0, %v5059
        %v5061 = vpop.f32.mrf.mxu0
        %5062 = vdwg.mxu0
        %v5064 = vsel %vm700, %v5060, 0
        %5066 = vmatprep.subr.mxu0 0.0
        %5067 = vmatpush1.msra.mxu0 0.0
        %5068 = vmatprep.subr.mxu0 0.0
        %5069 = vmatpush1.msra.mxu0 0.0
        %5070 = vmatprep.subr.mxu0 0.0
        %5071 = vmatpush1.msra.mxu0 0.0
        %5072 = vmatprep.subr.mxu0 0.0
        %5073 = vmatpush1.msra.mxu0 0.0
        %5074 = vmatprep.subr.mxu0 0.0
        %5075 = vmatpush1.msra.mxu0 0.0
        %5076 = vmatprep.subr.mxu0 0.0
        %5077 = vmatpush1.msra.mxu0 0.0
        %5078 = vmatprep.subr.mxu0 0.0
        %5079 = vmatpush1.msra.mxu0 0.0
        %5080 = vmatprep.subr.mxu0 0.0
        %5081 = vmatpush1.msra.mxu0 0.0
        %5082 = vmatprep.subr.mxu0 0.0
        %5083 = vmatpush1.msra.mxu0 0.0
        %5084 = vmatprep.subr.mxu0 0.0
        %5085 = vmatpush1.msra.mxu0 0.0
        %5086 = vmatprep.subr.mxu0 0.0
        %5087 = vmatpush1.msra.mxu0 0.0
        %5088 = vmatprep.subr.mxu0 0.0
        %5089 = vmatpush1.msra.mxu0 0.0
        %5090 = vmatprep.subr.mxu0 0.0
        %5091 = vmatpush1.msra.mxu0 0.0
        %5092 = vmatprep.subr.mxu0 0.0
        %5093 = vmatpush1.msra.mxu0 0.0
        %5094 = vmatprep.subr.mxu0 0.0
        %5095 = vmatpush1.msra.mxu0 0.0
        %5096 = vmatprep.subr.mxu0 0.0
        %5097 = vmatpush1.msra.mxu0 %v4184
        %5098 = vmatprep.subr.mxu0 0.0
        %5099 = vmatpush2.msra.mxu0 0.0
        %5100 = vmatprep.subr.mxu0 0.0
        %5101 = vmatpush2.msra.mxu0 0.0
        %5102 = vmatprep.subr.mxu0 0.0
        %5103 = vmatpush2.msra.mxu0 0.0
        %5104 = vmatprep.subr.mxu0 0.0
        %5105 = vmatpush2.msra.mxu0 0.0
        %5106 = vmatprep.subr.mxu0 0.0
        %5107 = vmatpush2.msra.mxu0 0.0
        %5108 = vmatprep.subr.mxu0 0.0
        %5109 = vmatpush2.msra.mxu0 0.0
        %5110 = vmatprep.subr.mxu0 0.0
        %5111 = vmatpush2.msra.mxu0 0.0
        %5112 = vmatprep.subr.mxu0 0.0
        %5113 = vmatpush2.msra.mxu0 0.0
        %5114 = vmatprep.subr.mxu0 0.0
        %5115 = vmatpush2.msra.mxu0 0.0
        %5116 = vmatprep.subr.mxu0 0.0
        %5117 = vmatpush2.msra.mxu0 0.0
        %5118 = vmatprep.subr.mxu0 0.0
        %5119 = vmatpush2.msra.mxu0 0.0
        %5120 = vmatprep.subr.mxu0 0.0
        %5121 = vmatpush2.msra.mxu0 0.0
        %5122 = vmatprep.subr.mxu0 0.0
        %5123 = vmatpush2.msra.mxu0 0.0
        %5124 = vmatprep.subr.mxu0 0.0
        %5125 = vmatpush2.msra.mxu0 0.0
        %5126 = vmatprep.subr.mxu0 0.0
        %5127 = vmatpush2.msra.mxu0 0.0
        %5128 = vmatprep.subr.mxu0 0.0
        %5129 = vmatpush2.msra.mxu0 0.0
        %5130 = vmatprep.mubr.f32.mxu0 0.0
        %5131 = vmatmul.mubr.f32.gmra.mxu0 %v5064
        %v5132 = vpop.f32.mrf.mxu0
        %v5133 = vadd.f32 0.0, %v5132
        %v5134 = vpop.f32.mrf.mxu0
        %5135 = vdwg.mxu0
        %v5136 = vadd.f32 %v4897, %v5133
        %v5137 = vadd.f32 %v4009, %v5136
        %s5138 = scalar_lea.vmem %s11, 1
        %v5139 = vld [vmem:[%s5138] sm:$0x1]
        %v5140 = vmul.f32 %v5137, %v5137
        %v5141 = vsel %vm600, %v5140, 0.0
        %5142 = vadd.xlane.f32.xlu0 %v5141
        %v5143 = vpop.xlane.xlu0 %5142
        %v5144 = vmul.f32 %v5143, %v604
        %v5145 = vadd.f32 %v5144, 1e-06
        %v5146 = vrsqrt.pop %v5145
        %v5147 = vmul.f32 %v5137, %v5146
        %v5149 = vlaneseq
        %v5150 = vshrl.u32 %v5149, 7
        %v5151 = vsub.s32 0, %v5150
        %v5152 = vrot.slane %v5139, %v5151
        %v5154 = vmul.f32 %v5147, %v5152
        %s5155 = scalar_lea.vmem %s12, 32
        %v5156 = vld [vmem:[%s5155] sm:$0xff]
        %v5157 = vld [vmem:[%s5155 + $0x8] sm:$0xff]
        %v5158 = vld [vmem:[%s5155 + $0x10] sm:$0xff]
        %v5159 = vld [vmem:[%s5155 + $0x18] sm:$0xff]
        %v5161 = vsel %vm600, %v5154, 0
        %5163 = vmatprep.subr.mxu0 0.0
        %5164 = vmatpush1.msra.mxu0 0.0
        %5165 = vmatprep.subr.mxu0 0.0
        %5166 = vmatpush1.msra.mxu0 0.0
        %5167 = vmatprep.subr.mxu0 0.0
        %5168 = vmatpush1.msra.mxu0 0.0
        %5169 = vmatprep.subr.mxu0 0.0
        %5170 = vmatpush1.msra.mxu0 0.0
        %5171 = vmatprep.subr.mxu0 0.0
        %5172 = vmatpush1.msra.mxu0 0.0
        %5173 = vmatprep.subr.mxu0 0.0
        %5174 = vmatpush1.msra.mxu0 0.0
        %5175 = vmatprep.subr.mxu0 0.0
        %5176 = vmatpush1.msra.mxu0 0.0
        %5177 = vmatprep.subr.mxu0 0.0
        %5178 = vmatpush1.msra.mxu0 0.0
        %5179 = vmatprep.subr.mxu0 0.0
        %5180 = vmatpush1.msra.mxu0 0.0
        %5181 = vmatprep.subr.mxu0 0.0
        %5182 = vmatpush1.msra.mxu0 0.0
        %5183 = vmatprep.subr.mxu0 0.0
        %5184 = vmatpush1.msra.mxu0 0.0
        %5185 = vmatprep.subr.mxu0 0.0
        %5186 = vmatpush1.msra.mxu0 0.0
        %5187 = vmatprep.subr.mxu0 0.0
        %5188 = vmatpush1.msra.mxu0 %v5159
        %5189 = vmatprep.subr.mxu0 0.0
        %5190 = vmatpush1.msra.mxu0 %v5158
        %5191 = vmatprep.subr.mxu0 0.0
        %5192 = vmatpush1.msra.mxu0 %v5157
        %5193 = vmatprep.subr.mxu0 0.0
        %5194 = vmatpush1.msra.mxu0 %v5156
        %5195 = vmatprep.subr.mxu0 0.0
        %5196 = vmatpush2.msra.mxu0 0.0
        %5197 = vmatprep.subr.mxu0 0.0
        %5198 = vmatpush2.msra.mxu0 0.0
        %5199 = vmatprep.subr.mxu0 0.0
        %5200 = vmatpush2.msra.mxu0 0.0
        %5201 = vmatprep.subr.mxu0 0.0
        %5202 = vmatpush2.msra.mxu0 0.0
        %5203 = vmatprep.subr.mxu0 0.0
        %5204 = vmatpush2.msra.mxu0 0.0
        %5205 = vmatprep.subr.mxu0 0.0
        %5206 = vmatpush2.msra.mxu0 0.0
        %5207 = vmatprep.subr.mxu0 0.0
        %5208 = vmatpush2.msra.mxu0 0.0
        %5209 = vmatprep.subr.mxu0 0.0
        %5210 = vmatpush2.msra.mxu0 0.0
        %5211 = vmatprep.subr.mxu0 0.0
        %5212 = vmatpush2.msra.mxu0 0.0
        %5213 = vmatprep.subr.mxu0 0.0
        %5214 = vmatpush2.msra.mxu0 0.0
        %5215 = vmatprep.subr.mxu0 0.0
        %5216 = vmatpush2.msra.mxu0 0.0
        %5217 = vmatprep.subr.mxu0 0.0
        %5218 = vmatpush2.msra.mxu0 0.0
        %5219 = vmatprep.subr.mxu0 0.0
        %5220 = vmatpush2.msra.mxu0 0.0
        %5221 = vmatprep.subr.mxu0 0.0
        %5222 = vmatpush2.msra.mxu0 0.0
        %5223 = vmatprep.subr.mxu0 0.0
        %5224 = vmatpush2.msra.mxu0 0.0
        %5225 = vmatprep.subr.mxu0 0.0
        %5226 = vmatpush2.msra.mxu0 0.0
        %5227 = vmatprep.mubr.f32.mxu0 0.0
        %5228 = vmatmul.mubr.f32.gmra.mxu0 %v5161
        %v5229 = vpop.f32.mrf.mxu0
        %v5230 = vadd.f32 0.0, %v5229
        %v5231 = vpop.f32.mrf.mxu0
        %5232 = vdwg.mxu0
        %v5233 = vmax.f32 %v5230, 0.0
        %s5234 = scalar_lea.vmem %s13, 64
        %v5235 = vld [vmem:[%s5234] sm:$0xff]
        %v5236 = vld [vmem:[%s5234 + $0x8] sm:$0xff]
        %v5237 = vld [vmem:[%s5234 + $0x10] sm:$0xff]
        %v5238 = vld [vmem:[%s5234 + $0x18] sm:$0xff]
        %v5239 = vld [vmem:[%s5234 + $0x20] sm:$0xff]
        %v5240 = vld [vmem:[%s5234 + $0x28] sm:$0xff]
        %v5241 = vld [vmem:[%s5234 + $0x30] sm:$0xff]
        %v5242 = vld [vmem:[%s5234 + $0x38] sm:$0xff]
        %v5244 = vsel %vm2881, %v5233, 0
        %5246 = vmatprep.subr.mxu0 0.0
        %5247 = vmatpush1.msra.mxu0 0.0
        %5248 = vmatprep.subr.mxu0 0.0
        %5249 = vmatpush1.msra.mxu0 0.0
        %5250 = vmatprep.subr.mxu0 0.0
        %5251 = vmatpush1.msra.mxu0 0.0
        %5252 = vmatprep.subr.mxu0 0.0
        %5253 = vmatpush1.msra.mxu0 0.0
        %5254 = vmatprep.subr.mxu0 0.0
        %5255 = vmatpush1.msra.mxu0 0.0
        %5256 = vmatprep.subr.mxu0 0.0
        %5257 = vmatpush1.msra.mxu0 0.0
        %5258 = vmatprep.subr.mxu0 0.0
        %5259 = vmatpush1.msra.mxu0 0.0
        %5260 = vmatprep.subr.mxu0 0.0
        %5261 = vmatpush1.msra.mxu0 0.0
        %5262 = vmatprep.subr.mxu0 0.0
        %5263 = vmatpush1.msra.mxu0 %v5242
        %5264 = vmatprep.subr.mxu0 0.0
        %5265 = vmatpush1.msra.mxu0 %v5241
        %5266 = vmatprep.subr.mxu0 0.0
        %5267 = vmatpush1.msra.mxu0 %v5240
        %5268 = vmatprep.subr.mxu0 0.0
        %5269 = vmatpush1.msra.mxu0 %v5239
        %5270 = vmatprep.subr.mxu0 0.0
        %5271 = vmatpush1.msra.mxu0 %v5238
        %5272 = vmatprep.subr.mxu0 0.0
        %5273 = vmatpush1.msra.mxu0 %v5237
        %5274 = vmatprep.subr.mxu0 0.0
        %5275 = vmatpush1.msra.mxu0 %v5236
        %5276 = vmatprep.subr.mxu0 0.0
        %5277 = vmatpush1.msra.mxu0 %v5235
        %5278 = vmatprep.subr.mxu0 0.0
        %5279 = vmatpush2.msra.mxu0 0.0
        %5280 = vmatprep.subr.mxu0 0.0
        %5281 = vmatpush2.msra.mxu0 0.0
        %5282 = vmatprep.subr.mxu0 0.0
        %5283 = vmatpush2.msra.mxu0 0.0
        %5284 = vmatprep.subr.mxu0 0.0
        %5285 = vmatpush2.msra.mxu0 0.0
        %5286 = vmatprep.subr.mxu0 0.0
        %5287 = vmatpush2.msra.mxu0 0.0
        %5288 = vmatprep.subr.mxu0 0.0
        %5289 = vmatpush2.msra.mxu0 0.0
        %5290 = vmatprep.subr.mxu0 0.0
        %5291 = vmatpush2.msra.mxu0 0.0
        %5292 = vmatprep.subr.mxu0 0.0
        %5293 = vmatpush2.msra.mxu0 0.0
        %5294 = vmatprep.subr.mxu0 0.0
        %5295 = vmatpush2.msra.mxu0 0.0
        %5296 = vmatprep.subr.mxu0 0.0
        %5297 = vmatpush2.msra.mxu0 0.0
        %5298 = vmatprep.subr.mxu0 0.0
        %5299 = vmatpush2.msra.mxu0 0.0
        %5300 = vmatprep.subr.mxu0 0.0
        %5301 = vmatpush2.msra.mxu0 0.0
        %5302 = vmatprep.subr.mxu0 0.0
        %5303 = vmatpush2.msra.mxu0 0.0
        %5304 = vmatprep.subr.mxu0 0.0
        %5305 = vmatpush2.msra.mxu0 0.0
        %5306 = vmatprep.subr.mxu0 0.0
        %5307 = vmatpush2.msra.mxu0 0.0
        %5308 = vmatprep.subr.mxu0 0.0
        %5309 = vmatpush2.msra.mxu0 0.0
        %5310 = vmatprep.mubr.f32.mxu0 0.0
        %5311 = vmatmul.mubr.f32.gmra.mxu0 %v5244
        %v5312 = vpop.f32.mrf.mxu0
        %v5313 = vadd.f32 0.0, %v5312
        %v5314 = vpop.f32.mrf.mxu0
        %5315 = vdwg.mxu0
        %v5316 = vadd.f32 %v5137, %v5313
        %v5317 = vld [vmem:[%s14] sm:$0x1]
        %v5318 = vmul.f32 %v5316, %v5316
        %v5319 = vsel %vm600, %v5318, 0.0
        %5320 = vadd.xlane.f32.xlu0 %v5319
        %v5321 = vpop.xlane.xlu0 %5320
        %v5322 = vmul.f32 %v5321, %v604
        %v5323 = vadd.f32 %v5322, 1e-06
        %v5324 = vrsqrt.pop %v5323
        %v5325 = vmul.f32 %v5316, %v5324
        %v5327 = vlaneseq
        %v5328 = vshrl.u32 %v5327, 7
        %v5329 = vsub.s32 0, %v5328
        %v5330 = vrot.slane %v5317, %v5329
        %v5332 = vmul.f32 %v5325, %v5330
        %v5333 = vld [vmem:[%s15] sm:$0xff]
        %v5334 = vld [vmem:[%s15 + $0x8] sm:$0xff]
        %v5335 = vld [vmem:[%s15 + $0x10] sm:$0xff]
        %v5336 = vld [vmem:[%s15 + $0x18] sm:$0xff]
        %v5338 = vsel %vm600, %v5332, 0
        %5340 = vmatprep.subr.mxu0 0.0
        %5341 = vmatpush1.msra.mxu0 0.0
        %5342 = vmatprep.subr.mxu0 0.0
        %5343 = vmatpush1.msra.mxu0 0.0
        %5344 = vmatprep.subr.mxu0 0.0
        %5345 = vmatpush1.msra.mxu0 0.0
        %5346 = vmatprep.subr.mxu0 0.0
        %5347 = vmatpush1.msra.mxu0 0.0
        %5348 = vmatprep.subr.mxu0 0.0
        %5349 = vmatpush1.msra.mxu0 0.0
        %5350 = vmatprep.subr.mxu0 0.0
        %5351 = vmatpush1.msra.mxu0 0.0
        %5352 = vmatprep.subr.mxu0 0.0
        %5353 = vmatpush1.msra.mxu0 0.0
        %5354 = vmatprep.subr.mxu0 0.0
        %5355 = vmatpush1.msra.mxu0 0.0
        %5356 = vmatprep.subr.mxu0 0.0
        %5357 = vmatpush1.msra.mxu0 0.0
        %5358 = vmatprep.subr.mxu0 0.0
        %5359 = vmatpush1.msra.mxu0 0.0
        %5360 = vmatprep.subr.mxu0 0.0
        %5361 = vmatpush1.msra.mxu0 0.0
        %5362 = vmatprep.subr.mxu0 0.0
        %5363 = vmatpush1.msra.mxu0 0.0
        %5364 = vmatprep.subr.mxu0 0.0
        %5365 = vmatpush1.msra.mxu0 %v5336
        %5366 = vmatprep.subr.mxu0 0.0
        %5367 = vmatpush1.msra.mxu0 %v5335
        %5368 = vmatprep.subr.mxu0 0.0
        %5369 = vmatpush1.msra.mxu0 %v5334
        %5370 = vmatprep.subr.mxu0 0.0
        %5371 = vmatpush1.msra.mxu0 %v5333
        %5372 = vmatprep.subr.mxu0 0.0
        %5373 = vmatpush2.msra.mxu0 0.0
        %5374 = vmatprep.subr.mxu0 0.0
        %5375 = vmatpush2.msra.mxu0 0.0
        %5376 = vmatprep.subr.mxu0 0.0
        %5377 = vmatpush2.msra.mxu0 0.0
        %5378 = vmatprep.subr.mxu0 0.0
        %5379 = vmatpush2.msra.mxu0 0.0
        %5380 = vmatprep.subr.mxu0 0.0
        %5381 = vmatpush2.msra.mxu0 0.0
        %5382 = vmatprep.subr.mxu0 0.0
        %5383 = vmatpush2.msra.mxu0 0.0
        %5384 = vmatprep.subr.mxu0 0.0
        %5385 = vmatpush2.msra.mxu0 0.0
        %5386 = vmatprep.subr.mxu0 0.0
        %5387 = vmatpush2.msra.mxu0 0.0
        %5388 = vmatprep.subr.mxu0 0.0
        %5389 = vmatpush2.msra.mxu0 0.0
        %5390 = vmatprep.subr.mxu0 0.0
        %5391 = vmatpush2.msra.mxu0 0.0
        %5392 = vmatprep.subr.mxu0 0.0
        %5393 = vmatpush2.msra.mxu0 0.0
        %5394 = vmatprep.subr.mxu0 0.0
        %5395 = vmatpush2.msra.mxu0 0.0
        %5396 = vmatprep.subr.mxu0 0.0
        %5397 = vmatpush2.msra.mxu0 0.0
        %5398 = vmatprep.subr.mxu0 0.0
        %5399 = vmatpush2.msra.mxu0 0.0
        %5400 = vmatprep.subr.mxu0 0.0
        %5401 = vmatpush2.msra.mxu0 0.0
        %5402 = vmatprep.subr.mxu0 0.0
        %5403 = vmatpush2.msra.mxu0 0.0
        %5404 = vmatprep.mubr.f32.mxu0 0.0
        %5405 = vmatmul.mubr.f32.gmra.mxu0 %v5338
        %v5406 = vpop.f32.mrf.mxu0
        %v5407 = vadd.f32 0.0, %v5406
        %v5408 = vpop.f32.mrf.mxu0
        %5409 = vdwg.mxu0
        %5410 = vst [vmem:[%s566] sm:$0xff] %v5407
        %v5411 = vld [vmem:[%s584] sm:$0xff]
        %v5412 = vlaneseq
        %v5413 = vand.u32 %v5412, 127
        %vm5414 = vcmp.lt.s32.totalorder %v5413, 64
        %v5415 = vsel %vm5414, %v5407, -1e+09
        %5416 = vmax.xlane.f32.xlu0 %v5415
        %v5417 = vpop.xlane.xlu0 %5416
        %v5418 = vsub.f32 %v5415, %v5417
        %v5419 = vmul.f32 %v5418, 1.442695
        %v5420 = vpow.pop %v5419
        %5421 = vadd.xlane.f32.xlu0 %v5420
        %v5422 = vpop.xlane.xlu0 %5421
        %v5423 = vlog2.pop %v5422
        %v5424 = vmul.f32 %v5423, 0.6931472
        %v5425 = vadd.f32 %v5424, %v5417
        %5426 = vset.pattern.permute.xlu0 0
        %5427 = vperm.xlu0 %5426, %v5411
        %v5428 = vpop.permute.xlu0 %5427
        %vm5429 = vcmp.eq.s32.totalorder %v5413, %v5428
        %v5430 = vsel %vm5429, %v5407, 0.0
        %5431 = vadd.xlane.f32.xlu0 %v5430
        %v5432 = vpop.xlane.xlu0 %5431
        %vm5433 = vcmp.ne.s32.totalorder %v5411, 4294967196
        %v5434 = vsel %vm5433, 1, 0
        %v5435 = vcvt.s32.f32 %v5434
        %v5436 = vsub.f32 %v5425, %v5432
        %v5437 = vmul.f32 %v5436, %v5435
        %vm5438 = vcmask 7168
        %5439 = vst.msk [vmem:[%s588] sm:$0xff] %vm5438, %v5437
        %s5440 = sand.u32 %s391, 1
        %s5441 = scalar_lea.sflag [#allocation3], %s5440
        %s5442 = sand.u32 %s391, 1
        %s5443 = smul.addr %s5442, 8
        %s5444 = scalar_lea.vmem [#allocation2], %s5443
        %p5445 = scmp.lt.s32.totalorder %s32, 1
        %s5446 = scalar_select %p5445, %s32, 1
        %s5447 = smul.addr %s5446, 8
        %s5448 = scalar_lea.vmem %s17, %s5447
        // Predicated region
        $region85: #{clip_dsi_decoder_forward.3} parent=83 // pred_check
          %p5449 = pneg %p401
        $region86: #{clip_dsi_decoder_forward.3} parent=83 // pred_check_branch
          %5451 = sbr.rel (%p5449) target = $region88
        $region87: #{clip_dsi_decoder_forward.3} parent=83 // pred_region
          %s5453 = ssub.s32 128, 128
          %5454 = vsyncadd %s5441, %s5453
          %s5455 = smul.addr %s32, 128
          %s5456 = scalar_lea.hbm %s16, %s5455
          %s5458 = sshll.u32 %s5444, 4
          %s5459 = int_to_ptr.vmem [resolvable:$true] %s5458
          %5461 = dma.vmem_to_hbm [thread:$0]  %s5459, 128, %s5456, %s5441
        $region88: #{clip_dsi_decoder_forward.3} parent=83 // pred_fallthru
          _
        // Predicated region
        $region89: #{clip_dsi_decoder_forward.3} parent=83 // pred_check
          %p5462 = pneg %p427
        $region90: #{clip_dsi_decoder_forward.3} parent=83 // pred_check_branch
          %5464 = sbr.rel (%p5462) target = $region92
        $region91: #{clip_dsi_decoder_forward.3} parent=83 // pred_region
          _
        $region92: #{clip_dsi_decoder_forward.3} parent=83 // pred_fallthru
          _
      $region84: #{clip_dsi_decoder_forward.3} parent=5 // pred_fallthru
        _
      %p5465 = scmp.le.s32.totalorder 2, %s27
      // Predicated region
      $region93: #{clip_dsi_decoder_forward.3} parent=5 // pred_check
        %p5466 = pneg %p5465
      $region94: #{clip_dsi_decoder_forward.3} parent=5 // pred_check_branch
        %5468 = sbr.rel (%p5466) target = $region96
      $region95: #{clip_dsi_decoder_forward.3} parent=5 // pred_region
        %s5469 = ssub.s32 %s27, 2
        // Predicated region
        $region97: #{clip_dsi_decoder_forward.3} parent=95 // pred_check
          %p5470 = pneg %p407
        $region98: #{clip_dsi_decoder_forward.3} parent=95 // pred_check_branch
          %5472 = sbr.rel (%p5470) target = $region100
        $region99: #{clip_dsi_decoder_forward.3} parent=95 // pred_region
          %s5473 = sand.u32 %s392, 1
          %s5474 = scalar_lea.sflag [#allocation3], %s5473
          %s5475 = sand.u32 %s392, 1
          %s5476 = smul.addr %s5475, 8
          %s5477 = scalar_lea.vmem [#allocation2], %s5476
          %5478 = dma.done %s5474, 128
        $region100: #{clip_dsi_decoder_forward.3} parent=95 // pred_fallthru
          _
        // Predicated region
        $region101: #{clip_dsi_decoder_forward.3} parent=95 // pred_check
          %p5479 = pneg %p433
        $region102: #{clip_dsi_decoder_forward.3} parent=95 // pred_check_branch
          %5481 = sbr.rel (%p5479) target = $region104
        $region103: #{clip_dsi_decoder_forward.3} parent=95 // pred_region
          %p5482 = scmp.lt.s32.totalorder %s33, 1
          %s5483 = scalar_select %p5482, %s33, 1
          %s5484 = smul.addr %s5483, 8
          %s5485 = scalar_lea.vmem %s17, %s5484
        $region104: #{clip_dsi_decoder_forward.3} parent=95 // pred_fallthru
          _
      $region96: #{clip_dsi_decoder_forward.3} parent=5 // pred_fallthru
        _
    $region6: #{clip_dsi_decoder_forward.3} parent=1 // loop_footer
      %s31 = sadd.s32 1, %s27
    $region7: #{clip_dsi_decoder_forward.3} parent=1 // loop_footer_branch
      %26 = sbr.rel target = $region3
    $region8: #{clip_dsi_decoder_forward.3} parent=1 // loop_exit
      _
    %5486 = vsyncpa [#allocation3], 1
    %s5487 = scalar_lea.sflag [#allocation3], 1
    %5488 = vsyncpa %s5487, 1

</llo_original>
